<compile_context>
chip_gen: v7x
topology: tpu7x:2x2x1
jax: 0.10.0
libtpu: 0.0.40
codegen_flags: <defaults>
</compile_context>

<pallas_src>
import functools

import jax
import jax.numpy as jnp
from jax.experimental import pallas as pl
from jax.experimental.pallas import tpu as pltpu


def _rup(x, m):
    return ((x + m - 1) // m) * m


# ------------------------------------------------------------------
# Fused matmul kernel:
#   out = post_act( act( A*scale + shift ) @ B + bias )
# f32 accumulation in a VMEM scratch tile; bf16/f32 output written only in the
# last-K epilogue.
# ------------------------------------------------------------------

def _mm_kernel(*refs, pre_act, post_act, has_affine, has_bias):
    it = iter(refs)
    a_ref = next(it)
    b_ref = next(it)
    scale_ref = next(it) if has_affine else None
    shift_ref = next(it) if has_affine else None
    bias_ref = next(it) if has_bias else None
    o_ref = next(it)
    acc_ref = next(it)

    k = pl.program_id(2)

    a = a_ref[...]                                   # bf16 tile
    if has_affine:                                   # deferred BatchNorm affine
        a = a.astype(jnp.float32) * scale_ref[...] + shift_ref[...]
    if pre_act == "leaky_relu":
        a = jnp.where(a >= 0, a, a * 0.2)
    elif pre_act == "relu":
        a = jnp.maximum(a, 0)
    a = a.astype(jnp.bfloat16)

    part = jnp.dot(a, b_ref[...], preferred_element_type=jnp.float32)

    @pl.when(k == 0)
    def _():
        acc_ref[...] = part                          # assign, no zero-init RMW

    @pl.when(k > 0)
    def _():
        acc_ref[...] += part

    @pl.when(k == pl.num_programs(2) - 1)
    def _():
        y = acc_ref[...]
        if has_bias:
            y = y + bias_ref[...]
        if post_act == "tanh":
            y = jnp.tanh(y)
        o_ref[...] = y.astype(o_ref.dtype)


def _a_block_spec(tm, tk, deep):
    if deep:
        try:
            return pl.BlockSpec((tm, tk), lambda i, j, k: (i, k),
                                pipeline_mode=pl.Buffered(3))
        except Exception:   # pipeline_mode unavailable -> default double buffer
            pass
    return pl.BlockSpec((tm, tk), lambda i, j, k: (i, k))


def pallas_matmul(a, b, *, scale=None, shift=None, bias=None,
                  pre_act="none", post_act="none", out_dtype=jnp.bfloat16):
    """a: (M, K), b: (K, N) -> (M, N) in out_dtype (bf16 by default)."""
    M, K = a.shape
    K2, N = b.shape
    assert K == K2

    # Large tiles; pad M up instead of shrinking the tile for awkward sizes.
    tm = min(512, _rup(M, 16))
    Mp = _rup(M, tm)
    tn = min(512, _rup(N, 128))
    Np = _rup(N, tn)
    Kp = _rup(K, 128)
    if Kp <= 1024:
        tk = Kp                                    # single K step when it fits
    else:
        tk = 0
        for t in (1024, 768, 512, 384, 256):
            if Kp % t == 0:
                tk = t
                break
        if tk == 0:
            tk = 512
            Kp = _rup(K, 512)
    nk = Kp // tk

    a_p = a.astype(jnp.bfloat16)
    if (Mp, Kp) != (M, K):
        a_p = jnp.pad(a_p, ((0, Mp - M), (0, Kp - K)))
    b_p = b.astype(jnp.bfloat16)
    if (Kp, Np) != (K, N):
        b_p = jnp.pad(b_p, ((0, Kp - K), (0, Np - N)))

    has_affine = scale is not None
    has_bias = bias is not None

    inputs = [a_p, b_p]
    in_specs = [_a_block_spec(tm, tk, deep=(nk <= 2 and Mp // tm >= 2)),
                pl.BlockSpec((tk, tn), lambda i, j, k: (k, j))]
    if has_affine:
        sc = jnp.pad(scale.astype(jnp.float32).reshape(1, K),
                     ((0, 0), (0, Kp - K)))
        sh = jnp.pad(shift.astype(jnp.float32).reshape(1, K),
                     ((0, 0), (0, Kp - K)))
        inputs += [sc, sh]
        in_specs += [pl.BlockSpec((1, tk), lambda i, j, k: (0, k)),
                     pl.BlockSpec((1, tk), lambda i, j, k: (0, k))]
    if has_bias:
        bs = jnp.pad(bias.astype(jnp.float32).reshape(1, N),
                     ((0, 0), (0, Np - N)))
        inputs.append(bs)
        in_specs.append(pl.BlockSpec((1, tn), lambda i, j, k: (0, j)))

    out = pl.pallas_call(
        functools.partial(_mm_kernel, pre_act=pre_act, post_act=post_act,
                          has_affine=has_affine, has_bias=has_bias),
        out_shape=jax.ShapeDtypeStruct((Mp, Np), out_dtype),
        grid_spec=pltpu.PrefetchScalarGridSpec(
            num_scalar_prefetch=0,
            grid=(Mp // tm, Np // tn, nk),
            in_specs=in_specs,
            out_specs=pl.BlockSpec((tm, tn), lambda i, j, k: (i, j)),
            scratch_shapes=[pltpu.VMEM((tm, tn), jnp.float32)]),
        compiler_params=pltpu.CompilerParams(
            dimension_semantics=("parallel", "parallel", "arbitrary")),
    )(*inputs)
    if (Mp, Np) != (M, N):
        # TODO(synk): could keep channels 128-padded end-to-end to skip this
        #             slice + re-pad (needs padded gamma/beta/weight rows).
        out = out[:M, :N]
    return out


# ------------------------------------------------------------------
# BatchNorm2d (training-mode batch statistics): one row-tiled stats reduction.
# The per-channel affine is returned and fused into the consuming matmul.
# ------------------------------------------------------------------

def _bn_stats_kernel(x_ref, o_ref):
    @pl.when(pl.program_id(0) == 0)
    def _():
        o_ref[...] = jnp.zeros_like(o_ref)
    x = x_ref[...].astype(jnp.float32)
    s = jnp.sum(x, axis=0, keepdims=True)
    sq = jnp.sum(x * x, axis=0, keepdims=True)
    o_ref[...] += jnp.concatenate([s, sq], axis=0)


def bn_scale_shift(x_nhwc, gamma, beta, eps=1e-5):
    """Batch statistics over (N, H, W) per channel -> (scale, shift)."""
    N, H, W, C = x_nhwc.shape
    R = N * H * W
    Cp = _rup(C, 128)
    tr = min(1024, _rup(R, 16))
    Rp = _rup(R, tr)
    x2 = x_nhwc.reshape(R, C)
    if (Rp, Cp) != (R, C):
        x2 = jnp.pad(x2, ((0, Rp - R), (0, Cp - C)))

    stats = pl.pallas_call(
        _bn_stats_kernel,
        out_shape=jax.ShapeDtypeStruct((2, Cp), jnp.float32),
        grid_spec=pltpu.PrefetchScalarGridSpec(
            num_scalar_prefetch=0,
            grid=(Rp // tr,),
            in_specs=[pl.BlockSpec((tr, Cp), lambda i: (i, 0))],
            out_specs=pl.BlockSpec((2, Cp), lambda i: (0, 0))),
        compiler_params=pltpu.CompilerParams(
            dimension_semantics=("arbitrary",)),
    )(x2)

    s = stats[0, :C]
    sq = stats[1, :C]
    mean = s / R
    # TODO(synk): E[x^2]-E[x]^2 can cancel for large-mean activations; a
    #             centered second pass would be more robust but costs a reread.
    var = jnp.maximum(sq / R - mean * mean, 0.0)     # biased var (train mode)
    scale = gamma * jax.lax.rsqrt(var + eps)
    shift = beta - mean * scale
    return scale, shift


# ------------------------------------------------------------------
# Conv / ConvTranspose built on the fused Pallas matmul.
# Activations are lists of channel groups (x_bf16, scale|None, shift|None);
# the skip concat is just Python list concatenation (never materialized).
# ------------------------------------------------------------------

def _pad_group(x, scale, shift):
    """Spatial pad by 1.  Groups carrying a deferred BN affine are padded with
    the per-channel value that the fused affine maps back to 0, preserving the
    conv's zero-padding semantics (act(0) == 0 for ReLU / LeakyReLU)."""
    N, H, W, C = x.shape
    if scale is None:
        return jnp.pad(x, ((0, 0), (1, 1), (1, 1), (0, 0)))
    pad_val = jnp.where(scale != 0, -shift / scale, 0.0).astype(x.dtype)
    xp = jnp.broadcast_to(pad_val.reshape(1, 1, 1, C), (N, H + 2, W + 2, C))
    return jax.lax.dynamic_update_slice(xp, x, (0, 1, 1, 0))


def _affine_k(groups, reps):
    """Per-K-column (tap-major, then channel) scale/shift for the fused BN."""
    if not any(sc is not None for (_, sc, _) in groups):
        return None, None
    scs, shs = [], []
    for (x, sc, sh) in groups:
        C = x.shape[-1]
        scs.append(sc if sc is not None else jnp.ones((C,), jnp.float32))
        shs.append(sh if sh is not None else jnp.zeros((C,), jnp.float32))
    sc1 = jnp.concatenate(scs)
    sh1 = jnp.concatenate(shs)
    return jnp.tile(sc1, reps), jnp.tile(sh1, reps)


def conv_down(groups, w, pre_act="none"):
    """[deferred BN ->] pre_act -> Conv2d(k=4, stride=2, pad=1, bias=False).
    groups: list of (x NHWC bf16, scale, shift).  w: (Cout, Cin_total, 4, 4)."""
    N, H, W, _ = groups[0][0].shape
    Cout = w.shape[0]
    Ho, Wo = H // 2, W // 2
    padded = [_pad_group(x, sc, sh) for (x, sc, sh) in groups]
    # TODO(synk): im2col patch gather is plain-JAX glue (16x activation bytes);
    #             an in-kernel implicit-GEMM gather would cut this HBM traffic.
    cols = []
    for kh in range(4):
        for kw in range(4):
            for xp in padded:
                cols.append(xp[:, kh:kh + 2 * Ho:2, kw:kw + 2 * Wo:2, :])
    patches = jnp.concatenate(cols, axis=-1).reshape(N * Ho * Wo, -1)
    wmat = jnp.transpose(w, (2, 3, 1, 0)).reshape(-1, Cout)
    scale_k, shift_k = _affine_k(groups, reps=16)
    y = pallas_matmul(patches, wmat, scale=scale_k, shift=shift_k,
                      pre_act=pre_act)
    return y.reshape(N, Ho, Wo, Cout)


def conv_transpose_up(groups, w, bias=None, pre_act="relu", post_act="none",
                      out_dtype=jnp.bfloat16):
    """[deferred BN ->] pre_act -> ConvTranspose2d(k=4, s=2, p=1) [+bias, act].
    groups: channel groups as in conv_down.  w: (Cin_total, Cout, 4, 4).
    All 4 sub-pixel phases come from ONE matmul: a shared 9-shift patch matrix
    times a (9*Cin, 4*Cout) weight, then a single phase interleave."""
    N, H, W, _ = groups[0][0].shape
    Cin, Cout = w.shape[0], w.shape[1]
    padded = [_pad_group(x, sc, sh) for (x, sc, sh) in groups]
    cols = []
    for dh in range(3):
        for dw in range(3):
            for xp in padded:
                cols.append(xp[:, dh:dh + H, dw:dw + W, :])
    patches = jnp.concatenate(cols, axis=-1).reshape(N * H * W, -1)

    # TODO(synk): only 4 of the 9 shifts feed each output phase, so this fused
    #             weight carries ~2.25x structurally-zero K work; a per-phase K
    #             (prefetched tap table) would remove it at the cost of extra
    #             A-tile reads.
    taps = []
    for dh in range(3):
        for dw in range(3):
            blk = []
            for ph in range(2):
                for pw in range(2):
                    kh = 3 + ph - 2 * dh
                    kw = 3 + pw - 2 * dw
                    if 0 <= kh < 4 and 0 <= kw < 4:
                        blk.append(w[:, :, kh, kw])
                    else:
                        blk.append(jnp.zeros((Cin, Cout), w.dtype))
            taps.append(jnp.concatenate(blk, axis=1))         # (Cin, 4*Cout)
    wbig = jnp.concatenate(taps, axis=0)                      # (9*Cin, 4*Cout)

    scale_k, shift_k = _affine_k(groups, reps=9)
    bias_big = jnp.tile(bias, 4) if bias is not None else None
    y = pallas_matmul(patches, wbig, scale=scale_k, shift=shift_k,
                      bias=bias_big, pre_act=pre_act, post_act=post_act,
                      out_dtype=out_dtype)                    # (N*H*W, 4*Cout)
    y = y.reshape(N, H, W, 2, 2, Cout).transpose(0, 1, 3, 2, 4, 5)
    return y.reshape(N, 2 * H, 2 * W, Cout)


# ------------------------------------------------------------------
# UnetGenerator structure
# ------------------------------------------------------------------

def init_unet_params(key, input_nc, output_nc, num_downs, ngf):
    cfgs = [dict(kind="innermost", outer=ngf * 8, inner=ngf * 8, inp=ngf * 8)]
    for _ in range(num_downs - 5):
        cfgs.append(dict(kind="middle", outer=ngf * 8, inner=ngf * 8, inp=ngf * 8))
    for mo, mi in ((4, 8), (2, 4), (1, 2)):
        cfgs.append(dict(kind="middle", outer=ngf * mo, inner=ngf * mi, inp=ngf * mo))
    cfgs.append(dict(kind="outermost", outer=output_nc, inner=ngf, inp=input_nc))

    blocks = []
    for c in cfgs:
        key, k0, k1, k2, k3, k4, k5 = jax.random.split(key, 7)
        p = dict(kind=c["kind"])
        p["down_w"] = 0.02 * jax.random.normal(
            k0, (c["inner"], c["inp"], 4, 4), jnp.float32)
        up_in = c["inner"] if c["kind"] == "innermost" else c["inner"] * 2
        p["up_w"] = 0.02 * jax.random.normal(
            k1, (up_in, c["outer"], 4, 4), jnp.float32)
        if c["kind"] == "outermost":
            p["up_bias"] = 0.02 * jax.random.normal(k2, (c["outer"],), jnp.float32)
        else:
            p["up_g"] = 1.0 + 0.02 * jax.random.normal(k3, (c["outer"],), jnp.float32)
            p["up_b"] = 0.02 * jax.random.normal(k4, (c["outer"],), jnp.float32)
        if c["kind"] == "middle":
            p["dn_g"] = 1.0 + 0.02 * jax.random.normal(k5, (c["inner"],), jnp.float32)
            p["dn_b"] = 0.02 * jax.random.normal(k2, (c["inner"],), jnp.float32)
        blocks.append(p)
    blocks.reverse()   # outermost first
    return blocks


def run_block(blocks, i, groups):
    p = blocks[i]
    kind = p["kind"]
    if kind == "outermost":
        h = conv_down(groups, p["down_w"], pre_act="none")
        sub = run_block(blocks, i + 1, [(h, None, None)])
        # ReLU + child's deferred BN fused as pre-act; bias + Tanh in epilogue.
        return conv_transpose_up(sub, p["up_w"], bias=p["up_bias"],
                                 pre_act="relu", post_act="tanh",
                                 out_dtype=jnp.float32)
    if kind == "innermost":
        h = conv_down(groups, p["down_w"], pre_act="leaky_relu")
        t = conv_transpose_up([(h, None, None)], p["up_w"], pre_act="relu")
        sc, sh = bn_scale_shift(t, p["up_g"], p["up_b"])
        return groups + [(t, sc, sh)]                 # skip concat = list concat
    # middle block
    c = conv_down(groups, p["down_w"], pre_act="leaky_relu")
    dsc, dsh = bn_scale_shift(c, p["dn_g"], p["dn_b"])       # BN apply deferred
    sub = run_block(blocks, i + 1, [(c, dsc, dsh)])
    t = conv_transpose_up(sub, p["up_w"], pre_act="relu")
    usc, ush = bn_scale_shift(t, p["up_g"], p["up_b"])       # BN apply deferred
    return groups + [(t, usc, ush)]


def unet_forward(blocks, x_nchw):
    x = jnp.transpose(x_nchw, (0, 2, 3, 1)).astype(jnp.bfloat16)  # NCHW -> NHWC
    y = run_block(blocks, 0, [(x, None, None)])
    return jnp.transpose(y, (0, 3, 1, 2))                         # NHWC -> NCHW


# TODO(synk): nn.Dropout path unused (use_dropout=False default); not implemented.

if __name__ == "__main__":
    key = jax.random.PRNGKey(0)
    input_nc, output_nc, num_downs, ngf = 3, 1, 5, 8
    N, H, W = 2, 32, 32                 # 5 stride-2 downs: 32 -> 1 at bottleneck

    pkey, xkey = jax.random.split(key)
    blocks = init_unet_params(pkey, input_nc, output_nc, num_downs, ngf)
    x = jax.random.normal(xkey, (N, input_nc, H, W), jnp.float32)

    fwd = jax.jit(lambda inp: unet_forward(blocks, inp))
    y = jax.block_until_ready(fwd(x))

    assert y.shape == (N, output_nc, H, W), y.shape
    assert bool(jnp.all(jnp.isfinite(y)))
    print("KERNEL_OK")
</pallas_src>

<mosaic_0001>
module attributes {stable_mosaic.version = 11 : i64} {
  func.func @_mm_kernel(%arg0: i32, %arg1: i32, %arg2: i32, %arg3: memref<512x128xbf16, #tpu.memory_space<vmem>>, %arg4: memref<128x128xbf16, #tpu.memory_space<vmem>>, %arg5: memref<512x128xbf16, #tpu.memory_space<vmem>>, %arg6: memref<512x128xf32, #tpu.memory_space<vmem>>) attributes {dimension_semantics = [#tpu.dimension_semantics<parallel>, #tpu.dimension_semantics<parallel>, #tpu.dimension_semantics<arbitrary>], iteration_bounds = array<i64: 1, 1, 1>, scalar_prefetch = 0 : i64, scratch_operands = 1 : i64, tpu.core_type = #tpu.core_type<tc>, window_params = [{transform_indices = @transform_0, window_bounds = array<i64: 512, 128>}, {transform_indices = @transform_1, window_bounds = array<i64: 128, 128>}, {transform_indices = @transform_2, window_bounds = array<i64: 512, 128>}]} {
    %c0 = arith.constant 0 : index
    %c0_0 = arith.constant 0 : index
    %0 = vector.load %arg3[%c0, %c0_0] : memref<512x128xbf16, #tpu.memory_space<vmem>>, vector<512x128xbf16>
    %c0_1 = arith.constant 0 : index
    %c0_2 = arith.constant 0 : index
    %1 = vector.load %arg4[%c0_1, %c0_2] : memref<128x128xbf16, #tpu.memory_space<vmem>>, vector<128x128xbf16>
    %cst = arith.constant dense<0.000000e+00> : vector<512x128xf32>
    %2 = tpu.matmul %0, %1, %cst {dimension_numbers = #tpu.dot_dimension_numbers<[1], [0], [0], [1], [0, 0, 1, 1], [], []>} : vector<512x128xbf16>, vector<128x128xbf16>, vector<512x128xf32> -> vector<512x128xf32>
    %c0_i32 = arith.constant 0 : i32
    %3 = arith.cmpi eq, %arg2, %c0_i32 : i32
    %4 = arith.extui %3 : i1 to i32
    %c0_i32_3 = arith.constant 0 : i32
    %5 = arith.cmpi ne, %4, %c0_i32_3 : i32
    scf.if %5 {
      %c0_8 = arith.constant 0 : index
      %c0_9 = arith.constant 0 : index
      %12 = vector.load %arg6[%c0_8, %c0_9] : memref<512x128xf32, #tpu.memory_space<vmem>>, vector<512x128xf32>
      tpu.vector_store %arg6[%c0_8, %c0_9], %2 {strides = array<i32>} : memref<512x128xf32, #tpu.memory_space<vmem>>, vector<512x128xf32>,
    } else {
    }
    %c0_i32_4 = arith.constant 0 : i32
    %6 = arith.cmpi sgt, %arg2, %c0_i32_4 : i32
    %7 = arith.extui %6 : i1 to i32
    %c0_i32_5 = arith.constant 0 : i32
    %8 = arith.cmpi ne, %7, %c0_i32_5 : i32
    scf.if %8 {
      %c0_8 = arith.constant 0 : index
      %c0_9 = arith.constant 0 : index
      %12 = vector.load %arg6[%c0_8, %c0_9] : memref<512x128xf32, #tpu.memory_space<vmem>>, vector<512x128xf32>
      %13 = arith.addf %12, %2 : vector<512x128xf32>
      %c0_10 = arith.constant 0 : index
      %c0_11 = arith.constant 0 : index
      %14 = vector.load %arg6[%c0_10, %c0_11] : memref<512x128xf32, #tpu.memory_space<vmem>>, vector<512x128xf32>
      tpu.vector_store %arg6[%c0_10, %c0_11], %13 {strides = array<i32>} : memref<512x128xf32, #tpu.memory_space<vmem>>, vector<512x128xf32>,
    } else {
    }
    %c0_i32_6 = arith.constant 0 : i32
    %9 = arith.cmpi eq, %arg2, %c0_i32_6 : i32
    %10 = arith.extui %9 : i1 to i32
    %c0_i32_7 = arith.constant 0 : i32
    %11 = arith.cmpi ne, %10, %c0_i32_7 : i32
    scf.if %11 {
      %c0_8 = arith.constant 0 : index
      %c0_9 = arith.constant 0 : index
      %12 = vector.load %arg6[%c0_8, %c0_9] : memref<512x128xf32, #tpu.memory_space<vmem>>, vector<512x128xf32>
      %13 = arith.truncf %12 : vector<512x128xf32> to vector<512x128xbf16>
      %c0_10 = arith.constant 0 : index
      %c0_11 = arith.constant 0 : index
      %14 = vector.load %arg5[%c0_10, %c0_11] : memref<512x128xbf16, #tpu.memory_space<vmem>>, vector<512x128xbf16>
      tpu.vector_store %arg5[%c0_10, %c0_11], %13 {strides = array<i32>} : memref<512x128xbf16, #tpu.memory_space<vmem>>, vector<512x128xbf16>,
    } else {
    }
    return
  }
  func.func @transform_0(%arg0: i32, %arg1: i32, %arg2: i32) -> (i32, i32) {
    %c0_i32 = arith.constant 0 : i32
    return %arg0, %arg2 : i32, i32
  }
  func.func @transform_1(%arg0: i32, %arg1: i32, %arg2: i32) -> (i32, i32) {
    %c0_i32 = arith.constant 0 : i32
    return %arg2, %arg1 : i32, i32
  }
  func.func @transform_2(%arg0: i32, %arg1: i32, %arg2: i32) -> (i32, i32) {
    %c0_i32 = arith.constant 0 : i32
    return %arg0, %arg1 : i32, i32
  }
}

module attributes {stable_mosaic.version = 11 : i64} {
  func.func @_mm_kernel(%arg0: i32, %arg1: i32, %arg2: i32, %arg3: memref<128x128xbf16, #tpu.memory_space<vmem>>, %arg4: memref<128x128xbf16, #tpu.memory_space<vmem>>, %arg5: memref<128x128xbf16, #tpu.memory_space<vmem>>, %arg6: memref<128x128xf32, #tpu.memory_space<vmem>>) attributes {dimension_semantics = [#tpu.dimension_semantics<parallel>, #tpu.dimension_semantics<parallel>, #tpu.dimension_semantics<arbitrary>], iteration_bounds = array<i64: 1, 1, 1>, scalar_prefetch = 0 : i64, scratch_operands = 1 : i64, tpu.core_type = #tpu.core_type<tc>, window_params = [{transform_indices = @transform_0, window_bounds = array<i64: 128, 128>}, {transform_indices = @transform_1, window_bounds = array<i64: 128, 128>}, {transform_indices = @transform_2, window_bounds = array<i64: 128, 128>}]} {
    %c0 = arith.constant 0 : index
    %c0_0 = arith.constant 0 : index
    %0 = vector.load %arg3[%c0, %c0_0] : memref<128x128xbf16, #tpu.memory_space<vmem>>, vector<128x128xbf16>
    %cst = arith.constant 0.000000e+00 : bf16
    %1 = vector.broadcast %cst : bf16 to vector<128x128xbf16>
    %2 = arith.cmpf oge, %0, %1 : vector<128x128xbf16>
    %cst_1 = arith.constant 2.001950e-01 : bf16
    %3 = vector.broadcast %cst_1 : bf16 to vector<128x128xbf16>
    %4 = arith.mulf %0, %3 : vector<128x128xbf16>
    %5 = arith.select %2, %0, %4 : vector<128x128xi1>, vector<128x128xbf16>
    %c0_2 = arith.constant 0 : index
    %c0_3 = arith.constant 0 : index
    %6 = vector.load %arg4[%c0_2, %c0_3] : memref<128x128xbf16, #tpu.memory_space<vmem>>, vector<128x128xbf16>
    %cst_4 = arith.constant dense<0.000000e+00> : vector<128x128xf32>
    %7 = tpu.matmul %5, %6, %cst_4 {dimension_numbers = #tpu.dot_dimension_numbers<[1], [0], [0], [1], [0, 0, 1, 1], [], []>} : vector<128x128xbf16>, vector<128x128xbf16>, vector<128x128xf32> -> vector<128x128xf32>
    %c0_i32 = arith.constant 0 : i32
    %8 = arith.cmpi eq, %arg2, %c0_i32 : i32
    %9 = arith.extui %8 : i1 to i32
    %c0_i32_5 = arith.constant 0 : i32
    %10 = arith.cmpi ne, %9, %c0_i32_5 : i32
    scf.if %10 {
      %c0_10 = arith.constant 0 : index
      %c0_11 = arith.constant 0 : index
      %17 = vector.load %arg6[%c0_10, %c0_11] : memref<128x128xf32, #tpu.memory_space<vmem>>, vector<128x128xf32>
      tpu.vector_store %arg6[%c0_10, %c0_11], %7 {strides = array<i32>} : memref<128x128xf32, #tpu.memory_space<vmem>>, vector<128x128xf32>,
    } else {
    }
    %c0_i32_6 = arith.constant 0 : i32
    %11 = arith.cmpi sgt, %arg2, %c0_i32_6 : i32
    %12 = arith.extui %11 : i1 to i32
    %c0_i32_7 = arith.constant 0 : i32
    %13 = arith.cmpi ne, %12, %c0_i32_7 : i32
    scf.if %13 {
      %c0_10 = arith.constant 0 : index
      %c0_11 = arith.constant 0 : index
      %17 = vector.load %arg6[%c0_10, %c0_11] : memref<128x128xf32, #tpu.memory_space<vmem>>, vector<128x128xf32>
      %18 = arith.addf %17, %7 : vector<128x128xf32>
      %c0_12 = arith.constant 0 : index
      %c0_13 = arith.constant 0 : index
      %19 = vector.load %arg6[%c0_12, %c0_13] : memref<128x128xf32, #tpu.memory_space<vmem>>, vector<128x128xf32>
      tpu.vector_store %arg6[%c0_12, %c0_13], %18 {strides = array<i32>} : memref<128x128xf32, #tpu.memory_space<vmem>>, vector<128x128xf32>,
    } else {
    }
    %c0_i32_8 = arith.constant 0 : i32
    %14 = arith.cmpi eq, %arg2, %c0_i32_8 : i32
    %15 = arith.extui %14 : i1 to i32
    %c0_i32_9 = arith.constant 0 : i32
    %16 = arith.cmpi ne, %15, %c0_i32_9 : i32
    scf.if %16 {
      %c0_10 = arith.constant 0 : index
      %c0_11 = arith.constant 0 : index
      %17 = vector.load %arg6[%c0_10, %c0_11] : memref<128x128xf32, #tpu.memory_space<vmem>>, vector<128x128xf32>
      %18 = arith.truncf %17 : vector<128x128xf32> to vector<128x128xbf16>
      %c0_12 = arith.constant 0 : index
      %c0_13 = arith.constant 0 : index
      %19 = vector.load %arg5[%c0_12, %c0_13] : memref<128x128xbf16, #tpu.memory_space<vmem>>, vector<128x128xbf16>
      tpu.vector_store %arg5[%c0_12, %c0_13], %18 {strides = array<i32>} : memref<128x128xbf16, #tpu.memory_space<vmem>>, vector<128x128xbf16>,
    } else {
    }
    return
  }
  func.func @transform_0(%arg0: i32, %arg1: i32, %arg2: i32) -> (i32, i32) {
    %c0_i32 = arith.constant 0 : i32
    return %arg0, %arg2 : i32, i32
  }
  func.func @transform_1(%arg0: i32, %arg1: i32, %arg2: i32) -> (i32, i32) {
    %c0_i32 = arith.constant 0 : i32
    return %arg2, %arg1 : i32, i32
  }
  func.func @transform_2(%arg0: i32, %arg1: i32, %arg2: i32) -> (i32, i32) {
    %c0_i32 = arith.constant 0 : i32
    return %arg0, %arg1 : i32, i32
  }
}

module attributes {stable_mosaic.version = 11 : i64} {
  func.func @_bn_stats_kernel(%arg0: i32, %arg1: memref<128x128xbf16, #tpu.memory_space<vmem>>, %arg2: memref<2x128xf32, #tpu.memory_space<vmem>>) attributes {dimension_semantics = [#tpu.dimension_semantics<arbitrary>], iteration_bounds = array<i64: 1>, scalar_prefetch = 0 : i64, scratch_operands = 0 : i64, tpu.core_type = #tpu.core_type<tc>, window_params = [{transform_indices = @transform_0, window_bounds = array<i64: 128, 128>}, {pipeline_mode = #tpu.pipeline_mode<synchronous>, transform_indices = @transform_1, window_bounds = array<i64: 2, 128>}]} {
    %c0_i32 = arith.constant 0 : i32
    %0 = arith.cmpi eq, %arg0, %c0_i32 : i32
    %1 = arith.extui %0 : i1 to i32
    %c0_i32_0 = arith.constant 0 : i32
    %2 = arith.cmpi ne, %1, %c0_i32_0 : i32
    scf.if %2 {
      %cst_7 = arith.constant 0.000000e+00 : f32
      %14 = vector.broadcast %cst_7 : f32 to vector<2x128xf32>
      %c0_8 = arith.constant 0 : index
      %c0_9 = arith.constant 0 : index
      %15 = vector.load %arg2[%c0_8, %c0_9] : memref<2x128xf32, #tpu.memory_space<vmem>>, vector<2x128xf32>
      tpu.vector_store %arg2[%c0_8, %c0_9], %14 {strides = array<i32>} : memref<2x128xf32, #tpu.memory_space<vmem>>, vector<2x128xf32>,
    } else {
    }
    %c0 = arith.constant 0 : index
    %c0_1 = arith.constant 0 : index
    %3 = vector.load %arg1[%c0, %c0_1] : memref<128x128xbf16, #tpu.memory_space<vmem>>, vector<128x128xbf16>
    %4 = arith.extf %3 : vector<128x128xbf16> to vector<128x128xf32>
    %cst = arith.constant dense<0.000000e+00> : vector<128xf32>
    %5 = vector.multi_reduction <add>, %4, %cst [0] : vector<128x128xf32> to vector<128xf32>
    %6 = vector.shape_cast %5 : vector<128xf32> to vector<1x128xf32>
    %7 = arith.mulf %4, %4 : vector<128x128xf32>
    %cst_2 = arith.constant dense<0.000000e+00> : vector<128xf32>
    %8 = vector.multi_reduction <add>, %7, %cst_2 [0] : vector<128x128xf32> to vector<128xf32>
    %9 = vector.shape_cast %8 : vector<128xf32> to vector<1x128xf32>
    %c0_3 = arith.constant 0 : index
    %c0_4 = arith.constant 0 : index
    %10 = vector.load %arg2[%c0_3, %c0_4] : memref<2x128xf32, #tpu.memory_space<vmem>>, vector<2x128xf32>
    %11 = tpu.concatenate %6, %9 in 0 : vector<1x128xf32>, vector<1x128xf32> -> vector<2x128xf32>
    %12 = arith.addf %10, %11 : vector<2x128xf32>
    %c0_5 = arith.constant 0 : index
    %c0_6 = arith.constant 0 : index
    %13 = vector.load %arg2[%c0_5, %c0_6] : memref<2x128xf32, #tpu.memory_space<vmem>>, vector<2x128xf32>
    tpu.vector_store %arg2[%c0_5, %c0_6], %12 {strides = array<i32>} : memref<2x128xf32, #tpu.memory_space<vmem>>, vector<2x128xf32>,
    return
  }
  func.func @transform_0(%arg0: i32) -> (i32, i32) {
    %c0_i32 = arith.constant 0 : i32
    %c0_i32_0 = arith.constant 0 : i32
    return %arg0, %c0_i32 : i32, i32
  }
  func.func @transform_1(%arg0: i32) -> (i32, i32) {
    %c0_i32 = arith.constant 0 : i32
    %c0_i32_0 = arith.constant 0 : i32
    %c0_i32_1 = arith.constant 0 : i32
    return %c0_i32, %c0_i32_0 : i32, i32
  }
}

module attributes {stable_mosaic.version = 11 : i64} {
  func.func @_mm_kernel(%arg0: i32, %arg1: i32, %arg2: i32, %arg3: memref<32x256xbf16, #tpu.memory_space<vmem>>, %arg4: memref<256x128xbf16, #tpu.memory_space<vmem>>, %arg5: memref<1x256xf32, #tpu.memory_space<vmem>>, %arg6: memref<1x256xf32, #tpu.memory_space<vmem>>, %arg7: memref<32x128xbf16, #tpu.memory_space<vmem>>, %arg8: memref<32x128xf32, #tpu.memory_space<vmem>>) attributes {dimension_semantics = [#tpu.dimension_semantics<parallel>, #tpu.dimension_semantics<parallel>, #tpu.dimension_semantics<arbitrary>], iteration_bounds = array<i64: 1, 1, 1>, scalar_prefetch = 0 : i64, scratch_operands = 1 : i64, tpu.core_type = #tpu.core_type<tc>, window_params = [{transform_indices = @transform_0, window_bounds = array<i64: 32, 256>}, {transform_indices = @transform_1, window_bounds = array<i64: 256, 128>}, {transform_indices = @transform_2, window_bounds = array<i64: 1, 256>}, {transform_indices = @transform_3, window_bounds = array<i64: 1, 256>}, {transform_indices = @transform_4, window_bounds = array<i64: 32, 128>}]} {
    %c0 = arith.constant 0 : index
    %c0_0 = arith.constant 0 : index
    %0 = vector.load %arg3[%c0, %c0_0] : memref<32x256xbf16, #tpu.memory_space<vmem>>, vector<32x256xbf16>
    %1 = arith.extf %0 : vector<32x256xbf16> to vector<32x256xf32>
    %c0_1 = arith.constant 0 : index
    %c0_2 = arith.constant 0 : index
    %2 = vector.load %arg5[%c0_1, %c0_2] : memref<1x256xf32, #tpu.memory_space<vmem>>, vector<1x256xf32>
    %3 = vector.broadcast %2 : vector<1x256xf32> to vector<32x256xf32>
    %4 = arith.mulf %1, %3 : vector<32x256xf32>
    %c0_3 = arith.constant 0 : index
    %c0_4 = arith.constant 0 : index
    %5 = vector.load %arg6[%c0_3, %c0_4] : memref<1x256xf32, #tpu.memory_space<vmem>>, vector<1x256xf32>
    %6 = vector.broadcast %5 : vector<1x256xf32> to vector<32x256xf32>
    %7 = arith.addf %4, %6 : vector<32x256xf32>
    %cst = arith.constant 0.000000e+00 : f32
    %8 = vector.broadcast %cst : f32 to vector<32x256xf32>
    %9 = arith.cmpf oge, %7, %8 : vector<32x256xf32>
    %cst_5 = arith.constant 2.000000e-01 : f32
    %10 = vector.broadcast %cst_5 : f32 to vector<32x256xf32>
    %11 = arith.mulf %7, %10 : vector<32x256xf32>
    %12 = arith.select %9, %7, %11 : vector<32x256xi1>, vector<32x256xf32>
    %13 = arith.truncf %12 : vector<32x256xf32> to vector<32x256xbf16>
    %c0_6 = arith.constant 0 : index
    %c0_7 = arith.constant 0 : index
    %14 = vector.load %arg4[%c0_6, %c0_7] : memref<256x128xbf16, #tpu.memory_space<vmem>>, vector<256x128xbf16>
    %cst_8 = arith.constant dense<0.000000e+00> : vector<32x128xf32>
    %15 = tpu.matmul %13, %14, %cst_8 {dimension_numbers = #tpu.dot_dimension_numbers<[1], [0], [0], [1], [0, 0, 1, 1], [], []>} : vector<32x256xbf16>, vector<256x128xbf16>, vector<32x128xf32> -> vector<32x128xf32>
    %c0_i32 = arith.constant 0 : i32
    %16 = arith.cmpi eq, %arg2, %c0_i32 : i32
    %17 = arith.extui %16 : i1 to i32
    %c0_i32_9 = arith.constant 0 : i32
    %18 = arith.cmpi ne, %17, %c0_i32_9 : i32
    scf.if %18 {
      %c0_14 = arith.constant 0 : index
      %c0_15 = arith.constant 0 : index
      %25 = vector.load %arg8[%c0_14, %c0_15] : memref<32x128xf32, #tpu.memory_space<vmem>>, vector<32x128xf32>
      tpu.vector_store %arg8[%c0_14, %c0_15], %15 {strides = array<i32>} : memref<32x128xf32, #tpu.memory_space<vmem>>, vector<32x128xf32>,
    } else {
    }
    %c0_i32_10 = arith.constant 0 : i32
    %19 = arith.cmpi sgt, %arg2, %c0_i32_10 : i32
    %20 = arith.extui %19 : i1 to i32
    %c0_i32_11 = arith.constant 0 : i32
    %21 = arith.cmpi ne, %20, %c0_i32_11 : i32
    scf.if %21 {
      %c0_14 = arith.constant 0 : index
      %c0_15 = arith.constant 0 : index
      %25 = vector.load %arg8[%c0_14, %c0_15] : memref<32x128xf32, #tpu.memory_space<vmem>>, vector<32x128xf32>
      %26 = arith.addf %25, %15 : vector<32x128xf32>
      %c0_16 = arith.constant 0 : index
      %c0_17 = arith.constant 0 : index
      %27 = vector.load %arg8[%c0_16, %c0_17] : memref<32x128xf32, #tpu.memory_space<vmem>>, vector<32x128xf32>
      tpu.vector_store %arg8[%c0_16, %c0_17], %26 {strides = array<i32>} : memref<32x128xf32, #tpu.memory_space<vmem>>, vector<32x128xf32>,
    } else {
    }
    %c0_i32_12 = arith.constant 0 : i32
    %22 = arith.cmpi eq, %arg2, %c0_i32_12 : i32
    %23 = arith.extui %22 : i1 to i32
    %c0_i32_13 = arith.constant 0 : i32
    %24 = arith.cmpi ne, %23, %c0_i32_13 : i32
    scf.if %24 {
      %c0_14 = arith.constant 0 : index
      %c0_15 = arith.constant 0 : index
      %25 = vector.load %arg8[%c0_14, %c0_15] : memref<32x128xf32, #tpu.memory_space<vmem>>, vector<32x128xf32>
      %26 = arith.truncf %25 : vector<32x128xf32> to vector<32x128xbf16>
      %c0_16 = arith.constant 0 : index
      %c0_17 = arith.constant 0 : index
      %27 = vector.load %arg7[%c0_16, %c0_17] : memref<32x128xbf16, #tpu.memory_space<vmem>>, vector<32x128xbf16>
      tpu.vector_store %arg7[%c0_16, %c0_17], %26 {strides = array<i32>} : memref<32x128xbf16, #tpu.memory_space<vmem>>, vector<32x128xbf16>,
    } else {
    }
    return
  }
  func.func @transform_0(%arg0: i32, %arg1: i32, %arg2: i32) -> (i32, i32) {
    %c0_i32 = arith.constant 0 : i32
    return %arg0, %arg2 : i32, i32
  }
  func.func @transform_1(%arg0: i32, %arg1: i32, %arg2: i32) -> (i32, i32) {
    %c0_i32 = arith.constant 0 : i32
    return %arg2, %arg1 : i32, i32
  }
  func.func @transform_2(%arg0: i32, %arg1: i32, %arg2: i32) -> (i32, i32) {
    %c0_i32 = arith.constant 0 : i32
    %c0_i32_0 = arith.constant 0 : i32
    return %c0_i32, %arg2 : i32, i32
  }
  func.func @transform_3(%arg0: i32, %arg1: i32, %arg2: i32) -> (i32, i32) {
    %c0_i32 = arith.constant 0 : i32
    %c0_i32_0 = arith.constant 0 : i32
    return %c0_i32, %arg2 : i32, i32
  }
  func.func @transform_4(%arg0: i32, %arg1: i32, %arg2: i32) -> (i32, i32) {
    %c0_i32 = arith.constant 0 : i32
    return %arg0, %arg1 : i32, i32
  }
}

module attributes {stable_mosaic.version = 11 : i64} {
  func.func @_bn_stats_kernel(%arg0: i32, %arg1: memref<32x128xbf16, #tpu.memory_space<vmem>>, %arg2: memref<2x128xf32, #tpu.memory_space<vmem>>) attributes {dimension_semantics = [#tpu.dimension_semantics<arbitrary>], iteration_bounds = array<i64: 1>, scalar_prefetch = 0 : i64, scratch_operands = 0 : i64, tpu.core_type = #tpu.core_type<tc>, window_params = [{transform_indices = @transform_0, window_bounds = array<i64: 32, 128>}, {pipeline_mode = #tpu.pipeline_mode<synchronous>, transform_indices = @transform_1, window_bounds = array<i64: 2, 128>}]} {
    %c0_i32 = arith.constant 0 : i32
    %0 = arith.cmpi eq, %arg0, %c0_i32 : i32
    %1 = arith.extui %0 : i1 to i32
    %c0_i32_0 = arith.constant 0 : i32
    %2 = arith.cmpi ne, %1, %c0_i32_0 : i32
    scf.if %2 {
      %cst_7 = arith.constant 0.000000e+00 : f32
      %14 = vector.broadcast %cst_7 : f32 to vector<2x128xf32>
      %c0_8 = arith.constant 0 : index
      %c0_9 = arith.constant 0 : index
      %15 = vector.load %arg2[%c0_8, %c0_9] : memref<2x128xf32, #tpu.memory_space<vmem>>, vector<2x128xf32>
      tpu.vector_store %arg2[%c0_8, %c0_9], %14 {strides = array<i32>} : memref<2x128xf32, #tpu.memory_space<vmem>>, vector<2x128xf32>,
    } else {
    }
    %c0 = arith.constant 0 : index
    %c0_1 = arith.constant 0 : index
    %3 = vector.load %arg1[%c0, %c0_1] : memref<32x128xbf16, #tpu.memory_space<vmem>>, vector<32x128xbf16>
    %4 = arith.extf %3 : vector<32x128xbf16> to vector<32x128xf32>
    %cst = arith.constant dense<0.000000e+00> : vector<128xf32>
    %5 = vector.multi_reduction <add>, %4, %cst [0] : vector<32x128xf32> to vector<128xf32>
    %6 = vector.shape_cast %5 : vector<128xf32> to vector<1x128xf32>
    %7 = arith.mulf %4, %4 : vector<32x128xf32>
    %cst_2 = arith.constant dense<0.000000e+00> : vector<128xf32>
    %8 = vector.multi_reduction <add>, %7, %cst_2 [0] : vector<32x128xf32> to vector<128xf32>
    %9 = vector.shape_cast %8 : vector<128xf32> to vector<1x128xf32>
    %c0_3 = arith.constant 0 : index
    %c0_4 = arith.constant 0 : index
    %10 = vector.load %arg2[%c0_3, %c0_4] : memref<2x128xf32, #tpu.memory_space<vmem>>, vector<2x128xf32>
    %11 = tpu.concatenate %6, %9 in 0 : vector<1x128xf32>, vector<1x128xf32> -> vector<2x128xf32>
    %12 = arith.addf %10, %11 : vector<2x128xf32>
    %c0_5 = arith.constant 0 : index
    %c0_6 = arith.constant 0 : index
    %13 = vector.load %arg2[%c0_5, %c0_6] : memref<2x128xf32, #tpu.memory_space<vmem>>, vector<2x128xf32>
    tpu.vector_store %arg2[%c0_5, %c0_6], %12 {strides = array<i32>} : memref<2x128xf32, #tpu.memory_space<vmem>>, vector<2x128xf32>,
    return
  }
  func.func @transform_0(%arg0: i32) -> (i32, i32) {
    %c0_i32 = arith.constant 0 : i32
    %c0_i32_0 = arith.constant 0 : i32
    return %arg0, %c0_i32 : i32, i32
  }
  func.func @transform_1(%arg0: i32) -> (i32, i32) {
    %c0_i32 = arith.constant 0 : i32
    %c0_i32_0 = arith.constant 0 : i32
    %c0_i32_1 = arith.constant 0 : i32
    return %c0_i32, %c0_i32_0 : i32, i32
  }
}

module attributes {stable_mosaic.version = 11 : i64} {
  func.func @_mm_kernel(%arg0: i32, %arg1: i32, %arg2: i32, %arg3: memref<16x512xbf16, #tpu.memory_space<vmem>>, %arg4: memref<512x128xbf16, #tpu.memory_space<vmem>>, %arg5: memref<1x512xf32, #tpu.memory_space<vmem>>, %arg6: memref<1x512xf32, #tpu.memory_space<vmem>>, %arg7: memref<16x128xbf16, #tpu.memory_space<vmem>>, %arg8: memref<16x128xf32, #tpu.memory_space<vmem>>) attributes {dimension_semantics = [#tpu.dimension_semantics<parallel>, #tpu.dimension_semantics<parallel>, #tpu.dimension_semantics<arbitrary>], iteration_bounds = array<i64: 1, 1, 1>, scalar_prefetch = 0 : i64, scratch_operands = 1 : i64, tpu.core_type = #tpu.core_type<tc>, window_params = [{transform_indices = @transform_0, window_bounds = array<i64: 16, 512>}, {transform_indices = @transform_1, window_bounds = array<i64: 512, 128>}, {transform_indices = @transform_2, window_bounds = array<i64: 1, 512>}, {transform_indices = @transform_3, window_bounds = array<i64: 1, 512>}, {transform_indices = @transform_4, window_bounds = array<i64: 16, 128>}]} {
    %c0 = arith.constant 0 : index
    %c0_0 = arith.constant 0 : index
    %0 = vector.load %arg3[%c0, %c0_0] : memref<16x512xbf16, #tpu.memory_space<vmem>>, vector<16x512xbf16>
    %1 = arith.extf %0 : vector<16x512xbf16> to vector<16x512xf32>
    %c0_1 = arith.constant 0 : index
    %c0_2 = arith.constant 0 : index
    %2 = vector.load %arg5[%c0_1, %c0_2] : memref<1x512xf32, #tpu.memory_space<vmem>>, vector<1x512xf32>
    %3 = vector.broadcast %2 : vector<1x512xf32> to vector<16x512xf32>
    %4 = arith.mulf %1, %3 : vector<16x512xf32>
    %c0_3 = arith.constant 0 : index
    %c0_4 = arith.constant 0 : index
    %5 = vector.load %arg6[%c0_3, %c0_4] : memref<1x512xf32, #tpu.memory_space<vmem>>, vector<1x512xf32>
    %6 = vector.broadcast %5 : vector<1x512xf32> to vector<16x512xf32>
    %7 = arith.addf %4, %6 : vector<16x512xf32>
    %cst = arith.constant 0.000000e+00 : f32
    %8 = vector.broadcast %cst : f32 to vector<16x512xf32>
    %9 = arith.cmpf oge, %7, %8 : vector<16x512xf32>
    %cst_5 = arith.constant 2.000000e-01 : f32
    %10 = vector.broadcast %cst_5 : f32 to vector<16x512xf32>
    %11 = arith.mulf %7, %10 : vector<16x512xf32>
    %12 = arith.select %9, %7, %11 : vector<16x512xi1>, vector<16x512xf32>
    %13 = arith.truncf %12 : vector<16x512xf32> to vector<16x512xbf16>
    %c0_6 = arith.constant 0 : index
    %c0_7 = arith.constant 0 : index
    %14 = vector.load %arg4[%c0_6, %c0_7] : memref<512x128xbf16, #tpu.memory_space<vmem>>, vector<512x128xbf16>
    %cst_8 = arith.constant dense<0.000000e+00> : vector<16x128xf32>
    %15 = tpu.matmul %13, %14, %cst_8 {dimension_numbers = #tpu.dot_dimension_numbers<[1], [0], [0], [1], [0, 0, 1, 1], [], []>} : vector<16x512xbf16>, vector<512x128xbf16>, vector<16x128xf32> -> vector<16x128xf32>
    %c0_i32 = arith.constant 0 : i32
    %16 = arith.cmpi eq, %arg2, %c0_i32 : i32
    %17 = arith.extui %16 : i1 to i32
    %c0_i32_9 = arith.constant 0 : i32
    %18 = arith.cmpi ne, %17, %c0_i32_9 : i32
    scf.if %18 {
      %c0_14 = arith.constant 0 : index
      %c0_15 = arith.constant 0 : index
      %25 = vector.load %arg8[%c0_14, %c0_15] : memref<16x128xf32, #tpu.memory_space<vmem>>, vector<16x128xf32>
      tpu.vector_store %arg8[%c0_14, %c0_15], %15 {strides = array<i32>} : memref<16x128xf32, #tpu.memory_space<vmem>>, vector<16x128xf32>,
    } else {
    }
    %c0_i32_10 = arith.constant 0 : i32
    %19 = arith.cmpi sgt, %arg2, %c0_i32_10 : i32
    %20 = arith.extui %19 : i1 to i32
    %c0_i32_11 = arith.constant 0 : i32
    %21 = arith.cmpi ne, %20, %c0_i32_11 : i32
    scf.if %21 {
      %c0_14 = arith.constant 0 : index
      %c0_15 = arith.constant 0 : index
      %25 = vector.load %arg8[%c0_14, %c0_15] : memref<16x128xf32, #tpu.memory_space<vmem>>, vector<16x128xf32>
      %26 = arith.addf %25, %15 : vector<16x128xf32>
      %c0_16 = arith.constant 0 : index
      %c0_17 = arith.constant 0 : index
      %27 = vector.load %arg8[%c0_16, %c0_17] : memref<16x128xf32, #tpu.memory_space<vmem>>, vector<16x128xf32>
      tpu.vector_store %arg8[%c0_16, %c0_17], %26 {strides = array<i32>} : memref<16x128xf32, #tpu.memory_space<vmem>>, vector<16x128xf32>,
    } else {
    }
    %c0_i32_12 = arith.constant 0 : i32
    %22 = arith.cmpi eq, %arg2, %c0_i32_12 : i32
    %23 = arith.extui %22 : i1 to i32
    %c0_i32_13 = arith.constant 0 : i32
    %24 = arith.cmpi ne, %23, %c0_i32_13 : i32
    scf.if %24 {
      %c0_14 = arith.constant 0 : index
      %c0_15 = arith.constant 0 : index
      %25 = vector.load %arg8[%c0_14, %c0_15] : memref<16x128xf32, #tpu.memory_space<vmem>>, vector<16x128xf32>
      %26 = arith.truncf %25 : vector<16x128xf32> to vector<16x128xbf16>
      %c0_16 = arith.constant 0 : index
      %c0_17 = arith.constant 0 : index
      %27 = vector.load %arg7[%c0_16, %c0_17] : memref<16x128xbf16, #tpu.memory_space<vmem>>, vector<16x128xbf16>
      tpu.vector_store %arg7[%c0_16, %c0_17], %26 {strides = array<i32>} : memref<16x128xbf16, #tpu.memory_space<vmem>>, vector<16x128xbf16>,
    } else {
    }
    return
  }
  func.func @transform_0(%arg0: i32, %arg1: i32, %arg2: i32) -> (i32, i32) {
    %c0_i32 = arith.constant 0 : i32
    return %arg0, %arg2 : i32, i32
  }
  func.func @transform_1(%arg0: i32, %arg1: i32, %arg2: i32) -> (i32, i32) {
    %c0_i32 = arith.constant 0 : i32
    return %arg2, %arg1 : i32, i32
  }
  func.func @transform_2(%arg0: i32, %arg1: i32, %arg2: i32) -> (i32, i32) {
    %c0_i32 = arith.constant 0 : i32
    %c0_i32_0 = arith.constant 0 : i32
    return %c0_i32, %arg2 : i32, i32
  }
  func.func @transform_3(%arg0: i32, %arg1: i32, %arg2: i32) -> (i32, i32) {
    %c0_i32 = arith.constant 0 : i32
    %c0_i32_0 = arith.constant 0 : i32
    return %c0_i32, %arg2 : i32, i32
  }
  func.func @transform_4(%arg0: i32, %arg1: i32, %arg2: i32) -> (i32, i32) {
    %c0_i32 = arith.constant 0 : i32
    return %arg0, %arg1 : i32, i32
  }
}

module attributes {stable_mosaic.version = 11 : i64} {
  func.func @_bn_stats_kernel(%arg0: i32, %arg1: memref<16x128xbf16, #tpu.memory_space<vmem>>, %arg2: memref<2x128xf32, #tpu.memory_space<vmem>>) attributes {dimension_semantics = [#tpu.dimension_semantics<arbitrary>], iteration_bounds = array<i64: 1>, scalar_prefetch = 0 : i64, scratch_operands = 0 : i64, tpu.core_type = #tpu.core_type<tc>, window_params = [{transform_indices = @transform_0, window_bounds = array<i64: 16, 128>}, {pipeline_mode = #tpu.pipeline_mode<synchronous>, transform_indices = @transform_1, window_bounds = array<i64: 2, 128>}]} {
    %c0_i32 = arith.constant 0 : i32
    %0 = arith.cmpi eq, %arg0, %c0_i32 : i32
    %1 = arith.extui %0 : i1 to i32
    %c0_i32_0 = arith.constant 0 : i32
    %2 = arith.cmpi ne, %1, %c0_i32_0 : i32
    scf.if %2 {
      %cst_7 = arith.constant 0.000000e+00 : f32
      %14 = vector.broadcast %cst_7 : f32 to vector<2x128xf32>
      %c0_8 = arith.constant 0 : index
      %c0_9 = arith.constant 0 : index
      %15 = vector.load %arg2[%c0_8, %c0_9] : memref<2x128xf32, #tpu.memory_space<vmem>>, vector<2x128xf32>
      tpu.vector_store %arg2[%c0_8, %c0_9], %14 {strides = array<i32>} : memref<2x128xf32, #tpu.memory_space<vmem>>, vector<2x128xf32>,
    } else {
    }
    %c0 = arith.constant 0 : index
    %c0_1 = arith.constant 0 : index
    %3 = vector.load %arg1[%c0, %c0_1] : memref<16x128xbf16, #tpu.memory_space<vmem>>, vector<16x128xbf16>
    %4 = arith.extf %3 : vector<16x128xbf16> to vector<16x128xf32>
    %cst = arith.constant dense<0.000000e+00> : vector<128xf32>
    %5 = vector.multi_reduction <add>, %4, %cst [0] : vector<16x128xf32> to vector<128xf32>
    %6 = vector.shape_cast %5 : vector<128xf32> to vector<1x128xf32>
    %7 = arith.mulf %4, %4 : vector<16x128xf32>
    %cst_2 = arith.constant dense<0.000000e+00> : vector<128xf32>
    %8 = vector.multi_reduction <add>, %7, %cst_2 [0] : vector<16x128xf32> to vector<128xf32>
    %9 = vector.shape_cast %8 : vector<128xf32> to vector<1x128xf32>
    %c0_3 = arith.constant 0 : index
    %c0_4 = arith.constant 0 : index
    %10 = vector.load %arg2[%c0_3, %c0_4] : memref<2x128xf32, #tpu.memory_space<vmem>>, vector<2x128xf32>
    %11 = tpu.concatenate %6, %9 in 0 : vector<1x128xf32>, vector<1x128xf32> -> vector<2x128xf32>
    %12 = arith.addf %10, %11 : vector<2x128xf32>
    %c0_5 = arith.constant 0 : index
    %c0_6 = arith.constant 0 : index
    %13 = vector.load %arg2[%c0_5, %c0_6] : memref<2x128xf32, #tpu.memory_space<vmem>>, vector<2x128xf32>
    tpu.vector_store %arg2[%c0_5, %c0_6], %12 {strides = array<i32>} : memref<2x128xf32, #tpu.memory_space<vmem>>, vector<2x128xf32>,
    return
  }
  func.func @transform_0(%arg0: i32) -> (i32, i32) {
    %c0_i32 = arith.constant 0 : i32
    %c0_i32_0 = arith.constant 0 : i32
    return %arg0, %c0_i32 : i32, i32
  }
  func.func @transform_1(%arg0: i32) -> (i32, i32) {
    %c0_i32 = arith.constant 0 : i32
    %c0_i32_0 = arith.constant 0 : i32
    %c0_i32_1 = arith.constant 0 : i32
    return %c0_i32, %c0_i32_0 : i32, i32
  }
}

module attributes {stable_mosaic.version = 11 : i64} {
  func.func @_mm_kernel(%arg0: i32, %arg1: i32, %arg2: i32, %arg3: memref<16x1024xbf16, #tpu.memory_space<vmem>>, %arg4: memref<1024x128xbf16, #tpu.memory_space<vmem>>, %arg5: memref<1x1024xf32, #tpu.memory_space<vmem>>, %arg6: memref<1x1024xf32, #tpu.memory_space<vmem>>, %arg7: memref<16x128xbf16, #tpu.memory_space<vmem>>, %arg8: memref<16x128xf32, #tpu.memory_space<vmem>>) attributes {dimension_semantics = [#tpu.dimension_semantics<parallel>, #tpu.dimension_semantics<parallel>, #tpu.dimension_semantics<arbitrary>], iteration_bounds = array<i64: 1, 1, 1>, scalar_prefetch = 0 : i64, scratch_operands = 1 : i64, tpu.core_type = #tpu.core_type<tc>, window_params = [{transform_indices = @transform_0, window_bounds = array<i64: 16, 1024>}, {transform_indices = @transform_1, window_bounds = array<i64: 1024, 128>}, {transform_indices = @transform_2, window_bounds = array<i64: 1, 1024>}, {transform_indices = @transform_3, window_bounds = array<i64: 1, 1024>}, {transform_indices = @transform_4, window_bounds = array<i64: 16, 128>}]} {
    %c0 = arith.constant 0 : index
    %c0_0 = arith.constant 0 : index
    %0 = vector.load %arg3[%c0, %c0_0] : memref<16x1024xbf16, #tpu.memory_space<vmem>>, vector<16x1024xbf16>
    %1 = arith.extf %0 : vector<16x1024xbf16> to vector<16x1024xf32>
    %c0_1 = arith.constant 0 : index
    %c0_2 = arith.constant 0 : index
    %2 = vector.load %arg5[%c0_1, %c0_2] : memref<1x1024xf32, #tpu.memory_space<vmem>>, vector<1x1024xf32>
    %3 = vector.broadcast %2 : vector<1x1024xf32> to vector<16x1024xf32>
    %4 = arith.mulf %1, %3 : vector<16x1024xf32>
    %c0_3 = arith.constant 0 : index
    %c0_4 = arith.constant 0 : index
    %5 = vector.load %arg6[%c0_3, %c0_4] : memref<1x1024xf32, #tpu.memory_space<vmem>>, vector<1x1024xf32>
    %6 = vector.broadcast %5 : vector<1x1024xf32> to vector<16x1024xf32>
    %7 = arith.addf %4, %6 : vector<16x1024xf32>
    %cst = arith.constant 0.000000e+00 : f32
    %8 = vector.broadcast %cst : f32 to vector<16x1024xf32>
    %9 = arith.cmpf oge, %7, %8 : vector<16x1024xf32>
    %cst_5 = arith.constant 2.000000e-01 : f32
    %10 = vector.broadcast %cst_5 : f32 to vector<16x1024xf32>
    %11 = arith.mulf %7, %10 : vector<16x1024xf32>
    %12 = arith.select %9, %7, %11 : vector<16x1024xi1>, vector<16x1024xf32>
    %13 = arith.truncf %12 : vector<16x1024xf32> to vector<16x1024xbf16>
    %c0_6 = arith.constant 0 : index
    %c0_7 = arith.constant 0 : index
    %14 = vector.load %arg4[%c0_6, %c0_7] : memref<1024x128xbf16, #tpu.memory_space<vmem>>, vector<1024x128xbf16>
    %cst_8 = arith.constant dense<0.000000e+00> : vector<16x128xf32>
    %15 = tpu.matmul %13, %14, %cst_8 {dimension_numbers = #tpu.dot_dimension_numbers<[1], [0], [0], [1], [0, 0, 1, 1], [], []>} : vector<16x1024xbf16>, vector<1024x128xbf16>, vector<16x128xf32> -> vector<16x128xf32>
    %c0_i32 = arith.constant 0 : i32
    %16 = arith.cmpi eq, %arg2, %c0_i32 : i32
    %17 = arith.extui %16 : i1 to i32
    %c0_i32_9 = arith.constant 0 : i32
    %18 = arith.cmpi ne, %17, %c0_i32_9 : i32
    scf.if %18 {
      %c0_14 = arith.constant 0 : index
      %c0_15 = arith.constant 0 : index
      %25 = vector.load %arg8[%c0_14, %c0_15] : memref<16x128xf32, #tpu.memory_space<vmem>>, vector<16x128xf32>
      tpu.vector_store %arg8[%c0_14, %c0_15], %15 {strides = array<i32>} : memref<16x128xf32, #tpu.memory_space<vmem>>, vector<16x128xf32>,
    } else {
    }
    %c0_i32_10 = arith.constant 0 : i32
    %19 = arith.cmpi sgt, %arg2, %c0_i32_10 : i32
    %20 = arith.extui %19 : i1 to i32
    %c0_i32_11 = arith.constant 0 : i32
    %21 = arith.cmpi ne, %20, %c0_i32_11 : i32
    scf.if %21 {
      %c0_14 = arith.constant 0 : index
      %c0_15 = arith.constant 0 : index
      %25 = vector.load %arg8[%c0_14, %c0_15] : memref<16x128xf32, #tpu.memory_space<vmem>>, vector<16x128xf32>
      %26 = arith.addf %25, %15 : vector<16x128xf32>
      %c0_16 = arith.constant 0 : index
      %c0_17 = arith.constant 0 : index
      %27 = vector.load %arg8[%c0_16, %c0_17] : memref<16x128xf32, #tpu.memory_space<vmem>>, vector<16x128xf32>
      tpu.vector_store %arg8[%c0_16, %c0_17], %26 {strides = array<i32>} : memref<16x128xf32, #tpu.memory_space<vmem>>, vector<16x128xf32>,
    } else {
    }
    %c0_i32_12 = arith.constant 0 : i32
    %22 = arith.cmpi eq, %arg2, %c0_i32_12 : i32
    %23 = arith.extui %22 : i1 to i32
    %c0_i32_13 = arith.constant 0 : i32
    %24 = arith.cmpi ne, %23, %c0_i32_13 : i32
    scf.if %24 {
      %c0_14 = arith.constant 0 : index
      %c0_15 = arith.constant 0 : index
      %25 = vector.load %arg8[%c0_14, %c0_15] : memref<16x128xf32, #tpu.memory_space<vmem>>, vector<16x128xf32>
      %26 = arith.truncf %25 : vector<16x128xf32> to vector<16x128xbf16>
      %c0_16 = arith.constant 0 : index
      %c0_17 = arith.constant 0 : index
      %27 = vector.load %arg7[%c0_16, %c0_17] : memref<16x128xbf16, #tpu.memory_space<vmem>>, vector<16x128xbf16>
      tpu.vector_store %arg7[%c0_16, %c0_17], %26 {strides = array<i32>} : memref<16x128xbf16, #tpu.memory_space<vmem>>, vector<16x128xbf16>,
    } else {
    }
    return
  }
  func.func @transform_0(%arg0: i32, %arg1: i32, %arg2: i32) -> (i32, i32) {
    %c0_i32 = arith.constant 0 : i32
    return %arg0, %arg2 : i32, i32
  }
  func.func @transform_1(%arg0: i32, %arg1: i32, %arg2: i32) -> (i32, i32) {
    %c0_i32 = arith.constant 0 : i32
    return %arg2, %arg1 : i32, i32
  }
  func.func @transform_2(%arg0: i32, %arg1: i32, %arg2: i32) -> (i32, i32) {
    %c0_i32 = arith.constant 0 : i32
    %c0_i32_0 = arith.constant 0 : i32
    return %c0_i32, %arg2 : i32, i32
  }
  func.func @transform_3(%arg0: i32, %arg1: i32, %arg2: i32) -> (i32, i32) {
    %c0_i32 = arith.constant 0 : i32
    %c0_i32_0 = arith.constant 0 : i32
    return %c0_i32, %arg2 : i32, i32
  }
  func.func @transform_4(%arg0: i32, %arg1: i32, %arg2: i32) -> (i32, i32) {
    %c0_i32 = arith.constant 0 : i32
    return %arg0, %arg1 : i32, i32
  }
}

module attributes {stable_mosaic.version = 11 : i64} {
  func.func @_mm_kernel(%arg0: i32, %arg1: i32, %arg2: i32, %arg3: memref<16x640xbf16, #tpu.memory_space<vmem>>, %arg4: memref<640x256xbf16, #tpu.memory_space<vmem>>, %arg5: memref<16x256xbf16, #tpu.memory_space<vmem>>, %arg6: memref<16x256xf32, #tpu.memory_space<vmem>>) attributes {dimension_semantics = [#tpu.dimension_semantics<parallel>, #tpu.dimension_semantics<parallel>, #tpu.dimension_semantics<arbitrary>], iteration_bounds = array<i64: 1, 1, 1>, scalar_prefetch = 0 : i64, scratch_operands = 1 : i64, tpu.core_type = #tpu.core_type<tc>, window_params = [{transform_indices = @transform_0, window_bounds = array<i64: 16, 640>}, {transform_indices = @transform_1, window_bounds = array<i64: 640, 256>}, {transform_indices = @transform_2, window_bounds = array<i64: 16, 256>}]} {
    %c0 = arith.constant 0 : index
    %c0_0 = arith.constant 0 : index
    %0 = vector.load %arg3[%c0, %c0_0] : memref<16x640xbf16, #tpu.memory_space<vmem>>, vector<16x640xbf16>
    %cst = arith.constant 0.000000e+00 : bf16
    %1 = vector.broadcast %cst : bf16 to vector<16x640xbf16>
    %2 = arith.maximumf %0, %1 : vector<16x640xbf16>
    %c0_1 = arith.constant 0 : index
    %c0_2 = arith.constant 0 : index
    %3 = vector.load %arg4[%c0_1, %c0_2] : memref<640x256xbf16, #tpu.memory_space<vmem>>, vector<640x256xbf16>
    %cst_3 = arith.constant dense<0.000000e+00> : vector<16x256xf32>
    %4 = tpu.matmul %2, %3, %cst_3 {dimension_numbers = #tpu.dot_dimension_numbers<[1], [0], [0], [1], [0, 0, 1, 1], [], []>} : vector<16x640xbf16>, vector<640x256xbf16>, vector<16x256xf32> -> vector<16x256xf32>
    %c0_i32 = arith.constant 0 : i32
    %5 = arith.cmpi eq, %arg2, %c0_i32 : i32
    %6 = arith.extui %5 : i1 to i32
    %c0_i32_4 = arith.constant 0 : i32
    %7 = arith.cmpi ne, %6, %c0_i32_4 : i32
    scf.if %7 {
      %c0_9 = arith.constant 0 : index
      %c0_10 = arith.constant 0 : index
      %14 = vector.load %arg6[%c0_9, %c0_10] : memref<16x256xf32, #tpu.memory_space<vmem>>, vector<16x256xf32>
      tpu.vector_store %arg6[%c0_9, %c0_10], %4 {strides = array<i32>} : memref<16x256xf32, #tpu.memory_space<vmem>>, vector<16x256xf32>,
    } else {
    }
    %c0_i32_5 = arith.constant 0 : i32
    %8 = arith.cmpi sgt, %arg2, %c0_i32_5 : i32
    %9 = arith.extui %8 : i1 to i32
    %c0_i32_6 = arith.constant 0 : i32
    %10 = arith.cmpi ne, %9, %c0_i32_6 : i32
    scf.if %10 {
      %c0_9 = arith.constant 0 : index
      %c0_10 = arith.constant 0 : index
      %14 = vector.load %arg6[%c0_9, %c0_10] : memref<16x256xf32, #tpu.memory_space<vmem>>, vector<16x256xf32>
      %15 = arith.addf %14, %4 : vector<16x256xf32>
      %c0_11 = arith.constant 0 : index
      %c0_12 = arith.constant 0 : index
      %16 = vector.load %arg6[%c0_11, %c0_12] : memref<16x256xf32, #tpu.memory_space<vmem>>, vector<16x256xf32>
      tpu.vector_store %arg6[%c0_11, %c0_12], %15 {strides = array<i32>} : memref<16x256xf32, #tpu.memory_space<vmem>>, vector<16x256xf32>,
    } else {
    }
    %c0_i32_7 = arith.constant 0 : i32
    %11 = arith.cmpi eq, %arg2, %c0_i32_7 : i32
    %12 = arith.extui %11 : i1 to i32
    %c0_i32_8 = arith.constant 0 : i32
    %13 = arith.cmpi ne, %12, %c0_i32_8 : i32
    scf.if %13 {
      %c0_9 = arith.constant 0 : index
      %c0_10 = arith.constant 0 : index
      %14 = vector.load %arg6[%c0_9, %c0_10] : memref<16x256xf32, #tpu.memory_space<vmem>>, vector<16x256xf32>
      %15 = arith.truncf %14 : vector<16x256xf32> to vector<16x256xbf16>
      %c0_11 = arith.constant 0 : index
      %c0_12 = arith.constant 0 : index
      %16 = vector.load %arg5[%c0_11, %c0_12] : memref<16x256xbf16, #tpu.memory_space<vmem>>, vector<16x256xbf16>
      tpu.vector_store %arg5[%c0_11, %c0_12], %15 {strides = array<i32>} : memref<16x256xbf16, #tpu.memory_space<vmem>>, vector<16x256xbf16>,
    } else {
    }
    return
  }
  func.func @transform_0(%arg0: i32, %arg1: i32, %arg2: i32) -> (i32, i32) {
    %c0_i32 = arith.constant 0 : i32
    return %arg0, %arg2 : i32, i32
  }
  func.func @transform_1(%arg0: i32, %arg1: i32, %arg2: i32) -> (i32, i32) {
    %c0_i32 = arith.constant 0 : i32
    return %arg2, %arg1 : i32, i32
  }
  func.func @transform_2(%arg0: i32, %arg1: i32, %arg2: i32) -> (i32, i32) {
    %c0_i32 = arith.constant 0 : i32
    return %arg0, %arg1 : i32, i32
  }
}

module attributes {stable_mosaic.version = 11 : i64} {
  func.func @_mm_kernel(%arg0: i32, %arg1: i32, %arg2: i32, %arg3: memref<16x384xbf16, #tpu.memory_space<vmem>>, %arg4: memref<384x128xbf16, #tpu.memory_space<vmem>>, %arg5: memref<1x384xf32, #tpu.memory_space<vmem>>, %arg6: memref<1x384xf32, #tpu.memory_space<vmem>>, %arg7: memref<16x128xbf16, #tpu.memory_space<vmem>>, %arg8: memref<16x128xf32, #tpu.memory_space<vmem>>) attributes {dimension_semantics = [#tpu.dimension_semantics<parallel>, #tpu.dimension_semantics<parallel>, #tpu.dimension_semantics<arbitrary>], iteration_bounds = array<i64: 1, 1, 3>, scalar_prefetch = 0 : i64, scratch_operands = 1 : i64, tpu.core_type = #tpu.core_type<tc>, window_params = [{transform_indices = @transform_0, window_bounds = array<i64: 16, 384>}, {transform_indices = @transform_1, window_bounds = array<i64: 384, 128>}, {transform_indices = @transform_2, window_bounds = array<i64: 1, 384>}, {transform_indices = @transform_3, window_bounds = array<i64: 1, 384>}, {transform_indices = @transform_4, window_bounds = array<i64: 16, 128>}]} {
    %c0 = arith.constant 0 : index
    %c0_0 = arith.constant 0 : index
    %0 = vector.load %arg3[%c0, %c0_0] : memref<16x384xbf16, #tpu.memory_space<vmem>>, vector<16x384xbf16>
    %1 = arith.extf %0 : vector<16x384xbf16> to vector<16x384xf32>
    %c0_1 = arith.constant 0 : index
    %c0_2 = arith.constant 0 : index
    %2 = vector.load %arg5[%c0_1, %c0_2] : memref<1x384xf32, #tpu.memory_space<vmem>>, vector<1x384xf32>
    %3 = vector.broadcast %2 : vector<1x384xf32> to vector<16x384xf32>
    %4 = arith.mulf %1, %3 : vector<16x384xf32>
    %c0_3 = arith.constant 0 : index
    %c0_4 = arith.constant 0 : index
    %5 = vector.load %arg6[%c0_3, %c0_4] : memref<1x384xf32, #tpu.memory_space<vmem>>, vector<1x384xf32>
    %6 = vector.broadcast %5 : vector<1x384xf32> to vector<16x384xf32>
    %7 = arith.addf %4, %6 : vector<16x384xf32>
    %cst = arith.constant 0.000000e+00 : f32
    %8 = vector.broadcast %cst : f32 to vector<16x384xf32>
    %9 = arith.maximumf %7, %8 : vector<16x384xf32>
    %10 = arith.truncf %9 : vector<16x384xf32> to vector<16x384xbf16>
    %c0_5 = arith.constant 0 : index
    %c0_6 = arith.constant 0 : index
    %11 = vector.load %arg4[%c0_5, %c0_6] : memref<384x128xbf16, #tpu.memory_space<vmem>>, vector<384x128xbf16>
    %cst_7 = arith.constant dense<0.000000e+00> : vector<16x128xf32>
    %12 = tpu.matmul %10, %11, %cst_7 {dimension_numbers = #tpu.dot_dimension_numbers<[1], [0], [0], [1], [0, 0, 1, 1], [], []>} : vector<16x384xbf16>, vector<384x128xbf16>, vector<16x128xf32> -> vector<16x128xf32>
    %c0_i32 = arith.constant 0 : i32
    %13 = arith.cmpi eq, %arg2, %c0_i32 : i32
    %14 = arith.extui %13 : i1 to i32
    %c0_i32_8 = arith.constant 0 : i32
    %15 = arith.cmpi ne, %14, %c0_i32_8 : i32
    scf.if %15 {
      %c0_12 = arith.constant 0 : index
      %c0_13 = arith.constant 0 : index
      %22 = vector.load %arg8[%c0_12, %c0_13] : memref<16x128xf32, #tpu.memory_space<vmem>>, vector<16x128xf32>
      tpu.vector_store %arg8[%c0_12, %c0_13], %12 {strides = array<i32>} : memref<16x128xf32, #tpu.memory_space<vmem>>, vector<16x128xf32>,
    } else {
    }
    %c0_i32_9 = arith.constant 0 : i32
    %16 = arith.cmpi sgt, %arg2, %c0_i32_9 : i32
    %17 = arith.extui %16 : i1 to i32
    %c0_i32_10 = arith.constant 0 : i32
    %18 = arith.cmpi ne, %17, %c0_i32_10 : i32
    scf.if %18 {
      %c0_12 = arith.constant 0 : index
      %c0_13 = arith.constant 0 : index
      %22 = vector.load %arg8[%c0_12, %c0_13] : memref<16x128xf32, #tpu.memory_space<vmem>>, vector<16x128xf32>
      %23 = arith.addf %22, %12 : vector<16x128xf32>
      %c0_14 = arith.constant 0 : index
      %c0_15 = arith.constant 0 : index
      %24 = vector.load %arg8[%c0_14, %c0_15] : memref<16x128xf32, #tpu.memory_space<vmem>>, vector<16x128xf32>
      tpu.vector_store %arg8[%c0_14, %c0_15], %23 {strides = array<i32>} : memref<16x128xf32, #tpu.memory_space<vmem>>, vector<16x128xf32>,
    } else {
    }
    %c2_i32 = arith.constant 2 : i32
    %19 = arith.cmpi eq, %arg2, %c2_i32 : i32
    %20 = arith.extui %19 : i1 to i32
    %c0_i32_11 = arith.constant 0 : i32
    %21 = arith.cmpi ne, %20, %c0_i32_11 : i32
    scf.if %21 {
      %c0_12 = arith.constant 0 : index
      %c0_13 = arith.constant 0 : index
      %22 = vector.load %arg8[%c0_12, %c0_13] : memref<16x128xf32, #tpu.memory_space<vmem>>, vector<16x128xf32>
      %23 = arith.truncf %22 : vector<16x128xf32> to vector<16x128xbf16>
      %c0_14 = arith.constant 0 : index
      %c0_15 = arith.constant 0 : index
      %24 = vector.load %arg7[%c0_14, %c0_15] : memref<16x128xbf16, #tpu.memory_space<vmem>>, vector<16x128xbf16>
      tpu.vector_store %arg7[%c0_14, %c0_15], %23 {strides = array<i32>} : memref<16x128xbf16, #tpu.memory_space<vmem>>, vector<16x128xbf16>,
    } else {
    }
    return
  }
  func.func @transform_0(%arg0: i32, %arg1: i32, %arg2: i32) -> (i32, i32) {
    %c0_i32 = arith.constant 0 : i32
    return %arg0, %arg2 : i32, i32
  }
  func.func @transform_1(%arg0: i32, %arg1: i32, %arg2: i32) -> (i32, i32) {
    %c0_i32 = arith.constant 0 : i32
    return %arg2, %arg1 : i32, i32
  }
  func.func @transform_2(%arg0: i32, %arg1: i32, %arg2: i32) -> (i32, i32) {
    %c0_i32 = arith.constant 0 : i32
    %c0_i32_0 = arith.constant 0 : i32
    return %c0_i32, %arg2 : i32, i32
  }
  func.func @transform_3(%arg0: i32, %arg1: i32, %arg2: i32) -> (i32, i32) {
    %c0_i32 = arith.constant 0 : i32
    %c0_i32_0 = arith.constant 0 : i32
    return %c0_i32, %arg2 : i32, i32
  }
  func.func @transform_4(%arg0: i32, %arg1: i32, %arg2: i32) -> (i32, i32) {
    %c0_i32 = arith.constant 0 : i32
    return %arg0, %arg1 : i32, i32
  }
}

module attributes {stable_mosaic.version = 11 : i64} {
  func.func @_mm_kernel(%arg0: i32, %arg1: i32, %arg2: i32, %arg3: memref<32x640xbf16, #tpu.memory_space<vmem>>, %arg4: memref<640x128xbf16, #tpu.memory_space<vmem>>, %arg5: memref<1x640xf32, #tpu.memory_space<vmem>>, %arg6: memref<1x640xf32, #tpu.memory_space<vmem>>, %arg7: memref<32x128xbf16, #tpu.memory_space<vmem>>, %arg8: memref<32x128xf32, #tpu.memory_space<vmem>>) attributes {dimension_semantics = [#tpu.dimension_semantics<parallel>, #tpu.dimension_semantics<parallel>, #tpu.dimension_semantics<arbitrary>], iteration_bounds = array<i64: 1, 1, 1>, scalar_prefetch = 0 : i64, scratch_operands = 1 : i64, tpu.core_type = #tpu.core_type<tc>, window_params = [{transform_indices = @transform_0, window_bounds = array<i64: 32, 640>}, {transform_indices = @transform_1, window_bounds = array<i64: 640, 128>}, {transform_indices = @transform_2, window_bounds = array<i64: 1, 640>}, {transform_indices = @transform_3, window_bounds = array<i64: 1, 640>}, {transform_indices = @transform_4, window_bounds = array<i64: 32, 128>}]} {
    %c0 = arith.constant 0 : index
    %c0_0 = arith.constant 0 : index
    %0 = vector.load %arg3[%c0, %c0_0] : memref<32x640xbf16, #tpu.memory_space<vmem>>, vector<32x640xbf16>
    %1 = arith.extf %0 : vector<32x640xbf16> to vector<32x640xf32>
    %c0_1 = arith.constant 0 : index
    %c0_2 = arith.constant 0 : index
    %2 = vector.load %arg5[%c0_1, %c0_2] : memref<1x640xf32, #tpu.memory_space<vmem>>, vector<1x640xf32>
    %3 = vector.broadcast %2 : vector<1x640xf32> to vector<32x640xf32>
    %4 = arith.mulf %1, %3 : vector<32x640xf32>
    %c0_3 = arith.constant 0 : index
    %c0_4 = arith.constant 0 : index
    %5 = vector.load %arg6[%c0_3, %c0_4] : memref<1x640xf32, #tpu.memory_space<vmem>>, vector<1x640xf32>
    %6 = vector.broadcast %5 : vector<1x640xf32> to vector<32x640xf32>
    %7 = arith.addf %4, %6 : vector<32x640xf32>
    %cst = arith.constant 0.000000e+00 : f32
    %8 = vector.broadcast %cst : f32 to vector<32x640xf32>
    %9 = arith.maximumf %7, %8 : vector<32x640xf32>
    %10 = arith.truncf %9 : vector<32x640xf32> to vector<32x640xbf16>
    %c0_5 = arith.constant 0 : index
    %c0_6 = arith.constant 0 : index
    %11 = vector.load %arg4[%c0_5, %c0_6] : memref<640x128xbf16, #tpu.memory_space<vmem>>, vector<640x128xbf16>
    %cst_7 = arith.constant dense<0.000000e+00> : vector<32x128xf32>
    %12 = tpu.matmul %10, %11, %cst_7 {dimension_numbers = #tpu.dot_dimension_numbers<[1], [0], [0], [1], [0, 0, 1, 1], [], []>} : vector<32x640xbf16>, vector<640x128xbf16>, vector<32x128xf32> -> vector<32x128xf32>
    %c0_i32 = arith.constant 0 : i32
    %13 = arith.cmpi eq, %arg2, %c0_i32 : i32
    %14 = arith.extui %13 : i1 to i32
    %c0_i32_8 = arith.constant 0 : i32
    %15 = arith.cmpi ne, %14, %c0_i32_8 : i32
    scf.if %15 {
      %c0_13 = arith.constant 0 : index
      %c0_14 = arith.constant 0 : index
      %22 = vector.load %arg8[%c0_13, %c0_14] : memref<32x128xf32, #tpu.memory_space<vmem>>, vector<32x128xf32>
      tpu.vector_store %arg8[%c0_13, %c0_14], %12 {strides = array<i32>} : memref<32x128xf32, #tpu.memory_space<vmem>>, vector<32x128xf32>,
    } else {
    }
    %c0_i32_9 = arith.constant 0 : i32
    %16 = arith.cmpi sgt, %arg2, %c0_i32_9 : i32
    %17 = arith.extui %16 : i1 to i32
    %c0_i32_10 = arith.constant 0 : i32
    %18 = arith.cmpi ne, %17, %c0_i32_10 : i32
    scf.if %18 {
      %c0_13 = arith.constant 0 : index
      %c0_14 = arith.constant 0 : index
      %22 = vector.load %arg8[%c0_13, %c0_14] : memref<32x128xf32, #tpu.memory_space<vmem>>, vector<32x128xf32>
      %23 = arith.addf %22, %12 : vector<32x128xf32>
      %c0_15 = arith.constant 0 : index
      %c0_16 = arith.constant 0 : index
      %24 = vector.load %arg8[%c0_15, %c0_16] : memref<32x128xf32, #tpu.memory_space<vmem>>, vector<32x128xf32>
      tpu.vector_store %arg8[%c0_15, %c0_16], %23 {strides = array<i32>} : memref<32x128xf32, #tpu.memory_space<vmem>>, vector<32x128xf32>,
    } else {
    }
    %c0_i32_11 = arith.constant 0 : i32
    %19 = arith.cmpi eq, %arg2, %c0_i32_11 : i32
    %20 = arith.extui %19 : i1 to i32
    %c0_i32_12 = arith.constant 0 : i32
    %21 = arith.cmpi ne, %20, %c0_i32_12 : i32
    scf.if %21 {
      %c0_13 = arith.constant 0 : index
      %c0_14 = arith.constant 0 : index
      %22 = vector.load %arg8[%c0_13, %c0_14] : memref<32x128xf32, #tpu.memory_space<vmem>>, vector<32x128xf32>
      %23 = arith.truncf %22 : vector<32x128xf32> to vector<32x128xbf16>
      %c0_15 = arith.constant 0 : index
      %c0_16 = arith.constant 0 : index
      %24 = vector.load %arg7[%c0_15, %c0_16] : memref<32x128xbf16, #tpu.memory_space<vmem>>, vector<32x128xbf16>
      tpu.vector_store %arg7[%c0_15, %c0_16], %23 {strides = array<i32>} : memref<32x128xbf16, #tpu.memory_space<vmem>>, vector<32x128xbf16>,
    } else {
    }
    return
  }
  func.func @transform_0(%arg0: i32, %arg1: i32, %arg2: i32) -> (i32, i32) {
    %c0_i32 = arith.constant 0 : i32
    return %arg0, %arg2 : i32, i32
  }
  func.func @transform_1(%arg0: i32, %arg1: i32, %arg2: i32) -> (i32, i32) {
    %c0_i32 = arith.constant 0 : i32
    return %arg2, %arg1 : i32, i32
  }
  func.func @transform_2(%arg0: i32, %arg1: i32, %arg2: i32) -> (i32, i32) {
    %c0_i32 = arith.constant 0 : i32
    %c0_i32_0 = arith.constant 0 : i32
    return %c0_i32, %arg2 : i32, i32
  }
  func.func @transform_3(%arg0: i32, %arg1: i32, %arg2: i32) -> (i32, i32) {
    %c0_i32 = arith.constant 0 : i32
    %c0_i32_0 = arith.constant 0 : i32
    return %c0_i32, %arg2 : i32, i32
  }
  func.func @transform_4(%arg0: i32, %arg1: i32, %arg2: i32) -> (i32, i32) {
    %c0_i32 = arith.constant 0 : i32
    return %arg0, %arg1 : i32, i32
  }
}

module attributes {stable_mosaic.version = 11 : i64} {
  func.func @_mm_kernel(%arg0: i32, %arg1: i32, %arg2: i32, %arg3: memref<128x384xbf16, #tpu.memory_space<vmem>>, %arg4: memref<384x128xbf16, #tpu.memory_space<vmem>>, %arg5: memref<1x384xf32, #tpu.memory_space<vmem>>, %arg6: memref<1x384xf32, #tpu.memory_space<vmem>>, %arg7: memref<128x128xbf16, #tpu.memory_space<vmem>>, %arg8: memref<128x128xf32, #tpu.memory_space<vmem>>) attributes {dimension_semantics = [#tpu.dimension_semantics<parallel>, #tpu.dimension_semantics<parallel>, #tpu.dimension_semantics<arbitrary>], iteration_bounds = array<i64: 1, 1, 1>, scalar_prefetch = 0 : i64, scratch_operands = 1 : i64, tpu.core_type = #tpu.core_type<tc>, window_params = [{transform_indices = @transform_0, window_bounds = array<i64: 128, 384>}, {transform_indices = @transform_1, window_bounds = array<i64: 384, 128>}, {transform_indices = @transform_2, window_bounds = array<i64: 1, 384>}, {transform_indices = @transform_3, window_bounds = array<i64: 1, 384>}, {transform_indices = @transform_4, window_bounds = array<i64: 128, 128>}]} {
    %c0 = arith.constant 0 : index
    %c0_0 = arith.constant 0 : index
    %0 = vector.load %arg3[%c0, %c0_0] : memref<128x384xbf16, #tpu.memory_space<vmem>>, vector<128x384xbf16>
    %1 = arith.extf %0 : vector<128x384xbf16> to vector<128x384xf32>
    %c0_1 = arith.constant 0 : index
    %c0_2 = arith.constant 0 : index
    %2 = vector.load %arg5[%c0_1, %c0_2] : memref<1x384xf32, #tpu.memory_space<vmem>>, vector<1x384xf32>
    %3 = vector.broadcast %2 : vector<1x384xf32> to vector<128x384xf32>
    %4 = arith.mulf %1, %3 : vector<128x384xf32>
    %c0_3 = arith.constant 0 : index
    %c0_4 = arith.constant 0 : index
    %5 = vector.load %arg6[%c0_3, %c0_4] : memref<1x384xf32, #tpu.memory_space<vmem>>, vector<1x384xf32>
    %6 = vector.broadcast %5 : vector<1x384xf32> to vector<128x384xf32>
    %7 = arith.addf %4, %6 : vector<128x384xf32>
    %cst = arith.constant 0.000000e+00 : f32
    %8 = vector.broadcast %cst : f32 to vector<128x384xf32>
    %9 = arith.maximumf %7, %8 : vector<128x384xf32>
    %10 = arith.truncf %9 : vector<128x384xf32> to vector<128x384xbf16>
    %c0_5 = arith.constant 0 : index
    %c0_6 = arith.constant 0 : index
    %11 = vector.load %arg4[%c0_5, %c0_6] : memref<384x128xbf16, #tpu.memory_space<vmem>>, vector<384x128xbf16>
    %cst_7 = arith.constant dense<0.000000e+00> : vector<128x128xf32>
    %12 = tpu.matmul %10, %11, %cst_7 {dimension_numbers = #tpu.dot_dimension_numbers<[1], [0], [0], [1], [0, 0, 1, 1], [], []>} : vector<128x384xbf16>, vector<384x128xbf16>, vector<128x128xf32> -> vector<128x128xf32>
    %c0_i32 = arith.constant 0 : i32
    %13 = arith.cmpi eq, %arg2, %c0_i32 : i32
    %14 = arith.extui %13 : i1 to i32
    %c0_i32_8 = arith.constant 0 : i32
    %15 = arith.cmpi ne, %14, %c0_i32_8 : i32
    scf.if %15 {
      %c0_13 = arith.constant 0 : index
      %c0_14 = arith.constant 0 : index
      %22 = vector.load %arg8[%c0_13, %c0_14] : memref<128x128xf32, #tpu.memory_space<vmem>>, vector<128x128xf32>
      tpu.vector_store %arg8[%c0_13, %c0_14], %12 {strides = array<i32>} : memref<128x128xf32, #tpu.memory_space<vmem>>, vector<128x128xf32>,
    } else {
    }
    %c0_i32_9 = arith.constant 0 : i32
    %16 = arith.cmpi sgt, %arg2, %c0_i32_9 : i32
    %17 = arith.extui %16 : i1 to i32
    %c0_i32_10 = arith.constant 0 : i32
    %18 = arith.cmpi ne, %17, %c0_i32_10 : i32
    scf.if %18 {
      %c0_13 = arith.constant 0 : index
      %c0_14 = arith.constant 0 : index
      %22 = vector.load %arg8[%c0_13, %c0_14] : memref<128x128xf32, #tpu.memory_space<vmem>>, vector<128x128xf32>
      %23 = arith.addf %22, %12 : vector<128x128xf32>
      %c0_15 = arith.constant 0 : index
      %c0_16 = arith.constant 0 : index
      %24 = vector.load %arg8[%c0_15, %c0_16] : memref<128x128xf32, #tpu.memory_space<vmem>>, vector<128x128xf32>
      tpu.vector_store %arg8[%c0_15, %c0_16], %23 {strides = array<i32>} : memref<128x128xf32, #tpu.memory_space<vmem>>, vector<128x128xf32>,
    } else {
    }
    %c0_i32_11 = arith.constant 0 : i32
    %19 = arith.cmpi eq, %arg2, %c0_i32_11 : i32
    %20 = arith.extui %19 : i1 to i32
    %c0_i32_12 = arith.constant 0 : i32
    %21 = arith.cmpi ne, %20, %c0_i32_12 : i32
    scf.if %21 {
      %c0_13 = arith.constant 0 : index
      %c0_14 = arith.constant 0 : index
      %22 = vector.load %arg8[%c0_13, %c0_14] : memref<128x128xf32, #tpu.memory_space<vmem>>, vector<128x128xf32>
      %23 = arith.truncf %22 : vector<128x128xf32> to vector<128x128xbf16>
      %c0_15 = arith.constant 0 : index
      %c0_16 = arith.constant 0 : index
      %24 = vector.load %arg7[%c0_15, %c0_16] : memref<128x128xbf16, #tpu.memory_space<vmem>>, vector<128x128xbf16>
      tpu.vector_store %arg7[%c0_15, %c0_16], %23 {strides = array<i32>} : memref<128x128xbf16, #tpu.memory_space<vmem>>, vector<128x128xbf16>,
    } else {
    }
    return
  }
  func.func @transform_0(%arg0: i32, %arg1: i32, %arg2: i32) -> (i32, i32) {
    %c0_i32 = arith.constant 0 : i32
    return %arg0, %arg2 : i32, i32
  }
  func.func @transform_1(%arg0: i32, %arg1: i32, %arg2: i32) -> (i32, i32) {
    %c0_i32 = arith.constant 0 : i32
    return %arg2, %arg1 : i32, i32
  }
  func.func @transform_2(%arg0: i32, %arg1: i32, %arg2: i32) -> (i32, i32) {
    %c0_i32 = arith.constant 0 : i32
    %c0_i32_0 = arith.constant 0 : i32
    return %c0_i32, %arg2 : i32, i32
  }
  func.func @transform_3(%arg0: i32, %arg1: i32, %arg2: i32) -> (i32, i32) {
    %c0_i32 = arith.constant 0 : i32
    %c0_i32_0 = arith.constant 0 : i32
    return %c0_i32, %arg2 : i32, i32
  }
  func.func @transform_4(%arg0: i32, %arg1: i32, %arg2: i32) -> (i32, i32) {
    %c0_i32 = arith.constant 0 : i32
    return %arg0, %arg1 : i32, i32
  }
}

module attributes {stable_mosaic.version = 11 : i64} {
  func.func @_bn_stats_kernel(%arg0: i32, %arg1: memref<512x128xbf16, #tpu.memory_space<vmem>>, %arg2: memref<2x128xf32, #tpu.memory_space<vmem>>) attributes {dimension_semantics = [#tpu.dimension_semantics<arbitrary>], iteration_bounds = array<i64: 1>, scalar_prefetch = 0 : i64, scratch_operands = 0 : i64, tpu.core_type = #tpu.core_type<tc>, window_params = [{transform_indices = @transform_0, window_bounds = array<i64: 512, 128>}, {pipeline_mode = #tpu.pipeline_mode<synchronous>, transform_indices = @transform_1, window_bounds = array<i64: 2, 128>}]} {
    %c0_i32 = arith.constant 0 : i32
    %0 = arith.cmpi eq, %arg0, %c0_i32 : i32
    %1 = arith.extui %0 : i1 to i32
    %c0_i32_0 = arith.constant 0 : i32
    %2 = arith.cmpi ne, %1, %c0_i32_0 : i32
    scf.if %2 {
      %cst_7 = arith.constant 0.000000e+00 : f32
      %14 = vector.broadcast %cst_7 : f32 to vector<2x128xf32>
      %c0_8 = arith.constant 0 : index
      %c0_9 = arith.constant 0 : index
      %15 = vector.load %arg2[%c0_8, %c0_9] : memref<2x128xf32, #tpu.memory_space<vmem>>, vector<2x128xf32>
      tpu.vector_store %arg2[%c0_8, %c0_9], %14 {strides = array<i32>} : memref<2x128xf32, #tpu.memory_space<vmem>>, vector<2x128xf32>,
    } else {
    }
    %c0 = arith.constant 0 : index
    %c0_1 = arith.constant 0 : index
    %3 = vector.load %arg1[%c0, %c0_1] : memref<512x128xbf16, #tpu.memory_space<vmem>>, vector<512x128xbf16>
    %4 = arith.extf %3 : vector<512x128xbf16> to vector<512x128xf32>
    %cst = arith.constant dense<0.000000e+00> : vector<128xf32>
    %5 = vector.multi_reduction <add>, %4, %cst [0] : vector<512x128xf32> to vector<128xf32>
    %6 = vector.shape_cast %5 : vector<128xf32> to vector<1x128xf32>
    %7 = arith.mulf %4, %4 : vector<512x128xf32>
    %cst_2 = arith.constant dense<0.000000e+00> : vector<128xf32>
    %8 = vector.multi_reduction <add>, %7, %cst_2 [0] : vector<512x128xf32> to vector<128xf32>
    %9 = vector.shape_cast %8 : vector<128xf32> to vector<1x128xf32>
    %c0_3 = arith.constant 0 : index
    %c0_4 = arith.constant 0 : index
    %10 = vector.load %arg2[%c0_3, %c0_4] : memref<2x128xf32, #tpu.memory_space<vmem>>, vector<2x128xf32>
    %11 = tpu.concatenate %6, %9 in 0 : vector<1x128xf32>, vector<1x128xf32> -> vector<2x128xf32>
    %12 = arith.addf %10, %11 : vector<2x128xf32>
    %c0_5 = arith.constant 0 : index
    %c0_6 = arith.constant 0 : index
    %13 = vector.load %arg2[%c0_5, %c0_6] : memref<2x128xf32, #tpu.memory_space<vmem>>, vector<2x128xf32>
    tpu.vector_store %arg2[%c0_5, %c0_6], %12 {strides = array<i32>} : memref<2x128xf32, #tpu.memory_space<vmem>>, vector<2x128xf32>,
    return
  }
  func.func @transform_0(%arg0: i32) -> (i32, i32) {
    %c0_i32 = arith.constant 0 : i32
    %c0_i32_0 = arith.constant 0 : i32
    return %arg0, %c0_i32 : i32, i32
  }
  func.func @transform_1(%arg0: i32) -> (i32, i32) {
    %c0_i32 = arith.constant 0 : i32
    %c0_i32_0 = arith.constant 0 : i32
    %c0_i32_1 = arith.constant 0 : i32
    return %c0_i32, %c0_i32_0 : i32, i32
  }
}

module attributes {stable_mosaic.version = 11 : i64} {
  func.func @_mm_kernel(%arg0: i32, %arg1: i32, %arg2: i32, %arg3: memref<512x256xbf16, #tpu.memory_space<vmem>>, %arg4: memref<256x128xbf16, #tpu.memory_space<vmem>>, %arg5: memref<1x256xf32, #tpu.memory_space<vmem>>, %arg6: memref<1x256xf32, #tpu.memory_space<vmem>>, %arg7: memref<1x128xf32, #tpu.memory_space<vmem>>, %arg8: memref<512x128xf32, #tpu.memory_space<vmem>>, %arg9: memref<512x128xf32, #tpu.memory_space<vmem>>) attributes {dimension_semantics = [#tpu.dimension_semantics<parallel>, #tpu.dimension_semantics<parallel>, #tpu.dimension_semantics<arbitrary>], iteration_bounds = array<i64: 1, 1, 1>, scalar_prefetch = 0 : i64, scratch_operands = 1 : i64, tpu.core_type = #tpu.core_type<tc>, window_params = [{transform_indices = @transform_0, window_bounds = array<i64: 512, 256>}, {transform_indices = @transform_1, window_bounds = array<i64: 256, 128>}, {transform_indices = @transform_2, window_bounds = array<i64: 1, 256>}, {transform_indices = @transform_3, window_bounds = array<i64: 1, 256>}, {transform_indices = @transform_4, window_bounds = array<i64: 1, 128>}, {transform_indices = @transform_5, window_bounds = array<i64: 512, 128>}]} {
    %c0 = arith.constant 0 : index
    %c0_0 = arith.constant 0 : index
    %0 = vector.load %arg3[%c0, %c0_0] : memref<512x256xbf16, #tpu.memory_space<vmem>>, vector<512x256xbf16>
    %1 = arith.extf %0 : vector<512x256xbf16> to vector<512x256xf32>
    %c0_1 = arith.constant 0 : index
    %c0_2 = arith.constant 0 : index
    %2 = vector.load %arg5[%c0_1, %c0_2] : memref<1x256xf32, #tpu.memory_space<vmem>>, vector<1x256xf32>
    %3 = vector.broadcast %2 : vector<1x256xf32> to vector<512x256xf32>
    %4 = arith.mulf %1, %3 : vector<512x256xf32>
    %c0_3 = arith.constant 0 : index
    %c0_4 = arith.constant 0 : index
    %5 = vector.load %arg6[%c0_3, %c0_4] : memref<1x256xf32, #tpu.memory_space<vmem>>, vector<1x256xf32>
    %6 = vector.broadcast %5 : vector<1x256xf32> to vector<512x256xf32>
    %7 = arith.addf %4, %6 : vector<512x256xf32>
    %cst = arith.constant 0.000000e+00 : f32
    %8 = vector.broadcast %cst : f32 to vector<512x256xf32>
    %9 = arith.maximumf %7, %8 : vector<512x256xf32>
    %10 = arith.truncf %9 : vector<512x256xf32> to vector<512x256xbf16>
    %c0_5 = arith.constant 0 : index
    %c0_6 = arith.constant 0 : index
    %11 = vector.load %arg4[%c0_5, %c0_6] : memref<256x128xbf16, #tpu.memory_space<vmem>>, vector<256x128xbf16>
    %cst_7 = arith.constant dense<0.000000e+00> : vector<512x128xf32>
    %12 = tpu.matmul %10, %11, %cst_7 {dimension_numbers = #tpu.dot_dimension_numbers<[1], [0], [0], [1], [0, 0, 1, 1], [], []>} : vector<512x256xbf16>, vector<256x128xbf16>, vector<512x128xf32> -> vector<512x128xf32>
    %c0_i32 = arith.constant 0 : i32
    %13 = arith.cmpi eq, %arg2, %c0_i32 : i32
    %14 = arith.extui %13 : i1 to i32
    %c0_i32_8 = arith.constant 0 : i32
    %15 = arith.cmpi ne, %14, %c0_i32_8 : i32
    scf.if %15 {
      %c0_13 = arith.constant 0 : index
      %c0_14 = arith.constant 0 : index
      %22 = vector.load %arg9[%c0_13, %c0_14] : memref<512x128xf32, #tpu.memory_space<vmem>>, vector<512x128xf32>
      tpu.vector_store %arg9[%c0_13, %c0_14], %12 {strides = array<i32>} : memref<512x128xf32, #tpu.memory_space<vmem>>, vector<512x128xf32>,
    } else {
    }
    %c0_i32_9 = arith.constant 0 : i32
    %16 = arith.cmpi sgt, %arg2, %c0_i32_9 : i32
    %17 = arith.extui %16 : i1 to i32
    %c0_i32_10 = arith.constant 0 : i32
    %18 = arith.cmpi ne, %17, %c0_i32_10 : i32
    scf.if %18 {
      %c0_13 = arith.constant 0 : index
      %c0_14 = arith.constant 0 : index
      %22 = vector.load %arg9[%c0_13, %c0_14] : memref<512x128xf32, #tpu.memory_space<vmem>>, vector<512x128xf32>
      %23 = arith.addf %22, %12 : vector<512x128xf32>
      %c0_15 = arith.constant 0 : index
      %c0_16 = arith.constant 0 : index
      %24 = vector.load %arg9[%c0_15, %c0_16] : memref<512x128xf32, #tpu.memory_space<vmem>>, vector<512x128xf32>
      tpu.vector_store %arg9[%c0_15, %c0_16], %23 {strides = array<i32>} : memref<512x128xf32, #tpu.memory_space<vmem>>, vector<512x128xf32>,
    } else {
    }
    %c0_i32_11 = arith.constant 0 : i32
    %19 = arith.cmpi eq, %arg2, %c0_i32_11 : i32
    %20 = arith.extui %19 : i1 to i32
    %c0_i32_12 = arith.constant 0 : i32
    %21 = arith.cmpi ne, %20, %c0_i32_12 : i32
    scf.if %21 {
      %c0_13 = arith.constant 0 : index
      %c0_14 = arith.constant 0 : index
      %22 = vector.load %arg9[%c0_13, %c0_14] : memref<512x128xf32, #tpu.memory_space<vmem>>, vector<512x128xf32>
      %c0_15 = arith.constant 0 : index
      %c0_16 = arith.constant 0 : index
      %23 = vector.load %arg7[%c0_15, %c0_16] : memref<1x128xf32, #tpu.memory_space<vmem>>, vector<1x128xf32>
      %24 = vector.broadcast %23 : vector<1x128xf32> to vector<512x128xf32>
      %25 = arith.addf %22, %24 : vector<512x128xf32>
      %26 = math.tanh %25 : vector<512x128xf32>
      %c0_17 = arith.constant 0 : index
      %c0_18 = arith.constant 0 : index
      %27 = vector.load %arg8[%c0_17, %c0_18] : memref<512x128xf32, #tpu.memory_space<vmem>>, vector<512x128xf32>
      tpu.vector_store %arg8[%c0_17, %c0_18], %26 {strides = array<i32>} : memref<512x128xf32, #tpu.memory_space<vmem>>, vector<512x128xf32>,
    } else {
    }
    return
  }
  func.func @transform_0(%arg0: i32, %arg1: i32, %arg2: i32) -> (i32, i32) {
    %c0_i32 = arith.constant 0 : i32
    return %arg0, %arg2 : i32, i32
  }
  func.func @transform_1(%arg0: i32, %arg1: i32, %arg2: i32) -> (i32, i32) {
    %c0_i32 = arith.constant 0 : i32
    return %arg2, %arg1 : i32, i32
  }
  func.func @transform_2(%arg0: i32, %arg1: i32, %arg2: i32) -> (i32, i32) {
    %c0_i32 = arith.constant 0 : i32
    %c0_i32_0 = arith.constant 0 : i32
    return %c0_i32, %arg2 : i32, i32
  }
  func.func @transform_3(%arg0: i32, %arg1: i32, %arg2: i32) -> (i32, i32) {
    %c0_i32 = arith.constant 0 : i32
    %c0_i32_0 = arith.constant 0 : i32
    return %c0_i32, %arg2 : i32, i32
  }
  func.func @transform_4(%arg0: i32, %arg1: i32, %arg2: i32) -> (i32, i32) {
    %c0_i32 = arith.constant 0 : i32
    %c0_i32_0 = arith.constant 0 : i32
    return %c0_i32, %arg1 : i32, i32
  }
  func.func @transform_5(%arg0: i32, %arg1: i32, %arg2: i32) -> (i32, i32) {
    %c0_i32 = arith.constant 0 : i32
    return %arg0, %arg1 : i32, i32
  }
}

</mosaic_0001>

<llo_original>
// kernel: _lambda_.17
$region0: #{_lambda_.17}
  #allocation0 [shape = 'u32[]', space=smem, size = 0x4, offset = 0x4, fixed_abs, tag = 'smem constant byte address 0x4 - core index']
  #allocation1 [shape = 'u32[144,128]{1,0:T(1,128)}', space=vmem, size = 0x12000, scoped, tag = 'internal scratch']
  #allocation2 [shape = 'f32[512,128]{1,0:T(8,128)}', space=vmem, size = 0x40000, scoped, tag = 'scratch operand']
  %s0 = inlined_call_operand.vmem [shape: bf16[512,128], index: 0, kind: input, shape index: {}]
  %s1 = inlined_call_operand.vmem [shape: bf16[128,128], index: 1, kind: input, shape index: {}]
  %s2 = inlined_call_operand.vmem [shape: bf16[512,128], index: 2, kind: output, shape index: {}]
  %s3 = sld [smem:[#allocation0]]
  $region30: #{_lambda_.17} parent=0
    _
  %s5 = ssub.s32 1, %s3
  %s6 = scalar_select 0, %s5, %s3
  // Predicated region
  $region2: #{_lambda_.17} parent=0 // pred_check
    _
  $region3: #{_lambda_.17} parent=0 // pred_check_branch
    %8 = sbr.rel (0) target = $region5
  $region4: #{_lambda_.17} parent=0 // pred_region
    _
  $region5: #{_lambda_.17} parent=0 // pred_fallthru
    _
  // Predicated region
  $region6: #{_lambda_.17} parent=0 // pred_check
    _
  $region7: #{_lambda_.17} parent=0 // pred_check_branch
    %10 = sbr.rel (0) target = $region9
  $region8: #{_lambda_.17} parent=0 // pred_region
    _
  $region9: #{_lambda_.17} parent=0 // pred_fallthru
    _
  %v12 = vld [vmem:[%s0] sm:$0xf]
  %v13 = vld [vmem:[%s0 + $0x4] sm:$0xf]
  %v14 = vld [vmem:[%s0 + $0x8] sm:$0xf]
  %v15 = vld [vmem:[%s0 + $0xc] sm:$0xf]
  %v16 = vld [vmem:[%s0 + $0x10] sm:$0xf]
  %v17 = vld [vmem:[%s0 + $0x14] sm:$0xf]
  %v18 = vld [vmem:[%s0 + $0x18] sm:$0xf]
  %v19 = vld [vmem:[%s0 + $0x1c] sm:$0xf]
  %v20 = vld [vmem:[%s0 + $0x20] sm:$0xf]
  %v21 = vld [vmem:[%s0 + $0x24] sm:$0xf]
  %v22 = vld [vmem:[%s0 + $0x28] sm:$0xf]
  %v23 = vld [vmem:[%s0 + $0x2c] sm:$0xf]
  %v24 = vld [vmem:[%s0 + $0x30] sm:$0xf]
  %v25 = vld [vmem:[%s0 + $0x34] sm:$0xf]
  %v26 = vld [vmem:[%s0 + $0x38] sm:$0xf]
  %v27 = vld [vmem:[%s0 + $0x3c] sm:$0xf]
  %v28 = vld [vmem:[%s0 + $0x40] sm:$0xf]
  %v29 = vld [vmem:[%s0 + $0x44] sm:$0xf]
  %v30 = vld [vmem:[%s0 + $0x48] sm:$0xf]
  %v31 = vld [vmem:[%s0 + $0x4c] sm:$0xf]
  %v32 = vld [vmem:[%s0 + $0x50] sm:$0xf]
  %v33 = vld [vmem:[%s0 + $0x54] sm:$0xf]
  %v34 = vld [vmem:[%s0 + $0x58] sm:$0xf]
  %v35 = vld [vmem:[%s0 + $0x5c] sm:$0xf]
  %v36 = vld [vmem:[%s0 + $0x60] sm:$0xf]
  %v37 = vld [vmem:[%s0 + $0x64] sm:$0xf]
  %v38 = vld [vmem:[%s0 + $0x68] sm:$0xf]
  %v39 = vld [vmem:[%s0 + $0x6c] sm:$0xf]
  %v40 = vld [vmem:[%s0 + $0x70] sm:$0xf]
  %v41 = vld [vmem:[%s0 + $0x74] sm:$0xf]
  %v42 = vld [vmem:[%s0 + $0x78] sm:$0xf]
  %v43 = vld [vmem:[%s0 + $0x7c] sm:$0xf]
  %v44 = vld [vmem:[%s0 + $0x80] sm:$0xf]
  %v45 = vld [vmem:[%s0 + $0x84] sm:$0xf]
  %v46 = vld [vmem:[%s0 + $0x88] sm:$0xf]
  %v47 = vld [vmem:[%s0 + $0x8c] sm:$0xf]
  %v48 = vld [vmem:[%s0 + $0x90] sm:$0xf]
  %v49 = vld [vmem:[%s0 + $0x94] sm:$0xf]
  %v50 = vld [vmem:[%s0 + $0x98] sm:$0xf]
  %v51 = vld [vmem:[%s0 + $0x9c] sm:$0xf]
  %v52 = vld [vmem:[%s0 + $0xa0] sm:$0xf]
  %v53 = vld [vmem:[%s0 + $0xa4] sm:$0xf]
  %v54 = vld [vmem:[%s0 + $0xa8] sm:$0xf]
  %v55 = vld [vmem:[%s0 + $0xac] sm:$0xf]
  %v56 = vld [vmem:[%s0 + $0xb0] sm:$0xf]
  %v57 = vld [vmem:[%s0 + $0xb4] sm:$0xf]
  %v58 = vld [vmem:[%s0 + $0xb8] sm:$0xf]
  %v59 = vld [vmem:[%s0 + $0xbc] sm:$0xf]
  %v60 = vld [vmem:[%s0 + $0xc0] sm:$0xf]
  %v61 = vld [vmem:[%s0 + $0xc4] sm:$0xf]
  %v62 = vld [vmem:[%s0 + $0xc8] sm:$0xf]
  %v63 = vld [vmem:[%s0 + $0xcc] sm:$0xf]
  %v64 = vld [vmem:[%s0 + $0xd0] sm:$0xf]
  %v65 = vld [vmem:[%s0 + $0xd4] sm:$0xf]
  %v66 = vld [vmem:[%s0 + $0xd8] sm:$0xf]
  %v67 = vld [vmem:[%s0 + $0xdc] sm:$0xf]
  %v68 = vld [vmem:[%s0 + $0xe0] sm:$0xf]
  %v69 = vld [vmem:[%s0 + $0xe4] sm:$0xf]
  %v70 = vld [vmem:[%s0 + $0xe8] sm:$0xf]
  %v71 = vld [vmem:[%s0 + $0xec] sm:$0xf]
  %v72 = vld [vmem:[%s0 + $0xf0] sm:$0xf]
  %v73 = vld [vmem:[%s0 + $0xf4] sm:$0xf]
  %v74 = vld [vmem:[%s0 + $0xf8] sm:$0xf]
  %v75 = vld [vmem:[%s0 + $0xfc] sm:$0xf]
  %v76 = vld [vmem:[%s1] sm:$0xf]
  %v77 = vld [vmem:[%s1 + $0x4] sm:$0xf]
  %v78 = vld [vmem:[%s1 + $0x8] sm:$0xf]
  %v79 = vld [vmem:[%s1 + $0xc] sm:$0xf]
  %v80 = vld [vmem:[%s1 + $0x10] sm:$0xf]
  %v81 = vld [vmem:[%s1 + $0x14] sm:$0xf]
  %v82 = vld [vmem:[%s1 + $0x18] sm:$0xf]
  %v83 = vld [vmem:[%s1 + $0x1c] sm:$0xf]
  %v84 = vld [vmem:[%s1 + $0x20] sm:$0xf]
  %v85 = vld [vmem:[%s1 + $0x24] sm:$0xf]
  %v86 = vld [vmem:[%s1 + $0x28] sm:$0xf]
  %v87 = vld [vmem:[%s1 + $0x2c] sm:$0xf]
  %v88 = vld [vmem:[%s1 + $0x30] sm:$0xf]
  %v89 = vld [vmem:[%s1 + $0x34] sm:$0xf]
  %v90 = vld [vmem:[%s1 + $0x38] sm:$0xf]
  %v91 = vld [vmem:[%s1 + $0x3c] sm:$0xf]
  %v156 = vunpack.c.l.b16 %v12
  %v157 = vunpack.c.l.b16 %v13
  %v158 = vunpack.c.l.b16 %v14
  %v159 = vunpack.c.l.b16 %v15
  %v160 = vunpack.c.l.b16 %v16
  %v161 = vunpack.c.l.b16 %v17
  %v162 = vunpack.c.l.b16 %v18
  %v163 = vunpack.c.l.b16 %v19
  %v164 = vunpack.c.l.b16 %v20
  %v165 = vunpack.c.l.b16 %v21
  %v166 = vunpack.c.l.b16 %v22
  %v167 = vunpack.c.l.b16 %v23
  %v168 = vunpack.c.l.b16 %v24
  %v169 = vunpack.c.l.b16 %v25
  %v170 = vunpack.c.l.b16 %v26
  %v171 = vunpack.c.l.b16 %v27
  %v172 = vunpack.c.l.b16 %v28
  %v173 = vunpack.c.l.b16 %v29
  %v174 = vunpack.c.l.b16 %v30
  %v175 = vunpack.c.l.b16 %v31
  %v176 = vunpack.c.l.b16 %v32
  %v177 = vunpack.c.l.b16 %v33
  %v178 = vunpack.c.l.b16 %v34
  %v179 = vunpack.c.l.b16 %v35
  %v180 = vunpack.c.l.b16 %v36
  %v181 = vunpack.c.l.b16 %v37
  %v182 = vunpack.c.l.b16 %v38
  %v183 = vunpack.c.l.b16 %v39
  %v184 = vunpack.c.l.b16 %v40
  %v185 = vunpack.c.l.b16 %v41
  %v186 = vunpack.c.l.b16 %v42
  %v187 = vunpack.c.l.b16 %v43
  %v188 = vunpack.c.l.b16 %v44
  %v189 = vunpack.c.l.b16 %v45
  %v190 = vunpack.c.l.b16 %v46
  %v191 = vunpack.c.l.b16 %v47
  %v192 = vunpack.c.l.b16 %v48
  %v193 = vunpack.c.l.b16 %v49
  %v194 = vunpack.c.l.b16 %v50
  %v195 = vunpack.c.l.b16 %v51
  %v196 = vunpack.c.l.b16 %v52
  %v197 = vunpack.c.l.b16 %v53
  %v198 = vunpack.c.l.b16 %v54
  %v199 = vunpack.c.l.b16 %v55
  %v200 = vunpack.c.l.b16 %v56
  %v201 = vunpack.c.l.b16 %v57
  %v202 = vunpack.c.l.b16 %v58
  %v203 = vunpack.c.l.b16 %v59
  %v204 = vunpack.c.l.b16 %v60
  %v205 = vunpack.c.l.b16 %v61
  %v206 = vunpack.c.l.b16 %v62
  %v207 = vunpack.c.l.b16 %v63
  %v208 = vunpack.c.l.b16 %v64
  %v209 = vunpack.c.l.b16 %v65
  %v210 = vunpack.c.l.b16 %v66
  %v211 = vunpack.c.l.b16 %v67
  %v212 = vunpack.c.l.b16 %v68
  %v213 = vunpack.c.l.b16 %v69
  %v214 = vunpack.c.l.b16 %v70
  %v215 = vunpack.c.l.b16 %v71
  %v216 = vunpack.c.l.b16 %v72
  %v217 = vunpack.c.l.b16 %v73
  %v218 = vunpack.c.l.b16 %v74
  %v219 = vunpack.c.l.b16 %v75
  %v220 = vpack.c.b16 %v157, %v156
  %v221 = vpack.c.b16 %v159, %v158
  %v222 = vpack.c.b16 %v161, %v160
  %v223 = vpack.c.b16 %v163, %v162
  %v224 = vpack.c.b16 %v165, %v164
  %v225 = vpack.c.b16 %v167, %v166
  %v226 = vpack.c.b16 %v169, %v168
  %v227 = vpack.c.b16 %v171, %v170
  %v228 = vpack.c.b16 %v173, %v172
  %v229 = vpack.c.b16 %v175, %v174
  %v230 = vpack.c.b16 %v177, %v176
  %v231 = vpack.c.b16 %v179, %v178
  %v232 = vpack.c.b16 %v181, %v180
  %v233 = vpack.c.b16 %v183, %v182
  %v234 = vpack.c.b16 %v185, %v184
  %v235 = vpack.c.b16 %v187, %v186
  %v236 = vpack.c.b16 %v189, %v188
  %v237 = vpack.c.b16 %v191, %v190
  %v238 = vpack.c.b16 %v193, %v192
  %v239 = vpack.c.b16 %v195, %v194
  %v240 = vpack.c.b16 %v197, %v196
  %v241 = vpack.c.b16 %v199, %v198
  %v242 = vpack.c.b16 %v201, %v200
  %v243 = vpack.c.b16 %v203, %v202
  %v244 = vpack.c.b16 %v205, %v204
  %v245 = vpack.c.b16 %v207, %v206
  %v246 = vpack.c.b16 %v209, %v208
  %v247 = vpack.c.b16 %v211, %v210
  %v248 = vpack.c.b16 %v213, %v212
  %v249 = vpack.c.b16 %v215, %v214
  %v250 = vpack.c.b16 %v217, %v216
  %v251 = vpack.c.b16 %v219, %v218
  %v300 = vunpack.c.l.b16 %v76
  %v301 = vunpack.c.l.b16 %v77
  %v302 = vunpack.c.l.b16 %v78
  %v303 = vunpack.c.l.b16 %v79
  %v304 = vunpack.c.l.b16 %v80
  %v305 = vunpack.c.l.b16 %v81
  %v306 = vunpack.c.l.b16 %v82
  %v307 = vunpack.c.l.b16 %v83
  %v308 = vunpack.c.l.b16 %v84
  %v309 = vunpack.c.l.b16 %v85
  %v310 = vunpack.c.l.b16 %v86
  %v311 = vunpack.c.l.b16 %v87
  %v312 = vunpack.c.l.b16 %v88
  %v313 = vunpack.c.l.b16 %v89
  %v314 = vunpack.c.l.b16 %v90
  %v315 = vunpack.c.l.b16 %v91
  %v316 = vpack.c.b16 %v301, %v300
  %v317 = vpack.c.b16 %v303, %v302
  %v318 = vpack.c.b16 %v305, %v304
  %v319 = vpack.c.b16 %v307, %v306
  %v320 = vpack.c.b16 %v309, %v308
  %v321 = vpack.c.b16 %v311, %v310
  %v322 = vpack.c.b16 %v313, %v312
  %v323 = vpack.c.b16 %v315, %v314
  %332 = vmatprep.subr.bf16.mxu0 0
  %333 = vmatpush1.bf16.msra.mxu0 %v316
  %334 = vmatprep.subr.bf16.mxu0 0
  %335 = vmatpush1.bf16.msra.mxu0 %v317
  %336 = vmatprep.subr.bf16.mxu0 0
  %337 = vmatpush1.bf16.msra.mxu0 %v318
  %338 = vmatprep.subr.bf16.mxu0 0
  %339 = vmatpush1.bf16.msra.mxu0 %v319
  %340 = vmatprep.subr.bf16.mxu0 0
  %341 = vmatpush1.bf16.msra.mxu0 %v320
  %342 = vmatprep.subr.bf16.mxu0 0
  %343 = vmatpush1.bf16.msra.mxu0 %v321
  %344 = vmatprep.subr.bf16.mxu0 0
  %345 = vmatpush1.bf16.msra.mxu0 %v322
  %346 = vmatprep.subr.bf16.mxu0 0
  %347 = vmatpush1.bf16.msra.mxu0 %v323
  %348 = vmatprep.subr.bf16.mxu0 0
  %349 = vmatpush1.bf16.msra.mxu0 0
  %350 = vmatprep.subr.bf16.mxu0 0
  %351 = vmatpush1.bf16.msra.mxu0 0
  %352 = vmatprep.subr.bf16.mxu0 0
  %353 = vmatpush1.bf16.msra.mxu0 0
  %354 = vmatprep.subr.bf16.mxu0 0
  %355 = vmatpush1.bf16.msra.mxu0 0
  %356 = vmatprep.subr.bf16.mxu0 0
  %357 = vmatpush1.bf16.msra.mxu0 0
  %358 = vmatprep.subr.bf16.mxu0 0
  %359 = vmatpush1.bf16.msra.mxu0 0
  %360 = vmatprep.subr.bf16.mxu0 0
  %361 = vmatpush1.bf16.msra.mxu0 0
  %362 = vmatprep.subr.bf16.mxu0 0
  %363 = vmatpush1.bf16.msra.mxu0 0
  %364 = vmatprep.mubr.bf16.mxu0 0
  %365 = vmatmul.mubr.bf16.gmra.mrb[0].mxu0 %v220
  %v366 = vpop.f32.mrb[0].mxu0
  %v367 = vadd.f32 0.0, %v366
  %v368 = vpop.f32.mrb[0].mxu0
  %v369 = vpop.f32.mrb[0].mxu0
  %v370 = vadd.f32 0.0, %v369
  %v371 = vpop.f32.mrb[0].mxu0
  %372 = vmatprep.mubr.bf16.mxu0 0
  %373 = vmatmul.mubr.bf16.gmra.mrb[0].mxu0 %v221
  %v374 = vpop.f32.mrb[0].mxu0
  %v375 = vadd.f32 0.0, %v374
  %v376 = vpop.f32.mrb[0].mxu0
  %v377 = vpop.f32.mrb[0].mxu0
  %v378 = vadd.f32 0.0, %v377
  %v379 = vpop.f32.mrb[0].mxu0
  %380 = vmatprep.mubr.bf16.mxu0 0
  %381 = vmatmul.mubr.bf16.gmra.mrb[0].mxu0 %v222
  %v382 = vpop.f32.mrb[0].mxu0
  %v383 = vadd.f32 0.0, %v382
  %v384 = vpop.f32.mrb[0].mxu0
  %v385 = vpop.f32.mrb[0].mxu0
  %v386 = vadd.f32 0.0, %v385
  %v387 = vpop.f32.mrb[0].mxu0
  %388 = vmatprep.mubr.bf16.mxu0 0
  %389 = vmatmul.mubr.bf16.gmra.mrb[0].mxu0 %v223
  %v390 = vpop.f32.mrb[0].mxu0
  %v391 = vadd.f32 0.0, %v390
  %v392 = vpop.f32.mrb[0].mxu0
  %v393 = vpop.f32.mrb[0].mxu0
  %v394 = vadd.f32 0.0, %v393
  %v395 = vpop.f32.mrb[0].mxu0
  %396 = vmatprep.mubr.bf16.mxu0 0
  %397 = vmatmul.mubr.bf16.gmra.mrb[0].mxu0 %v224
  %v398 = vpop.f32.mrb[0].mxu0
  %v399 = vadd.f32 0.0, %v398
  %v400 = vpop.f32.mrb[0].mxu0
  %v401 = vpop.f32.mrb[0].mxu0
  %v402 = vadd.f32 0.0, %v401
  %v403 = vpop.f32.mrb[0].mxu0
  %404 = vmatprep.mubr.bf16.mxu0 0
  %405 = vmatmul.mubr.bf16.gmra.mrb[0].mxu0 %v225
  %v406 = vpop.f32.mrb[0].mxu0
  %v407 = vadd.f32 0.0, %v406
  %v408 = vpop.f32.mrb[0].mxu0
  %v409 = vpop.f32.mrb[0].mxu0
  %v410 = vadd.f32 0.0, %v409
  %v411 = vpop.f32.mrb[0].mxu0
  %412 = vmatprep.mubr.bf16.mxu0 0
  %413 = vmatmul.mubr.bf16.gmra.mrb[0].mxu0 %v226
  %v414 = vpop.f32.mrb[0].mxu0
  %v415 = vadd.f32 0.0, %v414
  %v416 = vpop.f32.mrb[0].mxu0
  %v417 = vpop.f32.mrb[0].mxu0
  %v418 = vadd.f32 0.0, %v417
  %v419 = vpop.f32.mrb[0].mxu0
  %420 = vmatprep.mubr.bf16.mxu0 0
  %421 = vmatmul.mubr.bf16.gmra.mrb[0].mxu0 %v227
  %v422 = vpop.f32.mrb[0].mxu0
  %v423 = vadd.f32 0.0, %v422
  %v424 = vpop.f32.mrb[0].mxu0
  %v425 = vpop.f32.mrb[0].mxu0
  %v426 = vadd.f32 0.0, %v425
  %v427 = vpop.f32.mrb[0].mxu0
  %428 = vmatprep.mubr.bf16.mxu0 0
  %429 = vmatmul.mubr.bf16.gmra.mrb[0].mxu0 %v228
  %v430 = vpop.f32.mrb[0].mxu0
  %v431 = vadd.f32 0.0, %v430
  %v432 = vpop.f32.mrb[0].mxu0
  %v433 = vpop.f32.mrb[0].mxu0
  %v434 = vadd.f32 0.0, %v433
  %v435 = vpop.f32.mrb[0].mxu0
  %436 = vmatprep.mubr.bf16.mxu0 0
  %437 = vmatmul.mubr.bf16.gmra.mrb[0].mxu0 %v229
  %v438 = vpop.f32.mrb[0].mxu0
  %v439 = vadd.f32 0.0, %v438
  %v440 = vpop.f32.mrb[0].mxu0
  %v441 = vpop.f32.mrb[0].mxu0
  %v442 = vadd.f32 0.0, %v441
  %v443 = vpop.f32.mrb[0].mxu0
  %444 = vmatprep.mubr.bf16.mxu0 0
  %445 = vmatmul.mubr.bf16.gmra.mrb[0].mxu0 %v230
  %v446 = vpop.f32.mrb[0].mxu0
  %v447 = vadd.f32 0.0, %v446
  %v448 = vpop.f32.mrb[0].mxu0
  %v449 = vpop.f32.mrb[0].mxu0
  %v450 = vadd.f32 0.0, %v449
  %v451 = vpop.f32.mrb[0].mxu0
  %452 = vmatprep.mubr.bf16.mxu0 0
  %453 = vmatmul.mubr.bf16.gmra.mrb[0].mxu0 %v231
  %v454 = vpop.f32.mrb[0].mxu0
  %v455 = vadd.f32 0.0, %v454
  %v456 = vpop.f32.mrb[0].mxu0
  %v457 = vpop.f32.mrb[0].mxu0
  %v458 = vadd.f32 0.0, %v457
  %v459 = vpop.f32.mrb[0].mxu0
  %460 = vmatprep.mubr.bf16.mxu0 0
  %461 = vmatmul.mubr.bf16.gmra.mrb[0].mxu0 %v232
  %v462 = vpop.f32.mrb[0].mxu0
  %v463 = vadd.f32 0.0, %v462
  %v464 = vpop.f32.mrb[0].mxu0
  %v465 = vpop.f32.mrb[0].mxu0
  %v466 = vadd.f32 0.0, %v465
  %v467 = vpop.f32.mrb[0].mxu0
  %468 = vmatprep.mubr.bf16.mxu0 0
  %469 = vmatmul.mubr.bf16.gmra.mrb[0].mxu0 %v233
  %v470 = vpop.f32.mrb[0].mxu0
  %v471 = vadd.f32 0.0, %v470
  %v472 = vpop.f32.mrb[0].mxu0
  %v473 = vpop.f32.mrb[0].mxu0
  %v474 = vadd.f32 0.0, %v473
  %v475 = vpop.f32.mrb[0].mxu0
  %476 = vmatprep.mubr.bf16.mxu0 0
  %477 = vmatmul.mubr.bf16.gmra.mrb[0].mxu0 %v234
  %v478 = vpop.f32.mrb[0].mxu0
  %v479 = vadd.f32 0.0, %v478
  %v480 = vpop.f32.mrb[0].mxu0
  %v481 = vpop.f32.mrb[0].mxu0
  %v482 = vadd.f32 0.0, %v481
  %v483 = vpop.f32.mrb[0].mxu0
  %484 = vmatprep.mubr.bf16.mxu0 0
  %485 = vmatmul.mubr.bf16.gmra.mrb[0].mxu0 %v235
  %v486 = vpop.f32.mrb[0].mxu0
  %v487 = vadd.f32 0.0, %v486
  %v488 = vpop.f32.mrb[0].mxu0
  %v489 = vpop.f32.mrb[0].mxu0
  %v490 = vadd.f32 0.0, %v489
  %v491 = vpop.f32.mrb[0].mxu0
  %492 = vmatprep.mubr.bf16.mxu0 0
  %493 = vmatmul.mubr.bf16.gmra.mrb[0].mxu0 %v236
  %v494 = vpop.f32.mrb[0].mxu0
  %v495 = vadd.f32 0.0, %v494
  %v496 = vpop.f32.mrb[0].mxu0
  %v497 = vpop.f32.mrb[0].mxu0
  %v498 = vadd.f32 0.0, %v497
  %v499 = vpop.f32.mrb[0].mxu0
  %500 = vmatprep.mubr.bf16.mxu0 0
  %501 = vmatmul.mubr.bf16.gmra.mrb[0].mxu0 %v237
  %v502 = vpop.f32.mrb[0].mxu0
  %v503 = vadd.f32 0.0, %v502
  %v504 = vpop.f32.mrb[0].mxu0
  %v505 = vpop.f32.mrb[0].mxu0
  %v506 = vadd.f32 0.0, %v505
  %v507 = vpop.f32.mrb[0].mxu0
  %508 = vmatprep.mubr.bf16.mxu0 0
  %509 = vmatmul.mubr.bf16.gmra.mrb[0].mxu0 %v238
  %v510 = vpop.f32.mrb[0].mxu0
  %v511 = vadd.f32 0.0, %v510
  %v512 = vpop.f32.mrb[0].mxu0
  %v513 = vpop.f32.mrb[0].mxu0
  %v514 = vadd.f32 0.0, %v513
  %v515 = vpop.f32.mrb[0].mxu0
  %516 = vmatprep.mubr.bf16.mxu0 0
  %517 = vmatmul.mubr.bf16.gmra.mrb[0].mxu0 %v239
  %v518 = vpop.f32.mrb[0].mxu0
  %v519 = vadd.f32 0.0, %v518
  %v520 = vpop.f32.mrb[0].mxu0
  %v521 = vpop.f32.mrb[0].mxu0
  %v522 = vadd.f32 0.0, %v521
  %v523 = vpop.f32.mrb[0].mxu0
  %524 = vmatprep.mubr.bf16.mxu0 0
  %525 = vmatmul.mubr.bf16.gmra.mrb[0].mxu0 %v240
  %v526 = vpop.f32.mrb[0].mxu0
  %v527 = vadd.f32 0.0, %v526
  %v528 = vpop.f32.mrb[0].mxu0
  %v529 = vpop.f32.mrb[0].mxu0
  %v530 = vadd.f32 0.0, %v529
  %v531 = vpop.f32.mrb[0].mxu0
  %532 = vmatprep.mubr.bf16.mxu0 0
  %533 = vmatmul.mubr.bf16.gmra.mrb[0].mxu0 %v241
  %v534 = vpop.f32.mrb[0].mxu0
  %v535 = vadd.f32 0.0, %v534
  %v536 = vpop.f32.mrb[0].mxu0
  %v537 = vpop.f32.mrb[0].mxu0
  %v538 = vadd.f32 0.0, %v537
  %v539 = vpop.f32.mrb[0].mxu0
  %540 = vmatprep.mubr.bf16.mxu0 0
  %541 = vmatmul.mubr.bf16.gmra.mrb[0].mxu0 %v242
  %v542 = vpop.f32.mrb[0].mxu0
  %v543 = vadd.f32 0.0, %v542
  %v544 = vpop.f32.mrb[0].mxu0
  %v545 = vpop.f32.mrb[0].mxu0
  %v546 = vadd.f32 0.0, %v545
  %v547 = vpop.f32.mrb[0].mxu0
  %548 = vmatprep.mubr.bf16.mxu0 0
  %549 = vmatmul.mubr.bf16.gmra.mrb[0].mxu0 %v243
  %v550 = vpop.f32.mrb[0].mxu0
  %v551 = vadd.f32 0.0, %v550
  %v552 = vpop.f32.mrb[0].mxu0
  %v553 = vpop.f32.mrb[0].mxu0
  %v554 = vadd.f32 0.0, %v553
  %v555 = vpop.f32.mrb[0].mxu0
  %556 = vmatprep.mubr.bf16.mxu0 0
  %557 = vmatmul.mubr.bf16.gmra.mrb[0].mxu0 %v244
  %v558 = vpop.f32.mrb[0].mxu0
  %v559 = vadd.f32 0.0, %v558
  %v560 = vpop.f32.mrb[0].mxu0
  %v561 = vpop.f32.mrb[0].mxu0
  %v562 = vadd.f32 0.0, %v561
  %v563 = vpop.f32.mrb[0].mxu0
  %564 = vmatprep.mubr.bf16.mxu0 0
  %565 = vmatmul.mubr.bf16.gmra.mrb[0].mxu0 %v245
  %v566 = vpop.f32.mrb[0].mxu0
  %v567 = vadd.f32 0.0, %v566
  %v568 = vpop.f32.mrb[0].mxu0
  %v569 = vpop.f32.mrb[0].mxu0
  %v570 = vadd.f32 0.0, %v569
  %v571 = vpop.f32.mrb[0].mxu0
  %572 = vmatprep.mubr.bf16.mxu0 0
  %573 = vmatmul.mubr.bf16.gmra.mrb[0].mxu0 %v246
  %v574 = vpop.f32.mrb[0].mxu0
  %v575 = vadd.f32 0.0, %v574
  %v576 = vpop.f32.mrb[0].mxu0
  %v577 = vpop.f32.mrb[0].mxu0
  %v578 = vadd.f32 0.0, %v577
  %v579 = vpop.f32.mrb[0].mxu0
  %580 = vmatprep.mubr.bf16.mxu0 0
  %581 = vmatmul.mubr.bf16.gmra.mrb[0].mxu0 %v247
  %v582 = vpop.f32.mrb[0].mxu0
  %v583 = vadd.f32 0.0, %v582
  %v584 = vpop.f32.mrb[0].mxu0
  %v585 = vpop.f32.mrb[0].mxu0
  %v586 = vadd.f32 0.0, %v585
  %v587 = vpop.f32.mrb[0].mxu0
  %588 = vmatprep.mubr.bf16.mxu0 0
  %589 = vmatmul.mubr.bf16.gmra.mrb[0].mxu0 %v248
  %v590 = vpop.f32.mrb[0].mxu0
  %v591 = vadd.f32 0.0, %v590
  %v592 = vpop.f32.mrb[0].mxu0
  %v593 = vpop.f32.mrb[0].mxu0
  %v594 = vadd.f32 0.0, %v593
  %v595 = vpop.f32.mrb[0].mxu0
  %596 = vmatprep.mubr.bf16.mxu0 0
  %597 = vmatmul.mubr.bf16.gmra.mrb[0].mxu0 %v249
  %v598 = vpop.f32.mrb[0].mxu0
  %v599 = vadd.f32 0.0, %v598
  %v600 = vpop.f32.mrb[0].mxu0
  %v601 = vpop.f32.mrb[0].mxu0
  %v602 = vadd.f32 0.0, %v601
  %v603 = vpop.f32.mrb[0].mxu0
  %604 = vmatprep.mubr.bf16.mxu0 0
  %605 = vmatmul.mubr.bf16.gmra.mrb[0].mxu0 %v250
  %v606 = vpop.f32.mrb[0].mxu0
  %v607 = vadd.f32 0.0, %v606
  %v608 = vpop.f32.mrb[0].mxu0
  %v609 = vpop.f32.mrb[0].mxu0
  %v610 = vadd.f32 0.0, %v609
  %v611 = vpop.f32.mrb[0].mxu0
  %612 = vmatprep.mubr.bf16.mxu0 0
  %613 = vmatmul.mubr.bf16.gmra.mrb[0].mxu0 %v251
  %v614 = vpop.f32.mrb[0].mxu0
  %v615 = vadd.f32 0.0, %v614
  %v616 = vpop.f32.mrb[0].mxu0
  %v617 = vpop.f32.mrb[0].mxu0
  %v618 = vadd.f32 0.0, %v617
  %v619 = vpop.f32.mrb[0].mxu0
  %620 = vdwg.mxu0
  %p621 = scmp.eq.s32.totalorder 0, 0
  // Predicated region
  $region10: #{_lambda_.17} parent=0 // pred_check
    %p622 = pneg %p621
  $region11: #{_lambda_.17} parent=0 // pred_check_branch
    %624 = sbr.rel (%p622) target = $region13
  $region12: #{_lambda_.17} parent=0 // pred_region
    %625 = vst [vmem:[#allocation2] sm:$0xff] %v367
    %626 = vst [vmem:[#allocation2 + $0x8] sm:$0xff] %v370
    %627 = vst [vmem:[#allocation2 + $0x10] sm:$0xff] %v375
    %628 = vst [vmem:[#allocation2 + $0x18] sm:$0xff] %v378
    %629 = vst [vmem:[#allocation2 + $0x20] sm:$0xff] %v383
    %630 = vst [vmem:[#allocation2 + $0x28] sm:$0xff] %v386
    %631 = vst [vmem:[#allocation2 + $0x30] sm:$0xff] %v391
    %632 = vst [vmem:[#allocation2 + $0x38] sm:$0xff] %v394
    %633 = vst [vmem:[#allocation2 + $0x40] sm:$0xff] %v399
    %634 = vst [vmem:[#allocation2 + $0x48] sm:$0xff] %v402
    %635 = vst [vmem:[#allocation2 + $0x50] sm:$0xff] %v407
    %636 = vst [vmem:[#allocation2 + $0x58] sm:$0xff] %v410
    %637 = vst [vmem:[#allocation2 + $0x60] sm:$0xff] %v415
    %638 = vst [vmem:[#allocation2 + $0x68] sm:$0xff] %v418
    %639 = vst [vmem:[#allocation2 + $0x70] sm:$0xff] %v423
    %640 = vst [vmem:[#allocation2 + $0x78] sm:$0xff] %v426
    %641 = vst [vmem:[#allocation2 + $0x80] sm:$0xff] %v431
    %642 = vst [vmem:[#allocation2 + $0x88] sm:$0xff] %v434
    %643 = vst [vmem:[#allocation2 + $0x90] sm:$0xff] %v439
    %644 = vst [vmem:[#allocation2 + $0x98] sm:$0xff] %v442
    %645 = vst [vmem:[#allocation2 + $0xa0] sm:$0xff] %v447
    %646 = vst [vmem:[#allocation2 + $0xa8] sm:$0xff] %v450
    %647 = vst [vmem:[#allocation2 + $0xb0] sm:$0xff] %v455
    %648 = vst [vmem:[#allocation2 + $0xb8] sm:$0xff] %v458
    %649 = vst [vmem:[#allocation2 + $0xc0] sm:$0xff] %v463
    %650 = vst [vmem:[#allocation2 + $0xc8] sm:$0xff] %v466
    %651 = vst [vmem:[#allocation2 + $0xd0] sm:$0xff] %v471
    %652 = vst [vmem:[#allocation2 + $0xd8] sm:$0xff] %v474
    %653 = vst [vmem:[#allocation2 + $0xe0] sm:$0xff] %v479
    %654 = vst [vmem:[#allocation2 + $0xe8] sm:$0xff] %v482
    %655 = vst [vmem:[#allocation2 + $0xf0] sm:$0xff] %v487
    %656 = vst [vmem:[#allocation2 + $0xf8] sm:$0xff] %v490
    %657 = vst [vmem:[#allocation2 + $0x100] sm:$0xff] %v495
    %658 = vst [vmem:[#allocation2 + $0x108] sm:$0xff] %v498
    %659 = vst [vmem:[#allocation2 + $0x110] sm:$0xff] %v503
    %660 = vst [vmem:[#allocation2 + $0x118] sm:$0xff] %v506
    %661 = vst [vmem:[#allocation2 + $0x120] sm:$0xff] %v511
    %662 = vst [vmem:[#allocation2 + $0x128] sm:$0xff] %v514
    %663 = vst [vmem:[#allocation2 + $0x130] sm:$0xff] %v519
    %664 = vst [vmem:[#allocation2 + $0x138] sm:$0xff] %v522
    %665 = vst [vmem:[#allocation2 + $0x140] sm:$0xff] %v527
    %666 = vst [vmem:[#allocation2 + $0x148] sm:$0xff] %v530
    %667 = vst [vmem:[#allocation2 + $0x150] sm:$0xff] %v535
    %668 = vst [vmem:[#allocation2 + $0x158] sm:$0xff] %v538
    %669 = vst [vmem:[#allocation2 + $0x160] sm:$0xff] %v543
    %670 = vst [vmem:[#allocation2 + $0x168] sm:$0xff] %v546
    %671 = vst [vmem:[#allocation2 + $0x170] sm:$0xff] %v551
    %672 = vst [vmem:[#allocation2 + $0x178] sm:$0xff] %v554
    %673 = vst [vmem:[#allocation2 + $0x180] sm:$0xff] %v559
    %674 = vst [vmem:[#allocation2 + $0x188] sm:$0xff] %v562
    %675 = vst [vmem:[#allocation2 + $0x190] sm:$0xff] %v567
    %676 = vst [vmem:[#allocation2 + $0x198] sm:$0xff] %v570
    %677 = vst [vmem:[#allocation2 + $0x1a0] sm:$0xff] %v575
    %678 = vst [vmem:[#allocation2 + $0x1a8] sm:$0xff] %v578
    %679 = vst [vmem:[#allocation2 + $0x1b0] sm:$0xff] %v583
    %680 = vst [vmem:[#allocation2 + $0x1b8] sm:$0xff] %v586
    %681 = vst [vmem:[#allocation2 + $0x1c0] sm:$0xff] %v591
    %682 = vst [vmem:[#allocation2 + $0x1c8] sm:$0xff] %v594
    %683 = vst [vmem:[#allocation2 + $0x1d0] sm:$0xff] %v599
    %684 = vst [vmem:[#allocation2 + $0x1d8] sm:$0xff] %v602
    %685 = vst [vmem:[#allocation2 + $0x1e0] sm:$0xff] %v607
    %686 = vst [vmem:[#allocation2 + $0x1e8] sm:$0xff] %v610
    %687 = vst [vmem:[#allocation2 + $0x1f0] sm:$0xff] %v615
    %688 = vst [vmem:[#allocation2 + $0x1f8] sm:$0xff] %v618
  $region13: #{_lambda_.17} parent=0 // pred_fallthru
    _
  %p689 = scmp.gt.s32.totalorder 0, 0
  // Predicated region
  $region14: #{_lambda_.17} parent=0 // pred_check
    %p690 = pneg %p689
  $region15: #{_lambda_.17} parent=0 // pred_check_branch
    %692 = sbr.rel (%p690) target = $region17
  $region16: #{_lambda_.17} parent=0 // pred_region
    %v693 = vld [vmem:[#allocation2] sm:$0xff]
    %v694 = vld [vmem:[#allocation2 + $0x8] sm:$0xff]
    %v695 = vld [vmem:[#allocation2 + $0x10] sm:$0xff]
    %v696 = vld [vmem:[#allocation2 + $0x18] sm:$0xff]
    %v697 = vld [vmem:[#allocation2 + $0x20] sm:$0xff]
    %v698 = vld [vmem:[#allocation2 + $0x28] sm:$0xff]
    %v699 = vld [vmem:[#allocation2 + $0x30] sm:$0xff]
    %v700 = vld [vmem:[#allocation2 + $0x38] sm:$0xff]
    %v701 = vld [vmem:[#allocation2 + $0x40] sm:$0xff]
    %v702 = vld [vmem:[#allocation2 + $0x48] sm:$0xff]
    %v703 = vld [vmem:[#allocation2 + $0x50] sm:$0xff]
    %v704 = vld [vmem:[#allocation2 + $0x58] sm:$0xff]
    %v705 = vld [vmem:[#allocation2 + $0x60] sm:$0xff]
    %v706 = vld [vmem:[#allocation2 + $0x68] sm:$0xff]
    %v707 = vld [vmem:[#allocation2 + $0x70] sm:$0xff]
    %v708 = vld [vmem:[#allocation2 + $0x78] sm:$0xff]
    %v709 = vld [vmem:[#allocation2 + $0x80] sm:$0xff]
    %v710 = vld [vmem:[#allocation2 + $0x88] sm:$0xff]
    %v711 = vld [vmem:[#allocation2 + $0x90] sm:$0xff]
    %v712 = vld [vmem:[#allocation2 + $0x98] sm:$0xff]
    %v713 = vld [vmem:[#allocation2 + $0xa0] sm:$0xff]
    %v714 = vld [vmem:[#allocation2 + $0xa8] sm:$0xff]
    %v715 = vld [vmem:[#allocation2 + $0xb0] sm:$0xff]
    %v716 = vld [vmem:[#allocation2 + $0xb8] sm:$0xff]
    %v717 = vld [vmem:[#allocation2 + $0xc0] sm:$0xff]
    %v718 = vld [vmem:[#allocation2 + $0xc8] sm:$0xff]
    %v719 = vld [vmem:[#allocation2 + $0xd0] sm:$0xff]
    %v720 = vld [vmem:[#allocation2 + $0xd8] sm:$0xff]
    %v721 = vld [vmem:[#allocation2 + $0xe0] sm:$0xff]
    %v722 = vld [vmem:[#allocation2 + $0xe8] sm:$0xff]
    %v723 = vld [vmem:[#allocation2 + $0xf0] sm:$0xff]
    %v724 = vld [vmem:[#allocation2 + $0xf8] sm:$0xff]
    %v725 = vld [vmem:[#allocation2 + $0x100] sm:$0xff]
    %v726 = vld [vmem:[#allocation2 + $0x108] sm:$0xff]
    %v727 = vld [vmem:[#allocation2 + $0x110] sm:$0xff]
    %v728 = vld [vmem:[#allocation2 + $0x118] sm:$0xff]
    %v729 = vld [vmem:[#allocation2 + $0x120] sm:$0xff]
    %v730 = vld [vmem:[#allocation2 + $0x128] sm:$0xff]
    %v731 = vld [vmem:[#allocation2 + $0x130] sm:$0xff]
    %v732 = vld [vmem:[#allocation2 + $0x138] sm:$0xff]
    %v733 = vld [vmem:[#allocation2 + $0x140] sm:$0xff]
    %v734 = vld [vmem:[#allocation2 + $0x148] sm:$0xff]
    %v735 = vld [vmem:[#allocation2 + $0x150] sm:$0xff]
    %v736 = vld [vmem:[#allocation2 + $0x158] sm:$0xff]
    %v737 = vld [vmem:[#allocation2 + $0x160] sm:$0xff]
    %v738 = vld [vmem:[#allocation2 + $0x168] sm:$0xff]
    %v739 = vld [vmem:[#allocation2 + $0x170] sm:$0xff]
    %v740 = vld [vmem:[#allocation2 + $0x178] sm:$0xff]
    %v741 = vld [vmem:[#allocation2 + $0x180] sm:$0xff]
    %v742 = vld [vmem:[#allocation2 + $0x188] sm:$0xff]
    %v743 = vld [vmem:[#allocation2 + $0x190] sm:$0xff]
    %v744 = vld [vmem:[#allocation2 + $0x198] sm:$0xff]
    %v745 = vld [vmem:[#allocation2 + $0x1a0] sm:$0xff]
    %v746 = vld [vmem:[#allocation2 + $0x1a8] sm:$0xff]
    %v747 = vld [vmem:[#allocation2 + $0x1b0] sm:$0xff]
    %v748 = vld [vmem:[#allocation2 + $0x1b8] sm:$0xff]
    %v749 = vld [vmem:[#allocation2 + $0x1c0] sm:$0xff]
    %v750 = vld [vmem:[#allocation2 + $0x1c8] sm:$0xff]
    %v751 = vld [vmem:[#allocation2 + $0x1d0] sm:$0xff]
    %v752 = vld [vmem:[#allocation2 + $0x1d8] sm:$0xff]
    %v753 = vld [vmem:[#allocation2 + $0x1e0] sm:$0xff]
    %v754 = vld [vmem:[#allocation2 + $0x1e8] sm:$0xff]
    %v755 = vld [vmem:[#allocation2 + $0x1f0] sm:$0xff]
    %v756 = vld [vmem:[#allocation2 + $0x1f8] sm:$0xff]
    %v757 = vadd.f32 %v693, %v367
    %v758 = vadd.f32 %v694, %v370
    %v759 = vadd.f32 %v695, %v375
    %v760 = vadd.f32 %v696, %v378
    %v761 = vadd.f32 %v697, %v383
    %v762 = vadd.f32 %v698, %v386
    %v763 = vadd.f32 %v699, %v391
    %v764 = vadd.f32 %v700, %v394
    %v765 = vadd.f32 %v701, %v399
    %v766 = vadd.f32 %v702, %v402
    %v767 = vadd.f32 %v703, %v407
    %v768 = vadd.f32 %v704, %v410
    %v769 = vadd.f32 %v705, %v415
    %v770 = vadd.f32 %v706, %v418
    %v771 = vadd.f32 %v707, %v423
    %v772 = vadd.f32 %v708, %v426
    %v773 = vadd.f32 %v709, %v431
    %v774 = vadd.f32 %v710, %v434
    %v775 = vadd.f32 %v711, %v439
    %v776 = vadd.f32 %v712, %v442
    %v777 = vadd.f32 %v713, %v447
    %v778 = vadd.f32 %v714, %v450
    %v779 = vadd.f32 %v715, %v455
    %v780 = vadd.f32 %v716, %v458
    %v781 = vadd.f32 %v717, %v463
    %v782 = vadd.f32 %v718, %v466
    %v783 = vadd.f32 %v719, %v471
    %v784 = vadd.f32 %v720, %v474
    %v785 = vadd.f32 %v721, %v479
    %v786 = vadd.f32 %v722, %v482
    %v787 = vadd.f32 %v723, %v487
    %v788 = vadd.f32 %v724, %v490
    %v789 = vadd.f32 %v725, %v495
    %v790 = vadd.f32 %v726, %v498
    %v791 = vadd.f32 %v727, %v503
    %v792 = vadd.f32 %v728, %v506
    %v793 = vadd.f32 %v729, %v511
    %v794 = vadd.f32 %v730, %v514
    %v795 = vadd.f32 %v731, %v519
    %v796 = vadd.f32 %v732, %v522
    %v797 = vadd.f32 %v733, %v527
    %v798 = vadd.f32 %v734, %v530
    %v799 = vadd.f32 %v735, %v535
    %v800 = vadd.f32 %v736, %v538
    %v801 = vadd.f32 %v737, %v543
    %v802 = vadd.f32 %v738, %v546
    %v803 = vadd.f32 %v739, %v551
    %v804 = vadd.f32 %v740, %v554
    %v805 = vadd.f32 %v741, %v559
    %v806 = vadd.f32 %v742, %v562
    %v807 = vadd.f32 %v743, %v567
    %v808 = vadd.f32 %v744, %v570
    %v809 = vadd.f32 %v745, %v575
    %v810 = vadd.f32 %v746, %v578
    %v811 = vadd.f32 %v747, %v583
    %v812 = vadd.f32 %v748, %v586
    %v813 = vadd.f32 %v749, %v591
    %v814 = vadd.f32 %v750, %v594
    %v815 = vadd.f32 %v751, %v599
    %v816 = vadd.f32 %v752, %v602
    %v817 = vadd.f32 %v753, %v607
    %v818 = vadd.f32 %v754, %v610
    %v819 = vadd.f32 %v755, %v615
    %v820 = vadd.f32 %v756, %v618
    %821 = vst [vmem:[#allocation2] sm:$0xff] %v757
    %822 = vst [vmem:[#allocation2 + $0x8] sm:$0xff] %v758
    %823 = vst [vmem:[#allocation2 + $0x10] sm:$0xff] %v759
    %824 = vst [vmem:[#allocation2 + $0x18] sm:$0xff] %v760
    %825 = vst [vmem:[#allocation2 + $0x20] sm:$0xff] %v761
    %826 = vst [vmem:[#allocation2 + $0x28] sm:$0xff] %v762
    %827 = vst [vmem:[#allocation2 + $0x30] sm:$0xff] %v763
    %828 = vst [vmem:[#allocation2 + $0x38] sm:$0xff] %v764
    %829 = vst [vmem:[#allocation2 + $0x40] sm:$0xff] %v765
    %830 = vst [vmem:[#allocation2 + $0x48] sm:$0xff] %v766
    %831 = vst [vmem:[#allocation2 + $0x50] sm:$0xff] %v767
    %832 = vst [vmem:[#allocation2 + $0x58] sm:$0xff] %v768
    %833 = vst [vmem:[#allocation2 + $0x60] sm:$0xff] %v769
    %834 = vst [vmem:[#allocation2 + $0x68] sm:$0xff] %v770
    %835 = vst [vmem:[#allocation2 + $0x70] sm:$0xff] %v771
    %836 = vst [vmem:[#allocation2 + $0x78] sm:$0xff] %v772
    %837 = vst [vmem:[#allocation2 + $0x80] sm:$0xff] %v773
    %838 = vst [vmem:[#allocation2 + $0x88] sm:$0xff] %v774
    %839 = vst [vmem:[#allocation2 + $0x90] sm:$0xff] %v775
    %840 = vst [vmem:[#allocation2 + $0x98] sm:$0xff] %v776
    %841 = vst [vmem:[#allocation2 + $0xa0] sm:$0xff] %v777
    %842 = vst [vmem:[#allocation2 + $0xa8] sm:$0xff] %v778
    %843 = vst [vmem:[#allocation2 + $0xb0] sm:$0xff] %v779
    %844 = vst [vmem:[#allocation2 + $0xb8] sm:$0xff] %v780
    %845 = vst [vmem:[#allocation2 + $0xc0] sm:$0xff] %v781
    %846 = vst [vmem:[#allocation2 + $0xc8] sm:$0xff] %v782
    %847 = vst [vmem:[#allocation2 + $0xd0] sm:$0xff] %v783
    %848 = vst [vmem:[#allocation2 + $0xd8] sm:$0xff] %v784
    %849 = vst [vmem:[#allocation2 + $0xe0] sm:$0xff] %v785
    %850 = vst [vmem:[#allocation2 + $0xe8] sm:$0xff] %v786
    %851 = vst [vmem:[#allocation2 + $0xf0] sm:$0xff] %v787
    %852 = vst [vmem:[#allocation2 + $0xf8] sm:$0xff] %v788
    %853 = vst [vmem:[#allocation2 + $0x100] sm:$0xff] %v789
    %854 = vst [vmem:[#allocation2 + $0x108] sm:$0xff] %v790
    %855 = vst [vmem:[#allocation2 + $0x110] sm:$0xff] %v791
    %856 = vst [vmem:[#allocation2 + $0x118] sm:$0xff] %v792
    %857 = vst [vmem:[#allocation2 + $0x120] sm:$0xff] %v793
    %858 = vst [vmem:[#allocation2 + $0x128] sm:$0xff] %v794
    %859 = vst [vmem:[#allocation2 + $0x130] sm:$0xff] %v795
    %860 = vst [vmem:[#allocation2 + $0x138] sm:$0xff] %v796
    %861 = vst [vmem:[#allocation2 + $0x140] sm:$0xff] %v797
    %862 = vst [vmem:[#allocation2 + $0x148] sm:$0xff] %v798
    %863 = vst [vmem:[#allocation2 + $0x150] sm:$0xff] %v799
    %864 = vst [vmem:[#allocation2 + $0x158] sm:$0xff] %v800
    %865 = vst [vmem:[#allocation2 + $0x160] sm:$0xff] %v801
    %866 = vst [vmem:[#allocation2 + $0x168] sm:$0xff] %v802
    %867 = vst [vmem:[#allocation2 + $0x170] sm:$0xff] %v803
    %868 = vst [vmem:[#allocation2 + $0x178] sm:$0xff] %v804
    %869 = vst [vmem:[#allocation2 + $0x180] sm:$0xff] %v805
    %870 = vst [vmem:[#allocation2 + $0x188] sm:$0xff] %v806
    %871 = vst [vmem:[#allocation2 + $0x190] sm:$0xff] %v807
    %872 = vst [vmem:[#allocation2 + $0x198] sm:$0xff] %v808
    %873 = vst [vmem:[#allocation2 + $0x1a0] sm:$0xff] %v809
    %874 = vst [vmem:[#allocation2 + $0x1a8] sm:$0xff] %v810
    %875 = vst [vmem:[#allocation2 + $0x1b0] sm:$0xff] %v811
    %876 = vst [vmem:[#allocation2 + $0x1b8] sm:$0xff] %v812
    %877 = vst [vmem:[#allocation2 + $0x1c0] sm:$0xff] %v813
    %878 = vst [vmem:[#allocation2 + $0x1c8] sm:$0xff] %v814
    %879 = vst [vmem:[#allocation2 + $0x1d0] sm:$0xff] %v815
    %880 = vst [vmem:[#allocation2 + $0x1d8] sm:$0xff] %v816
    %881 = vst [vmem:[#allocation2 + $0x1e0] sm:$0xff] %v817
    %882 = vst [vmem:[#allocation2 + $0x1e8] sm:$0xff] %v818
    %883 = vst [vmem:[#allocation2 + $0x1f0] sm:$0xff] %v819
    %884 = vst [vmem:[#allocation2 + $0x1f8] sm:$0xff] %v820
  $region17: #{_lambda_.17} parent=0 // pred_fallthru
    _
  // Predicated region
  $region18: #{_lambda_.17} parent=0 // pred_check
    %p885 = pneg %p621
  $region19: #{_lambda_.17} parent=0 // pred_check_branch
    %887 = sbr.rel (%p885) target = $region21
  $region20: #{_lambda_.17} parent=0 // pred_region
    %v888 = vld [vmem:[#allocation2] sm:$0xff]
    %v889 = vld [vmem:[#allocation2 + $0x8] sm:$0xff]
    %v890 = vld [vmem:[#allocation2 + $0x10] sm:$0xff]
    %v891 = vld [vmem:[#allocation2 + $0x18] sm:$0xff]
    %v892 = vld [vmem:[#allocation2 + $0x20] sm:$0xff]
    %v893 = vld [vmem:[#allocation2 + $0x28] sm:$0xff]
    %v894 = vld [vmem:[#allocation2 + $0x30] sm:$0xff]
    %v895 = vld [vmem:[#allocation2 + $0x38] sm:$0xff]
    %v896 = vld [vmem:[#allocation2 + $0x40] sm:$0xff]
    %v897 = vld [vmem:[#allocation2 + $0x48] sm:$0xff]
    %v898 = vld [vmem:[#allocation2 + $0x50] sm:$0xff]
    %v899 = vld [vmem:[#allocation2 + $0x58] sm:$0xff]
    %v900 = vld [vmem:[#allocation2 + $0x60] sm:$0xff]
    %v901 = vld [vmem:[#allocation2 + $0x68] sm:$0xff]
    %v902 = vld [vmem:[#allocation2 + $0x70] sm:$0xff]
    %v903 = vld [vmem:[#allocation2 + $0x78] sm:$0xff]
    %v904 = vld [vmem:[#allocation2 + $0x80] sm:$0xff]
    %v905 = vld [vmem:[#allocation2 + $0x88] sm:$0xff]
    %v906 = vld [vmem:[#allocation2 + $0x90] sm:$0xff]
    %v907 = vld [vmem:[#allocation2 + $0x98] sm:$0xff]
    %v908 = vld [vmem:[#allocation2 + $0xa0] sm:$0xff]
    %v909 = vld [vmem:[#allocation2 + $0xa8] sm:$0xff]
    %v910 = vld [vmem:[#allocation2 + $0xb0] sm:$0xff]
    %v911 = vld [vmem:[#allocation2 + $0xb8] sm:$0xff]
    %v912 = vld [vmem:[#allocation2 + $0xc0] sm:$0xff]
    %v913 = vld [vmem:[#allocation2 + $0xc8] sm:$0xff]
    %v914 = vld [vmem:[#allocation2 + $0xd0] sm:$0xff]
    %v915 = vld [vmem:[#allocation2 + $0xd8] sm:$0xff]
    %v916 = vld [vmem:[#allocation2 + $0xe0] sm:$0xff]
    %v917 = vld [vmem:[#allocation2 + $0xe8] sm:$0xff]
    %v918 = vld [vmem:[#allocation2 + $0xf0] sm:$0xff]
    %v919 = vld [vmem:[#allocation2 + $0xf8] sm:$0xff]
    %v920 = vld [vmem:[#allocation2 + $0x100] sm:$0xff]
    %v921 = vld [vmem:[#allocation2 + $0x108] sm:$0xff]
    %v922 = vld [vmem:[#allocation2 + $0x110] sm:$0xff]
    %v923 = vld [vmem:[#allocation2 + $0x118] sm:$0xff]
    %v924 = vld [vmem:[#allocation2 + $0x120] sm:$0xff]
    %v925 = vld [vmem:[#allocation2 + $0x128] sm:$0xff]
    %v926 = vld [vmem:[#allocation2 + $0x130] sm:$0xff]
    %v927 = vld [vmem:[#allocation2 + $0x138] sm:$0xff]
    %v928 = vld [vmem:[#allocation2 + $0x140] sm:$0xff]
    %v929 = vld [vmem:[#allocation2 + $0x148] sm:$0xff]
    %v930 = vld [vmem:[#allocation2 + $0x150] sm:$0xff]
    %v931 = vld [vmem:[#allocation2 + $0x158] sm:$0xff]
    %v932 = vld [vmem:[#allocation2 + $0x160] sm:$0xff]
    %v933 = vld [vmem:[#allocation2 + $0x168] sm:$0xff]
    %v934 = vld [vmem:[#allocation2 + $0x170] sm:$0xff]
    %v935 = vld [vmem:[#allocation2 + $0x178] sm:$0xff]
    %v936 = vld [vmem:[#allocation2 + $0x180] sm:$0xff]
    %v937 = vld [vmem:[#allocation2 + $0x188] sm:$0xff]
    %v938 = vld [vmem:[#allocation2 + $0x190] sm:$0xff]
    %v939 = vld [vmem:[#allocation2 + $0x198] sm:$0xff]
    %v940 = vld [vmem:[#allocation2 + $0x1a0] sm:$0xff]
    %v941 = vld [vmem:[#allocation2 + $0x1a8] sm:$0xff]
    %v942 = vld [vmem:[#allocation2 + $0x1b0] sm:$0xff]
    %v943 = vld [vmem:[#allocation2 + $0x1b8] sm:$0xff]
    %v944 = vld [vmem:[#allocation2 + $0x1c0] sm:$0xff]
    %v945 = vld [vmem:[#allocation2 + $0x1c8] sm:$0xff]
    %v946 = vld [vmem:[#allocation2 + $0x1d0] sm:$0xff]
    %v947 = vld [vmem:[#allocation2 + $0x1d8] sm:$0xff]
    %v948 = vld [vmem:[#allocation2 + $0x1e0] sm:$0xff]
    %v949 = vld [vmem:[#allocation2 + $0x1e8] sm:$0xff]
    %v950 = vld [vmem:[#allocation2 + $0x1f0] sm:$0xff]
    %v951 = vld [vmem:[#allocation2 + $0x1f8] sm:$0xff]
    %v952 = vpack.c.bf16 %v889, %v888
    %v953 = vpack.c.bf16 %v891, %v890
    %v954 = vpack.c.bf16 %v893, %v892
    %v955 = vpack.c.bf16 %v895, %v894
    %v956 = vpack.c.bf16 %v897, %v896
    %v957 = vpack.c.bf16 %v899, %v898
    %v958 = vpack.c.bf16 %v901, %v900
    %v959 = vpack.c.bf16 %v903, %v902
    %v960 = vpack.c.bf16 %v905, %v904
    %v961 = vpack.c.bf16 %v907, %v906
    %v962 = vpack.c.bf16 %v909, %v908
    %v963 = vpack.c.bf16 %v911, %v910
    %v964 = vpack.c.bf16 %v913, %v912
    %v965 = vpack.c.bf16 %v915, %v914
    %v966 = vpack.c.bf16 %v917, %v916
    %v967 = vpack.c.bf16 %v919, %v918
    %v968 = vpack.c.bf16 %v921, %v920
    %v969 = vpack.c.bf16 %v923, %v922
    %v970 = vpack.c.bf16 %v925, %v924
    %v971 = vpack.c.bf16 %v927, %v926
    %v972 = vpack.c.bf16 %v929, %v928
    %v973 = vpack.c.bf16 %v931, %v930
    %v974 = vpack.c.bf16 %v933, %v932
    %v975 = vpack.c.bf16 %v935, %v934
    %v976 = vpack.c.bf16 %v937, %v936
    %v977 = vpack.c.bf16 %v939, %v938
    %v978 = vpack.c.bf16 %v941, %v940
    %v979 = vpack.c.bf16 %v943, %v942
    %v980 = vpack.c.bf16 %v945, %v944
    %v981 = vpack.c.bf16 %v947, %v946
    %v982 = vpack.c.bf16 %v949, %v948
    %v983 = vpack.c.bf16 %v951, %v950
    %v1016 = vunpack.c.l.b16 %v952
    %v1017 = vunpack.c.h.b16 %v952
    %v1018 = vunpack.c.l.b16 %v953
    %v1019 = vunpack.c.h.b16 %v953
    %v1020 = vunpack.c.l.b16 %v954
    %v1021 = vunpack.c.h.b16 %v954
    %v1022 = vunpack.c.l.b16 %v955
    %v1023 = vunpack.c.h.b16 %v955
    %v1024 = vunpack.c.l.b16 %v956
    %v1025 = vunpack.c.h.b16 %v956
    %v1026 = vunpack.c.l.b16 %v957
    %v1027 = vunpack.c.h.b16 %v957
    %v1028 = vunpack.c.l.b16 %v958
    %v1029 = vunpack.c.h.b16 %v958
    %v1030 = vunpack.c.l.b16 %v959
    %v1031 = vunpack.c.h.b16 %v959
    %v1032 = vunpack.c.l.b16 %v960
    %v1033 = vunpack.c.h.b16 %v960
    %v1034 = vunpack.c.l.b16 %v961
    %v1035 = vunpack.c.h.b16 %v961
    %v1036 = vunpack.c.l.b16 %v962
    %v1037 = vunpack.c.h.b16 %v962
    %v1038 = vunpack.c.l.b16 %v963
    %v1039 = vunpack.c.h.b16 %v963
    %v1040 = vunpack.c.l.b16 %v964
    %v1041 = vunpack.c.h.b16 %v964
    %v1042 = vunpack.c.l.b16 %v965
    %v1043 = vunpack.c.h.b16 %v965
    %v1044 = vunpack.c.l.b16 %v966
    %v1045 = vunpack.c.h.b16 %v966
    %v1046 = vunpack.c.l.b16 %v967
    %v1047 = vunpack.c.h.b16 %v967
    %v1048 = vunpack.c.l.b16 %v968
    %v1049 = vunpack.c.h.b16 %v968
    %v1050 = vunpack.c.l.b16 %v969
    %v1051 = vunpack.c.h.b16 %v969
    %v1052 = vunpack.c.l.b16 %v970
    %v1053 = vunpack.c.h.b16 %v970
    %v1054 = vunpack.c.l.b16 %v971
    %v1055 = vunpack.c.h.b16 %v971
    %v1056 = vunpack.c.l.b16 %v972
    %v1057 = vunpack.c.h.b16 %v972
    %v1058 = vunpack.c.l.b16 %v973
    %v1059 = vunpack.c.h.b16 %v973
    %v1060 = vunpack.c.l.b16 %v974
    %v1061 = vunpack.c.h.b16 %v974
    %v1062 = vunpack.c.l.b16 %v975
    %v1063 = vunpack.c.h.b16 %v975
    %v1064 = vunpack.c.l.b16 %v976
    %v1065 = vunpack.c.h.b16 %v976
    %v1066 = vunpack.c.l.b16 %v977
    %v1067 = vunpack.c.h.b16 %v977
    %v1068 = vunpack.c.l.b16 %v978
    %v1069 = vunpack.c.h.b16 %v978
    %v1070 = vunpack.c.l.b16 %v979
    %v1071 = vunpack.c.h.b16 %v979
    %v1072 = vunpack.c.l.b16 %v980
    %v1073 = vunpack.c.h.b16 %v980
    %v1074 = vunpack.c.l.b16 %v981
    %v1075 = vunpack.c.h.b16 %v981
    %v1076 = vunpack.c.l.b16 %v982
    %v1077 = vunpack.c.h.b16 %v982
    %v1078 = vunpack.c.l.b16 %v983
    %v1079 = vunpack.c.h.b16 %v983
    %v1080 = vpack.c.b16 %v1016, %v1016
    %v1081 = vpack.c.b16 %v1017, %v1017
    %v1082 = vpack.c.b16 %v1018, %v1018
    %v1083 = vpack.c.b16 %v1019, %v1019
    %v1084 = vpack.c.b16 %v1020, %v1020
    %v1085 = vpack.c.b16 %v1021, %v1021
    %v1086 = vpack.c.b16 %v1022, %v1022
    %v1087 = vpack.c.b16 %v1023, %v1023
    %v1088 = vpack.c.b16 %v1024, %v1024
    %v1089 = vpack.c.b16 %v1025, %v1025
    %v1090 = vpack.c.b16 %v1026, %v1026
    %v1091 = vpack.c.b16 %v1027, %v1027
    %v1092 = vpack.c.b16 %v1028, %v1028
    %v1093 = vpack.c.b16 %v1029, %v1029
    %v1094 = vpack.c.b16 %v1030, %v1030
    %v1095 = vpack.c.b16 %v1031, %v1031
    %v1096 = vpack.c.b16 %v1032, %v1032
    %v1097 = vpack.c.b16 %v1033, %v1033
    %v1098 = vpack.c.b16 %v1034, %v1034
    %v1099 = vpack.c.b16 %v1035, %v1035
    %v1100 = vpack.c.b16 %v1036, %v1036
    %v1101 = vpack.c.b16 %v1037, %v1037
    %v1102 = vpack.c.b16 %v1038, %v1038
    %v1103 = vpack.c.b16 %v1039, %v1039
    %v1104 = vpack.c.b16 %v1040, %v1040
    %v1105 = vpack.c.b16 %v1041, %v1041
    %v1106 = vpack.c.b16 %v1042, %v1042
    %v1107 = vpack.c.b16 %v1043, %v1043
    %v1108 = vpack.c.b16 %v1044, %v1044
    %v1109 = vpack.c.b16 %v1045, %v1045
    %v1110 = vpack.c.b16 %v1046, %v1046
    %v1111 = vpack.c.b16 %v1047, %v1047
    %v1112 = vpack.c.b16 %v1048, %v1048
    %v1113 = vpack.c.b16 %v1049, %v1049
    %v1114 = vpack.c.b16 %v1050, %v1050
    %v1115 = vpack.c.b16 %v1051, %v1051
    %v1116 = vpack.c.b16 %v1052, %v1052
    %v1117 = vpack.c.b16 %v1053, %v1053
    %v1118 = vpack.c.b16 %v1054, %v1054
    %v1119 = vpack.c.b16 %v1055, %v1055
    %v1120 = vpack.c.b16 %v1056, %v1056
    %v1121 = vpack.c.b16 %v1057, %v1057
    %v1122 = vpack.c.b16 %v1058, %v1058
    %v1123 = vpack.c.b16 %v1059, %v1059
    %v1124 = vpack.c.b16 %v1060, %v1060
    %v1125 = vpack.c.b16 %v1061, %v1061
    %v1126 = vpack.c.b16 %v1062, %v1062
    %v1127 = vpack.c.b16 %v1063, %v1063
    %v1128 = vpack.c.b16 %v1064, %v1064
    %v1129 = vpack.c.b16 %v1065, %v1065
    %v1130 = vpack.c.b16 %v1066, %v1066
    %v1131 = vpack.c.b16 %v1067, %v1067
    %v1132 = vpack.c.b16 %v1068, %v1068
    %v1133 = vpack.c.b16 %v1069, %v1069
    %v1134 = vpack.c.b16 %v1070, %v1070
    %v1135 = vpack.c.b16 %v1071, %v1071
    %v1136 = vpack.c.b16 %v1072, %v1072
    %v1137 = vpack.c.b16 %v1073, %v1073
    %v1138 = vpack.c.b16 %v1074, %v1074
    %v1139 = vpack.c.b16 %v1075, %v1075
    %v1140 = vpack.c.b16 %v1076, %v1076
    %v1141 = vpack.c.b16 %v1077, %v1077
    %v1142 = vpack.c.b16 %v1078, %v1078
    %v1143 = vpack.c.b16 %v1079, %v1079
    %1208 = vst [vmem:[%s2] sm:$0xf] %v1080
    %1209 = vst [vmem:[%s2 + $0x4] sm:$0xf] %v1081
    %1210 = vst [vmem:[%s2 + $0x8] sm:$0xf] %v1082
    %1211 = vst [vmem:[%s2 + $0xc] sm:$0xf] %v1083
    %1212 = vst [vmem:[%s2 + $0x10] sm:$0xf] %v1084
    %1213 = vst [vmem:[%s2 + $0x14] sm:$0xf] %v1085
    %1214 = vst [vmem:[%s2 + $0x18] sm:$0xf] %v1086
    %1215 = vst [vmem:[%s2 + $0x1c] sm:$0xf] %v1087
    %1216 = vst [vmem:[%s2 + $0x20] sm:$0xf] %v1088
    %1217 = vst [vmem:[%s2 + $0x24] sm:$0xf] %v1089
    %1218 = vst [vmem:[%s2 + $0x28] sm:$0xf] %v1090
    %1219 = vst [vmem:[%s2 + $0x2c] sm:$0xf] %v1091
    %1220 = vst [vmem:[%s2 + $0x30] sm:$0xf] %v1092
    %1221 = vst [vmem:[%s2 + $0x34] sm:$0xf] %v1093
    %1222 = vst [vmem:[%s2 + $0x38] sm:$0xf] %v1094
    %1223 = vst [vmem:[%s2 + $0x3c] sm:$0xf] %v1095
    %1224 = vst [vmem:[%s2 + $0x40] sm:$0xf] %v1096
    %1225 = vst [vmem:[%s2 + $0x44] sm:$0xf] %v1097
    %1226 = vst [vmem:[%s2 + $0x48] sm:$0xf] %v1098
    %1227 = vst [vmem:[%s2 + $0x4c] sm:$0xf] %v1099
    %1228 = vst [vmem:[%s2 + $0x50] sm:$0xf] %v1100
    %1229 = vst [vmem:[%s2 + $0x54] sm:$0xf] %v1101
    %1230 = vst [vmem:[%s2 + $0x58] sm:$0xf] %v1102
    %1231 = vst [vmem:[%s2 + $0x5c] sm:$0xf] %v1103
    %1232 = vst [vmem:[%s2 + $0x60] sm:$0xf] %v1104
    %1233 = vst [vmem:[%s2 + $0x64] sm:$0xf] %v1105
    %1234 = vst [vmem:[%s2 + $0x68] sm:$0xf] %v1106
    %1235 = vst [vmem:[%s2 + $0x6c] sm:$0xf] %v1107
    %1236 = vst [vmem:[%s2 + $0x70] sm:$0xf] %v1108
    %1237 = vst [vmem:[%s2 + $0x74] sm:$0xf] %v1109
    %1238 = vst [vmem:[%s2 + $0x78] sm:$0xf] %v1110
    %1239 = vst [vmem:[%s2 + $0x7c] sm:$0xf] %v1111
    %1240 = vst [vmem:[%s2 + $0x80] sm:$0xf] %v1112
    %1241 = vst [vmem:[%s2 + $0x84] sm:$0xf] %v1113
    %1242 = vst [vmem:[%s2 + $0x88] sm:$0xf] %v1114
    %1243 = vst [vmem:[%s2 + $0x8c] sm:$0xf] %v1115
    %1244 = vst [vmem:[%s2 + $0x90] sm:$0xf] %v1116
    %1245 = vst [vmem:[%s2 + $0x94] sm:$0xf] %v1117
    %1246 = vst [vmem:[%s2 + $0x98] sm:$0xf] %v1118
    %1247 = vst [vmem:[%s2 + $0x9c] sm:$0xf] %v1119
    %1248 = vst [vmem:[%s2 + $0xa0] sm:$0xf] %v1120
    %1249 = vst [vmem:[%s2 + $0xa4] sm:$0xf] %v1121
    %1250 = vst [vmem:[%s2 + $0xa8] sm:$0xf] %v1122
    %1251 = vst [vmem:[%s2 + $0xac] sm:$0xf] %v1123
    %1252 = vst [vmem:[%s2 + $0xb0] sm:$0xf] %v1124
    %1253 = vst [vmem:[%s2 + $0xb4] sm:$0xf] %v1125
    %1254 = vst [vmem:[%s2 + $0xb8] sm:$0xf] %v1126
    %1255 = vst [vmem:[%s2 + $0xbc] sm:$0xf] %v1127
    %1256 = vst [vmem:[%s2 + $0xc0] sm:$0xf] %v1128
    %1257 = vst [vmem:[%s2 + $0xc4] sm:$0xf] %v1129
    %1258 = vst [vmem:[%s2 + $0xc8] sm:$0xf] %v1130
    %1259 = vst [vmem:[%s2 + $0xcc] sm:$0xf] %v1131
    %1260 = vst [vmem:[%s2 + $0xd0] sm:$0xf] %v1132
    %1261 = vst [vmem:[%s2 + $0xd4] sm:$0xf] %v1133
    %1262 = vst [vmem:[%s2 + $0xd8] sm:$0xf] %v1134
    %1263 = vst [vmem:[%s2 + $0xdc] sm:$0xf] %v1135
    %1264 = vst [vmem:[%s2 + $0xe0] sm:$0xf] %v1136
    %1265 = vst [vmem:[%s2 + $0xe4] sm:$0xf] %v1137
    %1266 = vst [vmem:[%s2 + $0xe8] sm:$0xf] %v1138
    %1267 = vst [vmem:[%s2 + $0xec] sm:$0xf] %v1139
    %1268 = vst [vmem:[%s2 + $0xf0] sm:$0xf] %v1140
    %1269 = vst [vmem:[%s2 + $0xf4] sm:$0xf] %v1141
    %1270 = vst [vmem:[%s2 + $0xf8] sm:$0xf] %v1142
    %1271 = vst [vmem:[%s2 + $0xfc] sm:$0xf] %v1143
  $region21: #{_lambda_.17} parent=0 // pred_fallthru
    _
  // Predicated region
  $region22: #{_lambda_.17} parent=0 // pred_check
    _
  $region23: #{_lambda_.17} parent=0 // pred_check_branch
    %1273 = sbr.rel (0) target = $region25
  $region24: #{_lambda_.17} parent=0 // pred_region
    _
  $region25: #{_lambda_.17} parent=0 // pred_fallthru
    _
  // Predicated region
  $region26: #{_lambda_.17} parent=0 // pred_check
    _
  $region27: #{_lambda_.17} parent=0 // pred_check_branch
    %1275 = sbr.rel (0) target = $region29
  $region28: #{_lambda_.17} parent=0 // pred_region
    _
  $region29: #{_lambda_.17} parent=0 // pred_fallthru
    _

// kernel: _lambda_.19
$region0: #{_lambda_.19}
  #allocation0 [shape = 'u32[]', space=smem, size = 0x4, offset = 0x4, fixed_abs, tag = 'smem constant byte address 0x4 - core index']
  #allocation1 [shape = 'u32[144,128]{1,0:T(1,128)}', space=vmem, size = 0x12000, scoped, tag = 'internal scratch']
  %s0 = inlined_call_operand.vmem [shape: bf16[128,128], index: 0, kind: input, shape index: {}]
  %s1 = inlined_call_operand.vmem [shape: f32[2,128], index: 1, kind: output, shape index: {}]
  %s2 = sld [smem:[#allocation0]]
  $region18: #{_lambda_.19} parent=0
    _
  %s4 = ssub.s32 1, %s2
  %s5 = scalar_select 0, %s4, %s2
  // Predicated region
  $region2: #{_lambda_.19} parent=0 // pred_check
    _
  $region3: #{_lambda_.19} parent=0 // pred_check_branch
    %7 = sbr.rel (0) target = $region5
  $region4: #{_lambda_.19} parent=0 // pred_region
    _
  $region5: #{_lambda_.19} parent=0 // pred_fallthru
    _
  %p8 = scmp.eq.s32.totalorder 0, 0
  // Predicated region
  $region6: #{_lambda_.19} parent=0 // pred_check
    %p9 = pneg %p8
  $region7: #{_lambda_.19} parent=0 // pred_check_branch
    %11 = sbr.rel (%p9) target = $region9
  $region8: #{_lambda_.19} parent=0 // pred_region
    %12 = vst [vmem:[%s1] sm:$0x3] 0.0
  $region9: #{_lambda_.19} parent=0 // pred_fallthru
    _
  %v13 = vld [vmem:[%s0] sm:$0xf]
  %v14 = vld [vmem:[%s0 + $0x4] sm:$0xf]
  %v15 = vld [vmem:[%s0 + $0x8] sm:$0xf]
  %v16 = vld [vmem:[%s0 + $0xc] sm:$0xf]
  %v17 = vld [vmem:[%s0 + $0x10] sm:$0xf]
  %v18 = vld [vmem:[%s0 + $0x14] sm:$0xf]
  %v19 = vld [vmem:[%s0 + $0x18] sm:$0xf]
  %v20 = vld [vmem:[%s0 + $0x1c] sm:$0xf]
  %v21 = vld [vmem:[%s0 + $0x20] sm:$0xf]
  %v22 = vld [vmem:[%s0 + $0x24] sm:$0xf]
  %v23 = vld [vmem:[%s0 + $0x28] sm:$0xf]
  %v24 = vld [vmem:[%s0 + $0x2c] sm:$0xf]
  %v25 = vld [vmem:[%s0 + $0x30] sm:$0xf]
  %v26 = vld [vmem:[%s0 + $0x34] sm:$0xf]
  %v27 = vld [vmem:[%s0 + $0x38] sm:$0xf]
  %v28 = vld [vmem:[%s0 + $0x3c] sm:$0xf]
  %v29 = vunpack.c.l.bf16 %v13
  %v30 = vunpack.c.l.bf16 %v14
  %v31 = vunpack.c.l.bf16 %v15
  %v32 = vunpack.c.l.bf16 %v16
  %v33 = vunpack.c.l.bf16 %v17
  %v34 = vunpack.c.l.bf16 %v18
  %v35 = vunpack.c.l.bf16 %v19
  %v36 = vunpack.c.l.bf16 %v20
  %v37 = vunpack.c.l.bf16 %v21
  %v38 = vunpack.c.l.bf16 %v22
  %v39 = vunpack.c.l.bf16 %v23
  %v40 = vunpack.c.l.bf16 %v24
  %v41 = vunpack.c.l.bf16 %v25
  %v42 = vunpack.c.l.bf16 %v26
  %v43 = vunpack.c.l.bf16 %v27
  %v44 = vunpack.c.l.bf16 %v28
  %v45 = vadd.f32 %v29, %v30
  %v46 = vadd.f32 %v45, %v31
  %v47 = vadd.f32 %v46, %v32
  %v48 = vadd.f32 %v47, %v33
  %v49 = vadd.f32 %v48, %v34
  %v50 = vadd.f32 %v49, %v35
  %v51 = vadd.f32 %v50, %v36
  %v52 = vadd.f32 %v51, %v37
  %v53 = vadd.f32 %v52, %v38
  %v54 = vadd.f32 %v53, %v39
  %v55 = vadd.f32 %v54, %v40
  %v56 = vadd.f32 %v55, %v41
  %v57 = vadd.f32 %v56, %v42
  %v58 = vadd.f32 %v57, %v43
  %v59 = vadd.f32 %v58, %v44
  %v60 = vrot.slane %v59, 4
  %v61 = vadd.f32 %v59, %v60
  %v62 = vrot.slane %v61, 2
  %v63 = vadd.f32 %v61, %v62
  %v64 = vrot.slane %v63, 1
  %v65 = vadd.f32 %v63, %v64
  %v66 = vmul.f32 %v29, %v29
  %v67 = vmul.f32 %v30, %v30
  %v68 = vmul.f32 %v31, %v31
  %v69 = vmul.f32 %v32, %v32
  %v70 = vmul.f32 %v33, %v33
  %v71 = vmul.f32 %v34, %v34
  %v72 = vmul.f32 %v35, %v35
  %v73 = vmul.f32 %v36, %v36
  %v74 = vmul.f32 %v37, %v37
  %v75 = vmul.f32 %v38, %v38
  %v76 = vmul.f32 %v39, %v39
  %v77 = vmul.f32 %v40, %v40
  %v78 = vmul.f32 %v41, %v41
  %v79 = vmul.f32 %v42, %v42
  %v80 = vmul.f32 %v43, %v43
  %v81 = vmul.f32 %v44, %v44
  %v82 = vadd.f32 %v66, %v67
  %v83 = vadd.f32 %v82, %v68
  %v84 = vadd.f32 %v83, %v69
  %v85 = vadd.f32 %v84, %v70
  %v86 = vadd.f32 %v85, %v71
  %v87 = vadd.f32 %v86, %v72
  %v88 = vadd.f32 %v87, %v73
  %v89 = vadd.f32 %v88, %v74
  %v90 = vadd.f32 %v89, %v75
  %v91 = vadd.f32 %v90, %v76
  %v92 = vadd.f32 %v91, %v77
  %v93 = vadd.f32 %v92, %v78
  %v94 = vadd.f32 %v93, %v79
  %v95 = vadd.f32 %v94, %v80
  %v96 = vadd.f32 %v95, %v81
  %v97 = vrot.slane %v96, 4
  %v98 = vadd.f32 %v96, %v97
  %v99 = vrot.slane %v98, 2
  %v100 = vadd.f32 %v98, %v99
  %v101 = vrot.slane %v100, 1
  %v102 = vadd.f32 %v100, %v101
  %v103 = vld [vmem:[%s1] sm:$0x3]
  %vm104 = vcmask 1040384
  %v105 = vsel %vm104, %v65, %v102
  %v106 = vadd.f32 %v103, %v105
  %107 = vst [vmem:[%s1] sm:$0x3] %v106
  // Predicated region
  $region10: #{_lambda_.19} parent=0 // pred_check
    _
  $region11: #{_lambda_.19} parent=0 // pred_check_branch
    %109 = sbr.rel (0) target = $region13
  $region12: #{_lambda_.19} parent=0 // pred_region
    _
  $region13: #{_lambda_.19} parent=0 // pred_fallthru
    _
  // Predicated region
  $region14: #{_lambda_.19} parent=0 // pred_check
    _
  $region15: #{_lambda_.19} parent=0 // pred_check_branch
    %111 = sbr.rel (0) target = $region17
  $region16: #{_lambda_.19} parent=0 // pred_region
    _
  $region17: #{_lambda_.19} parent=0 // pred_fallthru
    _

// kernel: _lambda_.18
$region0: #{_lambda_.18}
  #allocation0 [shape = 'u32[]', space=smem, size = 0x4, offset = 0x4, fixed_abs, tag = 'smem constant byte address 0x4 - core index']
  #allocation1 [shape = 'u32[144,128]{1,0:T(1,128)}', space=vmem, size = 0x12000, scoped, tag = 'internal scratch']
  #allocation2 [shape = 'f32[128,128]{1,0:T(8,128)}', space=vmem, size = 0x10000, scoped, tag = 'scratch operand']
  %s0 = inlined_call_operand.vmem [shape: bf16[128,128], index: 0, kind: input, shape index: {}]
  %s1 = inlined_call_operand.vmem [shape: bf16[128,128], index: 1, kind: input, shape index: {}]
  %s2 = inlined_call_operand.vmem [shape: bf16[128,128], index: 2, kind: output, shape index: {}]
  %s3 = sld [smem:[#allocation0]]
  $region30: #{_lambda_.18} parent=0
    _
  %s5 = ssub.s32 1, %s3
  %s6 = scalar_select 0, %s5, %s3
  // Predicated region
  $region2: #{_lambda_.18} parent=0 // pred_check
    _
  $region3: #{_lambda_.18} parent=0 // pred_check_branch
    %8 = sbr.rel (0) target = $region5
  $region4: #{_lambda_.18} parent=0 // pred_region
    _
  $region5: #{_lambda_.18} parent=0 // pred_fallthru
    _
  // Predicated region
  $region6: #{_lambda_.18} parent=0 // pred_check
    _
  $region7: #{_lambda_.18} parent=0 // pred_check_branch
    %10 = sbr.rel (0) target = $region9
  $region8: #{_lambda_.18} parent=0 // pred_region
    _
  $region9: #{_lambda_.18} parent=0 // pred_fallthru
    _
  %v13 = vld [vmem:[%s0] sm:$0xf]
  %v14 = vld [vmem:[%s0 + $0x4] sm:$0xf]
  %v15 = vld [vmem:[%s0 + $0x8] sm:$0xf]
  %v16 = vld [vmem:[%s0 + $0xc] sm:$0xf]
  %v17 = vld [vmem:[%s0 + $0x10] sm:$0xf]
  %v18 = vld [vmem:[%s0 + $0x14] sm:$0xf]
  %v19 = vld [vmem:[%s0 + $0x18] sm:$0xf]
  %v20 = vld [vmem:[%s0 + $0x1c] sm:$0xf]
  %v21 = vld [vmem:[%s0 + $0x20] sm:$0xf]
  %v22 = vld [vmem:[%s0 + $0x24] sm:$0xf]
  %v23 = vld [vmem:[%s0 + $0x28] sm:$0xf]
  %v24 = vld [vmem:[%s0 + $0x2c] sm:$0xf]
  %v25 = vld [vmem:[%s0 + $0x30] sm:$0xf]
  %v26 = vld [vmem:[%s0 + $0x34] sm:$0xf]
  %v27 = vld [vmem:[%s0 + $0x38] sm:$0xf]
  %v28 = vld [vmem:[%s0 + $0x3c] sm:$0xf]
  %vm29 = vcmp.ge.bf16.partialorder %v13, 0
  %vm30 = vcmp.ge.bf16.partialorder %v14, 0
  %vm31 = vcmp.ge.bf16.partialorder %v15, 0
  %vm32 = vcmp.ge.bf16.partialorder %v16, 0
  %vm33 = vcmp.ge.bf16.partialorder %v17, 0
  %vm34 = vcmp.ge.bf16.partialorder %v18, 0
  %vm35 = vcmp.ge.bf16.partialorder %v19, 0
  %vm36 = vcmp.ge.bf16.partialorder %v20, 0
  %vm37 = vcmp.ge.bf16.partialorder %v21, 0
  %vm38 = vcmp.ge.bf16.partialorder %v22, 0
  %vm39 = vcmp.ge.bf16.partialorder %v23, 0
  %vm40 = vcmp.ge.bf16.partialorder %v24, 0
  %vm41 = vcmp.ge.bf16.partialorder %v25, 0
  %vm42 = vcmp.ge.bf16.partialorder %v26, 0
  %vm43 = vcmp.ge.bf16.partialorder %v27, 0
  %vm44 = vcmp.ge.bf16.partialorder %v28, 0
  %v45 = vmul.bf16 %v13, 1045249613
  %v46 = vmul.bf16 %v14, 1045249613
  %v47 = vmul.bf16 %v15, 1045249613
  %v48 = vmul.bf16 %v16, 1045249613
  %v49 = vmul.bf16 %v17, 1045249613
  %v50 = vmul.bf16 %v18, 1045249613
  %v51 = vmul.bf16 %v19, 1045249613
  %v52 = vmul.bf16 %v20, 1045249613
  %v53 = vmul.bf16 %v21, 1045249613
  %v54 = vmul.bf16 %v22, 1045249613
  %v55 = vmul.bf16 %v23, 1045249613
  %v56 = vmul.bf16 %v24, 1045249613
  %v57 = vmul.bf16 %v25, 1045249613
  %v58 = vmul.bf16 %v26, 1045249613
  %v59 = vmul.bf16 %v27, 1045249613
  %v60 = vmul.bf16 %v28, 1045249613
  %v61 = vsel %vm29, %v13, %v45
  %v62 = vsel %vm30, %v14, %v46
  %v63 = vsel %vm31, %v15, %v47
  %v64 = vsel %vm32, %v16, %v48
  %v65 = vsel %vm33, %v17, %v49
  %v66 = vsel %vm34, %v18, %v50
  %v67 = vsel %vm35, %v19, %v51
  %v68 = vsel %vm36, %v20, %v52
  %v69 = vsel %vm37, %v21, %v53
  %v70 = vsel %vm38, %v22, %v54
  %v71 = vsel %vm39, %v23, %v55
  %v72 = vsel %vm40, %v24, %v56
  %v73 = vsel %vm41, %v25, %v57
  %v74 = vsel %vm42, %v26, %v58
  %v75 = vsel %vm43, %v27, %v59
  %v76 = vsel %vm44, %v28, %v60
  %v77 = vld [vmem:[%s1] sm:$0xf]
  %v78 = vld [vmem:[%s1 + $0x4] sm:$0xf]
  %v79 = vld [vmem:[%s1 + $0x8] sm:$0xf]
  %v80 = vld [vmem:[%s1 + $0xc] sm:$0xf]
  %v81 = vld [vmem:[%s1 + $0x10] sm:$0xf]
  %v82 = vld [vmem:[%s1 + $0x14] sm:$0xf]
  %v83 = vld [vmem:[%s1 + $0x18] sm:$0xf]
  %v84 = vld [vmem:[%s1 + $0x1c] sm:$0xf]
  %v85 = vld [vmem:[%s1 + $0x20] sm:$0xf]
  %v86 = vld [vmem:[%s1 + $0x24] sm:$0xf]
  %v87 = vld [vmem:[%s1 + $0x28] sm:$0xf]
  %v88 = vld [vmem:[%s1 + $0x2c] sm:$0xf]
  %v89 = vld [vmem:[%s1 + $0x30] sm:$0xf]
  %v90 = vld [vmem:[%s1 + $0x34] sm:$0xf]
  %v91 = vld [vmem:[%s1 + $0x38] sm:$0xf]
  %v92 = vld [vmem:[%s1 + $0x3c] sm:$0xf]
  %v109 = vunpack.c.l.b16 %v61
  %v110 = vunpack.c.l.b16 %v62
  %v111 = vunpack.c.l.b16 %v63
  %v112 = vunpack.c.l.b16 %v64
  %v113 = vunpack.c.l.b16 %v65
  %v114 = vunpack.c.l.b16 %v66
  %v115 = vunpack.c.l.b16 %v67
  %v116 = vunpack.c.l.b16 %v68
  %v117 = vunpack.c.l.b16 %v69
  %v118 = vunpack.c.l.b16 %v70
  %v119 = vunpack.c.l.b16 %v71
  %v120 = vunpack.c.l.b16 %v72
  %v121 = vunpack.c.l.b16 %v73
  %v122 = vunpack.c.l.b16 %v74
  %v123 = vunpack.c.l.b16 %v75
  %v124 = vunpack.c.l.b16 %v76
  %v125 = vpack.c.b16 %v110, %v109
  %v126 = vpack.c.b16 %v112, %v111
  %v127 = vpack.c.b16 %v114, %v113
  %v128 = vpack.c.b16 %v116, %v115
  %v129 = vpack.c.b16 %v118, %v117
  %v130 = vpack.c.b16 %v120, %v119
  %v131 = vpack.c.b16 %v122, %v121
  %v132 = vpack.c.b16 %v124, %v123
  %v157 = vunpack.c.l.b16 %v77
  %v158 = vunpack.c.l.b16 %v78
  %v159 = vunpack.c.l.b16 %v79
  %v160 = vunpack.c.l.b16 %v80
  %v161 = vunpack.c.l.b16 %v81
  %v162 = vunpack.c.l.b16 %v82
  %v163 = vunpack.c.l.b16 %v83
  %v164 = vunpack.c.l.b16 %v84
  %v165 = vunpack.c.l.b16 %v85
  %v166 = vunpack.c.l.b16 %v86
  %v167 = vunpack.c.l.b16 %v87
  %v168 = vunpack.c.l.b16 %v88
  %v169 = vunpack.c.l.b16 %v89
  %v170 = vunpack.c.l.b16 %v90
  %v171 = vunpack.c.l.b16 %v91
  %v172 = vunpack.c.l.b16 %v92
  %v173 = vpack.c.b16 %v158, %v157
  %v174 = vpack.c.b16 %v160, %v159
  %v175 = vpack.c.b16 %v162, %v161
  %v176 = vpack.c.b16 %v164, %v163
  %v177 = vpack.c.b16 %v166, %v165
  %v178 = vpack.c.b16 %v168, %v167
  %v179 = vpack.c.b16 %v170, %v169
  %v180 = vpack.c.b16 %v172, %v171
  %189 = vmatprep.subr.bf16.mxu0 0
  %190 = vmatpush1.bf16.msra.mxu0 %v173
  %191 = vmatprep.subr.bf16.mxu0 0
  %192 = vmatpush1.bf16.msra.mxu0 %v174
  %193 = vmatprep.subr.bf16.mxu0 0
  %194 = vmatpush1.bf16.msra.mxu0 %v175
  %195 = vmatprep.subr.bf16.mxu0 0
  %196 = vmatpush1.bf16.msra.mxu0 %v176
  %197 = vmatprep.subr.bf16.mxu0 0
  %198 = vmatpush1.bf16.msra.mxu0 %v177
  %199 = vmatprep.subr.bf16.mxu0 0
  %200 = vmatpush1.bf16.msra.mxu0 %v178
  %201 = vmatprep.subr.bf16.mxu0 0
  %202 = vmatpush1.bf16.msra.mxu0 %v179
  %203 = vmatprep.subr.bf16.mxu0 0
  %204 = vmatpush1.bf16.msra.mxu0 %v180
  %205 = vmatprep.subr.bf16.mxu0 0
  %206 = vmatpush1.bf16.msra.mxu0 0
  %207 = vmatprep.subr.bf16.mxu0 0
  %208 = vmatpush1.bf16.msra.mxu0 0
  %209 = vmatprep.subr.bf16.mxu0 0
  %210 = vmatpush1.bf16.msra.mxu0 0
  %211 = vmatprep.subr.bf16.mxu0 0
  %212 = vmatpush1.bf16.msra.mxu0 0
  %213 = vmatprep.subr.bf16.mxu0 0
  %214 = vmatpush1.bf16.msra.mxu0 0
  %215 = vmatprep.subr.bf16.mxu0 0
  %216 = vmatpush1.bf16.msra.mxu0 0
  %217 = vmatprep.subr.bf16.mxu0 0
  %218 = vmatpush1.bf16.msra.mxu0 0
  %219 = vmatprep.subr.bf16.mxu0 0
  %220 = vmatpush1.bf16.msra.mxu0 0
  %221 = vmatprep.mubr.bf16.mxu0 0
  %222 = vmatmul.mubr.bf16.gmra.mrb[0].mxu0 %v125
  %v223 = vpop.f32.mrb[0].mxu0
  %v224 = vadd.f32 0.0, %v223
  %v225 = vpop.f32.mrb[0].mxu0
  %v226 = vpop.f32.mrb[0].mxu0
  %v227 = vadd.f32 0.0, %v226
  %v228 = vpop.f32.mrb[0].mxu0
  %229 = vmatprep.mubr.bf16.mxu0 0
  %230 = vmatmul.mubr.bf16.gmra.mrb[0].mxu0 %v126
  %v231 = vpop.f32.mrb[0].mxu0
  %v232 = vadd.f32 0.0, %v231
  %v233 = vpop.f32.mrb[0].mxu0
  %v234 = vpop.f32.mrb[0].mxu0
  %v235 = vadd.f32 0.0, %v234
  %v236 = vpop.f32.mrb[0].mxu0
  %237 = vmatprep.mubr.bf16.mxu0 0
  %238 = vmatmul.mubr.bf16.gmra.mrb[0].mxu0 %v127
  %v239 = vpop.f32.mrb[0].mxu0
  %v240 = vadd.f32 0.0, %v239
  %v241 = vpop.f32.mrb[0].mxu0
  %v242 = vpop.f32.mrb[0].mxu0
  %v243 = vadd.f32 0.0, %v242
  %v244 = vpop.f32.mrb[0].mxu0
  %245 = vmatprep.mubr.bf16.mxu0 0
  %246 = vmatmul.mubr.bf16.gmra.mrb[0].mxu0 %v128
  %v247 = vpop.f32.mrb[0].mxu0
  %v248 = vadd.f32 0.0, %v247
  %v249 = vpop.f32.mrb[0].mxu0
  %v250 = vpop.f32.mrb[0].mxu0
  %v251 = vadd.f32 0.0, %v250
  %v252 = vpop.f32.mrb[0].mxu0
  %253 = vmatprep.mubr.bf16.mxu0 0
  %254 = vmatmul.mubr.bf16.gmra.mrb[0].mxu0 %v129
  %v255 = vpop.f32.mrb[0].mxu0
  %v256 = vadd.f32 0.0, %v255
  %v257 = vpop.f32.mrb[0].mxu0
  %v258 = vpop.f32.mrb[0].mxu0
  %v259 = vadd.f32 0.0, %v258
  %v260 = vpop.f32.mrb[0].mxu0
  %261 = vmatprep.mubr.bf16.mxu0 0
  %262 = vmatmul.mubr.bf16.gmra.mrb[0].mxu0 %v130
  %v263 = vpop.f32.mrb[0].mxu0
  %v264 = vadd.f32 0.0, %v263
  %v265 = vpop.f32.mrb[0].mxu0
  %v266 = vpop.f32.mrb[0].mxu0
  %v267 = vadd.f32 0.0, %v266
  %v268 = vpop.f32.mrb[0].mxu0
  %269 = vmatprep.mubr.bf16.mxu0 0
  %270 = vmatmul.mubr.bf16.gmra.mrb[0].mxu0 %v131
  %v271 = vpop.f32.mrb[0].mxu0
  %v272 = vadd.f32 0.0, %v271
  %v273 = vpop.f32.mrb[0].mxu0
  %v274 = vpop.f32.mrb[0].mxu0
  %v275 = vadd.f32 0.0, %v274
  %v276 = vpop.f32.mrb[0].mxu0
  %277 = vmatprep.mubr.bf16.mxu0 0
  %278 = vmatmul.mubr.bf16.gmra.mrb[0].mxu0 %v132
  %v279 = vpop.f32.mrb[0].mxu0
  %v280 = vadd.f32 0.0, %v279
  %v281 = vpop.f32.mrb[0].mxu0
  %v282 = vpop.f32.mrb[0].mxu0
  %v283 = vadd.f32 0.0, %v282
  %v284 = vpop.f32.mrb[0].mxu0
  %285 = vdwg.mxu0
  %p286 = scmp.eq.s32.totalorder 0, 0
  // Predicated region
  $region10: #{_lambda_.18} parent=0 // pred_check
    %p287 = pneg %p286
  $region11: #{_lambda_.18} parent=0 // pred_check_branch
    %289 = sbr.rel (%p287) target = $region13
  $region12: #{_lambda_.18} parent=0 // pred_region
    %290 = vst [vmem:[#allocation2] sm:$0xff] %v224
    %291 = vst [vmem:[#allocation2 + $0x8] sm:$0xff] %v227
    %292 = vst [vmem:[#allocation2 + $0x10] sm:$0xff] %v232
    %293 = vst [vmem:[#allocation2 + $0x18] sm:$0xff] %v235
    %294 = vst [vmem:[#allocation2 + $0x20] sm:$0xff] %v240
    %295 = vst [vmem:[#allocation2 + $0x28] sm:$0xff] %v243
    %296 = vst [vmem:[#allocation2 + $0x30] sm:$0xff] %v248
    %297 = vst [vmem:[#allocation2 + $0x38] sm:$0xff] %v251
    %298 = vst [vmem:[#allocation2 + $0x40] sm:$0xff] %v256
    %299 = vst [vmem:[#allocation2 + $0x48] sm:$0xff] %v259
    %300 = vst [vmem:[#allocation2 + $0x50] sm:$0xff] %v264
    %301 = vst [vmem:[#allocation2 + $0x58] sm:$0xff] %v267
    %302 = vst [vmem:[#allocation2 + $0x60] sm:$0xff] %v272
    %303 = vst [vmem:[#allocation2 + $0x68] sm:$0xff] %v275
    %304 = vst [vmem:[#allocation2 + $0x70] sm:$0xff] %v280
    %305 = vst [vmem:[#allocation2 + $0x78] sm:$0xff] %v283
  $region13: #{_lambda_.18} parent=0 // pred_fallthru
    _
  %p306 = scmp.gt.s32.totalorder 0, 0
  // Predicated region
  $region14: #{_lambda_.18} parent=0 // pred_check
    %p307 = pneg %p306
  $region15: #{_lambda_.18} parent=0 // pred_check_branch
    %309 = sbr.rel (%p307) target = $region17
  $region16: #{_lambda_.18} parent=0 // pred_region
    %v310 = vld [vmem:[#allocation2] sm:$0xff]
    %v311 = vld [vmem:[#allocation2 + $0x8] sm:$0xff]
    %v312 = vld [vmem:[#allocation2 + $0x10] sm:$0xff]
    %v313 = vld [vmem:[#allocation2 + $0x18] sm:$0xff]
    %v314 = vld [vmem:[#allocation2 + $0x20] sm:$0xff]
    %v315 = vld [vmem:[#allocation2 + $0x28] sm:$0xff]
    %v316 = vld [vmem:[#allocation2 + $0x30] sm:$0xff]
    %v317 = vld [vmem:[#allocation2 + $0x38] sm:$0xff]
    %v318 = vld [vmem:[#allocation2 + $0x40] sm:$0xff]
    %v319 = vld [vmem:[#allocation2 + $0x48] sm:$0xff]
    %v320 = vld [vmem:[#allocation2 + $0x50] sm:$0xff]
    %v321 = vld [vmem:[#allocation2 + $0x58] sm:$0xff]
    %v322 = vld [vmem:[#allocation2 + $0x60] sm:$0xff]
    %v323 = vld [vmem:[#allocation2 + $0x68] sm:$0xff]
    %v324 = vld [vmem:[#allocation2 + $0x70] sm:$0xff]
    %v325 = vld [vmem:[#allocation2 + $0x78] sm:$0xff]
    %v326 = vadd.f32 %v310, %v224
    %v327 = vadd.f32 %v311, %v227
    %v328 = vadd.f32 %v312, %v232
    %v329 = vadd.f32 %v313, %v235
    %v330 = vadd.f32 %v314, %v240
    %v331 = vadd.f32 %v315, %v243
    %v332 = vadd.f32 %v316, %v248
    %v333 = vadd.f32 %v317, %v251
    %v334 = vadd.f32 %v318, %v256
    %v335 = vadd.f32 %v319, %v259
    %v336 = vadd.f32 %v320, %v264
    %v337 = vadd.f32 %v321, %v267
    %v338 = vadd.f32 %v322, %v272
    %v339 = vadd.f32 %v323, %v275
    %v340 = vadd.f32 %v324, %v280
    %v341 = vadd.f32 %v325, %v283
    %342 = vst [vmem:[#allocation2] sm:$0xff] %v326
    %343 = vst [vmem:[#allocation2 + $0x8] sm:$0xff] %v327
    %344 = vst [vmem:[#allocation2 + $0x10] sm:$0xff] %v328
    %345 = vst [vmem:[#allocation2 + $0x18] sm:$0xff] %v329
    %346 = vst [vmem:[#allocation2 + $0x20] sm:$0xff] %v330
    %347 = vst [vmem:[#allocation2 + $0x28] sm:$0xff] %v331
    %348 = vst [vmem:[#allocation2 + $0x30] sm:$0xff] %v332
    %349 = vst [vmem:[#allocation2 + $0x38] sm:$0xff] %v333
    %350 = vst [vmem:[#allocation2 + $0x40] sm:$0xff] %v334
    %351 = vst [vmem:[#allocation2 + $0x48] sm:$0xff] %v335
    %352 = vst [vmem:[#allocation2 + $0x50] sm:$0xff] %v336
    %353 = vst [vmem:[#allocation2 + $0x58] sm:$0xff] %v337
    %354 = vst [vmem:[#allocation2 + $0x60] sm:$0xff] %v338
    %355 = vst [vmem:[#allocation2 + $0x68] sm:$0xff] %v339
    %356 = vst [vmem:[#allocation2 + $0x70] sm:$0xff] %v340
    %357 = vst [vmem:[#allocation2 + $0x78] sm:$0xff] %v341
  $region17: #{_lambda_.18} parent=0 // pred_fallthru
    _
  // Predicated region
  $region18: #{_lambda_.18} parent=0 // pred_check
    %p358 = pneg %p286
  $region19: #{_lambda_.18} parent=0 // pred_check_branch
    %360 = sbr.rel (%p358) target = $region21
  $region20: #{_lambda_.18} parent=0 // pred_region
    %v361 = vld [vmem:[#allocation2] sm:$0xff]
    %v362 = vld [vmem:[#allocation2 + $0x8] sm:$0xff]
    %v363 = vld [vmem:[#allocation2 + $0x10] sm:$0xff]
    %v364 = vld [vmem:[#allocation2 + $0x18] sm:$0xff]
    %v365 = vld [vmem:[#allocation2 + $0x20] sm:$0xff]
    %v366 = vld [vmem:[#allocation2 + $0x28] sm:$0xff]
    %v367 = vld [vmem:[#allocation2 + $0x30] sm:$0xff]
    %v368 = vld [vmem:[#allocation2 + $0x38] sm:$0xff]
    %v369 = vld [vmem:[#allocation2 + $0x40] sm:$0xff]
    %v370 = vld [vmem:[#allocation2 + $0x48] sm:$0xff]
    %v371 = vld [vmem:[#allocation2 + $0x50] sm:$0xff]
    %v372 = vld [vmem:[#allocation2 + $0x58] sm:$0xff]
    %v373 = vld [vmem:[#allocation2 + $0x60] sm:$0xff]
    %v374 = vld [vmem:[#allocation2 + $0x68] sm:$0xff]
    %v375 = vld [vmem:[#allocation2 + $0x70] sm:$0xff]
    %v376 = vld [vmem:[#allocation2 + $0x78] sm:$0xff]
    %v377 = vpack.c.bf16 %v362, %v361
    %v378 = vpack.c.bf16 %v364, %v363
    %v379 = vpack.c.bf16 %v366, %v365
    %v380 = vpack.c.bf16 %v368, %v367
    %v381 = vpack.c.bf16 %v370, %v369
    %v382 = vpack.c.bf16 %v372, %v371
    %v383 = vpack.c.bf16 %v374, %v373
    %v384 = vpack.c.bf16 %v376, %v375
    %v393 = vunpack.c.l.b16 %v377
    %v394 = vunpack.c.h.b16 %v377
    %v395 = vunpack.c.l.b16 %v378
    %v396 = vunpack.c.h.b16 %v378
    %v397 = vunpack.c.l.b16 %v379
    %v398 = vunpack.c.h.b16 %v379
    %v399 = vunpack.c.l.b16 %v380
    %v400 = vunpack.c.h.b16 %v380
    %v401 = vunpack.c.l.b16 %v381
    %v402 = vunpack.c.h.b16 %v381
    %v403 = vunpack.c.l.b16 %v382
    %v404 = vunpack.c.h.b16 %v382
    %v405 = vunpack.c.l.b16 %v383
    %v406 = vunpack.c.h.b16 %v383
    %v407 = vunpack.c.l.b16 %v384
    %v408 = vunpack.c.h.b16 %v384
    %v409 = vpack.c.b16 %v393, %v393
    %v410 = vpack.c.b16 %v394, %v394
    %v411 = vpack.c.b16 %v395, %v395
    %v412 = vpack.c.b16 %v396, %v396
    %v413 = vpack.c.b16 %v397, %v397
    %v414 = vpack.c.b16 %v398, %v398
    %v415 = vpack.c.b16 %v399, %v399
    %v416 = vpack.c.b16 %v400, %v400
    %v417 = vpack.c.b16 %v401, %v401
    %v418 = vpack.c.b16 %v402, %v402
    %v419 = vpack.c.b16 %v403, %v403
    %v420 = vpack.c.b16 %v404, %v404
    %v421 = vpack.c.b16 %v405, %v405
    %v422 = vpack.c.b16 %v406, %v406
    %v423 = vpack.c.b16 %v407, %v407
    %v424 = vpack.c.b16 %v408, %v408
    %441 = vst [vmem:[%s2] sm:$0xf] %v409
    %442 = vst [vmem:[%s2 + $0x4] sm:$0xf] %v410
    %443 = vst [vmem:[%s2 + $0x8] sm:$0xf] %v411
    %444 = vst [vmem:[%s2 + $0xc] sm:$0xf] %v412
    %445 = vst [vmem:[%s2 + $0x10] sm:$0xf] %v413
    %446 = vst [vmem:[%s2 + $0x14] sm:$0xf] %v414
    %447 = vst [vmem:[%s2 + $0x18] sm:$0xf] %v415
    %448 = vst [vmem:[%s2 + $0x1c] sm:$0xf] %v416
    %449 = vst [vmem:[%s2 + $0x20] sm:$0xf] %v417
    %450 = vst [vmem:[%s2 + $0x24] sm:$0xf] %v418
    %451 = vst [vmem:[%s2 + $0x28] sm:$0xf] %v419
    %452 = vst [vmem:[%s2 + $0x2c] sm:$0xf] %v420
    %453 = vst [vmem:[%s2 + $0x30] sm:$0xf] %v421
    %454 = vst [vmem:[%s2 + $0x34] sm:$0xf] %v422
    %455 = vst [vmem:[%s2 + $0x38] sm:$0xf] %v423
    %456 = vst [vmem:[%s2 + $0x3c] sm:$0xf] %v424
  $region21: #{_lambda_.18} parent=0 // pred_fallthru
    _
  // Predicated region
  $region22: #{_lambda_.18} parent=0 // pred_check
    _
  $region23: #{_lambda_.18} parent=0 // pred_check_branch
    %458 = sbr.rel (0) target = $region25
  $region24: #{_lambda_.18} parent=0 // pred_region
    _
  $region25: #{_lambda_.18} parent=0 // pred_fallthru
    _
  // Predicated region
  $region26: #{_lambda_.18} parent=0 // pred_check
    _
  $region27: #{_lambda_.18} parent=0 // pred_check_branch
    %460 = sbr.rel (0) target = $region29
  $region28: #{_lambda_.18} parent=0 // pred_region
    _
  $region29: #{_lambda_.18} parent=0 // pred_fallthru
    _

// kernel: tile.73
$region0: #{tile.73}
  #allocation0 [shape = 's32[1]{0}', space=sflag, size = 0x4, scoped, tag = 'scoped memory for tile.73']
  %s0 = inlined_call_operand.vmem [shape: f32[16], index: 0, kind: input, shape index: {}]
  %s1 = inlined_call_operand.vmem [shape: f32[16,16], index: 1, kind: output, shape index: {}]
  // Predicated region
  $region2: #{tile.73} parent=0 // pred_check
    _
  $region3: #{tile.73} parent=0 // pred_check_branch
    %3 = sbr.rel (0) target = $region5
  $region4: #{tile.73} parent=0 // pred_region
    _
  $region5: #{tile.73} parent=0 // pred_fallthru
    _
  %v4 = vld [vmem:[%s0] ss:$0 sm:$0xff]
  %5 = vst [vmem:[%s1] sm:$0xff] %v4
  %s6 = scalar_lea.vmem %s1, 8
  %7 = vst [vmem:[%s6] sm:$0xff] %v4

// kernel: tile.78
$region0: #{tile.78}
  %s0 = inlined_call_operand.vmem [shape: f32[16,16], index: 0, kind: input, shape index: {}]
  %s1 = inlined_call_operand.vmem [shape: f32[1,256], index: 1, kind: output, shape index: {}]
  $region1: #{tile.78} parent=0
    #allocation0 [shape = 'u8[8192]{0}', space=vmem, size = 0x2000, scoped, tag = 'scoped mem for output reshape']
    %s2 = smov 3
    %v3 = vld [vmem:[%s0] ss:$8 sm:%s2]
    %vm4 = vcmask 130048
    %5 = vst.msk [vmem:[#allocation0] ss:$8 sm:$0x3] %vm4, %v3
    %s6 = scalar_lea.vmem %s0, 7
    %s7 = smov 3
    %v8 = vld [vmem:[%s6] ss:$8 sm:%s7]
    %9 = vrot.lane.b32.xlu0 %v8, 112
    %v10 = vpop.permute.xlu0 %9
    %vm11 = vcmask 1048448
    %12 = vst.msk [vmem:[#allocation0] ss:$8 sm:$0x3] %vm11, %v10
    %s13 = scalar_lea.vmem %s0, 6
    %s14 = smov 3
    %v15 = vld [vmem:[%s13] ss:$8 sm:%s14]
    %16 = vrot.lane.b32.xlu0 %v15, 96
    %v17 = vpop.permute.xlu0 %16
    %vm18 = vcmask 917248
    %19 = vst.msk [vmem:[#allocation0] ss:$8 sm:$0x3] %vm18, %v17
    %s20 = scalar_lea.vmem %s0, 5
    %s21 = smov 3
    %v22 = vld [vmem:[%s20] ss:$8 sm:%s21]
    %23 = vrot.lane.b32.xlu0 %v22, 80
    %v24 = vpop.permute.xlu0 %23
    %vm25 = vcmask 786048
    %26 = vst.msk [vmem:[#allocation0] ss:$8 sm:$0x3] %vm25, %v24
    %s27 = scalar_lea.vmem %s0, 4
    %s28 = smov 3
    %v29 = vld [vmem:[%s27] ss:$8 sm:%s28]
    %30 = vrot.lane.b32.xlu0 %v29, 64
    %v31 = vpop.permute.xlu0 %30
    %vm32 = vcmask 654848
    %33 = vst.msk [vmem:[#allocation0] ss:$8 sm:$0x3] %vm32, %v31
    %s34 = scalar_lea.vmem %s0, 3
    %s35 = smov 3
    %v36 = vld [vmem:[%s34] ss:$8 sm:%s35]
    %37 = vrot.lane.b32.xlu0 %v36, 48
    %v38 = vpop.permute.xlu0 %37
    %vm39 = vcmask 523648
    %40 = vst.msk [vmem:[#allocation0] ss:$8 sm:$0x3] %vm39, %v38
    %s41 = scalar_lea.vmem %s0, 2
    %s42 = smov 3
    %v43 = vld [vmem:[%s41] ss:$8 sm:%s42]
    %44 = vrot.lane.b32.xlu0 %v43, 32
    %v45 = vpop.permute.xlu0 %44
    %vm46 = vcmask 392448
    %47 = vst.msk [vmem:[#allocation0] ss:$8 sm:$0x3] %vm46, %v45
    %s48 = scalar_lea.vmem %s0, 1
    %s49 = smov 3
    %v50 = vld [vmem:[%s48] ss:$8 sm:%s49]
    %51 = vrot.lane.b32.xlu0 %v50, 16
    %v52 = vpop.permute.xlu0 %51
    %vm53 = vcmask 261248
    %54 = vst.msk [vmem:[#allocation0] ss:$8 sm:$0x3] %vm53, %v52
    %s56 = sshllo.u32 0, 1
    %v58 = vld [vmem:[#allocation0] sm:%s56]
    %s59 = sshllo.u32 0, 1
    %60 = vst [vmem:[%s1] sm:%s59] %v58
    %s61 = scalar_lea.vmem [#allocation0], 8
    %v62 = vld [vmem:[%s61] sm:%s56]
    %s63 = sshllo.u32 0, 1
    %s64 = scalar_lea.vmem %s1, 1
    %65 = vst [vmem:[%s64] sm:%s63] %v62

// kernel: _lambda_.21
$region0: #{_lambda_.21}
  #allocation0 [shape = 'u32[]', space=smem, size = 0x4, offset = 0x4, fixed_abs, tag = 'smem constant byte address 0x4 - core index']
  #allocation1 [shape = 'u32[144,128]{1,0:T(1,128)}', space=vmem, size = 0x12000, scoped, tag = 'internal scratch']
  %s0 = inlined_call_operand.vmem [shape: bf16[32,128], index: 0, kind: input, shape index: {}]
  %s1 = inlined_call_operand.vmem [shape: f32[2,128], index: 1, kind: output, shape index: {}]
  %s2 = sld [smem:[#allocation0]]
  $region18: #{_lambda_.21} parent=0
    _
  %s4 = ssub.s32 1, %s2
  %s5 = scalar_select 0, %s4, %s2
  // Predicated region
  $region2: #{_lambda_.21} parent=0 // pred_check
    _
  $region3: #{_lambda_.21} parent=0 // pred_check_branch
    %7 = sbr.rel (0) target = $region5
  $region4: #{_lambda_.21} parent=0 // pred_region
    _
  $region5: #{_lambda_.21} parent=0 // pred_fallthru
    _
  %p8 = scmp.eq.s32.totalorder 0, 0
  // Predicated region
  $region6: #{_lambda_.21} parent=0 // pred_check
    %p9 = pneg %p8
  $region7: #{_lambda_.21} parent=0 // pred_check_branch
    %11 = sbr.rel (%p9) target = $region9
  $region8: #{_lambda_.21} parent=0 // pred_region
    %12 = vst [vmem:[%s1] sm:$0x3] 0.0
  $region9: #{_lambda_.21} parent=0 // pred_fallthru
    _
  %v13 = vld [vmem:[%s0] sm:$0xf]
  %v14 = vld [vmem:[%s0 + $0x4] sm:$0xf]
  %v15 = vld [vmem:[%s0 + $0x8] sm:$0xf]
  %v16 = vld [vmem:[%s0 + $0xc] sm:$0xf]
  %v17 = vunpack.c.l.bf16 %v13
  %v18 = vunpack.c.l.bf16 %v14
  %v19 = vunpack.c.l.bf16 %v15
  %v20 = vunpack.c.l.bf16 %v16
  %v21 = vadd.f32 %v17, %v18
  %v22 = vadd.f32 %v21, %v19
  %v23 = vadd.f32 %v22, %v20
  %v24 = vrot.slane %v23, 4
  %v25 = vadd.f32 %v23, %v24
  %v26 = vrot.slane %v25, 2
  %v27 = vadd.f32 %v25, %v26
  %v28 = vrot.slane %v27, 1
  %v29 = vadd.f32 %v27, %v28
  %v30 = vmul.f32 %v17, %v17
  %v31 = vmul.f32 %v18, %v18
  %v32 = vmul.f32 %v19, %v19
  %v33 = vmul.f32 %v20, %v20
  %v34 = vadd.f32 %v30, %v31
  %v35 = vadd.f32 %v34, %v32
  %v36 = vadd.f32 %v35, %v33
  %v37 = vrot.slane %v36, 4
  %v38 = vadd.f32 %v36, %v37
  %v39 = vrot.slane %v38, 2
  %v40 = vadd.f32 %v38, %v39
  %v41 = vrot.slane %v40, 1
  %v42 = vadd.f32 %v40, %v41
  %v43 = vld [vmem:[%s1] sm:$0x3]
  %vm44 = vcmask 1040384
  %v45 = vsel %vm44, %v29, %v42
  %v46 = vadd.f32 %v43, %v45
  %47 = vst [vmem:[%s1] sm:$0x3] %v46
  // Predicated region
  $region10: #{_lambda_.21} parent=0 // pred_check
    _
  $region11: #{_lambda_.21} parent=0 // pred_check_branch
    %49 = sbr.rel (0) target = $region13
  $region12: #{_lambda_.21} parent=0 // pred_region
    _
  $region13: #{_lambda_.21} parent=0 // pred_fallthru
    _
  // Predicated region
  $region14: #{_lambda_.21} parent=0 // pred_check
    _
  $region15: #{_lambda_.21} parent=0 // pred_check_branch
    %51 = sbr.rel (0) target = $region17
  $region16: #{_lambda_.21} parent=0 // pred_region
    _
  $region17: #{_lambda_.21} parent=0 // pred_fallthru
    _

// kernel: _lambda_.20
$region0: #{_lambda_.20}
  #allocation0 [shape = 'u32[]', space=smem, size = 0x4, offset = 0x4, fixed_abs, tag = 'smem constant byte address 0x4 - core index']
  #allocation1 [shape = 'u32[144,128]{1,0:T(1,128)}', space=vmem, size = 0x12000, scoped, tag = 'internal scratch']
  #allocation2 [shape = 'f32[32,128]{1,0:T(8,128)}', space=vmem, size = 0x4000, scoped, tag = 'scratch operand']
  %s0 = inlined_call_operand.vmem [shape: bf16[32,256], index: 0, kind: input, shape index: {}]
  %s1 = inlined_call_operand.vmem [shape: bf16[256,128], index: 1, kind: input, shape index: {}]
  %s2 = inlined_call_operand.vmem [shape: f32[1,256], index: 2, kind: input, shape index: {}]
  %s3 = inlined_call_operand.vmem [shape: f32[1,256], index: 3, kind: input, shape index: {}]
  %s4 = inlined_call_operand.vmem [shape: bf16[32,128], index: 4, kind: output, shape index: {}]
  %s5 = sld [smem:[#allocation0]]
  $region38: #{_lambda_.20} parent=0
    _
  %s7 = ssub.s32 1, %s5
  %s8 = scalar_select 0, %s7, %s5
  // Predicated region
  $region2: #{_lambda_.20} parent=0 // pred_check
    _
  $region3: #{_lambda_.20} parent=0 // pred_check_branch
    %10 = sbr.rel (0) target = $region5
  $region4: #{_lambda_.20} parent=0 // pred_region
    _
  $region5: #{_lambda_.20} parent=0 // pred_fallthru
    _
  // Predicated region
  $region6: #{_lambda_.20} parent=0 // pred_check
    _
  $region7: #{_lambda_.20} parent=0 // pred_check_branch
    %12 = sbr.rel (0) target = $region9
  $region8: #{_lambda_.20} parent=0 // pred_region
    _
  $region9: #{_lambda_.20} parent=0 // pred_fallthru
    _
  // Predicated region
  $region10: #{_lambda_.20} parent=0 // pred_check
    _
  $region11: #{_lambda_.20} parent=0 // pred_check_branch
    %14 = sbr.rel (0) target = $region13
  $region12: #{_lambda_.20} parent=0 // pred_region
    _
  $region13: #{_lambda_.20} parent=0 // pred_fallthru
    _
  // Predicated region
  $region14: #{_lambda_.20} parent=0 // pred_check
    _
  $region15: #{_lambda_.20} parent=0 // pred_check_branch
    %16 = sbr.rel (0) target = $region17
  $region16: #{_lambda_.20} parent=0 // pred_region
    _
  $region17: #{_lambda_.20} parent=0 // pred_fallthru
    _
  %v18 = vld [vmem:[%s0] sm:$0xff]
  %v19 = vld [vmem:[%s0 + $0x8] sm:$0xff]
  %v20 = vld [vmem:[%s0 + $0x10] sm:$0xff]
  %v21 = vld [vmem:[%s0 + $0x18] sm:$0xff]
  %v22 = vunpack.c.l.bf16 %v18
  %v23 = vunpack.c.h.bf16 %v18
  %v24 = vunpack.c.l.bf16 %v19
  %v25 = vunpack.c.h.bf16 %v19
  %v26 = vunpack.c.l.bf16 %v20
  %v27 = vunpack.c.h.bf16 %v20
  %v28 = vunpack.c.l.bf16 %v21
  %v29 = vunpack.c.h.bf16 %v21
  %v30 = vld [vmem:[%s2] sm:$0x3]
  %v32 = vlaneseq
  %v33 = vshrl.u32 %v32, 7
  %v34 = vsub.s32 0, %v33
  %v35 = vrot.slane %v30, %v34
  %v36 = vlaneseq
  %v37 = vshrl.u32 %v36, 7
  %v38 = vsub.s32 1, %v37
  %v39 = vrot.slane %v30, %v38
  %v42 = vmul.f32 %v22, %v35
  %v43 = vmul.f32 %v23, %v39
  %v44 = vmul.f32 %v24, %v35
  %v45 = vmul.f32 %v25, %v39
  %v46 = vmul.f32 %v26, %v35
  %v47 = vmul.f32 %v27, %v39
  %v48 = vmul.f32 %v28, %v35
  %v49 = vmul.f32 %v29, %v39
  %v50 = vld [vmem:[%s3] sm:$0x3]
  %v52 = vlaneseq
  %v53 = vshrl.u32 %v52, 7
  %v54 = vsub.s32 0, %v53
  %v55 = vrot.slane %v50, %v54
  %v56 = vlaneseq
  %v57 = vshrl.u32 %v56, 7
  %v58 = vsub.s32 1, %v57
  %v59 = vrot.slane %v50, %v58
  %v62 = vadd.f32 %v42, %v55
  %v63 = vadd.f32 %v43, %v59
  %v64 = vadd.f32 %v44, %v55
  %v65 = vadd.f32 %v45, %v59
  %v66 = vadd.f32 %v46, %v55
  %v67 = vadd.f32 %v47, %v59
  %v68 = vadd.f32 %v48, %v55
  %v69 = vadd.f32 %v49, %v59
  %vm70 = vcmp.ge.f32.partialorder %v62, 0.0
  %vm71 = vcmp.ge.f32.partialorder %v63, 0.0
  %vm72 = vcmp.ge.f32.partialorder %v64, 0.0
  %vm73 = vcmp.ge.f32.partialorder %v65, 0.0
  %vm74 = vcmp.ge.f32.partialorder %v66, 0.0
  %vm75 = vcmp.ge.f32.partialorder %v67, 0.0
  %vm76 = vcmp.ge.f32.partialorder %v68, 0.0
  %vm77 = vcmp.ge.f32.partialorder %v69, 0.0
  %v78 = vmul.f32 %v62, 0.2
  %v79 = vmul.f32 %v63, 0.2
  %v80 = vmul.f32 %v64, 0.2
  %v81 = vmul.f32 %v65, 0.2
  %v82 = vmul.f32 %v66, 0.2
  %v83 = vmul.f32 %v67, 0.2
  %v84 = vmul.f32 %v68, 0.2
  %v85 = vmul.f32 %v69, 0.2
  %v86 = vsel %vm70, %v62, %v78
  %v87 = vsel %vm71, %v63, %v79
  %v88 = vsel %vm72, %v64, %v80
  %v89 = vsel %vm73, %v65, %v81
  %v90 = vsel %vm74, %v66, %v82
  %v91 = vsel %vm75, %v67, %v83
  %v92 = vsel %vm76, %v68, %v84
  %v93 = vsel %vm77, %v69, %v85
  %v94 = vpack.c.bf16 %v88, %v86
  %v95 = vpack.c.bf16 %v89, %v87
  %v96 = vpack.c.bf16 %v92, %v90
  %v97 = vpack.c.bf16 %v93, %v91
  %v98 = vld [vmem:[%s1] sm:$0xf]
  %v99 = vld [vmem:[%s1 + $0x4] sm:$0xf]
  %v100 = vld [vmem:[%s1 + $0x8] sm:$0xf]
  %v101 = vld [vmem:[%s1 + $0xc] sm:$0xf]
  %v102 = vld [vmem:[%s1 + $0x10] sm:$0xf]
  %v103 = vld [vmem:[%s1 + $0x14] sm:$0xf]
  %v104 = vld [vmem:[%s1 + $0x18] sm:$0xf]
  %v105 = vld [vmem:[%s1 + $0x1c] sm:$0xf]
  %v106 = vld [vmem:[%s1 + $0x20] sm:$0xf]
  %v107 = vld [vmem:[%s1 + $0x24] sm:$0xf]
  %v108 = vld [vmem:[%s1 + $0x28] sm:$0xf]
  %v109 = vld [vmem:[%s1 + $0x2c] sm:$0xf]
  %v110 = vld [vmem:[%s1 + $0x30] sm:$0xf]
  %v111 = vld [vmem:[%s1 + $0x34] sm:$0xf]
  %v112 = vld [vmem:[%s1 + $0x38] sm:$0xf]
  %v113 = vld [vmem:[%s1 + $0x3c] sm:$0xf]
  %v114 = vld [vmem:[%s1 + $0x40] sm:$0xf]
  %v115 = vld [vmem:[%s1 + $0x44] sm:$0xf]
  %v116 = vld [vmem:[%s1 + $0x48] sm:$0xf]
  %v117 = vld [vmem:[%s1 + $0x4c] sm:$0xf]
  %v118 = vld [vmem:[%s1 + $0x50] sm:$0xf]
  %v119 = vld [vmem:[%s1 + $0x54] sm:$0xf]
  %v120 = vld [vmem:[%s1 + $0x58] sm:$0xf]
  %v121 = vld [vmem:[%s1 + $0x5c] sm:$0xf]
  %v122 = vld [vmem:[%s1 + $0x60] sm:$0xf]
  %v123 = vld [vmem:[%s1 + $0x64] sm:$0xf]
  %v124 = vld [vmem:[%s1 + $0x68] sm:$0xf]
  %v125 = vld [vmem:[%s1 + $0x6c] sm:$0xf]
  %v126 = vld [vmem:[%s1 + $0x70] sm:$0xf]
  %v127 = vld [vmem:[%s1 + $0x74] sm:$0xf]
  %v128 = vld [vmem:[%s1 + $0x78] sm:$0xf]
  %v129 = vld [vmem:[%s1 + $0x7c] sm:$0xf]
  %v162 = vunpack.c.l.b16 %v98
  %v163 = vunpack.c.l.b16 %v99
  %v164 = vunpack.c.l.b16 %v100
  %v165 = vunpack.c.l.b16 %v101
  %v166 = vunpack.c.l.b16 %v102
  %v167 = vunpack.c.l.b16 %v103
  %v168 = vunpack.c.l.b16 %v104
  %v169 = vunpack.c.l.b16 %v105
  %v170 = vunpack.c.l.b16 %v106
  %v171 = vunpack.c.l.b16 %v107
  %v172 = vunpack.c.l.b16 %v108
  %v173 = vunpack.c.l.b16 %v109
  %v174 = vunpack.c.l.b16 %v110
  %v175 = vunpack.c.l.b16 %v111
  %v176 = vunpack.c.l.b16 %v112
  %v177 = vunpack.c.l.b16 %v113
  %v178 = vunpack.c.l.b16 %v114
  %v179 = vunpack.c.l.b16 %v115
  %v180 = vunpack.c.l.b16 %v116
  %v181 = vunpack.c.l.b16 %v117
  %v182 = vunpack.c.l.b16 %v118
  %v183 = vunpack.c.l.b16 %v119
  %v184 = vunpack.c.l.b16 %v120
  %v185 = vunpack.c.l.b16 %v121
  %v186 = vunpack.c.l.b16 %v122
  %v187 = vunpack.c.l.b16 %v123
  %v188 = vunpack.c.l.b16 %v124
  %v189 = vunpack.c.l.b16 %v125
  %v190 = vunpack.c.l.b16 %v126
  %v191 = vunpack.c.l.b16 %v127
  %v192 = vunpack.c.l.b16 %v128
  %v193 = vunpack.c.l.b16 %v129
  %v194 = vpack.c.b16 %v163, %v162
  %v195 = vpack.c.b16 %v165, %v164
  %v196 = vpack.c.b16 %v167, %v166
  %v197 = vpack.c.b16 %v169, %v168
  %v198 = vpack.c.b16 %v171, %v170
  %v199 = vpack.c.b16 %v173, %v172
  %v200 = vpack.c.b16 %v175, %v174
  %v201 = vpack.c.b16 %v177, %v176
  %v202 = vpack.c.b16 %v179, %v178
  %v203 = vpack.c.b16 %v181, %v180
  %v204 = vpack.c.b16 %v183, %v182
  %v205 = vpack.c.b16 %v185, %v184
  %v206 = vpack.c.b16 %v187, %v186
  %v207 = vpack.c.b16 %v189, %v188
  %v208 = vpack.c.b16 %v191, %v190
  %v209 = vpack.c.b16 %v193, %v192
  %226 = vmatprep.subr.bf16.mxu0 0
  %227 = vmatpush1.bf16.msra.mxu0 %v194
  %228 = vmatprep.subr.bf16.mxu0 0
  %229 = vmatpush1.bf16.msra.mxu0 %v195
  %230 = vmatprep.subr.bf16.mxu0 0
  %231 = vmatpush1.bf16.msra.mxu0 %v196
  %232 = vmatprep.subr.bf16.mxu0 0
  %233 = vmatpush1.bf16.msra.mxu0 %v197
  %234 = vmatprep.subr.bf16.mxu0 0
  %235 = vmatpush1.bf16.msra.mxu0 %v198
  %236 = vmatprep.subr.bf16.mxu0 0
  %237 = vmatpush1.bf16.msra.mxu0 %v199
  %238 = vmatprep.subr.bf16.mxu0 0
  %239 = vmatpush1.bf16.msra.mxu0 %v200
  %240 = vmatprep.subr.bf16.mxu0 0
  %241 = vmatpush1.bf16.msra.mxu0 %v201
  %242 = vmatprep.subr.bf16.mxu0 0
  %243 = vmatpush1.bf16.msra.mxu0 %v202
  %244 = vmatprep.subr.bf16.mxu0 0
  %245 = vmatpush1.bf16.msra.mxu0 %v203
  %246 = vmatprep.subr.bf16.mxu0 0
  %247 = vmatpush1.bf16.msra.mxu0 %v204
  %248 = vmatprep.subr.bf16.mxu0 0
  %249 = vmatpush1.bf16.msra.mxu0 %v205
  %250 = vmatprep.subr.bf16.mxu0 0
  %251 = vmatpush1.bf16.msra.mxu0 %v206
  %252 = vmatprep.subr.bf16.mxu0 0
  %253 = vmatpush1.bf16.msra.mxu0 %v207
  %254 = vmatprep.subr.bf16.mxu0 0
  %255 = vmatpush1.bf16.msra.mxu0 %v208
  %256 = vmatprep.subr.bf16.mxu0 0
  %257 = vmatpush1.bf16.msra.mxu0 %v209
  %258 = vmatprep.mubr.bf16.mxu0 %v95
  %259 = vmatmul.mubr.bf16.gmra.mrb[0].mxu0 %v94
  %v260 = vpop.f32.mrb[0].mxu0
  %v261 = vadd.f32 0.0, %v260
  %v262 = vpop.f32.mrb[0].mxu0
  %v263 = vpop.f32.mrb[0].mxu0
  %v264 = vadd.f32 0.0, %v263
  %v265 = vpop.f32.mrb[0].mxu0
  %266 = vmatprep.mubr.bf16.mxu0 %v97
  %267 = vmatmul.mubr.bf16.gmra.mrb[0].mxu0 %v96
  %v268 = vpop.f32.mrb[0].mxu0
  %v269 = vadd.f32 0.0, %v268
  %v270 = vpop.f32.mrb[0].mxu0
  %v271 = vpop.f32.mrb[0].mxu0
  %v272 = vadd.f32 0.0, %v271
  %v273 = vpop.f32.mrb[0].mxu0
  %274 = vdwg.mxu0
  %p275 = scmp.eq.s32.totalorder 0, 0
  // Predicated region
  $region18: #{_lambda_.20} parent=0 // pred_check
    %p276 = pneg %p275
  $region19: #{_lambda_.20} parent=0 // pred_check_branch
    %278 = sbr.rel (%p276) target = $region21
  $region20: #{_lambda_.20} parent=0 // pred_region
    %279 = vst [vmem:[#allocation2] sm:$0xff] %v261
    %280 = vst [vmem:[#allocation2 + $0x8] sm:$0xff] %v264
    %281 = vst [vmem:[#allocation2 + $0x10] sm:$0xff] %v269
    %282 = vst [vmem:[#allocation2 + $0x18] sm:$0xff] %v272
  $region21: #{_lambda_.20} parent=0 // pred_fallthru
    _
  %p283 = scmp.gt.s32.totalorder 0, 0
  // Predicated region
  $region22: #{_lambda_.20} parent=0 // pred_check
    %p284 = pneg %p283
  $region23: #{_lambda_.20} parent=0 // pred_check_branch
    %286 = sbr.rel (%p284) target = $region25
  $region24: #{_lambda_.20} parent=0 // pred_region
    %v287 = vld [vmem:[#allocation2] sm:$0xff]
    %v288 = vld [vmem:[#allocation2 + $0x8] sm:$0xff]
    %v289 = vld [vmem:[#allocation2 + $0x10] sm:$0xff]
    %v290 = vld [vmem:[#allocation2 + $0x18] sm:$0xff]
    %v291 = vadd.f32 %v287, %v261
    %v292 = vadd.f32 %v288, %v264
    %v293 = vadd.f32 %v289, %v269
    %v294 = vadd.f32 %v290, %v272
    %295 = vst [vmem:[#allocation2] sm:$0xff] %v291
    %296 = vst [vmem:[#allocation2 + $0x8] sm:$0xff] %v292
    %297 = vst [vmem:[#allocation2 + $0x10] sm:$0xff] %v293
    %298 = vst [vmem:[#allocation2 + $0x18] sm:$0xff] %v294
  $region25: #{_lambda_.20} parent=0 // pred_fallthru
    _
  // Predicated region
  $region26: #{_lambda_.20} parent=0 // pred_check
    %p299 = pneg %p275
  $region27: #{_lambda_.20} parent=0 // pred_check_branch
    %301 = sbr.rel (%p299) target = $region29
  $region28: #{_lambda_.20} parent=0 // pred_region
    %v302 = vld [vmem:[#allocation2] sm:$0xff]
    %v303 = vld [vmem:[#allocation2 + $0x8] sm:$0xff]
    %v304 = vld [vmem:[#allocation2 + $0x10] sm:$0xff]
    %v305 = vld [vmem:[#allocation2 + $0x18] sm:$0xff]
    %v306 = vpack.c.bf16 %v303, %v302
    %v307 = vpack.c.bf16 %v305, %v304
    %v310 = vunpack.c.l.b16 %v306
    %v311 = vunpack.c.h.b16 %v306
    %v312 = vunpack.c.l.b16 %v307
    %v313 = vunpack.c.h.b16 %v307
    %v314 = vpack.c.b16 %v310, %v310
    %v315 = vpack.c.b16 %v311, %v311
    %v316 = vpack.c.b16 %v312, %v312
    %v317 = vpack.c.b16 %v313, %v313
    %322 = vst [vmem:[%s4] sm:$0xf] %v314
    %323 = vst [vmem:[%s4 + $0x4] sm:$0xf] %v315
    %324 = vst [vmem:[%s4 + $0x8] sm:$0xf] %v316
    %325 = vst [vmem:[%s4 + $0xc] sm:$0xf] %v317
  $region29: #{_lambda_.20} parent=0 // pred_fallthru
    _
  // Predicated region
  $region30: #{_lambda_.20} parent=0 // pred_check
    _
  $region31: #{_lambda_.20} parent=0 // pred_check_branch
    %327 = sbr.rel (0) target = $region33
  $region32: #{_lambda_.20} parent=0 // pred_region
    _
  $region33: #{_lambda_.20} parent=0 // pred_fallthru
    _
  // Predicated region
  $region34: #{_lambda_.20} parent=0 // pred_check
    _
  $region35: #{_lambda_.20} parent=0 // pred_check_branch
    %329 = sbr.rel (0) target = $region37
  $region36: #{_lambda_.20} parent=0 // pred_region
    _
  $region37: #{_lambda_.20} parent=0 // pred_fallthru
    _

// kernel: tile.83
$region0: #{tile.83}
  #allocation0 [shape = 's32[1]{0}', space=sflag, size = 0x4, scoped, tag = 'scoped memory for tile.83']
  %s0 = inlined_call_operand.vmem [shape: f32[32], index: 0, kind: input, shape index: {}]
  %s1 = inlined_call_operand.vmem [shape: f32[16,32], index: 1, kind: output, shape index: {}]
  // Predicated region
  $region2: #{tile.83} parent=0 // pred_check
    _
  $region3: #{tile.83} parent=0 // pred_check_branch
    %3 = sbr.rel (0) target = $region5
  $region4: #{tile.83} parent=0 // pred_region
    _
  $region5: #{tile.83} parent=0 // pred_fallthru
    _
  %v4 = vld [vmem:[%s0] ss:$0 sm:$0xff]
  %5 = vst [vmem:[%s1] sm:$0xff] %v4
  %s6 = scalar_lea.vmem %s1, 8
  %7 = vst [vmem:[%s6] sm:$0xff] %v4

// kernel: tile.88
$region0: #{tile.88}
  %s0 = inlined_call_operand.vmem [shape: f32[16,32], index: 0, kind: input, shape index: {}]
  %s1 = inlined_call_operand.vmem [shape: f32[1,512], index: 1, kind: output, shape index: {}]
  $region1: #{tile.88} parent=0
    #allocation0 [shape = 'u8[16384]{0}', space=vmem, size = 0x4000, scoped, tag = 'scoped mem for output reshape']
    %v2 = vld [vmem:[%s0] ss:$4 sm:$0xf]
    %vm3 = vcmask 261120
    %4 = vst.msk [vmem:[#allocation0] ss:$8 sm:$0xf] %vm3, %v2
    %s5 = scalar_lea.vmem %s0, 3
    %v6 = vld [vmem:[%s5] ss:$4 sm:$0xf]
    %7 = vrot.lane.b32.xlu0 %v6, 96
    %v8 = vpop.permute.xlu0 %7
    %vm9 = vcmask 1048320
    %10 = vst.msk [vmem:[#allocation0] ss:$8 sm:$0xf] %vm9, %v8
    %s11 = scalar_lea.vmem %s0, 2
    %v12 = vld [vmem:[%s11] ss:$4 sm:$0xf]
    %13 = vrot.lane.b32.xlu0 %v12, 64
    %v14 = vpop.permute.xlu0 %13
    %vm15 = vcmask 785920
    %16 = vst.msk [vmem:[#allocation0] ss:$8 sm:$0xf] %vm15, %v14
    %s17 = scalar_lea.vmem %s0, 1
    %v18 = vld [vmem:[%s17] ss:$4 sm:$0xf]
    %19 = vrot.lane.b32.xlu0 %v18, 32
    %v20 = vpop.permute.xlu0 %19
    %vm21 = vcmask 523520
    %22 = vst.msk [vmem:[#allocation0] ss:$8 sm:$0xf] %vm21, %v20
    %s24 = sshllo.u32 0, 1
    %v26 = vld [vmem:[#allocation0] sm:%s24]
    %s27 = sshllo.u32 0, 1
    %28 = vst [vmem:[%s1] sm:%s27] %v26
    %s29 = scalar_lea.vmem [#allocation0], 8
    %v30 = vld [vmem:[%s29] sm:%s24]
    %s31 = sshllo.u32 0, 1
    %s32 = scalar_lea.vmem %s1, 1
    %33 = vst [vmem:[%s32] sm:%s31] %v30
    %s34 = scalar_lea.vmem [#allocation0], 16
    %v35 = vld [vmem:[%s34] sm:%s24]
    %s36 = sshllo.u32 0, 1
    %s37 = smul.addr 1, 2
    %s38 = scalar_lea.vmem %s1, %s37
    %39 = vst [vmem:[%s38] sm:%s36] %v35
    %s40 = scalar_lea.vmem [#allocation0], 24
    %v41 = vld [vmem:[%s40] sm:%s24]
    %s42 = sshllo.u32 0, 1
    %s43 = smul.addr 1, 3
    %s44 = scalar_lea.vmem %s1, %s43
    %45 = vst [vmem:[%s44] sm:%s42] %v41

// kernel: tile.93
$region0: #{tile.93}
  #allocation0 [shape = 's32[1]{0}', space=sflag, size = 0x4, scoped, tag = 'scoped memory for tile.93']
  %s0 = inlined_call_operand.vmem [shape: f32[64], index: 0, kind: input, shape index: {}]
  %s1 = inlined_call_operand.vmem [shape: f32[16,64], index: 1, kind: output, shape index: {}]
  // Predicated region
  $region2: #{tile.93} parent=0 // pred_check
    _
  $region3: #{tile.93} parent=0 // pred_check_branch
    %3 = sbr.rel (0) target = $region5
  $region4: #{tile.93} parent=0 // pred_region
    _
  $region5: #{tile.93} parent=0 // pred_fallthru
    _
  %v4 = vld [vmem:[%s0] ss:$0 sm:$0xff]
  %5 = vst [vmem:[%s1] sm:$0xff] %v4
  %s6 = scalar_lea.vmem %s1, 8
  %7 = vst [vmem:[%s6] sm:$0xff] %v4

// kernel: tile.98
$region0: #{tile.98}
  %s0 = inlined_call_operand.vmem [shape: f32[16,64], index: 0, kind: input, shape index: {}]
  %s1 = inlined_call_operand.vmem [shape: f32[1,1024], index: 1, kind: output, shape index: {}]
  $region1: #{tile.98} parent=0
    #allocation0 [shape = 'u8[32768]{0}', space=vmem, size = 0x8000, scoped, tag = 'scoped mem for output reshape']
    %v2 = vld [vmem:[%s0] ss:$2 sm:$0xff]
    %vm3 = vcmask 523264
    %4 = vst.msk [vmem:[#allocation0] ss:$8 sm:$0xf] %vm3, %v2
    %5 = vst.msk [vmem:[#allocation0] ss:$8 sm:$0xf0] %vm3, %v2
    %s6 = scalar_lea.vmem %s0, 1
    %v7 = vld [vmem:[%s6] ss:$2 sm:$0xff]
    %8 = vrot.lane.b32.xlu0 %v7, 64
    %v9 = vpop.permute.xlu0 %8
    %vm10 = vcmask 1048064
    %11 = vst.msk [vmem:[#allocation0] ss:$8 sm:$0xf] %vm10, %v9
    %12 = vst.msk [vmem:[#allocation0] ss:$8 sm:$0xf0] %vm10, %v9
    %s14 = sshllo.u32 0, 1
    %v16 = vld [vmem:[#allocation0] sm:%s14]
    %s17 = sshllo.u32 0, 1
    %18 = vst [vmem:[%s1] sm:%s17] %v16
    %s19 = scalar_lea.vmem [#allocation0], 8
    %v20 = vld [vmem:[%s19] sm:%s14]
    %s21 = sshllo.u32 0, 1
    %s22 = scalar_lea.vmem %s1, 1
    %23 = vst [vmem:[%s22] sm:%s21] %v20
    %s24 = scalar_lea.vmem [#allocation0], 16
    %v25 = vld [vmem:[%s24] sm:%s14]
    %s26 = sshllo.u32 0, 1
    %s27 = smul.addr 1, 2
    %s28 = scalar_lea.vmem %s1, %s27
    %29 = vst [vmem:[%s28] sm:%s26] %v25
    %s30 = scalar_lea.vmem [#allocation0], 24
    %v31 = vld [vmem:[%s30] sm:%s14]
    %s32 = sshllo.u32 0, 1
    %s33 = smul.addr 1, 3
    %s34 = scalar_lea.vmem %s1, %s33
    %35 = vst [vmem:[%s34] sm:%s32] %v31
    %s36 = scalar_lea.vmem [#allocation0], 32
    %v37 = vld [vmem:[%s36] sm:%s14]
    %s38 = sshllo.u32 0, 1
    %s39 = smul.addr 1, 4
    %s40 = scalar_lea.vmem %s1, %s39
    %41 = vst [vmem:[%s40] sm:%s38] %v37
    %s42 = scalar_lea.vmem [#allocation0], 40
    %v43 = vld [vmem:[%s42] sm:%s14]
    %s44 = sshllo.u32 0, 1
    %s45 = smul.addr 1, 5
    %s46 = scalar_lea.vmem %s1, %s45
    %47 = vst [vmem:[%s46] sm:%s44] %v43
    %s48 = scalar_lea.vmem [#allocation0], 48
    %v49 = vld [vmem:[%s48] sm:%s14]
    %s50 = sshllo.u32 0, 1
    %s51 = smul.addr 1, 6
    %s52 = scalar_lea.vmem %s1, %s51
    %53 = vst [vmem:[%s52] sm:%s50] %v49
    %s54 = scalar_lea.vmem [#allocation0], 56
    %v55 = vld [vmem:[%s54] sm:%s14]
    %s56 = sshllo.u32 0, 1
    %s57 = smul.addr 1, 7
    %s58 = scalar_lea.vmem %s1, %s57
    %59 = vst [vmem:[%s58] sm:%s56] %v55

// kernel: _lambda_.23
$region0: #{_lambda_.23}
  #allocation0 [shape = 'u32[]', space=smem, size = 0x4, offset = 0x4, fixed_abs, tag = 'smem constant byte address 0x4 - core index']
  #allocation1 [shape = 'u32[144,128]{1,0:T(1,128)}', space=vmem, size = 0x12000, scoped, tag = 'internal scratch']
  %s0 = inlined_call_operand.vmem [shape: bf16[16,128], index: 0, kind: input, shape index: {}]
  %s1 = inlined_call_operand.vmem [shape: f32[2,128], index: 1, kind: output, shape index: {}]
  %s2 = sld [smem:[#allocation0]]
  $region18: #{_lambda_.23} parent=0
    _
  %s4 = ssub.s32 1, %s2
  %s5 = scalar_select 0, %s4, %s2
  // Predicated region
  $region2: #{_lambda_.23} parent=0 // pred_check
    _
  $region3: #{_lambda_.23} parent=0 // pred_check_branch
    %7 = sbr.rel (0) target = $region5
  $region4: #{_lambda_.23} parent=0 // pred_region
    _
  $region5: #{_lambda_.23} parent=0 // pred_fallthru
    _
  %p8 = scmp.eq.s32.totalorder 0, 0
  // Predicated region
  $region6: #{_lambda_.23} parent=0 // pred_check
    %p9 = pneg %p8
  $region7: #{_lambda_.23} parent=0 // pred_check_branch
    %11 = sbr.rel (%p9) target = $region9
  $region8: #{_lambda_.23} parent=0 // pred_region
    %12 = vst [vmem:[%s1] sm:$0x3] 0.0
  $region9: #{_lambda_.23} parent=0 // pred_fallthru
    _
  %v13 = vld [vmem:[%s0] sm:$0xf]
  %v14 = vld [vmem:[%s0 + $0x4] sm:$0xf]
  %v15 = vunpack.c.l.bf16 %v13
  %v16 = vunpack.c.l.bf16 %v14
  %v17 = vadd.f32 %v15, %v16
  %v18 = vrot.slane %v17, 4
  %v19 = vadd.f32 %v17, %v18
  %v20 = vrot.slane %v19, 2
  %v21 = vadd.f32 %v19, %v20
  %v22 = vrot.slane %v21, 1
  %v23 = vadd.f32 %v21, %v22
  %v24 = vmul.f32 %v15, %v15
  %v25 = vmul.f32 %v16, %v16
  %v26 = vadd.f32 %v24, %v25
  %v27 = vrot.slane %v26, 4
  %v28 = vadd.f32 %v26, %v27
  %v29 = vrot.slane %v28, 2
  %v30 = vadd.f32 %v28, %v29
  %v31 = vrot.slane %v30, 1
  %v32 = vadd.f32 %v30, %v31
  %v33 = vld [vmem:[%s1] sm:$0x3]
  %vm34 = vcmask 1040384
  %v35 = vsel %vm34, %v23, %v32
  %v36 = vadd.f32 %v33, %v35
  %37 = vst [vmem:[%s1] sm:$0x3] %v36
  // Predicated region
  $region10: #{_lambda_.23} parent=0 // pred_check
    _
  $region11: #{_lambda_.23} parent=0 // pred_check_branch
    %39 = sbr.rel (0) target = $region13
  $region12: #{_lambda_.23} parent=0 // pred_region
    _
  $region13: #{_lambda_.23} parent=0 // pred_fallthru
    _
  // Predicated region
  $region14: #{_lambda_.23} parent=0 // pred_check
    _
  $region15: #{_lambda_.23} parent=0 // pred_check_branch
    %41 = sbr.rel (0) target = $region17
  $region16: #{_lambda_.23} parent=0 // pred_region
    _
  $region17: #{_lambda_.23} parent=0 // pred_fallthru
    _

// kernel: _lambda_.22
$region0: #{_lambda_.22}
  #allocation0 [shape = 'u32[]', space=smem, size = 0x4, offset = 0x4, fixed_abs, tag = 'smem constant byte address 0x4 - core index']
  #allocation1 [shape = 'u32[144,128]{1,0:T(1,128)}', space=vmem, size = 0x12000, scoped, tag = 'internal scratch']
  #allocation2 [shape = 'f32[16,128]{1,0:T(8,128)}', space=vmem, size = 0x2000, scoped, tag = 'scratch operand']
  %s0 = inlined_call_operand.vmem [shape: bf16[16,512], index: 0, kind: input, shape index: {}]
  %s1 = inlined_call_operand.vmem [shape: bf16[512,128], index: 1, kind: input, shape index: {}]
  %s2 = inlined_call_operand.vmem [shape: f32[1,512], index: 2, kind: input, shape index: {}]
  %s3 = inlined_call_operand.vmem [shape: f32[1,512], index: 3, kind: input, shape index: {}]
  %s4 = inlined_call_operand.vmem [shape: bf16[16,128], index: 4, kind: output, shape index: {}]
  %s5 = sld [smem:[#allocation0]]
  $region38: #{_lambda_.22} parent=0
    _
  %s7 = ssub.s32 1, %s5
  %s8 = scalar_select 0, %s7, %s5
  // Predicated region
  $region2: #{_lambda_.22} parent=0 // pred_check
    _
  $region3: #{_lambda_.22} parent=0 // pred_check_branch
    %10 = sbr.rel (0) target = $region5
  $region4: #{_lambda_.22} parent=0 // pred_region
    _
  $region5: #{_lambda_.22} parent=0 // pred_fallthru
    _
  // Predicated region
  $region6: #{_lambda_.22} parent=0 // pred_check
    _
  $region7: #{_lambda_.22} parent=0 // pred_check_branch
    %12 = sbr.rel (0) target = $region9
  $region8: #{_lambda_.22} parent=0 // pred_region
    _
  $region9: #{_lambda_.22} parent=0 // pred_fallthru
    _
  // Predicated region
  $region10: #{_lambda_.22} parent=0 // pred_check
    _
  $region11: #{_lambda_.22} parent=0 // pred_check_branch
    %14 = sbr.rel (0) target = $region13
  $region12: #{_lambda_.22} parent=0 // pred_region
    _
  $region13: #{_lambda_.22} parent=0 // pred_fallthru
    _
  // Predicated region
  $region14: #{_lambda_.22} parent=0 // pred_check
    _
  $region15: #{_lambda_.22} parent=0 // pred_check_branch
    %16 = sbr.rel (0) target = $region17
  $region16: #{_lambda_.22} parent=0 // pred_region
    _
  $region17: #{_lambda_.22} parent=0 // pred_fallthru
    _
  %v18 = vld [vmem:[%s0] sm:$0xff]
  %v19 = vld [vmem:[%s0 + $0x8] sm:$0xff]
  %v20 = vld [vmem:[%s0 + $0x10] sm:$0xff]
  %v21 = vld [vmem:[%s0 + $0x18] sm:$0xff]
  %v22 = vunpack.c.l.bf16 %v18
  %v23 = vunpack.c.h.bf16 %v18
  %v24 = vunpack.c.l.bf16 %v19
  %v25 = vunpack.c.h.bf16 %v19
  %v26 = vunpack.c.l.bf16 %v20
  %v27 = vunpack.c.h.bf16 %v20
  %v28 = vunpack.c.l.bf16 %v21
  %v29 = vunpack.c.h.bf16 %v21
  %v30 = vld [vmem:[%s2] sm:$0xf]
  %v32 = vlaneseq
  %v33 = vshrl.u32 %v32, 7
  %v34 = vsub.s32 0, %v33
  %v35 = vrot.slane %v30, %v34
  %v36 = vlaneseq
  %v37 = vshrl.u32 %v36, 7
  %v38 = vsub.s32 1, %v37
  %v39 = vrot.slane %v30, %v38
  %v40 = vlaneseq
  %v41 = vshrl.u32 %v40, 7
  %v42 = vsub.s32 2, %v41
  %v43 = vrot.slane %v30, %v42
  %v44 = vlaneseq
  %v45 = vshrl.u32 %v44, 7
  %v46 = vsub.s32 3, %v45
  %v47 = vrot.slane %v30, %v46
  %v52 = vmul.f32 %v22, %v35
  %v53 = vmul.f32 %v23, %v39
  %v54 = vmul.f32 %v24, %v43
  %v55 = vmul.f32 %v25, %v47
  %v56 = vmul.f32 %v26, %v35
  %v57 = vmul.f32 %v27, %v39
  %v58 = vmul.f32 %v28, %v43
  %v59 = vmul.f32 %v29, %v47
  %v60 = vld [vmem:[%s3] sm:$0xf]
  %v62 = vlaneseq
  %v63 = vshrl.u32 %v62, 7
  %v64 = vsub.s32 0, %v63
  %v65 = vrot.slane %v60, %v64
  %v66 = vlaneseq
  %v67 = vshrl.u32 %v66, 7
  %v68 = vsub.s32 1, %v67
  %v69 = vrot.slane %v60, %v68
  %v70 = vlaneseq
  %v71 = vshrl.u32 %v70, 7
  %v72 = vsub.s32 2, %v71
  %v73 = vrot.slane %v60, %v72
  %v74 = vlaneseq
  %v75 = vshrl.u32 %v74, 7
  %v76 = vsub.s32 3, %v75
  %v77 = vrot.slane %v60, %v76
  %v82 = vadd.f32 %v52, %v65
  %v83 = vadd.f32 %v53, %v69
  %v84 = vadd.f32 %v54, %v73
  %v85 = vadd.f32 %v55, %v77
  %v86 = vadd.f32 %v56, %v65
  %v87 = vadd.f32 %v57, %v69
  %v88 = vadd.f32 %v58, %v73
  %v89 = vadd.f32 %v59, %v77
  %vm90 = vcmp.ge.f32.partialorder %v82, 0.0
  %vm91 = vcmp.ge.f32.partialorder %v83, 0.0
  %vm92 = vcmp.ge.f32.partialorder %v84, 0.0
  %vm93 = vcmp.ge.f32.partialorder %v85, 0.0
  %vm94 = vcmp.ge.f32.partialorder %v86, 0.0
  %vm95 = vcmp.ge.f32.partialorder %v87, 0.0
  %vm96 = vcmp.ge.f32.partialorder %v88, 0.0
  %vm97 = vcmp.ge.f32.partialorder %v89, 0.0
  %v98 = vmul.f32 %v82, 0.2
  %v99 = vmul.f32 %v83, 0.2
  %v100 = vmul.f32 %v84, 0.2
  %v101 = vmul.f32 %v85, 0.2
  %v102 = vmul.f32 %v86, 0.2
  %v103 = vmul.f32 %v87, 0.2
  %v104 = vmul.f32 %v88, 0.2
  %v105 = vmul.f32 %v89, 0.2
  %v106 = vsel %vm90, %v82, %v98
  %v107 = vsel %vm91, %v83, %v99
  %v108 = vsel %vm92, %v84, %v100
  %v109 = vsel %vm93, %v85, %v101
  %v110 = vsel %vm94, %v86, %v102
  %v111 = vsel %vm95, %v87, %v103
  %v112 = vsel %vm96, %v88, %v104
  %v113 = vsel %vm97, %v89, %v105
  %v114 = vpack.c.bf16 %v110, %v106
  %v115 = vpack.c.bf16 %v111, %v107
  %v116 = vpack.c.bf16 %v112, %v108
  %v117 = vpack.c.bf16 %v113, %v109
  %v118 = vld [vmem:[%s1] sm:$0xf]
  %v119 = vld [vmem:[%s1 + $0x4] sm:$0xf]
  %v120 = vld [vmem:[%s1 + $0x8] sm:$0xf]
  %v121 = vld [vmem:[%s1 + $0xc] sm:$0xf]
  %v122 = vld [vmem:[%s1 + $0x10] sm:$0xf]
  %v123 = vld [vmem:[%s1 + $0x14] sm:$0xf]
  %v124 = vld [vmem:[%s1 + $0x18] sm:$0xf]
  %v125 = vld [vmem:[%s1 + $0x1c] sm:$0xf]
  %v126 = vld [vmem:[%s1 + $0x20] sm:$0xf]
  %v127 = vld [vmem:[%s1 + $0x24] sm:$0xf]
  %v128 = vld [vmem:[%s1 + $0x28] sm:$0xf]
  %v129 = vld [vmem:[%s1 + $0x2c] sm:$0xf]
  %v130 = vld [vmem:[%s1 + $0x30] sm:$0xf]
  %v131 = vld [vmem:[%s1 + $0x34] sm:$0xf]
  %v132 = vld [vmem:[%s1 + $0x38] sm:$0xf]
  %v133 = vld [vmem:[%s1 + $0x3c] sm:$0xf]
  %v134 = vld [vmem:[%s1 + $0x40] sm:$0xf]
  %v135 = vld [vmem:[%s1 + $0x44] sm:$0xf]
  %v136 = vld [vmem:[%s1 + $0x48] sm:$0xf]
  %v137 = vld [vmem:[%s1 + $0x4c] sm:$0xf]
  %v138 = vld [vmem:[%s1 + $0x50] sm:$0xf]
  %v139 = vld [vmem:[%s1 + $0x54] sm:$0xf]
  %v140 = vld [vmem:[%s1 + $0x58] sm:$0xf]
  %v141 = vld [vmem:[%s1 + $0x5c] sm:$0xf]
  %v142 = vld [vmem:[%s1 + $0x60] sm:$0xf]
  %v143 = vld [vmem:[%s1 + $0x64] sm:$0xf]
  %v144 = vld [vmem:[%s1 + $0x68] sm:$0xf]
  %v145 = vld [vmem:[%s1 + $0x6c] sm:$0xf]
  %v146 = vld [vmem:[%s1 + $0x70] sm:$0xf]
  %v147 = vld [vmem:[%s1 + $0x74] sm:$0xf]
  %v148 = vld [vmem:[%s1 + $0x78] sm:$0xf]
  %v149 = vld [vmem:[%s1 + $0x7c] sm:$0xf]
  %v150 = vld [vmem:[%s1 + $0x80] sm:$0xf]
  %v151 = vld [vmem:[%s1 + $0x84] sm:$0xf]
  %v152 = vld [vmem:[%s1 + $0x88] sm:$0xf]
  %v153 = vld [vmem:[%s1 + $0x8c] sm:$0xf]
  %v154 = vld [vmem:[%s1 + $0x90] sm:$0xf]
  %v155 = vld [vmem:[%s1 + $0x94] sm:$0xf]
  %v156 = vld [vmem:[%s1 + $0x98] sm:$0xf]
  %v157 = vld [vmem:[%s1 + $0x9c] sm:$0xf]
  %v158 = vld [vmem:[%s1 + $0xa0] sm:$0xf]
  %v159 = vld [vmem:[%s1 + $0xa4] sm:$0xf]
  %v160 = vld [vmem:[%s1 + $0xa8] sm:$0xf]
  %v161 = vld [vmem:[%s1 + $0xac] sm:$0xf]
  %v162 = vld [vmem:[%s1 + $0xb0] sm:$0xf]
  %v163 = vld [vmem:[%s1 + $0xb4] sm:$0xf]
  %v164 = vld [vmem:[%s1 + $0xb8] sm:$0xf]
  %v165 = vld [vmem:[%s1 + $0xbc] sm:$0xf]
  %v166 = vld [vmem:[%s1 + $0xc0] sm:$0xf]
  %v167 = vld [vmem:[%s1 + $0xc4] sm:$0xf]
  %v168 = vld [vmem:[%s1 + $0xc8] sm:$0xf]
  %v169 = vld [vmem:[%s1 + $0xcc] sm:$0xf]
  %v170 = vld [vmem:[%s1 + $0xd0] sm:$0xf]
  %v171 = vld [vmem:[%s1 + $0xd4] sm:$0xf]
  %v172 = vld [vmem:[%s1 + $0xd8] sm:$0xf]
  %v173 = vld [vmem:[%s1 + $0xdc] sm:$0xf]
  %v174 = vld [vmem:[%s1 + $0xe0] sm:$0xf]
  %v175 = vld [vmem:[%s1 + $0xe4] sm:$0xf]
  %v176 = vld [vmem:[%s1 + $0xe8] sm:$0xf]
  %v177 = vld [vmem:[%s1 + $0xec] sm:$0xf]
  %v178 = vld [vmem:[%s1 + $0xf0] sm:$0xf]
  %v179 = vld [vmem:[%s1 + $0xf4] sm:$0xf]
  %v180 = vld [vmem:[%s1 + $0xf8] sm:$0xf]
  %v181 = vld [vmem:[%s1 + $0xfc] sm:$0xf]
  %v246 = vunpack.c.l.b16 %v118
  %v247 = vunpack.c.l.b16 %v119
  %v248 = vunpack.c.l.b16 %v120
  %v249 = vunpack.c.l.b16 %v121
  %v250 = vunpack.c.l.b16 %v122
  %v251 = vunpack.c.l.b16 %v123
  %v252 = vunpack.c.l.b16 %v124
  %v253 = vunpack.c.l.b16 %v125
  %v254 = vunpack.c.l.b16 %v126
  %v255 = vunpack.c.l.b16 %v127
  %v256 = vunpack.c.l.b16 %v128
  %v257 = vunpack.c.l.b16 %v129
  %v258 = vunpack.c.l.b16 %v130
  %v259 = vunpack.c.l.b16 %v131
  %v260 = vunpack.c.l.b16 %v132
  %v261 = vunpack.c.l.b16 %v133
  %v262 = vunpack.c.l.b16 %v134
  %v263 = vunpack.c.l.b16 %v135
  %v264 = vunpack.c.l.b16 %v136
  %v265 = vunpack.c.l.b16 %v137
  %v266 = vunpack.c.l.b16 %v138
  %v267 = vunpack.c.l.b16 %v139
  %v268 = vunpack.c.l.b16 %v140
  %v269 = vunpack.c.l.b16 %v141
  %v270 = vunpack.c.l.b16 %v142
  %v271 = vunpack.c.l.b16 %v143
  %v272 = vunpack.c.l.b16 %v144
  %v273 = vunpack.c.l.b16 %v145
  %v274 = vunpack.c.l.b16 %v146
  %v275 = vunpack.c.l.b16 %v147
  %v276 = vunpack.c.l.b16 %v148
  %v277 = vunpack.c.l.b16 %v149
  %v278 = vunpack.c.l.b16 %v150
  %v279 = vunpack.c.l.b16 %v151
  %v280 = vunpack.c.l.b16 %v152
  %v281 = vunpack.c.l.b16 %v153
  %v282 = vunpack.c.l.b16 %v154
  %v283 = vunpack.c.l.b16 %v155
  %v284 = vunpack.c.l.b16 %v156
  %v285 = vunpack.c.l.b16 %v157
  %v286 = vunpack.c.l.b16 %v158
  %v287 = vunpack.c.l.b16 %v159
  %v288 = vunpack.c.l.b16 %v160
  %v289 = vunpack.c.l.b16 %v161
  %v290 = vunpack.c.l.b16 %v162
  %v291 = vunpack.c.l.b16 %v163
  %v292 = vunpack.c.l.b16 %v164
  %v293 = vunpack.c.l.b16 %v165
  %v294 = vunpack.c.l.b16 %v166
  %v295 = vunpack.c.l.b16 %v167
  %v296 = vunpack.c.l.b16 %v168
  %v297 = vunpack.c.l.b16 %v169
  %v298 = vunpack.c.l.b16 %v170
  %v299 = vunpack.c.l.b16 %v171
  %v300 = vunpack.c.l.b16 %v172
  %v301 = vunpack.c.l.b16 %v173
  %v302 = vunpack.c.l.b16 %v174
  %v303 = vunpack.c.l.b16 %v175
  %v304 = vunpack.c.l.b16 %v176
  %v305 = vunpack.c.l.b16 %v177
  %v306 = vunpack.c.l.b16 %v178
  %v307 = vunpack.c.l.b16 %v179
  %v308 = vunpack.c.l.b16 %v180
  %v309 = vunpack.c.l.b16 %v181
  %v310 = vpack.c.b16 %v247, %v246
  %v311 = vpack.c.b16 %v249, %v248
  %v312 = vpack.c.b16 %v251, %v250
  %v313 = vpack.c.b16 %v253, %v252
  %v314 = vpack.c.b16 %v255, %v254
  %v315 = vpack.c.b16 %v257, %v256
  %v316 = vpack.c.b16 %v259, %v258
  %v317 = vpack.c.b16 %v261, %v260
  %v318 = vpack.c.b16 %v263, %v262
  %v319 = vpack.c.b16 %v265, %v264
  %v320 = vpack.c.b16 %v267, %v266
  %v321 = vpack.c.b16 %v269, %v268
  %v322 = vpack.c.b16 %v271, %v270
  %v323 = vpack.c.b16 %v273, %v272
  %v324 = vpack.c.b16 %v275, %v274
  %v325 = vpack.c.b16 %v277, %v276
  %v326 = vpack.c.b16 %v279, %v278
  %v327 = vpack.c.b16 %v281, %v280
  %v328 = vpack.c.b16 %v283, %v282
  %v329 = vpack.c.b16 %v285, %v284
  %v330 = vpack.c.b16 %v287, %v286
  %v331 = vpack.c.b16 %v289, %v288
  %v332 = vpack.c.b16 %v291, %v290
  %v333 = vpack.c.b16 %v293, %v292
  %v334 = vpack.c.b16 %v295, %v294
  %v335 = vpack.c.b16 %v297, %v296
  %v336 = vpack.c.b16 %v299, %v298
  %v337 = vpack.c.b16 %v301, %v300
  %v338 = vpack.c.b16 %v303, %v302
  %v339 = vpack.c.b16 %v305, %v304
  %v340 = vpack.c.b16 %v307, %v306
  %v341 = vpack.c.b16 %v309, %v308
  %374 = vmatprep.subr.bf16.mxu0 0
  %375 = vmatpush1.bf16.msra.mxu0 %v310
  %376 = vmatprep.subr.bf16.mxu0 0
  %377 = vmatpush1.bf16.msra.mxu0 %v311
  %378 = vmatprep.subr.bf16.mxu0 0
  %379 = vmatpush1.bf16.msra.mxu0 %v312
  %380 = vmatprep.subr.bf16.mxu0 0
  %381 = vmatpush1.bf16.msra.mxu0 %v313
  %382 = vmatprep.subr.bf16.mxu0 0
  %383 = vmatpush1.bf16.msra.mxu0 %v314
  %384 = vmatprep.subr.bf16.mxu0 0
  %385 = vmatpush1.bf16.msra.mxu0 %v315
  %386 = vmatprep.subr.bf16.mxu0 0
  %387 = vmatpush1.bf16.msra.mxu0 %v316
  %388 = vmatprep.subr.bf16.mxu0 0
  %389 = vmatpush1.bf16.msra.mxu0 %v317
  %390 = vmatprep.subr.bf16.mxu0 0
  %391 = vmatpush1.bf16.msra.mxu0 %v318
  %392 = vmatprep.subr.bf16.mxu0 0
  %393 = vmatpush1.bf16.msra.mxu0 %v319
  %394 = vmatprep.subr.bf16.mxu0 0
  %395 = vmatpush1.bf16.msra.mxu0 %v320
  %396 = vmatprep.subr.bf16.mxu0 0
  %397 = vmatpush1.bf16.msra.mxu0 %v321
  %398 = vmatprep.subr.bf16.mxu0 0
  %399 = vmatpush1.bf16.msra.mxu0 %v322
  %400 = vmatprep.subr.bf16.mxu0 0
  %401 = vmatpush1.bf16.msra.mxu0 %v323
  %402 = vmatprep.subr.bf16.mxu0 0
  %403 = vmatpush1.bf16.msra.mxu0 %v324
  %404 = vmatprep.subr.bf16.mxu0 0
  %405 = vmatpush1.bf16.msra.mxu0 %v325
  %406 = vmatprep.mubr.bf16.mxu0 %v115
  %407 = vmatmul.mubr.bf16.gmra.mrb[0].mxu0 %v114
  %v408 = vpop.f32.mrb[0].mxu0
  %v409 = vadd.f32 0.0, %v408
  %v410 = vpop.f32.mrb[0].mxu0
  %v411 = vpop.f32.mrb[0].mxu0
  %v412 = vadd.f32 0.0, %v411
  %v413 = vpop.f32.mrb[0].mxu0
  %414 = vdwg.mxu0
  %415 = vmatprep.subr.bf16.mxu0 0
  %416 = vmatpush1.bf16.msra.mxu0 %v326
  %417 = vmatprep.subr.bf16.mxu0 0
  %418 = vmatpush1.bf16.msra.mxu0 %v327
  %419 = vmatprep.subr.bf16.mxu0 0
  %420 = vmatpush1.bf16.msra.mxu0 %v328
  %421 = vmatprep.subr.bf16.mxu0 0
  %422 = vmatpush1.bf16.msra.mxu0 %v329
  %423 = vmatprep.subr.bf16.mxu0 0
  %424 = vmatpush1.bf16.msra.mxu0 %v330
  %425 = vmatprep.subr.bf16.mxu0 0
  %426 = vmatpush1.bf16.msra.mxu0 %v331
  %427 = vmatprep.subr.bf16.mxu0 0
  %428 = vmatpush1.bf16.msra.mxu0 %v332
  %429 = vmatprep.subr.bf16.mxu0 0
  %430 = vmatpush1.bf16.msra.mxu0 %v333
  %431 = vmatprep.subr.bf16.mxu0 0
  %432 = vmatpush1.bf16.msra.mxu0 %v334
  %433 = vmatprep.subr.bf16.mxu0 0
  %434 = vmatpush1.bf16.msra.mxu0 %v335
  %435 = vmatprep.subr.bf16.mxu0 0
  %436 = vmatpush1.bf16.msra.mxu0 %v336
  %437 = vmatprep.subr.bf16.mxu0 0
  %438 = vmatpush1.bf16.msra.mxu0 %v337
  %439 = vmatprep.subr.bf16.mxu0 0
  %440 = vmatpush1.bf16.msra.mxu0 %v338
  %441 = vmatprep.subr.bf16.mxu0 0
  %442 = vmatpush1.bf16.msra.mxu0 %v339
  %443 = vmatprep.subr.bf16.mxu0 0
  %444 = vmatpush1.bf16.msra.mxu0 %v340
  %445 = vmatprep.subr.bf16.mxu0 0
  %446 = vmatpush1.bf16.msra.mxu0 %v341
  %447 = vmatprep.mubr.bf16.mxu0 %v117
  %448 = vmatmul.mubr.bf16.gmra.mrb[0].mxu0 %v116
  %v449 = vpop.f32.mrb[0].mxu0
  %v450 = vadd.f32 %v409, %v449
  %v451 = vpop.f32.mrb[0].mxu0
  %v452 = vpop.f32.mrb[0].mxu0
  %v453 = vadd.f32 %v412, %v452
  %v454 = vpop.f32.mrb[0].mxu0
  %455 = vdwg.mxu0
  %p456 = scmp.eq.s32.totalorder 0, 0
  // Predicated region
  $region18: #{_lambda_.22} parent=0 // pred_check
    %p457 = pneg %p456
  $region19: #{_lambda_.22} parent=0 // pred_check_branch
    %459 = sbr.rel (%p457) target = $region21
  $region20: #{_lambda_.22} parent=0 // pred_region
    %460 = vst [vmem:[#allocation2] sm:$0xff] %v450
    %461 = vst [vmem:[#allocation2 + $0x8] sm:$0xff] %v453
  $region21: #{_lambda_.22} parent=0 // pred_fallthru
    _
  %p462 = scmp.gt.s32.totalorder 0, 0
  // Predicated region
  $region22: #{_lambda_.22} parent=0 // pred_check
    %p463 = pneg %p462
  $region23: #{_lambda_.22} parent=0 // pred_check_branch
    %465 = sbr.rel (%p463) target = $region25
  $region24: #{_lambda_.22} parent=0 // pred_region
    %v466 = vld [vmem:[#allocation2] sm:$0xff]
    %v467 = vld [vmem:[#allocation2 + $0x8] sm:$0xff]
    %v468 = vadd.f32 %v466, %v450
    %v469 = vadd.f32 %v467, %v453
    %470 = vst [vmem:[#allocation2] sm:$0xff] %v468
    %471 = vst [vmem:[#allocation2 + $0x8] sm:$0xff] %v469
  $region25: #{_lambda_.22} parent=0 // pred_fallthru
    _
  // Predicated region
  $region26: #{_lambda_.22} parent=0 // pred_check
    %p472 = pneg %p456
  $region27: #{_lambda_.22} parent=0 // pred_check_branch
    %474 = sbr.rel (%p472) target = $region29
  $region28: #{_lambda_.22} parent=0 // pred_region
    %v475 = vld [vmem:[#allocation2] sm:$0xff]
    %v476 = vld [vmem:[#allocation2 + $0x8] sm:$0xff]
    %v477 = vpack.c.bf16 %v476, %v475
    %v479 = vunpack.c.l.b16 %v477
    %v480 = vunpack.c.h.b16 %v477
    %v481 = vpack.c.b16 %v479, %v479
    %v482 = vpack.c.b16 %v480, %v480
    %485 = vst [vmem:[%s4] sm:$0xf] %v481
    %486 = vst [vmem:[%s4 + $0x4] sm:$0xf] %v482
  $region29: #{_lambda_.22} parent=0 // pred_fallthru
    _
  // Predicated region
  $region30: #{_lambda_.22} parent=0 // pred_check
    _
  $region31: #{_lambda_.22} parent=0 // pred_check_branch
    %488 = sbr.rel (0) target = $region33
  $region32: #{_lambda_.22} parent=0 // pred_region
    _
  $region33: #{_lambda_.22} parent=0 // pred_fallthru
    _
  // Predicated region
  $region34: #{_lambda_.22} parent=0 // pred_check
    _
  $region35: #{_lambda_.22} parent=0 // pred_check_branch
    %490 = sbr.rel (0) target = $region37
  $region36: #{_lambda_.22} parent=0 // pred_region
    _
  $region37: #{_lambda_.22} parent=0 // pred_fallthru
    _

// kernel: _lambda_.25
$region0: #{_lambda_.25}
  #allocation0 [shape = 'u32[]', space=smem, size = 0x4, offset = 0x4, fixed_abs, tag = 'smem constant byte address 0x4 - core index']
  #allocation1 [shape = 'u32[144,128]{1,0:T(1,128)}', space=vmem, size = 0x12000, scoped, tag = 'internal scratch']
  #allocation2 [shape = 'f32[16,256]{1,0:T(8,128)}', space=vmem, size = 0x4000, scoped, tag = 'scratch operand']
  %s0 = inlined_call_operand.vmem [shape: bf16[16,640], index: 0, kind: input, shape index: {}]
  %s1 = inlined_call_operand.vmem [shape: bf16[640,256], index: 1, kind: input, shape index: {}]
  %s2 = inlined_call_operand.vmem [shape: bf16[16,256], index: 2, kind: output, shape index: {}]
  %s3 = sld [smem:[#allocation0]]
  $region30: #{_lambda_.25} parent=0
    _
  %s5 = ssub.s32 1, %s3
  %s6 = scalar_select 0, %s5, %s3
  // Predicated region
  $region2: #{_lambda_.25} parent=0 // pred_check
    _
  $region3: #{_lambda_.25} parent=0 // pred_check_branch
    %8 = sbr.rel (0) target = $region5
  $region4: #{_lambda_.25} parent=0 // pred_region
    _
  $region5: #{_lambda_.25} parent=0 // pred_fallthru
    _
  // Predicated region
  $region6: #{_lambda_.25} parent=0 // pred_check
    _
  $region7: #{_lambda_.25} parent=0 // pred_check_branch
    %10 = sbr.rel (0) target = $region9
  $region8: #{_lambda_.25} parent=0 // pred_region
    _
  $region9: #{_lambda_.25} parent=0 // pred_fallthru
    _
  %v12 = vld [vmem:[%s0] sm:$0xff]
  %v13 = vld [vmem:[%s0 + $0x8] sm:$0xff]
  %v14 = vld [vmem:[%s0 + $0x10] sm:$0xf]
  %v15 = vld [vmem:[%s0 + $0x14] sm:$0xff]
  %v16 = vld [vmem:[%s0 + $0x1c] sm:$0xff]
  %v17 = vld [vmem:[%s0 + $0x24] sm:$0xf]
  %v18 = vmax.bf16 %v12, 0
  %v19 = vmax.bf16 %v13, 0
  %v20 = vmax.bf16 %v14, 0
  %v21 = vmax.bf16 %v15, 0
  %v22 = vmax.bf16 %v16, 0
  %v23 = vmax.bf16 %v17, 0
  %v24 = vld [vmem:[%s1] sm:$0xff]
  %v25 = vld [vmem:[%s1 + $0x8] sm:$0xff]
  %v26 = vld [vmem:[%s1 + $0x10] sm:$0xff]
  %v27 = vld [vmem:[%s1 + $0x18] sm:$0xff]
  %v28 = vld [vmem:[%s1 + $0x20] sm:$0xff]
  %v29 = vld [vmem:[%s1 + $0x28] sm:$0xff]
  %v30 = vld [vmem:[%s1 + $0x30] sm:$0xff]
  %v31 = vld [vmem:[%s1 + $0x38] sm:$0xff]
  %v32 = vld [vmem:[%s1 + $0x40] sm:$0xff]
  %v33 = vld [vmem:[%s1 + $0x48] sm:$0xff]
  %v34 = vld [vmem:[%s1 + $0x50] sm:$0xff]
  %v35 = vld [vmem:[%s1 + $0x58] sm:$0xff]
  %v36 = vld [vmem:[%s1 + $0x60] sm:$0xff]
  %v37 = vld [vmem:[%s1 + $0x68] sm:$0xff]
  %v38 = vld [vmem:[%s1 + $0x70] sm:$0xff]
  %v39 = vld [vmem:[%s1 + $0x78] sm:$0xff]
  %v40 = vld [vmem:[%s1 + $0x80] sm:$0xff]
  %v41 = vld [vmem:[%s1 + $0x88] sm:$0xff]
  %v42 = vld [vmem:[%s1 + $0x90] sm:$0xff]
  %v43 = vld [vmem:[%s1 + $0x98] sm:$0xff]
  %v44 = vld [vmem:[%s1 + $0xa0] sm:$0xff]
  %v45 = vld [vmem:[%s1 + $0xa8] sm:$0xff]
  %v46 = vld [vmem:[%s1 + $0xb0] sm:$0xff]
  %v47 = vld [vmem:[%s1 + $0xb8] sm:$0xff]
  %v48 = vld [vmem:[%s1 + $0xc0] sm:$0xff]
  %v49 = vld [vmem:[%s1 + $0xc8] sm:$0xff]
  %v50 = vld [vmem:[%s1 + $0xd0] sm:$0xff]
  %v51 = vld [vmem:[%s1 + $0xd8] sm:$0xff]
  %v52 = vld [vmem:[%s1 + $0xe0] sm:$0xff]
  %v53 = vld [vmem:[%s1 + $0xe8] sm:$0xff]
  %v54 = vld [vmem:[%s1 + $0xf0] sm:$0xff]
  %v55 = vld [vmem:[%s1 + $0xf8] sm:$0xff]
  %v56 = vld [vmem:[%s1 + $0x100] sm:$0xff]
  %v57 = vld [vmem:[%s1 + $0x108] sm:$0xff]
  %v58 = vld [vmem:[%s1 + $0x110] sm:$0xff]
  %v59 = vld [vmem:[%s1 + $0x118] sm:$0xff]
  %v60 = vld [vmem:[%s1 + $0x120] sm:$0xff]
  %v61 = vld [vmem:[%s1 + $0x128] sm:$0xff]
  %v62 = vld [vmem:[%s1 + $0x130] sm:$0xff]
  %v63 = vld [vmem:[%s1 + $0x138] sm:$0xff]
  %v64 = vld [vmem:[%s1 + $0x140] sm:$0xff]
  %v65 = vld [vmem:[%s1 + $0x148] sm:$0xff]
  %v66 = vld [vmem:[%s1 + $0x150] sm:$0xff]
  %v67 = vld [vmem:[%s1 + $0x158] sm:$0xff]
  %v68 = vld [vmem:[%s1 + $0x160] sm:$0xff]
  %v69 = vld [vmem:[%s1 + $0x168] sm:$0xff]
  %v70 = vld [vmem:[%s1 + $0x170] sm:$0xff]
  %v71 = vld [vmem:[%s1 + $0x178] sm:$0xff]
  %v72 = vld [vmem:[%s1 + $0x180] sm:$0xff]
  %v73 = vld [vmem:[%s1 + $0x188] sm:$0xff]
  %v74 = vld [vmem:[%s1 + $0x190] sm:$0xff]
  %v75 = vld [vmem:[%s1 + $0x198] sm:$0xff]
  %v76 = vld [vmem:[%s1 + $0x1a0] sm:$0xff]
  %v77 = vld [vmem:[%s1 + $0x1a8] sm:$0xff]
  %v78 = vld [vmem:[%s1 + $0x1b0] sm:$0xff]
  %v79 = vld [vmem:[%s1 + $0x1b8] sm:$0xff]
  %v80 = vld [vmem:[%s1 + $0x1c0] sm:$0xff]
  %v81 = vld [vmem:[%s1 + $0x1c8] sm:$0xff]
  %v82 = vld [vmem:[%s1 + $0x1d0] sm:$0xff]
  %v83 = vld [vmem:[%s1 + $0x1d8] sm:$0xff]
  %v84 = vld [vmem:[%s1 + $0x1e0] sm:$0xff]
  %v85 = vld [vmem:[%s1 + $0x1e8] sm:$0xff]
  %v86 = vld [vmem:[%s1 + $0x1f0] sm:$0xff]
  %v87 = vld [vmem:[%s1 + $0x1f8] sm:$0xff]
  %v88 = vld [vmem:[%s1 + $0x200] sm:$0xff]
  %v89 = vld [vmem:[%s1 + $0x208] sm:$0xff]
  %v90 = vld [vmem:[%s1 + $0x210] sm:$0xff]
  %v91 = vld [vmem:[%s1 + $0x218] sm:$0xff]
  %v92 = vld [vmem:[%s1 + $0x220] sm:$0xff]
  %v93 = vld [vmem:[%s1 + $0x228] sm:$0xff]
  %v94 = vld [vmem:[%s1 + $0x230] sm:$0xff]
  %v95 = vld [vmem:[%s1 + $0x238] sm:$0xff]
  %v96 = vld [vmem:[%s1 + $0x240] sm:$0xff]
  %v97 = vld [vmem:[%s1 + $0x248] sm:$0xff]
  %v98 = vld [vmem:[%s1 + $0x250] sm:$0xff]
  %v99 = vld [vmem:[%s1 + $0x258] sm:$0xff]
  %v100 = vld [vmem:[%s1 + $0x260] sm:$0xff]
  %v101 = vld [vmem:[%s1 + $0x268] sm:$0xff]
  %v102 = vld [vmem:[%s1 + $0x270] sm:$0xff]
  %v103 = vld [vmem:[%s1 + $0x278] sm:$0xff]
  %v110 = vunpack.c.l.b16 %v18
  %v111 = vunpack.c.h.b16 %v18
  %v112 = vunpack.c.l.b16 %v19
  %v113 = vunpack.c.h.b16 %v19
  %v114 = vunpack.c.l.b16 %v20
  %v115 = vunpack.c.l.b16 %v21
  %v116 = vunpack.c.h.b16 %v21
  %v117 = vunpack.c.l.b16 %v22
  %v118 = vunpack.c.h.b16 %v22
  %v119 = vunpack.c.l.b16 %v23
  %v120 = vpack.c.b16 %v115, %v110
  %v121 = vpack.c.b16 %v116, %v111
  %v122 = vpack.c.b16 %v117, %v112
  %v123 = vpack.c.b16 %v118, %v113
  %v124 = vpack.c.b16 %v119, %v114
  %v210 = vunpack.c.l.b16 %v24
  %v211 = vunpack.c.h.b16 %v24
  %v212 = vunpack.c.l.b16 %v25
  %v213 = vunpack.c.h.b16 %v25
  %v214 = vunpack.c.l.b16 %v26
  %v215 = vunpack.c.h.b16 %v26
  %v216 = vunpack.c.l.b16 %v27
  %v217 = vunpack.c.h.b16 %v27
  %v218 = vunpack.c.l.b16 %v28
  %v219 = vunpack.c.h.b16 %v28
  %v220 = vunpack.c.l.b16 %v29
  %v221 = vunpack.c.h.b16 %v29
  %v222 = vunpack.c.l.b16 %v30
  %v223 = vunpack.c.h.b16 %v30
  %v224 = vunpack.c.l.b16 %v31
  %v225 = vunpack.c.h.b16 %v31
  %v226 = vunpack.c.l.b16 %v32
  %v227 = vunpack.c.h.b16 %v32
  %v228 = vunpack.c.l.b16 %v33
  %v229 = vunpack.c.h.b16 %v33
  %v230 = vunpack.c.l.b16 %v34
  %v231 = vunpack.c.h.b16 %v34
  %v232 = vunpack.c.l.b16 %v35
  %v233 = vunpack.c.h.b16 %v35
  %v234 = vunpack.c.l.b16 %v36
  %v235 = vunpack.c.h.b16 %v36
  %v236 = vunpack.c.l.b16 %v37
  %v237 = vunpack.c.h.b16 %v37
  %v238 = vunpack.c.l.b16 %v38
  %v239 = vunpack.c.h.b16 %v38
  %v240 = vunpack.c.l.b16 %v39
  %v241 = vunpack.c.h.b16 %v39
  %v242 = vunpack.c.l.b16 %v40
  %v243 = vunpack.c.h.b16 %v40
  %v244 = vunpack.c.l.b16 %v41
  %v245 = vunpack.c.h.b16 %v41
  %v246 = vunpack.c.l.b16 %v42
  %v247 = vunpack.c.h.b16 %v42
  %v248 = vunpack.c.l.b16 %v43
  %v249 = vunpack.c.h.b16 %v43
  %v250 = vunpack.c.l.b16 %v44
  %v251 = vunpack.c.h.b16 %v44
  %v252 = vunpack.c.l.b16 %v45
  %v253 = vunpack.c.h.b16 %v45
  %v254 = vunpack.c.l.b16 %v46
  %v255 = vunpack.c.h.b16 %v46
  %v256 = vunpack.c.l.b16 %v47
  %v257 = vunpack.c.h.b16 %v47
  %v258 = vunpack.c.l.b16 %v48
  %v259 = vunpack.c.h.b16 %v48
  %v260 = vunpack.c.l.b16 %v49
  %v261 = vunpack.c.h.b16 %v49
  %v262 = vunpack.c.l.b16 %v50
  %v263 = vunpack.c.h.b16 %v50
  %v264 = vunpack.c.l.b16 %v51
  %v265 = vunpack.c.h.b16 %v51
  %v266 = vunpack.c.l.b16 %v52
  %v267 = vunpack.c.h.b16 %v52
  %v268 = vunpack.c.l.b16 %v53
  %v269 = vunpack.c.h.b16 %v53
  %v270 = vunpack.c.l.b16 %v54
  %v271 = vunpack.c.h.b16 %v54
  %v272 = vunpack.c.l.b16 %v55
  %v273 = vunpack.c.h.b16 %v55
  %v274 = vunpack.c.l.b16 %v56
  %v275 = vunpack.c.h.b16 %v56
  %v276 = vunpack.c.l.b16 %v57
  %v277 = vunpack.c.h.b16 %v57
  %v278 = vunpack.c.l.b16 %v58
  %v279 = vunpack.c.h.b16 %v58
  %v280 = vunpack.c.l.b16 %v59
  %v281 = vunpack.c.h.b16 %v59
  %v282 = vunpack.c.l.b16 %v60
  %v283 = vunpack.c.h.b16 %v60
  %v284 = vunpack.c.l.b16 %v61
  %v285 = vunpack.c.h.b16 %v61
  %v286 = vunpack.c.l.b16 %v62
  %v287 = vunpack.c.h.b16 %v62
  %v288 = vunpack.c.l.b16 %v63
  %v289 = vunpack.c.h.b16 %v63
  %v290 = vunpack.c.l.b16 %v64
  %v291 = vunpack.c.h.b16 %v64
  %v292 = vunpack.c.l.b16 %v65
  %v293 = vunpack.c.h.b16 %v65
  %v294 = vunpack.c.l.b16 %v66
  %v295 = vunpack.c.h.b16 %v66
  %v296 = vunpack.c.l.b16 %v67
  %v297 = vunpack.c.h.b16 %v67
  %v298 = vunpack.c.l.b16 %v68
  %v299 = vunpack.c.h.b16 %v68
  %v300 = vunpack.c.l.b16 %v69
  %v301 = vunpack.c.h.b16 %v69
  %v302 = vunpack.c.l.b16 %v70
  %v303 = vunpack.c.h.b16 %v70
  %v304 = vunpack.c.l.b16 %v71
  %v305 = vunpack.c.h.b16 %v71
  %v306 = vunpack.c.l.b16 %v72
  %v307 = vunpack.c.h.b16 %v72
  %v308 = vunpack.c.l.b16 %v73
  %v309 = vunpack.c.h.b16 %v73
  %v310 = vunpack.c.l.b16 %v74
  %v311 = vunpack.c.h.b16 %v74
  %v312 = vunpack.c.l.b16 %v75
  %v313 = vunpack.c.h.b16 %v75
  %v314 = vunpack.c.l.b16 %v76
  %v315 = vunpack.c.h.b16 %v76
  %v316 = vunpack.c.l.b16 %v77
  %v317 = vunpack.c.h.b16 %v77
  %v318 = vunpack.c.l.b16 %v78
  %v319 = vunpack.c.h.b16 %v78
  %v320 = vunpack.c.l.b16 %v79
  %v321 = vunpack.c.h.b16 %v79
  %v322 = vunpack.c.l.b16 %v80
  %v323 = vunpack.c.h.b16 %v80
  %v324 = vunpack.c.l.b16 %v81
  %v325 = vunpack.c.h.b16 %v81
  %v326 = vunpack.c.l.b16 %v82
  %v327 = vunpack.c.h.b16 %v82
  %v328 = vunpack.c.l.b16 %v83
  %v329 = vunpack.c.h.b16 %v83
  %v330 = vunpack.c.l.b16 %v84
  %v331 = vunpack.c.h.b16 %v84
  %v332 = vunpack.c.l.b16 %v85
  %v333 = vunpack.c.h.b16 %v85
  %v334 = vunpack.c.l.b16 %v86
  %v335 = vunpack.c.h.b16 %v86
  %v336 = vunpack.c.l.b16 %v87
  %v337 = vunpack.c.h.b16 %v87
  %v338 = vunpack.c.l.b16 %v88
  %v339 = vunpack.c.h.b16 %v88
  %v340 = vunpack.c.l.b16 %v89
  %v341 = vunpack.c.h.b16 %v89
  %v342 = vunpack.c.l.b16 %v90
  %v343 = vunpack.c.h.b16 %v90
  %v344 = vunpack.c.l.b16 %v91
  %v345 = vunpack.c.h.b16 %v91
  %v346 = vunpack.c.l.b16 %v92
  %v347 = vunpack.c.h.b16 %v92
  %v348 = vunpack.c.l.b16 %v93
  %v349 = vunpack.c.h.b16 %v93
  %v350 = vunpack.c.l.b16 %v94
  %v351 = vunpack.c.h.b16 %v94
  %v352 = vunpack.c.l.b16 %v95
  %v353 = vunpack.c.h.b16 %v95
  %v354 = vunpack.c.l.b16 %v96
  %v355 = vunpack.c.h.b16 %v96
  %v356 = vunpack.c.l.b16 %v97
  %v357 = vunpack.c.h.b16 %v97
  %v358 = vunpack.c.l.b16 %v98
  %v359 = vunpack.c.h.b16 %v98
  %v360 = vunpack.c.l.b16 %v99
  %v361 = vunpack.c.h.b16 %v99
  %v362 = vunpack.c.l.b16 %v100
  %v363 = vunpack.c.h.b16 %v100
  %v364 = vunpack.c.l.b16 %v101
  %v365 = vunpack.c.h.b16 %v101
  %v366 = vunpack.c.l.b16 %v102
  %v367 = vunpack.c.h.b16 %v102
  %v368 = vunpack.c.l.b16 %v103
  %v369 = vunpack.c.h.b16 %v103
  %v370 = vpack.c.b16 %v212, %v210
  %v371 = vpack.c.b16 %v213, %v211
  %v372 = vpack.c.b16 %v216, %v214
  %v373 = vpack.c.b16 %v217, %v215
  %v374 = vpack.c.b16 %v220, %v218
  %v375 = vpack.c.b16 %v221, %v219
  %v376 = vpack.c.b16 %v224, %v222
  %v377 = vpack.c.b16 %v225, %v223
  %v378 = vpack.c.b16 %v228, %v226
  %v379 = vpack.c.b16 %v229, %v227
  %v380 = vpack.c.b16 %v232, %v230
  %v381 = vpack.c.b16 %v233, %v231
  %v382 = vpack.c.b16 %v236, %v234
  %v383 = vpack.c.b16 %v237, %v235
  %v384 = vpack.c.b16 %v240, %v238
  %v385 = vpack.c.b16 %v241, %v239
  %v386 = vpack.c.b16 %v244, %v242
  %v387 = vpack.c.b16 %v245, %v243
  %v388 = vpack.c.b16 %v248, %v246
  %v389 = vpack.c.b16 %v249, %v247
  %v390 = vpack.c.b16 %v252, %v250
  %v391 = vpack.c.b16 %v253, %v251
  %v392 = vpack.c.b16 %v256, %v254
  %v393 = vpack.c.b16 %v257, %v255
  %v394 = vpack.c.b16 %v260, %v258
  %v395 = vpack.c.b16 %v261, %v259
  %v396 = vpack.c.b16 %v264, %v262
  %v397 = vpack.c.b16 %v265, %v263
  %v398 = vpack.c.b16 %v268, %v266
  %v399 = vpack.c.b16 %v269, %v267
  %v400 = vpack.c.b16 %v272, %v270
  %v401 = vpack.c.b16 %v273, %v271
  %v402 = vpack.c.b16 %v276, %v274
  %v403 = vpack.c.b16 %v277, %v275
  %v404 = vpack.c.b16 %v280, %v278
  %v405 = vpack.c.b16 %v281, %v279
  %v406 = vpack.c.b16 %v284, %v282
  %v407 = vpack.c.b16 %v285, %v283
  %v408 = vpack.c.b16 %v288, %v286
  %v409 = vpack.c.b16 %v289, %v287
  %v410 = vpack.c.b16 %v292, %v290
  %v411 = vpack.c.b16 %v293, %v291
  %v412 = vpack.c.b16 %v296, %v294
  %v413 = vpack.c.b16 %v297, %v295
  %v414 = vpack.c.b16 %v300, %v298
  %v415 = vpack.c.b16 %v301, %v299
  %v416 = vpack.c.b16 %v304, %v302
  %v417 = vpack.c.b16 %v305, %v303
  %v418 = vpack.c.b16 %v308, %v306
  %v419 = vpack.c.b16 %v309, %v307
  %v420 = vpack.c.b16 %v312, %v310
  %v421 = vpack.c.b16 %v313, %v311
  %v422 = vpack.c.b16 %v316, %v314
  %v423 = vpack.c.b16 %v317, %v315
  %v424 = vpack.c.b16 %v320, %v318
  %v425 = vpack.c.b16 %v321, %v319
  %v426 = vpack.c.b16 %v324, %v322
  %v427 = vpack.c.b16 %v325, %v323
  %v428 = vpack.c.b16 %v328, %v326
  %v429 = vpack.c.b16 %v329, %v327
  %v430 = vpack.c.b16 %v332, %v330
  %v431 = vpack.c.b16 %v333, %v331
  %v432 = vpack.c.b16 %v336, %v334
  %v433 = vpack.c.b16 %v337, %v335
  %v434 = vpack.c.b16 %v340, %v338
  %v435 = vpack.c.b16 %v341, %v339
  %v436 = vpack.c.b16 %v344, %v342
  %v437 = vpack.c.b16 %v345, %v343
  %v438 = vpack.c.b16 %v348, %v346
  %v439 = vpack.c.b16 %v349, %v347
  %v440 = vpack.c.b16 %v352, %v350
  %v441 = vpack.c.b16 %v353, %v351
  %v442 = vpack.c.b16 %v356, %v354
  %v443 = vpack.c.b16 %v357, %v355
  %v444 = vpack.c.b16 %v360, %v358
  %v445 = vpack.c.b16 %v361, %v359
  %v446 = vpack.c.b16 %v364, %v362
  %v447 = vpack.c.b16 %v365, %v363
  %v448 = vpack.c.b16 %v368, %v366
  %v449 = vpack.c.b16 %v369, %v367
  %530 = vmatprep.subr.bf16.mxu0 %v371
  %531 = vmatpush1.bf16.msra.mxu0 %v370
  %532 = vmatprep.subr.bf16.mxu0 %v373
  %533 = vmatpush1.bf16.msra.mxu0 %v372
  %534 = vmatprep.subr.bf16.mxu0 %v375
  %535 = vmatpush1.bf16.msra.mxu0 %v374
  %536 = vmatprep.subr.bf16.mxu0 %v377
  %537 = vmatpush1.bf16.msra.mxu0 %v376
  %538 = vmatprep.subr.bf16.mxu0 %v379
  %539 = vmatpush1.bf16.msra.mxu0 %v378
  %540 = vmatprep.subr.bf16.mxu0 %v381
  %541 = vmatpush1.bf16.msra.mxu0 %v380
  %542 = vmatprep.subr.bf16.mxu0 %v383
  %543 = vmatpush1.bf16.msra.mxu0 %v382
  %544 = vmatprep.subr.bf16.mxu0 %v385
  %545 = vmatpush1.bf16.msra.mxu0 %v384
  %546 = vmatprep.subr.bf16.mxu0 %v387
  %547 = vmatpush1.bf16.msra.mxu0 %v386
  %548 = vmatprep.subr.bf16.mxu0 %v389
  %549 = vmatpush1.bf16.msra.mxu0 %v388
  %550 = vmatprep.subr.bf16.mxu0 %v391
  %551 = vmatpush1.bf16.msra.mxu0 %v390
  %552 = vmatprep.subr.bf16.mxu0 %v393
  %553 = vmatpush1.bf16.msra.mxu0 %v392
  %554 = vmatprep.subr.bf16.mxu0 %v395
  %555 = vmatpush1.bf16.msra.mxu0 %v394
  %556 = vmatprep.subr.bf16.mxu0 %v397
  %557 = vmatpush1.bf16.msra.mxu0 %v396
  %558 = vmatprep.subr.bf16.mxu0 %v399
  %559 = vmatpush1.bf16.msra.mxu0 %v398
  %560 = vmatprep.subr.bf16.mxu0 %v401
  %561 = vmatpush1.bf16.msra.mxu0 %v400
  %562 = vmatprep.mubr.bf16.mxu0 %v121
  %563 = vmatmul.mubr.bf16.gmra.mrb[0].mxu0 %v120
  %v564 = vpop.f32.mrb[0].mxu0
  %v565 = vadd.f32 0.0, %v564
  %v566 = vpop.f32.mrb[0].mxu0
  %v567 = vadd.f32 0.0, %v566
  %v568 = vpop.f32.mrb[0].mxu0
  %v569 = vadd.f32 0.0, %v568
  %v570 = vpop.f32.mrb[0].mxu0
  %v571 = vadd.f32 0.0, %v570
  %572 = vdwg.mxu0
  %573 = vmatprep.subr.bf16.mxu0 %v403
  %574 = vmatpush1.bf16.msra.mxu0 %v402
  %575 = vmatprep.subr.bf16.mxu0 %v405
  %576 = vmatpush1.bf16.msra.mxu0 %v404
  %577 = vmatprep.subr.bf16.mxu0 %v407
  %578 = vmatpush1.bf16.msra.mxu0 %v406
  %579 = vmatprep.subr.bf16.mxu0 %v409
  %580 = vmatpush1.bf16.msra.mxu0 %v408
  %581 = vmatprep.subr.bf16.mxu0 %v411
  %582 = vmatpush1.bf16.msra.mxu0 %v410
  %583 = vmatprep.subr.bf16.mxu0 %v413
  %584 = vmatpush1.bf16.msra.mxu0 %v412
  %585 = vmatprep.subr.bf16.mxu0 %v415
  %586 = vmatpush1.bf16.msra.mxu0 %v414
  %587 = vmatprep.subr.bf16.mxu0 %v417
  %588 = vmatpush1.bf16.msra.mxu0 %v416
  %589 = vmatprep.subr.bf16.mxu0 %v419
  %590 = vmatpush1.bf16.msra.mxu0 %v418
  %591 = vmatprep.subr.bf16.mxu0 %v421
  %592 = vmatpush1.bf16.msra.mxu0 %v420
  %593 = vmatprep.subr.bf16.mxu0 %v423
  %594 = vmatpush1.bf16.msra.mxu0 %v422
  %595 = vmatprep.subr.bf16.mxu0 %v425
  %596 = vmatpush1.bf16.msra.mxu0 %v424
  %597 = vmatprep.subr.bf16.mxu0 %v427
  %598 = vmatpush1.bf16.msra.mxu0 %v426
  %599 = vmatprep.subr.bf16.mxu0 %v429
  %600 = vmatpush1.bf16.msra.mxu0 %v428
  %601 = vmatprep.subr.bf16.mxu0 %v431
  %602 = vmatpush1.bf16.msra.mxu0 %v430
  %603 = vmatprep.subr.bf16.mxu0 %v433
  %604 = vmatpush1.bf16.msra.mxu0 %v432
  %605 = vmatprep.mubr.bf16.mxu0 %v123
  %606 = vmatmul.mubr.bf16.gmra.mrb[0].mxu0 %v122
  %v607 = vpop.f32.mrb[0].mxu0
  %v608 = vadd.f32 %v565, %v607
  %v609 = vpop.f32.mrb[0].mxu0
  %v610 = vadd.f32 %v567, %v609
  %v611 = vpop.f32.mrb[0].mxu0
  %v612 = vadd.f32 %v569, %v611
  %v613 = vpop.f32.mrb[0].mxu0
  %v614 = vadd.f32 %v571, %v613
  %615 = vdwg.mxu0
  %616 = vmatprep.subr.bf16.mxu0 %v435
  %617 = vmatpush1.bf16.msra.mxu0 %v434
  %618 = vmatprep.subr.bf16.mxu0 %v437
  %619 = vmatpush1.bf16.msra.mxu0 %v436
  %620 = vmatprep.subr.bf16.mxu0 %v439
  %621 = vmatpush1.bf16.msra.mxu0 %v438
  %622 = vmatprep.subr.bf16.mxu0 %v441
  %623 = vmatpush1.bf16.msra.mxu0 %v440
  %624 = vmatprep.subr.bf16.mxu0 %v443
  %625 = vmatpush1.bf16.msra.mxu0 %v442
  %626 = vmatprep.subr.bf16.mxu0 %v445
  %627 = vmatpush1.bf16.msra.mxu0 %v444
  %628 = vmatprep.subr.bf16.mxu0 %v447
  %629 = vmatpush1.bf16.msra.mxu0 %v446
  %630 = vmatprep.subr.bf16.mxu0 %v449
  %631 = vmatpush1.bf16.msra.mxu0 %v448
  %632 = vmatprep.subr.bf16.mxu0 0
  %633 = vmatpush1.bf16.msra.mxu0 0
  %634 = vmatprep.subr.bf16.mxu0 0
  %635 = vmatpush1.bf16.msra.mxu0 0
  %636 = vmatprep.subr.bf16.mxu0 0
  %637 = vmatpush1.bf16.msra.mxu0 0
  %638 = vmatprep.subr.bf16.mxu0 0
  %639 = vmatpush1.bf16.msra.mxu0 0
  %640 = vmatprep.subr.bf16.mxu0 0
  %641 = vmatpush1.bf16.msra.mxu0 0
  %642 = vmatprep.subr.bf16.mxu0 0
  %643 = vmatpush1.bf16.msra.mxu0 0
  %644 = vmatprep.subr.bf16.mxu0 0
  %645 = vmatpush1.bf16.msra.mxu0 0
  %646 = vmatprep.subr.bf16.mxu0 0
  %647 = vmatpush1.bf16.msra.mxu0 0
  %648 = vmatprep.mubr.bf16.mxu0 0
  %649 = vmatmul.mubr.bf16.gmra.mrb[0].mxu0 %v124
  %v650 = vpop.f32.mrb[0].mxu0
  %v651 = vadd.f32 %v608, %v650
  %v652 = vpop.f32.mrb[0].mxu0
  %v653 = vadd.f32 %v610, %v652
  %v654 = vpop.f32.mrb[0].mxu0
  %v655 = vadd.f32 %v612, %v654
  %v656 = vpop.f32.mrb[0].mxu0
  %v657 = vadd.f32 %v614, %v656
  %658 = vdwg.mxu0
  %p659 = scmp.eq.s32.totalorder 0, 0
  // Predicated region
  $region10: #{_lambda_.25} parent=0 // pred_check
    %p660 = pneg %p659
  $region11: #{_lambda_.25} parent=0 // pred_check_branch
    %662 = sbr.rel (%p660) target = $region13
  $region12: #{_lambda_.25} parent=0 // pred_region
    %663 = vst [vmem:[#allocation2] sm:$0xff] %v651
    %664 = vst [vmem:[#allocation2 + $0x8] sm:$0xff] %v653
    %665 = vst [vmem:[#allocation2 + $0x10] sm:$0xff] %v655
    %666 = vst [vmem:[#allocation2 + $0x18] sm:$0xff] %v657
  $region13: #{_lambda_.25} parent=0 // pred_fallthru
    _
  %p667 = scmp.gt.s32.totalorder 0, 0
  // Predicated region
  $region14: #{_lambda_.25} parent=0 // pred_check
    %p668 = pneg %p667
  $region15: #{_lambda_.25} parent=0 // pred_check_branch
    %670 = sbr.rel (%p668) target = $region17
  $region16: #{_lambda_.25} parent=0 // pred_region
    %v671 = vld [vmem:[#allocation2] sm:$0xff]
    %v672 = vld [vmem:[#allocation2 + $0x8] sm:$0xff]
    %v673 = vld [vmem:[#allocation2 + $0x10] sm:$0xff]
    %v674 = vld [vmem:[#allocation2 + $0x18] sm:$0xff]
    %v675 = vadd.f32 %v671, %v651
    %v676 = vadd.f32 %v672, %v653
    %v677 = vadd.f32 %v673, %v655
    %v678 = vadd.f32 %v674, %v657
    %679 = vst [vmem:[#allocation2] sm:$0xff] %v675
    %680 = vst [vmem:[#allocation2 + $0x8] sm:$0xff] %v676
    %681 = vst [vmem:[#allocation2 + $0x10] sm:$0xff] %v677
    %682 = vst [vmem:[#allocation2 + $0x18] sm:$0xff] %v678
  $region17: #{_lambda_.25} parent=0 // pred_fallthru
    _
  // Predicated region
  $region18: #{_lambda_.25} parent=0 // pred_check
    %p683 = pneg %p659
  $region19: #{_lambda_.25} parent=0 // pred_check_branch
    %685 = sbr.rel (%p683) target = $region21
  $region20: #{_lambda_.25} parent=0 // pred_region
    %v686 = vld [vmem:[#allocation2] sm:$0xff]
    %v687 = vld [vmem:[#allocation2 + $0x8] sm:$0xff]
    %v688 = vld [vmem:[#allocation2 + $0x10] sm:$0xff]
    %v689 = vld [vmem:[#allocation2 + $0x18] sm:$0xff]
    %v690 = vpack.c.bf16 %v688, %v686
    %v691 = vpack.c.bf16 %v689, %v687
    %v694 = vunpack.c.l.b16 %v690
    %v695 = vunpack.c.l.b16 %v691
    %v696 = vunpack.c.h.b16 %v690
    %v697 = vunpack.c.h.b16 %v691
    %v698 = vpack.c.b16 %v695, %v694
    %v699 = vpack.c.b16 %v697, %v696
    %702 = vst [vmem:[%s2] sm:$0xff] %v698
    %703 = vst [vmem:[%s2 + $0x8] sm:$0xff] %v699
  $region21: #{_lambda_.25} parent=0 // pred_fallthru
    _
  // Predicated region
  $region22: #{_lambda_.25} parent=0 // pred_check
    _
  $region23: #{_lambda_.25} parent=0 // pred_check_branch
    %705 = sbr.rel (0) target = $region25
  $region24: #{_lambda_.25} parent=0 // pred_region
    _
  $region25: #{_lambda_.25} parent=0 // pred_fallthru
    _
  // Predicated region
  $region26: #{_lambda_.25} parent=0 // pred_check
    _
  $region27: #{_lambda_.25} parent=0 // pred_check_branch
    %707 = sbr.rel (0) target = $region29
  $region28: #{_lambda_.25} parent=0 // pred_region
    _
  $region29: #{_lambda_.25} parent=0 // pred_fallthru
    _

// kernel: _lambda_.24
$region0: #{_lambda_.24}
  #allocation0 [shape = 'u32[]', space=smem, size = 0x4, offset = 0x4, fixed_abs, tag = 'smem constant byte address 0x4 - core index']
  #allocation1 [shape = 'u32[144,128]{1,0:T(1,128)}', space=vmem, size = 0x12000, scoped, tag = 'internal scratch']
  #allocation2 [shape = 'f32[16,128]{1,0:T(8,128)}', space=vmem, size = 0x2000, scoped, tag = 'scratch operand']
  %s0 = inlined_call_operand.vmem [shape: bf16[16,1024], index: 0, kind: input, shape index: {}]
  %s1 = inlined_call_operand.vmem [shape: bf16[1024,128], index: 1, kind: input, shape index: {}]
  %s2 = inlined_call_operand.vmem [shape: f32[1,1024], index: 2, kind: input, shape index: {}]
  %s3 = inlined_call_operand.vmem [shape: f32[1,1024], index: 3, kind: input, shape index: {}]
  %s4 = inlined_call_operand.vmem [shape: bf16[16,128], index: 4, kind: output, shape index: {}]
  %s5 = sld [smem:[#allocation0]]
  $region38: #{_lambda_.24} parent=0
    _
  %s7 = ssub.s32 1, %s5
  %s8 = scalar_select 0, %s7, %s5
  // Predicated region
  $region2: #{_lambda_.24} parent=0 // pred_check
    _
  $region3: #{_lambda_.24} parent=0 // pred_check_branch
    %10 = sbr.rel (0) target = $region5
  $region4: #{_lambda_.24} parent=0 // pred_region
    _
  $region5: #{_lambda_.24} parent=0 // pred_fallthru
    _
  // Predicated region
  $region6: #{_lambda_.24} parent=0 // pred_check
    _
  $region7: #{_lambda_.24} parent=0 // pred_check_branch
    %12 = sbr.rel (0) target = $region9
  $region8: #{_lambda_.24} parent=0 // pred_region
    _
  $region9: #{_lambda_.24} parent=0 // pred_fallthru
    _
  // Predicated region
  $region10: #{_lambda_.24} parent=0 // pred_check
    _
  $region11: #{_lambda_.24} parent=0 // pred_check_branch
    %14 = sbr.rel (0) target = $region13
  $region12: #{_lambda_.24} parent=0 // pred_region
    _
  $region13: #{_lambda_.24} parent=0 // pred_fallthru
    _
  // Predicated region
  $region14: #{_lambda_.24} parent=0 // pred_check
    _
  $region15: #{_lambda_.24} parent=0 // pred_check_branch
    %16 = sbr.rel (0) target = $region17
  $region16: #{_lambda_.24} parent=0 // pred_region
    _
  $region17: #{_lambda_.24} parent=0 // pred_fallthru
    _
  %v18 = vld [vmem:[%s0] sm:$0xff]
  %v19 = vld [vmem:[%s0 + $0x8] sm:$0xff]
  %v20 = vld [vmem:[%s0 + $0x10] sm:$0xff]
  %v21 = vld [vmem:[%s0 + $0x18] sm:$0xff]
  %v22 = vld [vmem:[%s0 + $0x20] sm:$0xff]
  %v23 = vld [vmem:[%s0 + $0x28] sm:$0xff]
  %v24 = vld [vmem:[%s0 + $0x30] sm:$0xff]
  %v25 = vld [vmem:[%s0 + $0x38] sm:$0xff]
  %v26 = vunpack.c.l.bf16 %v18
  %v27 = vunpack.c.h.bf16 %v18
  %v28 = vunpack.c.l.bf16 %v19
  %v29 = vunpack.c.h.bf16 %v19
  %v30 = vunpack.c.l.bf16 %v20
  %v31 = vunpack.c.h.bf16 %v20
  %v32 = vunpack.c.l.bf16 %v21
  %v33 = vunpack.c.h.bf16 %v21
  %v34 = vunpack.c.l.bf16 %v22
  %v35 = vunpack.c.h.bf16 %v22
  %v36 = vunpack.c.l.bf16 %v23
  %v37 = vunpack.c.h.bf16 %v23
  %v38 = vunpack.c.l.bf16 %v24
  %v39 = vunpack.c.h.bf16 %v24
  %v40 = vunpack.c.l.bf16 %v25
  %v41 = vunpack.c.h.bf16 %v25
  %v42 = vld [vmem:[%s2] sm:$0xff]
  %v44 = vlaneseq
  %v45 = vshrl.u32 %v44, 7
  %v46 = vsub.s32 0, %v45
  %v47 = vrot.slane %v42, %v46
  %v48 = vlaneseq
  %v49 = vshrl.u32 %v48, 7
  %v50 = vsub.s32 1, %v49
  %v51 = vrot.slane %v42, %v50
  %v52 = vlaneseq
  %v53 = vshrl.u32 %v52, 7
  %v54 = vsub.s32 2, %v53
  %v55 = vrot.slane %v42, %v54
  %v56 = vlaneseq
  %v57 = vshrl.u32 %v56, 7
  %v58 = vsub.s32 3, %v57
  %v59 = vrot.slane %v42, %v58
  %v60 = vlaneseq
  %v61 = vshrl.u32 %v60, 7
  %v62 = vsub.s32 4, %v61
  %v63 = vrot.slane %v42, %v62
  %v64 = vlaneseq
  %v65 = vshrl.u32 %v64, 7
  %v66 = vsub.s32 5, %v65
  %v67 = vrot.slane %v42, %v66
  %v68 = vlaneseq
  %v69 = vshrl.u32 %v68, 7
  %v70 = vsub.s32 6, %v69
  %v71 = vrot.slane %v42, %v70
  %v72 = vlaneseq
  %v73 = vshrl.u32 %v72, 7
  %v74 = vsub.s32 7, %v73
  %v75 = vrot.slane %v42, %v74
  %v84 = vmul.f32 %v26, %v47
  %v85 = vmul.f32 %v27, %v51
  %v86 = vmul.f32 %v28, %v55
  %v87 = vmul.f32 %v29, %v59
  %v88 = vmul.f32 %v30, %v63
  %v89 = vmul.f32 %v31, %v67
  %v90 = vmul.f32 %v32, %v71
  %v91 = vmul.f32 %v33, %v75
  %v92 = vmul.f32 %v34, %v47
  %v93 = vmul.f32 %v35, %v51
  %v94 = vmul.f32 %v36, %v55
  %v95 = vmul.f32 %v37, %v59
  %v96 = vmul.f32 %v38, %v63
  %v97 = vmul.f32 %v39, %v67
  %v98 = vmul.f32 %v40, %v71
  %v99 = vmul.f32 %v41, %v75
  %v100 = vld [vmem:[%s3] sm:$0xff]
  %v102 = vlaneseq
  %v103 = vshrl.u32 %v102, 7
  %v104 = vsub.s32 0, %v103
  %v105 = vrot.slane %v100, %v104
  %v106 = vlaneseq
  %v107 = vshrl.u32 %v106, 7
  %v108 = vsub.s32 1, %v107
  %v109 = vrot.slane %v100, %v108
  %v110 = vlaneseq
  %v111 = vshrl.u32 %v110, 7
  %v112 = vsub.s32 2, %v111
  %v113 = vrot.slane %v100, %v112
  %v114 = vlaneseq
  %v115 = vshrl.u32 %v114, 7
  %v116 = vsub.s32 3, %v115
  %v117 = vrot.slane %v100, %v116
  %v118 = vlaneseq
  %v119 = vshrl.u32 %v118, 7
  %v120 = vsub.s32 4, %v119
  %v121 = vrot.slane %v100, %v120
  %v122 = vlaneseq
  %v123 = vshrl.u32 %v122, 7
  %v124 = vsub.s32 5, %v123
  %v125 = vrot.slane %v100, %v124
  %v126 = vlaneseq
  %v127 = vshrl.u32 %v126, 7
  %v128 = vsub.s32 6, %v127
  %v129 = vrot.slane %v100, %v128
  %v130 = vlaneseq
  %v131 = vshrl.u32 %v130, 7
  %v132 = vsub.s32 7, %v131
  %v133 = vrot.slane %v100, %v132
  %v142 = vadd.f32 %v84, %v105
  %v143 = vadd.f32 %v85, %v109
  %v144 = vadd.f32 %v86, %v113
  %v145 = vadd.f32 %v87, %v117
  %v146 = vadd.f32 %v88, %v121
  %v147 = vadd.f32 %v89, %v125
  %v148 = vadd.f32 %v90, %v129
  %v149 = vadd.f32 %v91, %v133
  %v150 = vadd.f32 %v92, %v105
  %v151 = vadd.f32 %v93, %v109
  %v152 = vadd.f32 %v94, %v113
  %v153 = vadd.f32 %v95, %v117
  %v154 = vadd.f32 %v96, %v121
  %v155 = vadd.f32 %v97, %v125
  %v156 = vadd.f32 %v98, %v129
  %v157 = vadd.f32 %v99, %v133
  %vm158 = vcmp.ge.f32.partialorder %v142, 0.0
  %vm159 = vcmp.ge.f32.partialorder %v143, 0.0
  %vm160 = vcmp.ge.f32.partialorder %v144, 0.0
  %vm161 = vcmp.ge.f32.partialorder %v145, 0.0
  %vm162 = vcmp.ge.f32.partialorder %v146, 0.0
  %vm163 = vcmp.ge.f32.partialorder %v147, 0.0
  %vm164 = vcmp.ge.f32.partialorder %v148, 0.0
  %vm165 = vcmp.ge.f32.partialorder %v149, 0.0
  %vm166 = vcmp.ge.f32.partialorder %v150, 0.0
  %vm167 = vcmp.ge.f32.partialorder %v151, 0.0
  %vm168 = vcmp.ge.f32.partialorder %v152, 0.0
  %vm169 = vcmp.ge.f32.partialorder %v153, 0.0
  %vm170 = vcmp.ge.f32.partialorder %v154, 0.0
  %vm171 = vcmp.ge.f32.partialorder %v155, 0.0
  %vm172 = vcmp.ge.f32.partialorder %v156, 0.0
  %vm173 = vcmp.ge.f32.partialorder %v157, 0.0
  %v174 = vmul.f32 %v142, 0.2
  %v175 = vmul.f32 %v143, 0.2
  %v176 = vmul.f32 %v144, 0.2
  %v177 = vmul.f32 %v145, 0.2
  %v178 = vmul.f32 %v146, 0.2
  %v179 = vmul.f32 %v147, 0.2
  %v180 = vmul.f32 %v148, 0.2
  %v181 = vmul.f32 %v149, 0.2
  %v182 = vmul.f32 %v150, 0.2
  %v183 = vmul.f32 %v151, 0.2
  %v184 = vmul.f32 %v152, 0.2
  %v185 = vmul.f32 %v153, 0.2
  %v186 = vmul.f32 %v154, 0.2
  %v187 = vmul.f32 %v155, 0.2
  %v188 = vmul.f32 %v156, 0.2
  %v189 = vmul.f32 %v157, 0.2
  %v190 = vsel %vm158, %v142, %v174
  %v191 = vsel %vm159, %v143, %v175
  %v192 = vsel %vm160, %v144, %v176
  %v193 = vsel %vm161, %v145, %v177
  %v194 = vsel %vm162, %v146, %v178
  %v195 = vsel %vm163, %v147, %v179
  %v196 = vsel %vm164, %v148, %v180
  %v197 = vsel %vm165, %v149, %v181
  %v198 = vsel %vm166, %v150, %v182
  %v199 = vsel %vm167, %v151, %v183
  %v200 = vsel %vm168, %v152, %v184
  %v201 = vsel %vm169, %v153, %v185
  %v202 = vsel %vm170, %v154, %v186
  %v203 = vsel %vm171, %v155, %v187
  %v204 = vsel %vm172, %v156, %v188
  %v205 = vsel %vm173, %v157, %v189
  %v206 = vpack.c.bf16 %v198, %v190
  %v207 = vpack.c.bf16 %v199, %v191
  %v208 = vpack.c.bf16 %v200, %v192
  %v209 = vpack.c.bf16 %v201, %v193
  %v210 = vpack.c.bf16 %v202, %v194
  %v211 = vpack.c.bf16 %v203, %v195
  %v212 = vpack.c.bf16 %v204, %v196
  %v213 = vpack.c.bf16 %v205, %v197
  %v214 = vld [vmem:[%s1] sm:$0xf]
  %v215 = vld [vmem:[%s1 + $0x4] sm:$0xf]
  %v216 = vld [vmem:[%s1 + $0x8] sm:$0xf]
  %v217 = vld [vmem:[%s1 + $0xc] sm:$0xf]
  %v218 = vld [vmem:[%s1 + $0x10] sm:$0xf]
  %v219 = vld [vmem:[%s1 + $0x14] sm:$0xf]
  %v220 = vld [vmem:[%s1 + $0x18] sm:$0xf]
  %v221 = vld [vmem:[%s1 + $0x1c] sm:$0xf]
  %v222 = vld [vmem:[%s1 + $0x20] sm:$0xf]
  %v223 = vld [vmem:[%s1 + $0x24] sm:$0xf]
  %v224 = vld [vmem:[%s1 + $0x28] sm:$0xf]
  %v225 = vld [vmem:[%s1 + $0x2c] sm:$0xf]
  %v226 = vld [vmem:[%s1 + $0x30] sm:$0xf]
  %v227 = vld [vmem:[%s1 + $0x34] sm:$0xf]
  %v228 = vld [vmem:[%s1 + $0x38] sm:$0xf]
  %v229 = vld [vmem:[%s1 + $0x3c] sm:$0xf]
  %v230 = vld [vmem:[%s1 + $0x40] sm:$0xf]
  %v231 = vld [vmem:[%s1 + $0x44] sm:$0xf]
  %v232 = vld [vmem:[%s1 + $0x48] sm:$0xf]
  %v233 = vld [vmem:[%s1 + $0x4c] sm:$0xf]
  %v234 = vld [vmem:[%s1 + $0x50] sm:$0xf]
  %v235 = vld [vmem:[%s1 + $0x54] sm:$0xf]
  %v236 = vld [vmem:[%s1 + $0x58] sm:$0xf]
  %v237 = vld [vmem:[%s1 + $0x5c] sm:$0xf]
  %v238 = vld [vmem:[%s1 + $0x60] sm:$0xf]
  %v239 = vld [vmem:[%s1 + $0x64] sm:$0xf]
  %v240 = vld [vmem:[%s1 + $0x68] sm:$0xf]
  %v241 = vld [vmem:[%s1 + $0x6c] sm:$0xf]
  %v242 = vld [vmem:[%s1 + $0x70] sm:$0xf]
  %v243 = vld [vmem:[%s1 + $0x74] sm:$0xf]
  %v244 = vld [vmem:[%s1 + $0x78] sm:$0xf]
  %v245 = vld [vmem:[%s1 + $0x7c] sm:$0xf]
  %v246 = vld [vmem:[%s1 + $0x80] sm:$0xf]
  %v247 = vld [vmem:[%s1 + $0x84] sm:$0xf]
  %v248 = vld [vmem:[%s1 + $0x88] sm:$0xf]
  %v249 = vld [vmem:[%s1 + $0x8c] sm:$0xf]
  %v250 = vld [vmem:[%s1 + $0x90] sm:$0xf]
  %v251 = vld [vmem:[%s1 + $0x94] sm:$0xf]
  %v252 = vld [vmem:[%s1 + $0x98] sm:$0xf]
  %v253 = vld [vmem:[%s1 + $0x9c] sm:$0xf]
  %v254 = vld [vmem:[%s1 + $0xa0] sm:$0xf]
  %v255 = vld [vmem:[%s1 + $0xa4] sm:$0xf]
  %v256 = vld [vmem:[%s1 + $0xa8] sm:$0xf]
  %v257 = vld [vmem:[%s1 + $0xac] sm:$0xf]
  %v258 = vld [vmem:[%s1 + $0xb0] sm:$0xf]
  %v259 = vld [vmem:[%s1 + $0xb4] sm:$0xf]
  %v260 = vld [vmem:[%s1 + $0xb8] sm:$0xf]
  %v261 = vld [vmem:[%s1 + $0xbc] sm:$0xf]
  %v262 = vld [vmem:[%s1 + $0xc0] sm:$0xf]
  %v263 = vld [vmem:[%s1 + $0xc4] sm:$0xf]
  %v264 = vld [vmem:[%s1 + $0xc8] sm:$0xf]
  %v265 = vld [vmem:[%s1 + $0xcc] sm:$0xf]
  %v266 = vld [vmem:[%s1 + $0xd0] sm:$0xf]
  %v267 = vld [vmem:[%s1 + $0xd4] sm:$0xf]
  %v268 = vld [vmem:[%s1 + $0xd8] sm:$0xf]
  %v269 = vld [vmem:[%s1 + $0xdc] sm:$0xf]
  %v270 = vld [vmem:[%s1 + $0xe0] sm:$0xf]
  %v271 = vld [vmem:[%s1 + $0xe4] sm:$0xf]
  %v272 = vld [vmem:[%s1 + $0xe8] sm:$0xf]
  %v273 = vld [vmem:[%s1 + $0xec] sm:$0xf]
  %v274 = vld [vmem:[%s1 + $0xf0] sm:$0xf]
  %v275 = vld [vmem:[%s1 + $0xf4] sm:$0xf]
  %v276 = vld [vmem:[%s1 + $0xf8] sm:$0xf]
  %v277 = vld [vmem:[%s1 + $0xfc] sm:$0xf]
  %v278 = vld [vmem:[%s1 + $0x100] sm:$0xf]
  %v279 = vld [vmem:[%s1 + $0x104] sm:$0xf]
  %v280 = vld [vmem:[%s1 + $0x108] sm:$0xf]
  %v281 = vld [vmem:[%s1 + $0x10c] sm:$0xf]
  %v282 = vld [vmem:[%s1 + $0x110] sm:$0xf]
  %v283 = vld [vmem:[%s1 + $0x114] sm:$0xf]
  %v284 = vld [vmem:[%s1 + $0x118] sm:$0xf]
  %v285 = vld [vmem:[%s1 + $0x11c] sm:$0xf]
  %v286 = vld [vmem:[%s1 + $0x120] sm:$0xf]
  %v287 = vld [vmem:[%s1 + $0x124] sm:$0xf]
  %v288 = vld [vmem:[%s1 + $0x128] sm:$0xf]
  %v289 = vld [vmem:[%s1 + $0x12c] sm:$0xf]
  %v290 = vld [vmem:[%s1 + $0x130] sm:$0xf]
  %v291 = vld [vmem:[%s1 + $0x134] sm:$0xf]
  %v292 = vld [vmem:[%s1 + $0x138] sm:$0xf]
  %v293 = vld [vmem:[%s1 + $0x13c] sm:$0xf]
  %v294 = vld [vmem:[%s1 + $0x140] sm:$0xf]
  %v295 = vld [vmem:[%s1 + $0x144] sm:$0xf]
  %v296 = vld [vmem:[%s1 + $0x148] sm:$0xf]
  %v297 = vld [vmem:[%s1 + $0x14c] sm:$0xf]
  %v298 = vld [vmem:[%s1 + $0x150] sm:$0xf]
  %v299 = vld [vmem:[%s1 + $0x154] sm:$0xf]
  %v300 = vld [vmem:[%s1 + $0x158] sm:$0xf]
  %v301 = vld [vmem:[%s1 + $0x15c] sm:$0xf]
  %v302 = vld [vmem:[%s1 + $0x160] sm:$0xf]
  %v303 = vld [vmem:[%s1 + $0x164] sm:$0xf]
  %v304 = vld [vmem:[%s1 + $0x168] sm:$0xf]
  %v305 = vld [vmem:[%s1 + $0x16c] sm:$0xf]
  %v306 = vld [vmem:[%s1 + $0x170] sm:$0xf]
  %v307 = vld [vmem:[%s1 + $0x174] sm:$0xf]
  %v308 = vld [vmem:[%s1 + $0x178] sm:$0xf]
  %v309 = vld [vmem:[%s1 + $0x17c] sm:$0xf]
  %v310 = vld [vmem:[%s1 + $0x180] sm:$0xf]
  %v311 = vld [vmem:[%s1 + $0x184] sm:$0xf]
  %v312 = vld [vmem:[%s1 + $0x188] sm:$0xf]
  %v313 = vld [vmem:[%s1 + $0x18c] sm:$0xf]
  %v314 = vld [vmem:[%s1 + $0x190] sm:$0xf]
  %v315 = vld [vmem:[%s1 + $0x194] sm:$0xf]
  %v316 = vld [vmem:[%s1 + $0x198] sm:$0xf]
  %v317 = vld [vmem:[%s1 + $0x19c] sm:$0xf]
  %v318 = vld [vmem:[%s1 + $0x1a0] sm:$0xf]
  %v319 = vld [vmem:[%s1 + $0x1a4] sm:$0xf]
  %v320 = vld [vmem:[%s1 + $0x1a8] sm:$0xf]
  %v321 = vld [vmem:[%s1 + $0x1ac] sm:$0xf]
  %v322 = vld [vmem:[%s1 + $0x1b0] sm:$0xf]
  %v323 = vld [vmem:[%s1 + $0x1b4] sm:$0xf]
  %v324 = vld [vmem:[%s1 + $0x1b8] sm:$0xf]
  %v325 = vld [vmem:[%s1 + $0x1bc] sm:$0xf]
  %v326 = vld [vmem:[%s1 + $0x1c0] sm:$0xf]
  %v327 = vld [vmem:[%s1 + $0x1c4] sm:$0xf]
  %v328 = vld [vmem:[%s1 + $0x1c8] sm:$0xf]
  %v329 = vld [vmem:[%s1 + $0x1cc] sm:$0xf]
  %v330 = vld [vmem:[%s1 + $0x1d0] sm:$0xf]
  %v331 = vld [vmem:[%s1 + $0x1d4] sm:$0xf]
  %v332 = vld [vmem:[%s1 + $0x1d8] sm:$0xf]
  %v333 = vld [vmem:[%s1 + $0x1dc] sm:$0xf]
  %v334 = vld [vmem:[%s1 + $0x1e0] sm:$0xf]
  %v335 = vld [vmem:[%s1 + $0x1e4] sm:$0xf]
  %v336 = vld [vmem:[%s1 + $0x1e8] sm:$0xf]
  %v337 = vld [vmem:[%s1 + $0x1ec] sm:$0xf]
  %v338 = vld [vmem:[%s1 + $0x1f0] sm:$0xf]
  %v339 = vld [vmem:[%s1 + $0x1f4] sm:$0xf]
  %v340 = vld [vmem:[%s1 + $0x1f8] sm:$0xf]
  %v341 = vld [vmem:[%s1 + $0x1fc] sm:$0xf]
  %v470 = vunpack.c.l.b16 %v214
  %v471 = vunpack.c.l.b16 %v215
  %v472 = vunpack.c.l.b16 %v216
  %v473 = vunpack.c.l.b16 %v217
  %v474 = vunpack.c.l.b16 %v218
  %v475 = vunpack.c.l.b16 %v219
  %v476 = vunpack.c.l.b16 %v220
  %v477 = vunpack.c.l.b16 %v221
  %v478 = vunpack.c.l.b16 %v222
  %v479 = vunpack.c.l.b16 %v223
  %v480 = vunpack.c.l.b16 %v224
  %v481 = vunpack.c.l.b16 %v225
  %v482 = vunpack.c.l.b16 %v226
  %v483 = vunpack.c.l.b16 %v227
  %v484 = vunpack.c.l.b16 %v228
  %v485 = vunpack.c.l.b16 %v229
  %v486 = vunpack.c.l.b16 %v230
  %v487 = vunpack.c.l.b16 %v231
  %v488 = vunpack.c.l.b16 %v232
  %v489 = vunpack.c.l.b16 %v233
  %v490 = vunpack.c.l.b16 %v234
  %v491 = vunpack.c.l.b16 %v235
  %v492 = vunpack.c.l.b16 %v236
  %v493 = vunpack.c.l.b16 %v237
  %v494 = vunpack.c.l.b16 %v238
  %v495 = vunpack.c.l.b16 %v239
  %v496 = vunpack.c.l.b16 %v240
  %v497 = vunpack.c.l.b16 %v241
  %v498 = vunpack.c.l.b16 %v242
  %v499 = vunpack.c.l.b16 %v243
  %v500 = vunpack.c.l.b16 %v244
  %v501 = vunpack.c.l.b16 %v245
  %v502 = vunpack.c.l.b16 %v246
  %v503 = vunpack.c.l.b16 %v247
  %v504 = vunpack.c.l.b16 %v248
  %v505 = vunpack.c.l.b16 %v249
  %v506 = vunpack.c.l.b16 %v250
  %v507 = vunpack.c.l.b16 %v251
  %v508 = vunpack.c.l.b16 %v252
  %v509 = vunpack.c.l.b16 %v253
  %v510 = vunpack.c.l.b16 %v254
  %v511 = vunpack.c.l.b16 %v255
  %v512 = vunpack.c.l.b16 %v256
  %v513 = vunpack.c.l.b16 %v257
  %v514 = vunpack.c.l.b16 %v258
  %v515 = vunpack.c.l.b16 %v259
  %v516 = vunpack.c.l.b16 %v260
  %v517 = vunpack.c.l.b16 %v261
  %v518 = vunpack.c.l.b16 %v262
  %v519 = vunpack.c.l.b16 %v263
  %v520 = vunpack.c.l.b16 %v264
  %v521 = vunpack.c.l.b16 %v265
  %v522 = vunpack.c.l.b16 %v266
  %v523 = vunpack.c.l.b16 %v267
  %v524 = vunpack.c.l.b16 %v268
  %v525 = vunpack.c.l.b16 %v269
  %v526 = vunpack.c.l.b16 %v270
  %v527 = vunpack.c.l.b16 %v271
  %v528 = vunpack.c.l.b16 %v272
  %v529 = vunpack.c.l.b16 %v273
  %v530 = vunpack.c.l.b16 %v274
  %v531 = vunpack.c.l.b16 %v275
  %v532 = vunpack.c.l.b16 %v276
  %v533 = vunpack.c.l.b16 %v277
  %v534 = vunpack.c.l.b16 %v278
  %v535 = vunpack.c.l.b16 %v279
  %v536 = vunpack.c.l.b16 %v280
  %v537 = vunpack.c.l.b16 %v281
  %v538 = vunpack.c.l.b16 %v282
  %v539 = vunpack.c.l.b16 %v283
  %v540 = vunpack.c.l.b16 %v284
  %v541 = vunpack.c.l.b16 %v285
  %v542 = vunpack.c.l.b16 %v286
  %v543 = vunpack.c.l.b16 %v287
  %v544 = vunpack.c.l.b16 %v288
  %v545 = vunpack.c.l.b16 %v289
  %v546 = vunpack.c.l.b16 %v290
  %v547 = vunpack.c.l.b16 %v291
  %v548 = vunpack.c.l.b16 %v292
  %v549 = vunpack.c.l.b16 %v293
  %v550 = vunpack.c.l.b16 %v294
  %v551 = vunpack.c.l.b16 %v295
  %v552 = vunpack.c.l.b16 %v296
  %v553 = vunpack.c.l.b16 %v297
  %v554 = vunpack.c.l.b16 %v298
  %v555 = vunpack.c.l.b16 %v299
  %v556 = vunpack.c.l.b16 %v300
  %v557 = vunpack.c.l.b16 %v301
  %v558 = vunpack.c.l.b16 %v302
  %v559 = vunpack.c.l.b16 %v303
  %v560 = vunpack.c.l.b16 %v304
  %v561 = vunpack.c.l.b16 %v305
  %v562 = vunpack.c.l.b16 %v306
  %v563 = vunpack.c.l.b16 %v307
  %v564 = vunpack.c.l.b16 %v308
  %v565 = vunpack.c.l.b16 %v309
  %v566 = vunpack.c.l.b16 %v310
  %v567 = vunpack.c.l.b16 %v311
  %v568 = vunpack.c.l.b16 %v312
  %v569 = vunpack.c.l.b16 %v313
  %v570 = vunpack.c.l.b16 %v314
  %v571 = vunpack.c.l.b16 %v315
  %v572 = vunpack.c.l.b16 %v316
  %v573 = vunpack.c.l.b16 %v317
  %v574 = vunpack.c.l.b16 %v318
  %v575 = vunpack.c.l.b16 %v319
  %v576 = vunpack.c.l.b16 %v320
  %v577 = vunpack.c.l.b16 %v321
  %v578 = vunpack.c.l.b16 %v322
  %v579 = vunpack.c.l.b16 %v323
  %v580 = vunpack.c.l.b16 %v324
  %v581 = vunpack.c.l.b16 %v325
  %v582 = vunpack.c.l.b16 %v326
  %v583 = vunpack.c.l.b16 %v327
  %v584 = vunpack.c.l.b16 %v328
  %v585 = vunpack.c.l.b16 %v329
  %v586 = vunpack.c.l.b16 %v330
  %v587 = vunpack.c.l.b16 %v331
  %v588 = vunpack.c.l.b16 %v332
  %v589 = vunpack.c.l.b16 %v333
  %v590 = vunpack.c.l.b16 %v334
  %v591 = vunpack.c.l.b16 %v335
  %v592 = vunpack.c.l.b16 %v336
  %v593 = vunpack.c.l.b16 %v337
  %v594 = vunpack.c.l.b16 %v338
  %v595 = vunpack.c.l.b16 %v339
  %v596 = vunpack.c.l.b16 %v340
  %v597 = vunpack.c.l.b16 %v341
  %v598 = vpack.c.b16 %v471, %v470
  %v599 = vpack.c.b16 %v473, %v472
  %v600 = vpack.c.b16 %v475, %v474
  %v601 = vpack.c.b16 %v477, %v476
  %v602 = vpack.c.b16 %v479, %v478
  %v603 = vpack.c.b16 %v481, %v480
  %v604 = vpack.c.b16 %v483, %v482
  %v605 = vpack.c.b16 %v485, %v484
  %v606 = vpack.c.b16 %v487, %v486
  %v607 = vpack.c.b16 %v489, %v488
  %v608 = vpack.c.b16 %v491, %v490
  %v609 = vpack.c.b16 %v493, %v492
  %v610 = vpack.c.b16 %v495, %v494
  %v611 = vpack.c.b16 %v497, %v496
  %v612 = vpack.c.b16 %v499, %v498
  %v613 = vpack.c.b16 %v501, %v500
  %v614 = vpack.c.b16 %v503, %v502
  %v615 = vpack.c.b16 %v505, %v504
  %v616 = vpack.c.b16 %v507, %v506
  %v617 = vpack.c.b16 %v509, %v508
  %v618 = vpack.c.b16 %v511, %v510
  %v619 = vpack.c.b16 %v513, %v512
  %v620 = vpack.c.b16 %v515, %v514
  %v621 = vpack.c.b16 %v517, %v516
  %v622 = vpack.c.b16 %v519, %v518
  %v623 = vpack.c.b16 %v521, %v520
  %v624 = vpack.c.b16 %v523, %v522
  %v625 = vpack.c.b16 %v525, %v524
  %v626 = vpack.c.b16 %v527, %v526
  %v627 = vpack.c.b16 %v529, %v528
  %v628 = vpack.c.b16 %v531, %v530
  %v629 = vpack.c.b16 %v533, %v532
  %v630 = vpack.c.b16 %v535, %v534
  %v631 = vpack.c.b16 %v537, %v536
  %v632 = vpack.c.b16 %v539, %v538
  %v633 = vpack.c.b16 %v541, %v540
  %v634 = vpack.c.b16 %v543, %v542
  %v635 = vpack.c.b16 %v545, %v544
  %v636 = vpack.c.b16 %v547, %v546
  %v637 = vpack.c.b16 %v549, %v548
  %v638 = vpack.c.b16 %v551, %v550
  %v639 = vpack.c.b16 %v553, %v552
  %v640 = vpack.c.b16 %v555, %v554
  %v641 = vpack.c.b16 %v557, %v556
  %v642 = vpack.c.b16 %v559, %v558
  %v643 = vpack.c.b16 %v561, %v560
  %v644 = vpack.c.b16 %v563, %v562
  %v645 = vpack.c.b16 %v565, %v564
  %v646 = vpack.c.b16 %v567, %v566
  %v647 = vpack.c.b16 %v569, %v568
  %v648 = vpack.c.b16 %v571, %v570
  %v649 = vpack.c.b16 %v573, %v572
  %v650 = vpack.c.b16 %v575, %v574
  %v651 = vpack.c.b16 %v577, %v576
  %v652 = vpack.c.b16 %v579, %v578
  %v653 = vpack.c.b16 %v581, %v580
  %v654 = vpack.c.b16 %v583, %v582
  %v655 = vpack.c.b16 %v585, %v584
  %v656 = vpack.c.b16 %v587, %v586
  %v657 = vpack.c.b16 %v589, %v588
  %v658 = vpack.c.b16 %v591, %v590
  %v659 = vpack.c.b16 %v593, %v592
  %v660 = vpack.c.b16 %v595, %v594
  %v661 = vpack.c.b16 %v597, %v596
  %726 = vmatprep.subr.bf16.mxu0 0
  %727 = vmatpush1.bf16.msra.mxu0 %v598
  %728 = vmatprep.subr.bf16.mxu0 0
  %729 = vmatpush1.bf16.msra.mxu0 %v599
  %730 = vmatprep.subr.bf16.mxu0 0
  %731 = vmatpush1.bf16.msra.mxu0 %v600
  %732 = vmatprep.subr.bf16.mxu0 0
  %733 = vmatpush1.bf16.msra.mxu0 %v601
  %734 = vmatprep.subr.bf16.mxu0 0
  %735 = vmatpush1.bf16.msra.mxu0 %v602
  %736 = vmatprep.subr.bf16.mxu0 0
  %737 = vmatpush1.bf16.msra.mxu0 %v603
  %738 = vmatprep.subr.bf16.mxu0 0
  %739 = vmatpush1.bf16.msra.mxu0 %v604
  %740 = vmatprep.subr.bf16.mxu0 0
  %741 = vmatpush1.bf16.msra.mxu0 %v605
  %742 = vmatprep.subr.bf16.mxu0 0
  %743 = vmatpush1.bf16.msra.mxu0 %v606
  %744 = vmatprep.subr.bf16.mxu0 0
  %745 = vmatpush1.bf16.msra.mxu0 %v607
  %746 = vmatprep.subr.bf16.mxu0 0
  %747 = vmatpush1.bf16.msra.mxu0 %v608
  %748 = vmatprep.subr.bf16.mxu0 0
  %749 = vmatpush1.bf16.msra.mxu0 %v609
  %750 = vmatprep.subr.bf16.mxu0 0
  %751 = vmatpush1.bf16.msra.mxu0 %v610
  %752 = vmatprep.subr.bf16.mxu0 0
  %753 = vmatpush1.bf16.msra.mxu0 %v611
  %754 = vmatprep.subr.bf16.mxu0 0
  %755 = vmatpush1.bf16.msra.mxu0 %v612
  %756 = vmatprep.subr.bf16.mxu0 0
  %757 = vmatpush1.bf16.msra.mxu0 %v613
  %758 = vmatprep.mubr.bf16.mxu0 %v207
  %759 = vmatmul.mubr.bf16.gmra.mrb[0].mxu0 %v206
  %v760 = vpop.f32.mrb[0].mxu0
  %v761 = vadd.f32 0.0, %v760
  %v762 = vpop.f32.mrb[0].mxu0
  %v763 = vpop.f32.mrb[0].mxu0
  %v764 = vadd.f32 0.0, %v763
  %v765 = vpop.f32.mrb[0].mxu0
  %766 = vdwg.mxu0
  %767 = vmatprep.subr.bf16.mxu0 0
  %768 = vmatpush1.bf16.msra.mxu0 %v614
  %769 = vmatprep.subr.bf16.mxu0 0
  %770 = vmatpush1.bf16.msra.mxu0 %v615
  %771 = vmatprep.subr.bf16.mxu0 0
  %772 = vmatpush1.bf16.msra.mxu0 %v616
  %773 = vmatprep.subr.bf16.mxu0 0
  %774 = vmatpush1.bf16.msra.mxu0 %v617
  %775 = vmatprep.subr.bf16.mxu0 0
  %776 = vmatpush1.bf16.msra.mxu0 %v618
  %777 = vmatprep.subr.bf16.mxu0 0
  %778 = vmatpush1.bf16.msra.mxu0 %v619
  %779 = vmatprep.subr.bf16.mxu0 0
  %780 = vmatpush1.bf16.msra.mxu0 %v620
  %781 = vmatprep.subr.bf16.mxu0 0
  %782 = vmatpush1.bf16.msra.mxu0 %v621
  %783 = vmatprep.subr.bf16.mxu0 0
  %784 = vmatpush1.bf16.msra.mxu0 %v622
  %785 = vmatprep.subr.bf16.mxu0 0
  %786 = vmatpush1.bf16.msra.mxu0 %v623
  %787 = vmatprep.subr.bf16.mxu0 0
  %788 = vmatpush1.bf16.msra.mxu0 %v624
  %789 = vmatprep.subr.bf16.mxu0 0
  %790 = vmatpush1.bf16.msra.mxu0 %v625
  %791 = vmatprep.subr.bf16.mxu0 0
  %792 = vmatpush1.bf16.msra.mxu0 %v626
  %793 = vmatprep.subr.bf16.mxu0 0
  %794 = vmatpush1.bf16.msra.mxu0 %v627
  %795 = vmatprep.subr.bf16.mxu0 0
  %796 = vmatpush1.bf16.msra.mxu0 %v628
  %797 = vmatprep.subr.bf16.mxu0 0
  %798 = vmatpush1.bf16.msra.mxu0 %v629
  %799 = vmatprep.mubr.bf16.mxu0 %v209
  %800 = vmatmul.mubr.bf16.gmra.mrb[0].mxu0 %v208
  %v801 = vpop.f32.mrb[0].mxu0
  %v802 = vadd.f32 %v761, %v801
  %v803 = vpop.f32.mrb[0].mxu0
  %v804 = vpop.f32.mrb[0].mxu0
  %v805 = vadd.f32 %v764, %v804
  %v806 = vpop.f32.mrb[0].mxu0
  %807 = vdwg.mxu0
  %808 = vmatprep.subr.bf16.mxu0 0
  %809 = vmatpush1.bf16.msra.mxu0 %v630
  %810 = vmatprep.subr.bf16.mxu0 0
  %811 = vmatpush1.bf16.msra.mxu0 %v631
  %812 = vmatprep.subr.bf16.mxu0 0
  %813 = vmatpush1.bf16.msra.mxu0 %v632
  %814 = vmatprep.subr.bf16.mxu0 0
  %815 = vmatpush1.bf16.msra.mxu0 %v633
  %816 = vmatprep.subr.bf16.mxu0 0
  %817 = vmatpush1.bf16.msra.mxu0 %v634
  %818 = vmatprep.subr.bf16.mxu0 0
  %819 = vmatpush1.bf16.msra.mxu0 %v635
  %820 = vmatprep.subr.bf16.mxu0 0
  %821 = vmatpush1.bf16.msra.mxu0 %v636
  %822 = vmatprep.subr.bf16.mxu0 0
  %823 = vmatpush1.bf16.msra.mxu0 %v637
  %824 = vmatprep.subr.bf16.mxu0 0
  %825 = vmatpush1.bf16.msra.mxu0 %v638
  %826 = vmatprep.subr.bf16.mxu0 0
  %827 = vmatpush1.bf16.msra.mxu0 %v639
  %828 = vmatprep.subr.bf16.mxu0 0
  %829 = vmatpush1.bf16.msra.mxu0 %v640
  %830 = vmatprep.subr.bf16.mxu0 0
  %831 = vmatpush1.bf16.msra.mxu0 %v641
  %832 = vmatprep.subr.bf16.mxu0 0
  %833 = vmatpush1.bf16.msra.mxu0 %v642
  %834 = vmatprep.subr.bf16.mxu0 0
  %835 = vmatpush1.bf16.msra.mxu0 %v643
  %836 = vmatprep.subr.bf16.mxu0 0
  %837 = vmatpush1.bf16.msra.mxu0 %v644
  %838 = vmatprep.subr.bf16.mxu0 0
  %839 = vmatpush1.bf16.msra.mxu0 %v645
  %840 = vmatprep.mubr.bf16.mxu0 %v211
  %841 = vmatmul.mubr.bf16.gmra.mrb[0].mxu0 %v210
  %v842 = vpop.f32.mrb[0].mxu0
  %v843 = vadd.f32 %v802, %v842
  %v844 = vpop.f32.mrb[0].mxu0
  %v845 = vpop.f32.mrb[0].mxu0
  %v846 = vadd.f32 %v805, %v845
  %v847 = vpop.f32.mrb[0].mxu0
  %848 = vdwg.mxu0
  %849 = vmatprep.subr.bf16.mxu0 0
  %850 = vmatpush1.bf16.msra.mxu0 %v646
  %851 = vmatprep.subr.bf16.mxu0 0
  %852 = vmatpush1.bf16.msra.mxu0 %v647
  %853 = vmatprep.subr.bf16.mxu0 0
  %854 = vmatpush1.bf16.msra.mxu0 %v648
  %855 = vmatprep.subr.bf16.mxu0 0
  %856 = vmatpush1.bf16.msra.mxu0 %v649
  %857 = vmatprep.subr.bf16.mxu0 0
  %858 = vmatpush1.bf16.msra.mxu0 %v650
  %859 = vmatprep.subr.bf16.mxu0 0
  %860 = vmatpush1.bf16.msra.mxu0 %v651
  %861 = vmatprep.subr.bf16.mxu0 0
  %862 = vmatpush1.bf16.msra.mxu0 %v652
  %863 = vmatprep.subr.bf16.mxu0 0
  %864 = vmatpush1.bf16.msra.mxu0 %v653
  %865 = vmatprep.subr.bf16.mxu0 0
  %866 = vmatpush1.bf16.msra.mxu0 %v654
  %867 = vmatprep.subr.bf16.mxu0 0
  %868 = vmatpush1.bf16.msra.mxu0 %v655
  %869 = vmatprep.subr.bf16.mxu0 0
  %870 = vmatpush1.bf16.msra.mxu0 %v656
  %871 = vmatprep.subr.bf16.mxu0 0
  %872 = vmatpush1.bf16.msra.mxu0 %v657
  %873 = vmatprep.subr.bf16.mxu0 0
  %874 = vmatpush1.bf16.msra.mxu0 %v658
  %875 = vmatprep.subr.bf16.mxu0 0
  %876 = vmatpush1.bf16.msra.mxu0 %v659
  %877 = vmatprep.subr.bf16.mxu0 0
  %878 = vmatpush1.bf16.msra.mxu0 %v660
  %879 = vmatprep.subr.bf16.mxu0 0
  %880 = vmatpush1.bf16.msra.mxu0 %v661
  %881 = vmatprep.mubr.bf16.mxu0 %v213
  %882 = vmatmul.mubr.bf16.gmra.mrb[0].mxu0 %v212
  %v883 = vpop.f32.mrb[0].mxu0
  %v884 = vadd.f32 %v843, %v883
  %v885 = vpop.f32.mrb[0].mxu0
  %v886 = vpop.f32.mrb[0].mxu0
  %v887 = vadd.f32 %v846, %v886
  %v888 = vpop.f32.mrb[0].mxu0
  %889 = vdwg.mxu0
  %p890 = scmp.eq.s32.totalorder 0, 0
  // Predicated region
  $region18: #{_lambda_.24} parent=0 // pred_check
    %p891 = pneg %p890
  $region19: #{_lambda_.24} parent=0 // pred_check_branch
    %893 = sbr.rel (%p891) target = $region21
  $region20: #{_lambda_.24} parent=0 // pred_region
    %894 = vst [vmem:[#allocation2] sm:$0xff] %v884
    %895 = vst [vmem:[#allocation2 + $0x8] sm:$0xff] %v887
  $region21: #{_lambda_.24} parent=0 // pred_fallthru
    _
  %p896 = scmp.gt.s32.totalorder 0, 0
  // Predicated region
  $region22: #{_lambda_.24} parent=0 // pred_check
    %p897 = pneg %p896
  $region23: #{_lambda_.24} parent=0 // pred_check_branch
    %899 = sbr.rel (%p897) target = $region25
  $region24: #{_lambda_.24} parent=0 // pred_region
    %v900 = vld [vmem:[#allocation2] sm:$0xff]
    %v901 = vld [vmem:[#allocation2 + $0x8] sm:$0xff]
    %v902 = vadd.f32 %v900, %v884
    %v903 = vadd.f32 %v901, %v887
    %904 = vst [vmem:[#allocation2] sm:$0xff] %v902
    %905 = vst [vmem:[#allocation2 + $0x8] sm:$0xff] %v903
  $region25: #{_lambda_.24} parent=0 // pred_fallthru
    _
  // Predicated region
  $region26: #{_lambda_.24} parent=0 // pred_check
    %p906 = pneg %p890
  $region27: #{_lambda_.24} parent=0 // pred_check_branch
    %908 = sbr.rel (%p906) target = $region29
  $region28: #{_lambda_.24} parent=0 // pred_region
    %v909 = vld [vmem:[#allocation2] sm:$0xff]
    %v910 = vld [vmem:[#allocation2 + $0x8] sm:$0xff]
    %v911 = vpack.c.bf16 %v910, %v909
    %v913 = vunpack.c.l.b16 %v911
    %v914 = vunpack.c.h.b16 %v911
    %v915 = vpack.c.b16 %v913, %v913
    %v916 = vpack.c.b16 %v914, %v914
    %919 = vst [vmem:[%s4] sm:$0xf] %v915
    %920 = vst [vmem:[%s4 + $0x4] sm:$0xf] %v916
  $region29: #{_lambda_.24} parent=0 // pred_fallthru
    _
  // Predicated region
  $region30: #{_lambda_.24} parent=0 // pred_check
    _
  $region31: #{_lambda_.24} parent=0 // pred_check_branch
    %922 = sbr.rel (0) target = $region33
  $region32: #{_lambda_.24} parent=0 // pred_region
    _
  $region33: #{_lambda_.24} parent=0 // pred_fallthru
    _
  // Predicated region
  $region34: #{_lambda_.24} parent=0 // pred_check
    _
  $region35: #{_lambda_.24} parent=0 // pred_check_branch
    %924 = sbr.rel (0) target = $region37
  $region36: #{_lambda_.24} parent=0 // pred_region
    _
  $region37: #{_lambda_.24} parent=0 // pred_fallthru
    _

// kernel: _lambda_.27
$region0: #{_lambda_.27}
  #allocation0 [shape = 'u32[]', space=smem, size = 0x4, offset = 0x4, fixed_abs, tag = 'smem constant byte address 0x4 - core index']
  #allocation1 [shape = 'u32[144,128]{1,0:T(1,128)}', space=vmem, size = 0x12000, scoped, tag = 'internal scratch']
  #allocation2 [shape = 'f32[16,128]{1,0:T(8,128)}', space=vmem, size = 0x2000, scoped, tag = 'scratch operand']
  %s0 = inlined_call_operand.vmem [shape: bf16[16,1152], index: 0, kind: input, shape index: {}]
  %s1 = inlined_call_operand.vmem [shape: bf16[1152,128], index: 1, kind: input, shape index: {}]
  %s2 = inlined_call_operand.vmem [shape: f32[1,1152], index: 2, kind: input, shape index: {}]
  %s3 = inlined_call_operand.vmem [shape: f32[1,1152], index: 3, kind: input, shape index: {}]
  %s4 = inlined_call_operand.vmem [shape: bf16[16,128], index: 4, kind: output, shape index: {}]
  %s5 = sld [smem:[#allocation0]]
  $region87: #{_lambda_.27} parent=0
    _
  %s7 = ssub.s32 1, %s5
  %s8 = scalar_select 0, %s7, %s5
  $region1: #{_lambda_.27} parent=0
    #allocation3 [shape = 'u8[24576]{0}', space=vmem, size = 0x6000, scoped, tag = 'input window, operand 0']
    loop: start=0, step=1, limit=5
    $region2: #{_lambda_.27} parent=1 // loop_pre_header
      _
    $region3: #{_lambda_.27} parent=1 // loop_header
      %s10 = sphi 0, %s14
      %p11 = scmp.ge.s32.totalorder %s10, 5
      %s17 = sphi 0, %s36
      %s18 = sphi 0, %s32
      %s19 = sphi 0, %s28
      %s20 = sphi 0, %s17
      %s21 = sphi 0, %s18
      %s22 = sphi 0, %s19
      %s23 = sphi 0, %s20
      %s24 = sphi 0, %s21
      %s25 = sphi 0, %s22
      %s41 = sphi 0, %s43
      %s44 = sphi 0, %s41
      %s45 = sphi 0, %s44
      %s61 = sphi 0, %s45
      %s69 = sphi 0, %s71
      %s72 = sphi 0, %s69
      %s73 = sphi 0, %s72
      %s89 = sphi 0, %s73
      %s95 = sphi 0, %s97
      %s98 = sphi 0, %s95
      %s99 = sphi 0, %s98
      %s115 = sphi 0, %s99
      %s121 = sphi 0, %s123
      %s124 = sphi 0, %s121
      %s125 = sphi 0, %s124
      %s141 = sphi 0, %s125
      %s149 = sphi 0, %s151
      %s152 = sphi 0, %s149
      %s153 = sphi 0, %s152
      %s169 = sphi 0, %s153
    $region4: #{_lambda_.27} parent=1 // loop_header_branch
      %13 = sbr.rel (%p11) target = $region8
    $region5: #{_lambda_.27} parent=1 // loop_body
      %s15 = ssub.s32 %s10, 1
      %s16 = ssub.s32 %s10, 2
      %s26 = sadd.s32 1, %s19
      %p27 = scmp.ge.s32.totalorder %s26, 3
      %s28 = scalar_select %p27, 0, %s26
      %s29 = sadd.s32 1, %s18
      %s30 = scalar_select %p27, %s29, %s18
      %p31 = scmp.ge.s32.totalorder %s30, 1
      %s32 = scalar_select %p31, 0, %s30
      %s33 = sadd.s32 1, %s17
      %s34 = scalar_select %p31, %s33, %s17
      %p35 = scmp.ge.s32.totalorder %s34, 1
      %s36 = scalar_select %p35, 0, %s34
      %s37 = ssub.s32 %s17, %s36
      %s38 = ssub.s32 %s19, %s28
      %s39 = sor.u32 %s37, %s38
      %p40 = scmp.eq.s32.totalorder %s39, 0
      %s42 = sadd.s32 %s41, 1
      %s43 = scalar_select %p40, %s41, %s42
      %p46 = pneg %p40
      %p47 = scmp.eq.s32.totalorder %s10, 2
      %p48 = por %p46, %p47
      %p49 = scmp.ne.s32.totalorder %s41, %s44
      %p50 = scmp.eq.s32.totalorder %s10, 0
      %p51 = por %p49, %p50
      %p52 = scmp.ne.s32.totalorder %s41, %s44
      %p53 = scmp.eq.s32.totalorder %s15, 2
      %p54 = por %p52, %p53
      %p55 = scmp.ne.s32.totalorder %s44, %s45
      %p56 = scmp.eq.s32.totalorder %s15, 0
      %p57 = por %p55, %p56
      %p58 = scmp.ne.s32.totalorder %s44, %s45
      %p59 = scmp.eq.s32.totalorder %s16, 2
      %p60 = por %p58, %p59
      %p62 = scmp.ne.s32.totalorder %s45, %s61
      %p63 = scmp.eq.s32.totalorder %s16, 0
      %p64 = por %p62, %p63
      %s65 = ssub.s32 %s19, %s28
      %s66 = ssub.s32 %s18, %s32
      %s67 = sor.u32 %s65, %s66
      %p68 = scmp.eq.s32.totalorder %s67, 0
      %s70 = sadd.s32 %s69, 1
      %s71 = scalar_select %p68, %s69, %s70
      %p74 = pneg %p68
      %p75 = scmp.eq.s32.totalorder %s10, 2
      %p76 = por %p74, %p75
      %p77 = scmp.ne.s32.totalorder %s69, %s72
      %p78 = scmp.eq.s32.totalorder %s10, 0
      %p79 = por %p77, %p78
      %p80 = scmp.ne.s32.totalorder %s69, %s72
      %p81 = scmp.eq.s32.totalorder %s15, 2
      %p82 = por %p80, %p81
      %p83 = scmp.ne.s32.totalorder %s72, %s73
      %p84 = scmp.eq.s32.totalorder %s15, 0
      %p85 = por %p83, %p84
      %p86 = scmp.ne.s32.totalorder %s72, %s73
      %p87 = scmp.eq.s32.totalorder %s16, 2
      %p88 = por %p86, %p87
      %p90 = scmp.ne.s32.totalorder %s73, %s89
      %p91 = scmp.eq.s32.totalorder %s16, 0
      %p92 = por %p90, %p91
      %s93 = ssub.s32 %s19, %s28
      %p94 = scmp.eq.s32.totalorder %s93, 0
      %s96 = sadd.s32 %s95, 1
      %s97 = scalar_select %p94, %s95, %s96
      %p100 = pneg %p94
      %p101 = scmp.eq.s32.totalorder %s10, 2
      %p102 = por %p100, %p101
      %p103 = scmp.ne.s32.totalorder %s95, %s98
      %p104 = scmp.eq.s32.totalorder %s10, 0
      %p105 = por %p103, %p104
      %p106 = scmp.ne.s32.totalorder %s95, %s98
      %p107 = scmp.eq.s32.totalorder %s15, 2
      %p108 = por %p106, %p107
      %p109 = scmp.ne.s32.totalorder %s98, %s99
      %p110 = scmp.eq.s32.totalorder %s15, 0
      %p111 = por %p109, %p110
      %p112 = scmp.ne.s32.totalorder %s98, %s99
      %p113 = scmp.eq.s32.totalorder %s16, 2
      %p114 = por %p112, %p113
      %p116 = scmp.ne.s32.totalorder %s99, %s115
      %p117 = scmp.eq.s32.totalorder %s16, 0
      %p118 = por %p116, %p117
      %s119 = ssub.s32 %s19, %s28
      %p120 = scmp.eq.s32.totalorder %s119, 0
      %s122 = sadd.s32 %s121, 1
      %s123 = scalar_select %p120, %s121, %s122
      %p126 = pneg %p120
      %p127 = scmp.eq.s32.totalorder %s10, 2
      %p128 = por %p126, %p127
      %p129 = scmp.ne.s32.totalorder %s121, %s124
      %p130 = scmp.eq.s32.totalorder %s10, 0
      %p131 = por %p129, %p130
      %p132 = scmp.ne.s32.totalorder %s121, %s124
      %p133 = scmp.eq.s32.totalorder %s15, 2
      %p134 = por %p132, %p133
      %p135 = scmp.ne.s32.totalorder %s124, %s125
      %p136 = scmp.eq.s32.totalorder %s15, 0
      %p137 = por %p135, %p136
      %p138 = scmp.ne.s32.totalorder %s124, %s125
      %p139 = scmp.eq.s32.totalorder %s16, 2
      %p140 = por %p138, %p139
      %p142 = scmp.ne.s32.totalorder %s125, %s141
      %p143 = scmp.eq.s32.totalorder %s16, 0
      %p144 = por %p142, %p143
      %s145 = ssub.s32 %s17, %s36
      %s146 = ssub.s32 %s18, %s32
      %s147 = sor.u32 %s145, %s146
      %p148 = scmp.eq.s32.totalorder %s147, 0
      %s150 = sadd.s32 %s149, 1
      %s151 = scalar_select %p148, %s149, %s150
      %p154 = pneg %p148
      %p155 = scmp.eq.s32.totalorder %s10, 2
      %p156 = por %p154, %p155
      %p157 = scmp.ne.s32.totalorder %s149, %s152
      %p158 = scmp.eq.s32.totalorder %s10, 0
      %p159 = por %p157, %p158
      %p160 = scmp.ne.s32.totalorder %s149, %s152
      %p161 = scmp.eq.s32.totalorder %s15, 2
      %p162 = por %p160, %p161
      %p163 = scmp.ne.s32.totalorder %s152, %s153
      %p164 = scmp.eq.s32.totalorder %s15, 0
      %p165 = por %p163, %p164
      %p166 = scmp.ne.s32.totalorder %s152, %s153
      %p167 = scmp.eq.s32.totalorder %s16, 2
      %p168 = por %p166, %p167
      %p170 = scmp.ne.s32.totalorder %s153, %s169
      %p171 = scmp.eq.s32.totalorder %s16, 0
      %p172 = por %p170, %p171
      %p173 = scmp.le.s32.totalorder 1, %s10
      %p174 = scmp.lt.s32.totalorder %s10, 4
      %p175 = pnand %p173, %p174
      %p176 = pneg %p175
      // Predicated region
      $region9: #{_lambda_.27} parent=5 // pred_check
        _
      $region10: #{_lambda_.27} parent=5 // pred_check_branch
        %178 = sbr.rel (%p175) target = $region12
      $region11: #{_lambda_.27} parent=5 // pred_region
        %s179 = ssub.s32 %s10, 1
      $region12: #{_lambda_.27} parent=5 // pred_fallthru
        _
      %p180 = scmp.lt.s32.totalorder %s10, 3
      // Predicated region
      $region13: #{_lambda_.27} parent=5 // pred_check
        %p181 = pneg %p180
      $region14: #{_lambda_.27} parent=5 // pred_check_branch
        %183 = sbr.rel (%p181) target = $region16
      $region15: #{_lambda_.27} parent=5 // pred_region
        // Predicated region
        $region17: #{_lambda_.27} parent=15 // pred_check
          %p184 = pneg %p51
        $region18: #{_lambda_.27} parent=15 // pred_check_branch
          %186 = sbr.rel (%p184) target = $region20
        $region19: #{_lambda_.27} parent=15 // pred_region
          %s187 = sand.u32 %s41, 1
          %s188 = sand.u32 %s41, 1
          %s189 = smul.addr %s188, 24
          %s190 = scalar_lea.vmem [#allocation3], %s189
          %s191 = smul.u32 2, %s17
          %s192 = smul.u32 3, %s19
          %s193 = smul.addr %s191, 9
          %s194 = sadd.s32 %s192, %s193
          %s195 = smul.addr %s194, 4
          %s196 = scalar_lea.vmem %s0, %s195
          // Predicated region
          $region21: #{_lambda_.27} parent=19 // pred_check
            _
          $region22: #{_lambda_.27} parent=19 // pred_check_branch
            %198 = sbr.rel (0) target = $region24
          $region23: #{_lambda_.27} parent=19 // pred_region
            // Predicated region
            $region25: #{_lambda_.27} parent=23 // pred_check
              _
            $region26: #{_lambda_.27} parent=23 // pred_check_branch
              %200 = sbr.rel (0) target = $region28
            $region27: #{_lambda_.27} parent=23 // pred_region
              %s201 = scalar_lea.vmem %s196, 8
              %s202 = scalar_lea.vmem %s190, 8 [#allocation3]
              loop: start=0, step=1, limit=1
              $region29: #{_lambda_.27} parent=27 // loop_pre_header
                _
              $region30: #{_lambda_.27} parent=27 // loop_header
                %s204 = sphi 0, %s208
                %p205 = scmp.ge.s32.totalorder %s204, 1
                %s209 = sphi %s196, %s196
                %s210 = sphi %s190, %s190
              $region31: #{_lambda_.27} parent=27 // loop_header_branch
                %207 = sbr.rel (%p205) target = $region35
              $region32: #{_lambda_.27} parent=27 // loop_body
                %v211 = vld [vmem:[%s209] sm:$0xff]
                %212 = vst [vmem:[%s210] sm:$0xff] %v211
                %v213 = vld [vmem:[%s209 + $0x24] sm:$0xff]
                %214 = vst [vmem:[%s210 + $0xc] sm:$0xff] %v213
              $region33: #{_lambda_.27} parent=27 // loop_footer
                %s208 = sadd.s32 1, %s204
              $region34: #{_lambda_.27} parent=27 // loop_footer_branch
                %203 = sbr.rel target = $region30
              $region35: #{_lambda_.27} parent=27 // loop_exit
                _
              loop: start=0, step=1, limit=1
              $region36: #{_lambda_.27} parent=27 // loop_pre_header
                _
              $region37: #{_lambda_.27} parent=27 // loop_header
                %s217 = sphi 0, %s221
                %p218 = scmp.ge.s32.totalorder %s217, 1
                %s222 = sphi %s201, %s201
                %s223 = sphi %s202, %s202
              $region38: #{_lambda_.27} parent=27 // loop_header_branch
                %220 = sbr.rel (%p218) target = $region42
              $region39: #{_lambda_.27} parent=27 // loop_body
                %v224 = vld [vmem:[%s222] sm:$0xf]
                %225 = vst [vmem:[%s223] sm:$0xf] %v224
                %v226 = vld [vmem:[%s222 + $0x24] sm:$0xf]
                %227 = vst [vmem:[%s223 + $0xc] sm:$0xf] %v226
              $region40: #{_lambda_.27} parent=27 // loop_footer
                %s221 = sadd.s32 1, %s217
              $region41: #{_lambda_.27} parent=27 // loop_footer_branch
                %216 = sbr.rel target = $region37
              $region42: #{_lambda_.27} parent=27 // loop_exit
                _
            $region28: #{_lambda_.27} parent=23 // pred_fallthru
              _
          $region24: #{_lambda_.27} parent=19 // pred_fallthru
            _
          %228 = vnop
        $region20: #{_lambda_.27} parent=15 // pred_fallthru
          _
        // Predicated region
        $region43: #{_lambda_.27} parent=15 // pred_check
          %p229 = pneg %p79
        $region44: #{_lambda_.27} parent=15 // pred_check_branch
          %231 = sbr.rel (%p229) target = $region46
        $region45: #{_lambda_.27} parent=15 // pred_region
          %s232 = smul.u32 48, %s19
          %p233 = scmp.lt.s32.totalorder %s232, 143
          %s234 = scalar_select %p233, %s232, 143
          %p235 = scmp.lt.s32.totalorder %s18, 0
          %s236 = scalar_select %p235, %s18, 0
          %s237 = sadd.s32 %s236, %s234
          %s238 = smul.addr %s237, 4
          %s239 = scalar_lea.vmem %s1, %s238
          %s240 = smul.u32 48, %s19
        $region46: #{_lambda_.27} parent=15 // pred_fallthru
          _
        // Predicated region
        $region47: #{_lambda_.27} parent=15 // pred_check
          %p241 = pneg %p105
        $region48: #{_lambda_.27} parent=15 // pred_check_branch
          %243 = sbr.rel (%p241) target = $region50
        $region49: #{_lambda_.27} parent=15 // pred_region
          %s244 = smul.u32 3, %s19
          %p245 = scmp.lt.s32.totalorder %s244, 8
          %s246 = scalar_select %p245, %s244, 8
          %s247 = scalar_lea.vmem %s2, %s246
          %s248 = smul.u32 3, %s19
        $region50: #{_lambda_.27} parent=15 // pred_fallthru
          _
        // Predicated region
        $region51: #{_lambda_.27} parent=15 // pred_check
          %p249 = pneg %p131
        $region52: #{_lambda_.27} parent=15 // pred_check_branch
          %251 = sbr.rel (%p249) target = $region54
        $region53: #{_lambda_.27} parent=15 // pred_region
          %s252 = smul.u32 3, %s19
          %p253 = scmp.lt.s32.totalorder %s252, 8
          %s254 = scalar_select %p253, %s252, 8
          %s255 = scalar_lea.vmem %s3, %s254
          %s256 = smul.u32 3, %s19
        $region54: #{_lambda_.27} parent=15 // pred_fallthru
          _
      $region16: #{_lambda_.27} parent=5 // pred_fallthru
        _
      %p257 = scmp.le.s32.totalorder 1, %s10
      %p258 = scmp.lt.s32.totalorder %s10, 4
      %p259 = pnand %p257, %p258
      %p260 = pneg %p259
      // Predicated region
      $region55: #{_lambda_.27} parent=5 // pred_check
        _
      $region56: #{_lambda_.27} parent=5 // pred_check_branch
        %262 = sbr.rel (%p259) target = $region58
      $region57: #{_lambda_.27} parent=5 // pred_region
        %s263 = ssub.s32 %s10, 1
        %s264 = sand.u32 %s44, 1
        %s265 = sand.u32 %s44, 1
        %s266 = smul.addr %s265, 24
        %s267 = scalar_lea.vmem [#allocation3], %s266
        // Predicated region
        $region59: #{_lambda_.27} parent=57 // pred_check
          %p268 = pneg %p57
        $region60: #{_lambda_.27} parent=57 // pred_check_branch
          %270 = sbr.rel (%p268) target = $region62
        $region61: #{_lambda_.27} parent=57 // pred_region
          _
        $region62: #{_lambda_.27} parent=57 // pred_fallthru
          _
        %s271 = sand.u32 %s44, 1
        %s272 = sand.u32 %s44, 1
        %s273 = smul.addr %s272, 24
        %s274 = scalar_lea.vmem [#allocation3], %s273
        %p275 = pneg %p57
        %p276 = pneg %p54
        %s277 = smul.u32 48, %s22
        %p278 = scmp.lt.s32.totalorder %s277, 143
        %s279 = scalar_select %p278, %s277, 143
        %p280 = scmp.lt.s32.totalorder %s21, 0
        %s281 = scalar_select %p280, %s21, 0
        %s282 = sadd.s32 %s281, %s279
        %s283 = smul.addr %s282, 4
        %s284 = scalar_lea.vmem %s1, %s283
        %p285 = pneg %p85
        %p286 = pneg %p82
        %s287 = smul.u32 3, %s22
        %p288 = scmp.lt.s32.totalorder %s287, 8
        %s289 = scalar_select %p288, %s287, 8
        %s290 = scalar_lea.vmem %s2, %s289
        %p291 = pneg %p111
        %p292 = pneg %p108
        %s293 = smul.u32 3, %s22
        %p294 = scmp.lt.s32.totalorder %s293, 8
        %s295 = scalar_select %p294, %s293, 8
        %s296 = scalar_lea.vmem %s3, %s295
        %p297 = pneg %p137
        %p298 = pneg %p134
        %p299 = pneg %p165
        %p300 = pneg %p162
        %s301 = smul.u32 2, %s20
        %p302 = scmp.lt.s32.totalorder %s301, 1
        %s303 = scalar_select %p302, %s301, 1
        %p304 = scmp.lt.s32.totalorder %s21, 0
        %s305 = scalar_select %p304, %s21, 0
        %s306 = sadd.s32 %s305, %s303
        %s307 = smul.addr %s306, 4
        %s308 = scalar_lea.vmem %s4, %s307
        %s309 = smul.u32 2, %s20
        %s310 = smul.u32 3, %s22
        %s311 = smul.u32 48, %s22
        %p312 = scmp.lt.s32.totalorder %s311, 143
        %s313 = scalar_select %p312, %s311, 143
        %p314 = scmp.lt.s32.totalorder %s21, 0
        %s315 = scalar_select %p314, %s21, 0
        %s316 = sadd.s32 %s315, %s313
        %s317 = smul.addr %s316, 4
        %s318 = scalar_lea.vmem %s1, %s317
        %s319 = smul.u32 48, %s22
        %s320 = smul.u32 3, %s22
        %p321 = scmp.lt.s32.totalorder %s320, 8
        %s322 = scalar_select %p321, %s320, 8
        %s323 = scalar_lea.vmem %s2, %s322
        %s324 = smul.u32 3, %s22
        %s325 = smul.u32 3, %s22
        %p326 = scmp.lt.s32.totalorder %s325, 8
        %s327 = scalar_select %p326, %s325, 8
        %s328 = scalar_lea.vmem %s3, %s327
        %s329 = smul.u32 3, %s22
        %s330 = smul.u32 2, %s20
        %p331 = scmp.lt.s32.totalorder %s330, 1
        %s332 = scalar_select %p331, %s330, 1
        %p333 = scmp.lt.s32.totalorder %s21, 0
        %s334 = scalar_select %p333, %s21, 0
        %s335 = sadd.s32 %s334, %s332
        %s336 = smul.addr %s335, 4
        %s337 = scalar_lea.vmem %s4, %s336
        %s338 = smul.u32 2, %s20
        %v340 = vld [vmem:[%s267] sm:$0xff]
        %v341 = vld [vmem:[%s267 + $0x8] sm:$0xf]
        %v342 = vld [vmem:[%s267 + $0xc] sm:$0xff]
        %v343 = vld [vmem:[%s267 + $0x14] sm:$0xf]
        %v344 = vunpack.c.l.bf16 %v340
        %v345 = vunpack.c.h.bf16 %v340
        %v346 = vunpack.c.l.bf16 %v341
        %v347 = vunpack.c.l.bf16 %v342
        %v348 = vunpack.c.h.bf16 %v342
        %v349 = vunpack.c.l.bf16 %v343
        %v350 = vld [vmem:[%s323] sm:$0x7]
        %v352 = vlaneseq
        %v353 = vshrl.u32 %v352, 7
        %v354 = vsub.s32 0, %v353
        %v355 = vrot.slane %v350, %v354
        %v356 = vlaneseq
        %v357 = vshrl.u32 %v356, 7
        %v358 = vsub.s32 1, %v357
        %v359 = vrot.slane %v350, %v358
        %v360 = vlaneseq
        %v361 = vshrl.u32 %v360, 7
        %v362 = vsub.s32 2, %v361
        %v363 = vrot.slane %v350, %v362
        %v367 = vmul.f32 %v344, %v355
        %v368 = vmul.f32 %v345, %v359
        %v369 = vmul.f32 %v346, %v363
        %v370 = vmul.f32 %v347, %v355
        %v371 = vmul.f32 %v348, %v359
        %v372 = vmul.f32 %v349, %v363
        %v373 = vld [vmem:[%s328] sm:$0x7]
        %v375 = vlaneseq
        %v376 = vshrl.u32 %v375, 7
        %v377 = vsub.s32 0, %v376
        %v378 = vrot.slane %v373, %v377
        %v379 = vlaneseq
        %v380 = vshrl.u32 %v379, 7
        %v381 = vsub.s32 1, %v380
        %v382 = vrot.slane %v373, %v381
        %v383 = vlaneseq
        %v384 = vshrl.u32 %v383, 7
        %v385 = vsub.s32 2, %v384
        %v386 = vrot.slane %v373, %v385
        %v390 = vadd.f32 %v367, %v378
        %v391 = vadd.f32 %v368, %v382
        %v392 = vadd.f32 %v369, %v386
        %v393 = vadd.f32 %v370, %v378
        %v394 = vadd.f32 %v371, %v382
        %v395 = vadd.f32 %v372, %v386
        %v396 = vmax.f32 %v390, 0.0
        %v397 = vmax.f32 %v391, 0.0
        %v398 = vmax.f32 %v392, 0.0
        %v399 = vmax.f32 %v393, 0.0
        %v400 = vmax.f32 %v394, 0.0
        %v401 = vmax.f32 %v395, 0.0
        %v402 = vpack.c.bf16 %v399, %v396
        %v403 = vpack.c.bf16 %v400, %v397
        %v404 = vpack.c.bf16 %v401, %v398
        %v405 = vld [vmem:[%s318] sm:$0xf]
        %v406 = vld [vmem:[%s318 + $0x4] sm:$0xf]
        %v407 = vld [vmem:[%s318 + $0x8] sm:$0xf]
        %v408 = vld [vmem:[%s318 + $0xc] sm:$0xf]
        %v409 = vld [vmem:[%s318 + $0x10] sm:$0xf]
        %v410 = vld [vmem:[%s318 + $0x14] sm:$0xf]
        %v411 = vld [vmem:[%s318 + $0x18] sm:$0xf]
        %v412 = vld [vmem:[%s318 + $0x1c] sm:$0xf]
        %v413 = vld [vmem:[%s318 + $0x20] sm:$0xf]
        %v414 = vld [vmem:[%s318 + $0x24] sm:$0xf]
        %v415 = vld [vmem:[%s318 + $0x28] sm:$0xf]
        %v416 = vld [vmem:[%s318 + $0x2c] sm:$0xf]
        %v417 = vld [vmem:[%s318 + $0x30] sm:$0xf]
        %v418 = vld [vmem:[%s318 + $0x34] sm:$0xf]
        %v419 = vld [vmem:[%s318 + $0x38] sm:$0xf]
        %v420 = vld [vmem:[%s318 + $0x3c] sm:$0xf]
        %v421 = vld [vmem:[%s318 + $0x40] sm:$0xf]
        %v422 = vld [vmem:[%s318 + $0x44] sm:$0xf]
        %v423 = vld [vmem:[%s318 + $0x48] sm:$0xf]
        %v424 = vld [vmem:[%s318 + $0x4c] sm:$0xf]
        %v425 = vld [vmem:[%s318 + $0x50] sm:$0xf]
        %v426 = vld [vmem:[%s318 + $0x54] sm:$0xf]
        %v427 = vld [vmem:[%s318 + $0x58] sm:$0xf]
        %v428 = vld [vmem:[%s318 + $0x5c] sm:$0xf]
        %v429 = vld [vmem:[%s318 + $0x60] sm:$0xf]
        %v430 = vld [vmem:[%s318 + $0x64] sm:$0xf]
        %v431 = vld [vmem:[%s318 + $0x68] sm:$0xf]
        %v432 = vld [vmem:[%s318 + $0x6c] sm:$0xf]
        %v433 = vld [vmem:[%s318 + $0x70] sm:$0xf]
        %v434 = vld [vmem:[%s318 + $0x74] sm:$0xf]
        %v435 = vld [vmem:[%s318 + $0x78] sm:$0xf]
        %v436 = vld [vmem:[%s318 + $0x7c] sm:$0xf]
        %v437 = vld [vmem:[%s318 + $0x80] sm:$0xf]
        %v438 = vld [vmem:[%s318 + $0x84] sm:$0xf]
        %v439 = vld [vmem:[%s318 + $0x88] sm:$0xf]
        %v440 = vld [vmem:[%s318 + $0x8c] sm:$0xf]
        %v441 = vld [vmem:[%s318 + $0x90] sm:$0xf]
        %v442 = vld [vmem:[%s318 + $0x94] sm:$0xf]
        %v443 = vld [vmem:[%s318 + $0x98] sm:$0xf]
        %v444 = vld [vmem:[%s318 + $0x9c] sm:$0xf]
        %v445 = vld [vmem:[%s318 + $0xa0] sm:$0xf]
        %v446 = vld [vmem:[%s318 + $0xa4] sm:$0xf]
        %v447 = vld [vmem:[%s318 + $0xa8] sm:$0xf]
        %v448 = vld [vmem:[%s318 + $0xac] sm:$0xf]
        %v449 = vld [vmem:[%s318 + $0xb0] sm:$0xf]
        %v450 = vld [vmem:[%s318 + $0xb4] sm:$0xf]
        %v451 = vld [vmem:[%s318 + $0xb8] sm:$0xf]
        %v452 = vld [vmem:[%s318 + $0xbc] sm:$0xf]
        %v501 = vunpack.c.l.b16 %v405
        %v502 = vunpack.c.l.b16 %v406
        %v503 = vunpack.c.l.b16 %v407
        %v504 = vunpack.c.l.b16 %v408
        %v505 = vunpack.c.l.b16 %v409
        %v506 = vunpack.c.l.b16 %v410
        %v507 = vunpack.c.l.b16 %v411
        %v508 = vunpack.c.l.b16 %v412
        %v509 = vunpack.c.l.b16 %v413
        %v510 = vunpack.c.l.b16 %v414
        %v511 = vunpack.c.l.b16 %v415
        %v512 = vunpack.c.l.b16 %v416
        %v513 = vunpack.c.l.b16 %v417
        %v514 = vunpack.c.l.b16 %v418
        %v515 = vunpack.c.l.b16 %v419
        %v516 = vunpack.c.l.b16 %v420
        %v517 = vunpack.c.l.b16 %v421
        %v518 = vunpack.c.l.b16 %v422
        %v519 = vunpack.c.l.b16 %v423
        %v520 = vunpack.c.l.b16 %v424
        %v521 = vunpack.c.l.b16 %v425
        %v522 = vunpack.c.l.b16 %v426
        %v523 = vunpack.c.l.b16 %v427
        %v524 = vunpack.c.l.b16 %v428
        %v525 = vunpack.c.l.b16 %v429
        %v526 = vunpack.c.l.b16 %v430
        %v527 = vunpack.c.l.b16 %v431
        %v528 = vunpack.c.l.b16 %v432
        %v529 = vunpack.c.l.b16 %v433
        %v530 = vunpack.c.l.b16 %v434
        %v531 = vunpack.c.l.b16 %v435
        %v532 = vunpack.c.l.b16 %v436
        %v533 = vunpack.c.l.b16 %v437
        %v534 = vunpack.c.l.b16 %v438
        %v535 = vunpack.c.l.b16 %v439
        %v536 = vunpack.c.l.b16 %v440
        %v537 = vunpack.c.l.b16 %v441
        %v538 = vunpack.c.l.b16 %v442
        %v539 = vunpack.c.l.b16 %v443
        %v540 = vunpack.c.l.b16 %v444
        %v541 = vunpack.c.l.b16 %v445
        %v542 = vunpack.c.l.b16 %v446
        %v543 = vunpack.c.l.b16 %v447
        %v544 = vunpack.c.l.b16 %v448
        %v545 = vunpack.c.l.b16 %v449
        %v546 = vunpack.c.l.b16 %v450
        %v547 = vunpack.c.l.b16 %v451
        %v548 = vunpack.c.l.b16 %v452
        %v549 = vpack.c.b16 %v502, %v501
        %v550 = vpack.c.b16 %v504, %v503
        %v551 = vpack.c.b16 %v506, %v505
        %v552 = vpack.c.b16 %v508, %v507
        %v553 = vpack.c.b16 %v510, %v509
        %v554 = vpack.c.b16 %v512, %v511
        %v555 = vpack.c.b16 %v514, %v513
        %v556 = vpack.c.b16 %v516, %v515
        %v557 = vpack.c.b16 %v518, %v517
        %v558 = vpack.c.b16 %v520, %v519
        %v559 = vpack.c.b16 %v522, %v521
        %v560 = vpack.c.b16 %v524, %v523
        %v561 = vpack.c.b16 %v526, %v525
        %v562 = vpack.c.b16 %v528, %v527
        %v563 = vpack.c.b16 %v530, %v529
        %v564 = vpack.c.b16 %v532, %v531
        %v565 = vpack.c.b16 %v534, %v533
        %v566 = vpack.c.b16 %v536, %v535
        %v567 = vpack.c.b16 %v538, %v537
        %v568 = vpack.c.b16 %v540, %v539
        %v569 = vpack.c.b16 %v542, %v541
        %v570 = vpack.c.b16 %v544, %v543
        %v571 = vpack.c.b16 %v546, %v545
        %v572 = vpack.c.b16 %v548, %v547
        %597 = vmatprep.subr.bf16.mxu0 0
        %598 = vmatpush1.bf16.msra.mxu0 %v549
        %599 = vmatprep.subr.bf16.mxu0 0
        %600 = vmatpush1.bf16.msra.mxu0 %v550
        %601 = vmatprep.subr.bf16.mxu0 0
        %602 = vmatpush1.bf16.msra.mxu0 %v551
        %603 = vmatprep.subr.bf16.mxu0 0
        %604 = vmatpush1.bf16.msra.mxu0 %v552
        %605 = vmatprep.subr.bf16.mxu0 0
        %606 = vmatpush1.bf16.msra.mxu0 %v553
        %607 = vmatprep.subr.bf16.mxu0 0
        %608 = vmatpush1.bf16.msra.mxu0 %v554
        %609 = vmatprep.subr.bf16.mxu0 0
        %610 = vmatpush1.bf16.msra.mxu0 %v555
        %611 = vmatprep.subr.bf16.mxu0 0
        %612 = vmatpush1.bf16.msra.mxu0 %v556
        %613 = vmatprep.subr.bf16.mxu0 0
        %614 = vmatpush1.bf16.msra.mxu0 %v557
        %615 = vmatprep.subr.bf16.mxu0 0
        %616 = vmatpush1.bf16.msra.mxu0 %v558
        %617 = vmatprep.subr.bf16.mxu0 0
        %618 = vmatpush1.bf16.msra.mxu0 %v559
        %619 = vmatprep.subr.bf16.mxu0 0
        %620 = vmatpush1.bf16.msra.mxu0 %v560
        %621 = vmatprep.subr.bf16.mxu0 0
        %622 = vmatpush1.bf16.msra.mxu0 %v561
        %623 = vmatprep.subr.bf16.mxu0 0
        %624 = vmatpush1.bf16.msra.mxu0 %v562
        %625 = vmatprep.subr.bf16.mxu0 0
        %626 = vmatpush1.bf16.msra.mxu0 %v563
        %627 = vmatprep.subr.bf16.mxu0 0
        %628 = vmatpush1.bf16.msra.mxu0 %v564
        %629 = vmatprep.mubr.bf16.mxu0 %v403
        %630 = vmatmul.mubr.bf16.gmra.mrb[0].mxu0 %v402
        %v631 = vpop.f32.mrb[0].mxu0
        %v632 = vadd.f32 0.0, %v631
        %v633 = vpop.f32.mrb[0].mxu0
        %v634 = vpop.f32.mrb[0].mxu0
        %v635 = vadd.f32 0.0, %v634
        %v636 = vpop.f32.mrb[0].mxu0
        %637 = vdwg.mxu0
        %638 = vmatprep.subr.bf16.mxu0 0
        %639 = vmatpush1.bf16.msra.mxu0 %v565
        %640 = vmatprep.subr.bf16.mxu0 0
        %641 = vmatpush1.bf16.msra.mxu0 %v566
        %642 = vmatprep.subr.bf16.mxu0 0
        %643 = vmatpush1.bf16.msra.mxu0 %v567
        %644 = vmatprep.subr.bf16.mxu0 0
        %645 = vmatpush1.bf16.msra.mxu0 %v568
        %646 = vmatprep.subr.bf16.mxu0 0
        %647 = vmatpush1.bf16.msra.mxu0 %v569
        %648 = vmatprep.subr.bf16.mxu0 0
        %649 = vmatpush1.bf16.msra.mxu0 %v570
        %650 = vmatprep.subr.bf16.mxu0 0
        %651 = vmatpush1.bf16.msra.mxu0 %v571
        %652 = vmatprep.subr.bf16.mxu0 0
        %653 = vmatpush1.bf16.msra.mxu0 %v572
        %654 = vmatprep.subr.bf16.mxu0 0
        %655 = vmatpush1.bf16.msra.mxu0 0
        %656 = vmatprep.subr.bf16.mxu0 0
        %657 = vmatpush1.bf16.msra.mxu0 0
        %658 = vmatprep.subr.bf16.mxu0 0
        %659 = vmatpush1.bf16.msra.mxu0 0
        %660 = vmatprep.subr.bf16.mxu0 0
        %661 = vmatpush1.bf16.msra.mxu0 0
        %662 = vmatprep.subr.bf16.mxu0 0
        %663 = vmatpush1.bf16.msra.mxu0 0
        %664 = vmatprep.subr.bf16.mxu0 0
        %665 = vmatpush1.bf16.msra.mxu0 0
        %666 = vmatprep.subr.bf16.mxu0 0
        %667 = vmatpush1.bf16.msra.mxu0 0
        %668 = vmatprep.subr.bf16.mxu0 0
        %669 = vmatpush1.bf16.msra.mxu0 0
        %670 = vmatprep.mubr.bf16.mxu0 0
        %671 = vmatmul.mubr.bf16.gmra.mrb[0].mxu0 %v404
        %v672 = vpop.f32.mrb[0].mxu0
        %v673 = vadd.f32 %v632, %v672
        %v674 = vpop.f32.mrb[0].mxu0
        %v675 = vpop.f32.mrb[0].mxu0
        %v676 = vadd.f32 %v635, %v675
        %v677 = vpop.f32.mrb[0].mxu0
        %678 = vdwg.mxu0
        %p679 = scmp.eq.s32.totalorder %s22, 0
        // Predicated region
        $region63: #{_lambda_.27} parent=57 // pred_check
          %p680 = pneg %p679
        $region64: #{_lambda_.27} parent=57 // pred_check_branch
          %682 = sbr.rel (%p680) target = $region66
        $region65: #{_lambda_.27} parent=57 // pred_region
          %683 = vst [vmem:[#allocation2] sm:$0xff] %v673
          %684 = vst [vmem:[#allocation2 + $0x8] sm:$0xff] %v676
        $region66: #{_lambda_.27} parent=57 // pred_fallthru
          _
        %p685 = scmp.gt.s32.totalorder %s22, 0
        // Predicated region
        $region67: #{_lambda_.27} parent=57 // pred_check
          %p686 = pneg %p685
        $region68: #{_lambda_.27} parent=57 // pred_check_branch
          %688 = sbr.rel (%p686) target = $region70
        $region69: #{_lambda_.27} parent=57 // pred_region
          %v689 = vld [vmem:[#allocation2] sm:$0xff]
          %v690 = vld [vmem:[#allocation2 + $0x8] sm:$0xff]
          %v691 = vadd.f32 %v689, %v673
          %v692 = vadd.f32 %v690, %v676
          %693 = vst [vmem:[#allocation2] sm:$0xff] %v691
          %694 = vst [vmem:[#allocation2 + $0x8] sm:$0xff] %v692
        $region70: #{_lambda_.27} parent=57 // pred_fallthru
          _
        %p695 = scmp.eq.s32.totalorder %s22, 2
        // Predicated region
        $region71: #{_lambda_.27} parent=57 // pred_check
          %p696 = pneg %p695
        $region72: #{_lambda_.27} parent=57 // pred_check_branch
          %698 = sbr.rel (%p696) target = $region74
        $region73: #{_lambda_.27} parent=57 // pred_region
          %v699 = vld [vmem:[#allocation2] sm:$0xff]
          %v700 = vld [vmem:[#allocation2 + $0x8] sm:$0xff]
          %v701 = vpack.c.bf16 %v700, %v699
          %v703 = vunpack.c.l.b16 %v701
          %v704 = vunpack.c.h.b16 %v701
          %v705 = vpack.c.b16 %v703, %v703
          %v706 = vpack.c.b16 %v704, %v704
          %709 = vst [vmem:[%s337] sm:$0xf] %v705
          %710 = vst [vmem:[%s337 + $0x4] sm:$0xf] %v706
        $region74: #{_lambda_.27} parent=57 // pred_fallthru
          _
        %s711 = smul.u32 2, %s20
        %p712 = scmp.lt.s32.totalorder %s711, 1
        %s713 = scalar_select %p712, %s711, 1
        %p714 = scmp.lt.s32.totalorder %s21, 0
        %s715 = scalar_select %p714, %s21, 0
        %s716 = sadd.s32 %s715, %s713
        %s717 = smul.addr %s716, 4
        %s718 = scalar_lea.vmem %s4, %s717
        // Predicated region
        $region75: #{_lambda_.27} parent=57 // pred_check
          %p719 = pneg %p162
        $region76: #{_lambda_.27} parent=57 // pred_check_branch
          %721 = sbr.rel (%p719) target = $region78
        $region77: #{_lambda_.27} parent=57 // pred_region
          %s722 = smul.u32 2, %s20
        $region78: #{_lambda_.27} parent=57 // pred_fallthru
          _
        // Predicated region
        $region79: #{_lambda_.27} parent=57 // pred_check
          %p723 = pneg %p162
        $region80: #{_lambda_.27} parent=57 // pred_check_branch
          %725 = sbr.rel (%p723) target = $region82
        $region81: #{_lambda_.27} parent=57 // pred_region
          %s726 = smul.u32 2, %s20
          %p727 = scmp.lt.s32.totalorder %s726, 1
          %s728 = scalar_select %p727, %s726, 1
          %p729 = scmp.lt.s32.totalorder %s21, 0
          %s730 = scalar_select %p729, %s21, 0
          %s731 = sadd.s32 %s730, %s728
          %s732 = smul.addr %s731, 4
          %s733 = scalar_lea.vmem %s4, %s732
        $region82: #{_lambda_.27} parent=57 // pred_fallthru
          _
      $region58: #{_lambda_.27} parent=5 // pred_fallthru
        _
      %p734 = scmp.le.s32.totalorder 2, %s10
      // Predicated region
      $region83: #{_lambda_.27} parent=5 // pred_check
        %p735 = pneg %p734
      $region84: #{_lambda_.27} parent=5 // pred_check_branch
        %737 = sbr.rel (%p735) target = $region86
      $region85: #{_lambda_.27} parent=5 // pred_region
        %s738 = ssub.s32 %s10, 2
      $region86: #{_lambda_.27} parent=5 // pred_fallthru
        _
    $region6: #{_lambda_.27} parent=1 // loop_footer
      %s14 = sadd.s32 1, %s10
    $region7: #{_lambda_.27} parent=1 // loop_footer_branch
      %9 = sbr.rel target = $region3
    $region8: #{_lambda_.27} parent=1 // loop_exit
      _

// kernel: tile.117
$region0: #{tile.117}
  #allocation0 [shape = 's32[1]{0}', space=sflag, size = 0x4, scoped, tag = 'scoped memory for tile.117']
  %s0 = inlined_call_operand.vmem [shape: f32[64], index: 0, kind: input, shape index: {}]
  %s1 = inlined_call_operand.vmem [shape: f32[9,64], index: 1, kind: output, shape index: {}]
  // Predicated region
  $region2: #{tile.117} parent=0 // pred_check
    _
  $region3: #{tile.117} parent=0 // pred_check_branch
    %3 = sbr.rel (0) target = $region5
  $region4: #{tile.117} parent=0 // pred_region
    _
  $region5: #{tile.117} parent=0 // pred_fallthru
    _
  %v4 = vld [vmem:[%s0] ss:$0 sm:$0xff]
  %5 = vst [vmem:[%s1] sm:$0xff] %v4
  %s6 = scalar_lea.vmem %s1, 8
  %7 = vst [vmem:[%s6] sm:$0xff] %v4

// kernel: tile.119
$region0: #{tile.119}
  %s0 = inlined_call_operand.vmem [shape: f32[9,64], index: 0, kind: input, shape index: {}]
  %s1 = inlined_call_operand.vmem [shape: f32[1,576], index: 1, kind: output, shape index: {}]
  $region1: #{tile.119} parent=0
    #allocation0 [shape = 'u8[20480]{0}', space=vmem, size = 0x5000, scoped, tag = 'scoped mem for output reshape']
    %v2 = vld [vmem:[%s0] ss:$2 sm:$0x1f]
    %vm3 = vcmask 523264
    %4 = vst.msk [vmem:[#allocation0] ss:$8 sm:$0xf] %vm3, %v2
    %s5 = scalar_lea.vmem [#allocation0], 28
    %6 = vst.msk [vmem:[%s5] sm:$0x10] %vm3, %v2
    %s7 = scalar_lea.vmem %s0, 1
    %v8 = vld [vmem:[%s7] ss:$2 sm:$0xf]
    %9 = vrot.lane.b32.xlu0 %v8, 64
    %v10 = vpop.permute.xlu0 %9
    %vm11 = vcmask 1048064
    %12 = vst.msk [vmem:[#allocation0] ss:$8 sm:$0xf] %vm11, %v10
    %s14 = sshllo.u32 0, 1
    %v16 = vld [vmem:[#allocation0] sm:%s14]
    %s17 = sshllo.u32 0, 1
    %18 = vst [vmem:[%s1] sm:%s17] %v16
    %s19 = scalar_lea.vmem [#allocation0], 8
    %v20 = vld [vmem:[%s19] sm:%s14]
    %s21 = sshllo.u32 0, 1
    %s22 = scalar_lea.vmem %s1, 1
    %23 = vst [vmem:[%s22] sm:%s21] %v20
    %s24 = scalar_lea.vmem [#allocation0], 16
    %v25 = vld [vmem:[%s24] sm:%s14]
    %s26 = sshllo.u32 0, 1
    %s27 = smul.addr 1, 2
    %s28 = scalar_lea.vmem %s1, %s27
    %29 = vst [vmem:[%s28] sm:%s26] %v25
    %s30 = scalar_lea.vmem [#allocation0], 24
    %v31 = vld [vmem:[%s30] sm:%s14]
    %s32 = sshllo.u32 0, 1
    %s33 = smul.addr 1, 3
    %s34 = scalar_lea.vmem %s1, %s33
    %35 = vst [vmem:[%s34] sm:%s32] %v31
    %s36 = scalar_lea.vmem [#allocation0], 32
    %v37 = vld [vmem:[%s36] sm:%s14]
    %s38 = sshllo.u32 0, 1
    %s39 = smul.addr 1, 4
    %s40 = scalar_lea.vmem %s1, %s39
    %41 = vst [vmem:[%s40] sm:%s38] %v37

// kernel: tile.123
$region0: #{tile.123}
  #allocation0 [shape = 's32[1]{0}', space=sflag, size = 0x4, scoped, tag = 'scoped memory for tile.123']
  %s0 = inlined_call_operand.vmem [shape: f32[32], index: 0, kind: input, shape index: {}]
  %s1 = inlined_call_operand.vmem [shape: f32[9,32], index: 1, kind: output, shape index: {}]
  // Predicated region
  $region2: #{tile.123} parent=0 // pred_check
    _
  $region3: #{tile.123} parent=0 // pred_check_branch
    %3 = sbr.rel (0) target = $region5
  $region4: #{tile.123} parent=0 // pred_region
    _
  $region5: #{tile.123} parent=0 // pred_fallthru
    _
  %v4 = vld [vmem:[%s0] ss:$0 sm:$0xff]
  %5 = vst [vmem:[%s1] sm:$0xff] %v4
  %s6 = scalar_lea.vmem %s1, 8
  %7 = vst [vmem:[%s6] sm:$0xff] %v4

// kernel: tile.128
$region0: #{tile.128}
  %s0 = inlined_call_operand.vmem [shape: f32[9,32], index: 0, kind: input, shape index: {}]
  %s1 = inlined_call_operand.vmem [shape: f32[1,288], index: 1, kind: output, shape index: {}]
  $region1: #{tile.128} parent=0
    #allocation0 [shape = 'u8[12288]{0}', space=vmem, size = 0x3000, scoped, tag = 'scoped mem for output reshape']
    %v2 = vld [vmem:[%s0] ss:$4 sm:$0x7]
    %vm3 = vcmask 261120
    %4 = vst.msk [vmem:[#allocation0] ss:$8 sm:$0x7] %vm3, %v2
    %s5 = scalar_lea.vmem %s0, 3
    %s6 = smov 3
    %v7 = vld [vmem:[%s5] ss:$4 sm:%s6]
    %8 = vrot.lane.b32.xlu0 %v7, 96
    %v9 = vpop.permute.xlu0 %8
    %vm10 = vcmask 1048320
    %11 = vst.msk [vmem:[#allocation0] ss:$8 sm:$0x3] %vm10, %v9
    %s12 = scalar_lea.vmem %s0, 2
    %s13 = smov 3
    %v14 = vld [vmem:[%s12] ss:$4 sm:%s13]
    %15 = vrot.lane.b32.xlu0 %v14, 64
    %v16 = vpop.permute.xlu0 %15
    %vm17 = vcmask 785920
    %18 = vst.msk [vmem:[#allocation0] ss:$8 sm:$0x3] %vm17, %v16
    %s19 = scalar_lea.vmem %s0, 1
    %s20 = smov 3
    %v21 = vld [vmem:[%s19] ss:$4 sm:%s20]
    %22 = vrot.lane.b32.xlu0 %v21, 32
    %v23 = vpop.permute.xlu0 %22
    %vm24 = vcmask 523520
    %25 = vst.msk [vmem:[#allocation0] ss:$8 sm:$0x3] %vm24, %v23
    %s27 = sshllo.u32 0, 1
    %v29 = vld [vmem:[#allocation0] sm:%s27]
    %s30 = sshllo.u32 0, 1
    %31 = vst [vmem:[%s1] sm:%s30] %v29
    %s32 = scalar_lea.vmem [#allocation0], 8
    %v33 = vld [vmem:[%s32] sm:%s27]
    %s34 = sshllo.u32 0, 1
    %s35 = scalar_lea.vmem %s1, 1
    %36 = vst [vmem:[%s35] sm:%s34] %v33
    %s37 = scalar_lea.vmem [#allocation0], 16
    %v38 = vld [vmem:[%s37] sm:%s27]
    %s39 = sshllo.u32 0, 1
    %s40 = smul.addr 1, 2
    %s41 = scalar_lea.vmem %s1, %s40
    %42 = vst [vmem:[%s41] sm:%s39] %v38

// kernel: _lambda_.29
$region0: #{_lambda_.29}
  #allocation0 [shape = 'u32[]', space=smem, size = 0x4, offset = 0x4, fixed_abs, tag = 'smem constant byte address 0x4 - core index']
  #allocation1 [shape = 'u32[144,128]{1,0:T(1,128)}', space=vmem, size = 0x12000, scoped, tag = 'internal scratch']
  #allocation2 [shape = 'f32[32,128]{1,0:T(8,128)}', space=vmem, size = 0x4000, scoped, tag = 'scratch operand']
  %s0 = inlined_call_operand.vmem [shape: bf16[32,640], index: 0, kind: input, shape index: {}]
  %s1 = inlined_call_operand.vmem [shape: bf16[640,128], index: 1, kind: input, shape index: {}]
  %s2 = inlined_call_operand.vmem [shape: f32[1,640], index: 2, kind: input, shape index: {}]
  %s3 = inlined_call_operand.vmem [shape: f32[1,640], index: 3, kind: input, shape index: {}]
  %s4 = inlined_call_operand.vmem [shape: bf16[32,128], index: 4, kind: output, shape index: {}]
  %s5 = sld [smem:[#allocation0]]
  $region38: #{_lambda_.29} parent=0
    _
  %s7 = ssub.s32 1, %s5
  %s8 = scalar_select 0, %s7, %s5
  // Predicated region
  $region2: #{_lambda_.29} parent=0 // pred_check
    _
  $region3: #{_lambda_.29} parent=0 // pred_check_branch
    %10 = sbr.rel (0) target = $region5
  $region4: #{_lambda_.29} parent=0 // pred_region
    _
  $region5: #{_lambda_.29} parent=0 // pred_fallthru
    _
  // Predicated region
  $region6: #{_lambda_.29} parent=0 // pred_check
    _
  $region7: #{_lambda_.29} parent=0 // pred_check_branch
    %12 = sbr.rel (0) target = $region9
  $region8: #{_lambda_.29} parent=0 // pred_region
    _
  $region9: #{_lambda_.29} parent=0 // pred_fallthru
    _
  // Predicated region
  $region10: #{_lambda_.29} parent=0 // pred_check
    _
  $region11: #{_lambda_.29} parent=0 // pred_check_branch
    %14 = sbr.rel (0) target = $region13
  $region12: #{_lambda_.29} parent=0 // pred_region
    _
  $region13: #{_lambda_.29} parent=0 // pred_fallthru
    _
  // Predicated region
  $region14: #{_lambda_.29} parent=0 // pred_check
    _
  $region15: #{_lambda_.29} parent=0 // pred_check_branch
    %16 = sbr.rel (0) target = $region17
  $region16: #{_lambda_.29} parent=0 // pred_region
    _
  $region17: #{_lambda_.29} parent=0 // pred_fallthru
    _
  %v18 = vld [vmem:[%s0] sm:$0xff]
  %v19 = vld [vmem:[%s0 + $0x8] sm:$0xff]
  %v20 = vld [vmem:[%s0 + $0x10] sm:$0xf]
  %v21 = vld [vmem:[%s0 + $0x14] sm:$0xff]
  %v22 = vld [vmem:[%s0 + $0x1c] sm:$0xff]
  %v23 = vld [vmem:[%s0 + $0x24] sm:$0xf]
  %v24 = vld [vmem:[%s0 + $0x28] sm:$0xff]
  %v25 = vld [vmem:[%s0 + $0x30] sm:$0xff]
  %v26 = vld [vmem:[%s0 + $0x38] sm:$0xf]
  %v27 = vld [vmem:[%s0 + $0x3c] sm:$0xff]
  %v28 = vld [vmem:[%s0 + $0x44] sm:$0xff]
  %v29 = vld [vmem:[%s0 + $0x4c] sm:$0xf]
  %v30 = vunpack.c.l.bf16 %v18
  %v31 = vunpack.c.h.bf16 %v18
  %v32 = vunpack.c.l.bf16 %v19
  %v33 = vunpack.c.h.bf16 %v19
  %v34 = vunpack.c.l.bf16 %v20
  %v35 = vunpack.c.l.bf16 %v21
  %v36 = vunpack.c.h.bf16 %v21
  %v37 = vunpack.c.l.bf16 %v22
  %v38 = vunpack.c.h.bf16 %v22
  %v39 = vunpack.c.l.bf16 %v23
  %v40 = vunpack.c.l.bf16 %v24
  %v41 = vunpack.c.h.bf16 %v24
  %v42 = vunpack.c.l.bf16 %v25
  %v43 = vunpack.c.h.bf16 %v25
  %v44 = vunpack.c.l.bf16 %v26
  %v45 = vunpack.c.l.bf16 %v27
  %v46 = vunpack.c.h.bf16 %v27
  %v47 = vunpack.c.l.bf16 %v28
  %v48 = vunpack.c.h.bf16 %v28
  %v49 = vunpack.c.l.bf16 %v29
  %v50 = vld [vmem:[%s2] sm:$0x1f]
  %v52 = vlaneseq
  %v53 = vshrl.u32 %v52, 7
  %v54 = vsub.s32 0, %v53
  %v55 = vrot.slane %v50, %v54
  %v56 = vlaneseq
  %v57 = vshrl.u32 %v56, 7
  %v58 = vsub.s32 1, %v57
  %v59 = vrot.slane %v50, %v58
  %v60 = vlaneseq
  %v61 = vshrl.u32 %v60, 7
  %v62 = vsub.s32 2, %v61
  %v63 = vrot.slane %v50, %v62
  %v64 = vlaneseq
  %v65 = vshrl.u32 %v64, 7
  %v66 = vsub.s32 3, %v65
  %v67 = vrot.slane %v50, %v66
  %v68 = vlaneseq
  %v69 = vshrl.u32 %v68, 7
  %v70 = vsub.s32 4, %v69
  %v71 = vrot.slane %v50, %v70
  %v77 = vmul.f32 %v30, %v55
  %v78 = vmul.f32 %v31, %v59
  %v79 = vmul.f32 %v32, %v63
  %v80 = vmul.f32 %v33, %v67
  %v81 = vmul.f32 %v34, %v71
  %v82 = vmul.f32 %v35, %v55
  %v83 = vmul.f32 %v36, %v59
  %v84 = vmul.f32 %v37, %v63
  %v85 = vmul.f32 %v38, %v67
  %v86 = vmul.f32 %v39, %v71
  %v87 = vmul.f32 %v40, %v55
  %v88 = vmul.f32 %v41, %v59
  %v89 = vmul.f32 %v42, %v63
  %v90 = vmul.f32 %v43, %v67
  %v91 = vmul.f32 %v44, %v71
  %v92 = vmul.f32 %v45, %v55
  %v93 = vmul.f32 %v46, %v59
  %v94 = vmul.f32 %v47, %v63
  %v95 = vmul.f32 %v48, %v67
  %v96 = vmul.f32 %v49, %v71
  %v97 = vld [vmem:[%s3] sm:$0x1f]
  %v99 = vlaneseq
  %v100 = vshrl.u32 %v99, 7
  %v101 = vsub.s32 0, %v100
  %v102 = vrot.slane %v97, %v101
  %v103 = vlaneseq
  %v104 = vshrl.u32 %v103, 7
  %v105 = vsub.s32 1, %v104
  %v106 = vrot.slane %v97, %v105
  %v107 = vlaneseq
  %v108 = vshrl.u32 %v107, 7
  %v109 = vsub.s32 2, %v108
  %v110 = vrot.slane %v97, %v109
  %v111 = vlaneseq
  %v112 = vshrl.u32 %v111, 7
  %v113 = vsub.s32 3, %v112
  %v114 = vrot.slane %v97, %v113
  %v115 = vlaneseq
  %v116 = vshrl.u32 %v115, 7
  %v117 = vsub.s32 4, %v116
  %v118 = vrot.slane %v97, %v117
  %v124 = vadd.f32 %v77, %v102
  %v125 = vadd.f32 %v78, %v106
  %v126 = vadd.f32 %v79, %v110
  %v127 = vadd.f32 %v80, %v114
  %v128 = vadd.f32 %v81, %v118
  %v129 = vadd.f32 %v82, %v102
  %v130 = vadd.f32 %v83, %v106
  %v131 = vadd.f32 %v84, %v110
  %v132 = vadd.f32 %v85, %v114
  %v133 = vadd.f32 %v86, %v118
  %v134 = vadd.f32 %v87, %v102
  %v135 = vadd.f32 %v88, %v106
  %v136 = vadd.f32 %v89, %v110
  %v137 = vadd.f32 %v90, %v114
  %v138 = vadd.f32 %v91, %v118
  %v139 = vadd.f32 %v92, %v102
  %v140 = vadd.f32 %v93, %v106
  %v141 = vadd.f32 %v94, %v110
  %v142 = vadd.f32 %v95, %v114
  %v143 = vadd.f32 %v96, %v118
  %v144 = vmax.f32 %v124, 0.0
  %v145 = vmax.f32 %v125, 0.0
  %v146 = vmax.f32 %v126, 0.0
  %v147 = vmax.f32 %v127, 0.0
  %v148 = vmax.f32 %v128, 0.0
  %v149 = vmax.f32 %v129, 0.0
  %v150 = vmax.f32 %v130, 0.0
  %v151 = vmax.f32 %v131, 0.0
  %v152 = vmax.f32 %v132, 0.0
  %v153 = vmax.f32 %v133, 0.0
  %v154 = vmax.f32 %v134, 0.0
  %v155 = vmax.f32 %v135, 0.0
  %v156 = vmax.f32 %v136, 0.0
  %v157 = vmax.f32 %v137, 0.0
  %v158 = vmax.f32 %v138, 0.0
  %v159 = vmax.f32 %v139, 0.0
  %v160 = vmax.f32 %v140, 0.0
  %v161 = vmax.f32 %v141, 0.0
  %v162 = vmax.f32 %v142, 0.0
  %v163 = vmax.f32 %v143, 0.0
  %v164 = vpack.c.bf16 %v149, %v144
  %v165 = vpack.c.bf16 %v150, %v145
  %v166 = vpack.c.bf16 %v151, %v146
  %v167 = vpack.c.bf16 %v152, %v147
  %v168 = vpack.c.bf16 %v153, %v148
  %v169 = vpack.c.bf16 %v159, %v154
  %v170 = vpack.c.bf16 %v160, %v155
  %v171 = vpack.c.bf16 %v161, %v156
  %v172 = vpack.c.bf16 %v162, %v157
  %v173 = vpack.c.bf16 %v163, %v158
  %v174 = vld [vmem:[%s1] sm:$0xf]
  %v175 = vld [vmem:[%s1 + $0x4] sm:$0xf]
  %v176 = vld [vmem:[%s1 + $0x8] sm:$0xf]
  %v177 = vld [vmem:[%s1 + $0xc] sm:$0xf]
  %v178 = vld [vmem:[%s1 + $0x10] sm:$0xf]
  %v179 = vld [vmem:[%s1 + $0x14] sm:$0xf]
  %v180 = vld [vmem:[%s1 + $0x18] sm:$0xf]
  %v181 = vld [vmem:[%s1 + $0x1c] sm:$0xf]
  %v182 = vld [vmem:[%s1 + $0x20] sm:$0xf]
  %v183 = vld [vmem:[%s1 + $0x24] sm:$0xf]
  %v184 = vld [vmem:[%s1 + $0x28] sm:$0xf]
  %v185 = vld [vmem:[%s1 + $0x2c] sm:$0xf]
  %v186 = vld [vmem:[%s1 + $0x30] sm:$0xf]
  %v187 = vld [vmem:[%s1 + $0x34] sm:$0xf]
  %v188 = vld [vmem:[%s1 + $0x38] sm:$0xf]
  %v189 = vld [vmem:[%s1 + $0x3c] sm:$0xf]
  %v190 = vld [vmem:[%s1 + $0x40] sm:$0xf]
  %v191 = vld [vmem:[%s1 + $0x44] sm:$0xf]
  %v192 = vld [vmem:[%s1 + $0x48] sm:$0xf]
  %v193 = vld [vmem:[%s1 + $0x4c] sm:$0xf]
  %v194 = vld [vmem:[%s1 + $0x50] sm:$0xf]
  %v195 = vld [vmem:[%s1 + $0x54] sm:$0xf]
  %v196 = vld [vmem:[%s1 + $0x58] sm:$0xf]
  %v197 = vld [vmem:[%s1 + $0x5c] sm:$0xf]
  %v198 = vld [vmem:[%s1 + $0x60] sm:$0xf]
  %v199 = vld [vmem:[%s1 + $0x64] sm:$0xf]
  %v200 = vld [vmem:[%s1 + $0x68] sm:$0xf]
  %v201 = vld [vmem:[%s1 + $0x6c] sm:$0xf]
  %v202 = vld [vmem:[%s1 + $0x70] sm:$0xf]
  %v203 = vld [vmem:[%s1 + $0x74] sm:$0xf]
  %v204 = vld [vmem:[%s1 + $0x78] sm:$0xf]
  %v205 = vld [vmem:[%s1 + $0x7c] sm:$0xf]
  %v206 = vld [vmem:[%s1 + $0x80] sm:$0xf]
  %v207 = vld [vmem:[%s1 + $0x84] sm:$0xf]
  %v208 = vld [vmem:[%s1 + $0x88] sm:$0xf]
  %v209 = vld [vmem:[%s1 + $0x8c] sm:$0xf]
  %v210 = vld [vmem:[%s1 + $0x90] sm:$0xf]
  %v211 = vld [vmem:[%s1 + $0x94] sm:$0xf]
  %v212 = vld [vmem:[%s1 + $0x98] sm:$0xf]
  %v213 = vld [vmem:[%s1 + $0x9c] sm:$0xf]
  %v214 = vld [vmem:[%s1 + $0xa0] sm:$0xf]
  %v215 = vld [vmem:[%s1 + $0xa4] sm:$0xf]
  %v216 = vld [vmem:[%s1 + $0xa8] sm:$0xf]
  %v217 = vld [vmem:[%s1 + $0xac] sm:$0xf]
  %v218 = vld [vmem:[%s1 + $0xb0] sm:$0xf]
  %v219 = vld [vmem:[%s1 + $0xb4] sm:$0xf]
  %v220 = vld [vmem:[%s1 + $0xb8] sm:$0xf]
  %v221 = vld [vmem:[%s1 + $0xbc] sm:$0xf]
  %v222 = vld [vmem:[%s1 + $0xc0] sm:$0xf]
  %v223 = vld [vmem:[%s1 + $0xc4] sm:$0xf]
  %v224 = vld [vmem:[%s1 + $0xc8] sm:$0xf]
  %v225 = vld [vmem:[%s1 + $0xcc] sm:$0xf]
  %v226 = vld [vmem:[%s1 + $0xd0] sm:$0xf]
  %v227 = vld [vmem:[%s1 + $0xd4] sm:$0xf]
  %v228 = vld [vmem:[%s1 + $0xd8] sm:$0xf]
  %v229 = vld [vmem:[%s1 + $0xdc] sm:$0xf]
  %v230 = vld [vmem:[%s1 + $0xe0] sm:$0xf]
  %v231 = vld [vmem:[%s1 + $0xe4] sm:$0xf]
  %v232 = vld [vmem:[%s1 + $0xe8] sm:$0xf]
  %v233 = vld [vmem:[%s1 + $0xec] sm:$0xf]
  %v234 = vld [vmem:[%s1 + $0xf0] sm:$0xf]
  %v235 = vld [vmem:[%s1 + $0xf4] sm:$0xf]
  %v236 = vld [vmem:[%s1 + $0xf8] sm:$0xf]
  %v237 = vld [vmem:[%s1 + $0xfc] sm:$0xf]
  %v238 = vld [vmem:[%s1 + $0x100] sm:$0xf]
  %v239 = vld [vmem:[%s1 + $0x104] sm:$0xf]
  %v240 = vld [vmem:[%s1 + $0x108] sm:$0xf]
  %v241 = vld [vmem:[%s1 + $0x10c] sm:$0xf]
  %v242 = vld [vmem:[%s1 + $0x110] sm:$0xf]
  %v243 = vld [vmem:[%s1 + $0x114] sm:$0xf]
  %v244 = vld [vmem:[%s1 + $0x118] sm:$0xf]
  %v245 = vld [vmem:[%s1 + $0x11c] sm:$0xf]
  %v246 = vld [vmem:[%s1 + $0x120] sm:$0xf]
  %v247 = vld [vmem:[%s1 + $0x124] sm:$0xf]
  %v248 = vld [vmem:[%s1 + $0x128] sm:$0xf]
  %v249 = vld [vmem:[%s1 + $0x12c] sm:$0xf]
  %v250 = vld [vmem:[%s1 + $0x130] sm:$0xf]
  %v251 = vld [vmem:[%s1 + $0x134] sm:$0xf]
  %v252 = vld [vmem:[%s1 + $0x138] sm:$0xf]
  %v253 = vld [vmem:[%s1 + $0x13c] sm:$0xf]
  %v334 = vunpack.c.l.b16 %v174
  %v335 = vunpack.c.l.b16 %v175
  %v336 = vunpack.c.l.b16 %v176
  %v337 = vunpack.c.l.b16 %v177
  %v338 = vunpack.c.l.b16 %v178
  %v339 = vunpack.c.l.b16 %v179
  %v340 = vunpack.c.l.b16 %v180
  %v341 = vunpack.c.l.b16 %v181
  %v342 = vunpack.c.l.b16 %v182
  %v343 = vunpack.c.l.b16 %v183
  %v344 = vunpack.c.l.b16 %v184
  %v345 = vunpack.c.l.b16 %v185
  %v346 = vunpack.c.l.b16 %v186
  %v347 = vunpack.c.l.b16 %v187
  %v348 = vunpack.c.l.b16 %v188
  %v349 = vunpack.c.l.b16 %v189
  %v350 = vunpack.c.l.b16 %v190
  %v351 = vunpack.c.l.b16 %v191
  %v352 = vunpack.c.l.b16 %v192
  %v353 = vunpack.c.l.b16 %v193
  %v354 = vunpack.c.l.b16 %v194
  %v355 = vunpack.c.l.b16 %v195
  %v356 = vunpack.c.l.b16 %v196
  %v357 = vunpack.c.l.b16 %v197
  %v358 = vunpack.c.l.b16 %v198
  %v359 = vunpack.c.l.b16 %v199
  %v360 = vunpack.c.l.b16 %v200
  %v361 = vunpack.c.l.b16 %v201
  %v362 = vunpack.c.l.b16 %v202
  %v363 = vunpack.c.l.b16 %v203
  %v364 = vunpack.c.l.b16 %v204
  %v365 = vunpack.c.l.b16 %v205
  %v366 = vunpack.c.l.b16 %v206
  %v367 = vunpack.c.l.b16 %v207
  %v368 = vunpack.c.l.b16 %v208
  %v369 = vunpack.c.l.b16 %v209
  %v370 = vunpack.c.l.b16 %v210
  %v371 = vunpack.c.l.b16 %v211
  %v372 = vunpack.c.l.b16 %v212
  %v373 = vunpack.c.l.b16 %v213
  %v374 = vunpack.c.l.b16 %v214
  %v375 = vunpack.c.l.b16 %v215
  %v376 = vunpack.c.l.b16 %v216
  %v377 = vunpack.c.l.b16 %v217
  %v378 = vunpack.c.l.b16 %v218
  %v379 = vunpack.c.l.b16 %v219
  %v380 = vunpack.c.l.b16 %v220
  %v381 = vunpack.c.l.b16 %v221
  %v382 = vunpack.c.l.b16 %v222
  %v383 = vunpack.c.l.b16 %v223
  %v384 = vunpack.c.l.b16 %v224
  %v385 = vunpack.c.l.b16 %v225
  %v386 = vunpack.c.l.b16 %v226
  %v387 = vunpack.c.l.b16 %v227
  %v388 = vunpack.c.l.b16 %v228
  %v389 = vunpack.c.l.b16 %v229
  %v390 = vunpack.c.l.b16 %v230
  %v391 = vunpack.c.l.b16 %v231
  %v392 = vunpack.c.l.b16 %v232
  %v393 = vunpack.c.l.b16 %v233
  %v394 = vunpack.c.l.b16 %v234
  %v395 = vunpack.c.l.b16 %v235
  %v396 = vunpack.c.l.b16 %v236
  %v397 = vunpack.c.l.b16 %v237
  %v398 = vunpack.c.l.b16 %v238
  %v399 = vunpack.c.l.b16 %v239
  %v400 = vunpack.c.l.b16 %v240
  %v401 = vunpack.c.l.b16 %v241
  %v402 = vunpack.c.l.b16 %v242
  %v403 = vunpack.c.l.b16 %v243
  %v404 = vunpack.c.l.b16 %v244
  %v405 = vunpack.c.l.b16 %v245
  %v406 = vunpack.c.l.b16 %v246
  %v407 = vunpack.c.l.b16 %v247
  %v408 = vunpack.c.l.b16 %v248
  %v409 = vunpack.c.l.b16 %v249
  %v410 = vunpack.c.l.b16 %v250
  %v411 = vunpack.c.l.b16 %v251
  %v412 = vunpack.c.l.b16 %v252
  %v413 = vunpack.c.l.b16 %v253
  %v414 = vpack.c.b16 %v335, %v334
  %v415 = vpack.c.b16 %v337, %v336
  %v416 = vpack.c.b16 %v339, %v338
  %v417 = vpack.c.b16 %v341, %v340
  %v418 = vpack.c.b16 %v343, %v342
  %v419 = vpack.c.b16 %v345, %v344
  %v420 = vpack.c.b16 %v347, %v346
  %v421 = vpack.c.b16 %v349, %v348
  %v422 = vpack.c.b16 %v351, %v350
  %v423 = vpack.c.b16 %v353, %v352
  %v424 = vpack.c.b16 %v355, %v354
  %v425 = vpack.c.b16 %v357, %v356
  %v426 = vpack.c.b16 %v359, %v358
  %v427 = vpack.c.b16 %v361, %v360
  %v428 = vpack.c.b16 %v363, %v362
  %v429 = vpack.c.b16 %v365, %v364
  %v430 = vpack.c.b16 %v367, %v366
  %v431 = vpack.c.b16 %v369, %v368
  %v432 = vpack.c.b16 %v371, %v370
  %v433 = vpack.c.b16 %v373, %v372
  %v434 = vpack.c.b16 %v375, %v374
  %v435 = vpack.c.b16 %v377, %v376
  %v436 = vpack.c.b16 %v379, %v378
  %v437 = vpack.c.b16 %v381, %v380
  %v438 = vpack.c.b16 %v383, %v382
  %v439 = vpack.c.b16 %v385, %v384
  %v440 = vpack.c.b16 %v387, %v386
  %v441 = vpack.c.b16 %v389, %v388
  %v442 = vpack.c.b16 %v391, %v390
  %v443 = vpack.c.b16 %v393, %v392
  %v444 = vpack.c.b16 %v395, %v394
  %v445 = vpack.c.b16 %v397, %v396
  %v446 = vpack.c.b16 %v399, %v398
  %v447 = vpack.c.b16 %v401, %v400
  %v448 = vpack.c.b16 %v403, %v402
  %v449 = vpack.c.b16 %v405, %v404
  %v450 = vpack.c.b16 %v407, %v406
  %v451 = vpack.c.b16 %v409, %v408
  %v452 = vpack.c.b16 %v411, %v410
  %v453 = vpack.c.b16 %v413, %v412
  %494 = vmatprep.subr.bf16.mxu0 0
  %495 = vmatpush1.bf16.msra.mxu0 %v414
  %496 = vmatprep.subr.bf16.mxu0 0
  %497 = vmatpush1.bf16.msra.mxu0 %v415
  %498 = vmatprep.subr.bf16.mxu0 0
  %499 = vmatpush1.bf16.msra.mxu0 %v416
  %500 = vmatprep.subr.bf16.mxu0 0
  %501 = vmatpush1.bf16.msra.mxu0 %v417
  %502 = vmatprep.subr.bf16.mxu0 0
  %503 = vmatpush1.bf16.msra.mxu0 %v418
  %504 = vmatprep.subr.bf16.mxu0 0
  %505 = vmatpush1.bf16.msra.mxu0 %v419
  %506 = vmatprep.subr.bf16.mxu0 0
  %507 = vmatpush1.bf16.msra.mxu0 %v420
  %508 = vmatprep.subr.bf16.mxu0 0
  %509 = vmatpush1.bf16.msra.mxu0 %v421
  %510 = vmatprep.subr.bf16.mxu0 0
  %511 = vmatpush1.bf16.msra.mxu0 %v422
  %512 = vmatprep.subr.bf16.mxu0 0
  %513 = vmatpush1.bf16.msra.mxu0 %v423
  %514 = vmatprep.subr.bf16.mxu0 0
  %515 = vmatpush1.bf16.msra.mxu0 %v424
  %516 = vmatprep.subr.bf16.mxu0 0
  %517 = vmatpush1.bf16.msra.mxu0 %v425
  %518 = vmatprep.subr.bf16.mxu0 0
  %519 = vmatpush1.bf16.msra.mxu0 %v426
  %520 = vmatprep.subr.bf16.mxu0 0
  %521 = vmatpush1.bf16.msra.mxu0 %v427
  %522 = vmatprep.subr.bf16.mxu0 0
  %523 = vmatpush1.bf16.msra.mxu0 %v428
  %524 = vmatprep.subr.bf16.mxu0 0
  %525 = vmatpush1.bf16.msra.mxu0 %v429
  %526 = vmatprep.mubr.bf16.mxu0 %v165
  %527 = vmatmul.mubr.bf16.gmra.mrb[0].mxu0 %v164
  %v528 = vpop.f32.mrb[0].mxu0
  %v529 = vadd.f32 0.0, %v528
  %v530 = vpop.f32.mrb[0].mxu0
  %v531 = vpop.f32.mrb[0].mxu0
  %v532 = vadd.f32 0.0, %v531
  %v533 = vpop.f32.mrb[0].mxu0
  %534 = vmatprep.mubr.bf16.mxu0 %v170
  %535 = vmatmul.mubr.bf16.gmra.mrb[0].mxu0 %v169
  %v536 = vpop.f32.mrb[0].mxu0
  %v537 = vadd.f32 0.0, %v536
  %v538 = vpop.f32.mrb[0].mxu0
  %v539 = vpop.f32.mrb[0].mxu0
  %v540 = vadd.f32 0.0, %v539
  %v541 = vpop.f32.mrb[0].mxu0
  %542 = vdwg.mxu0
  %543 = vmatprep.subr.bf16.mxu0 0
  %544 = vmatpush1.bf16.msra.mxu0 %v430
  %545 = vmatprep.subr.bf16.mxu0 0
  %546 = vmatpush1.bf16.msra.mxu0 %v431
  %547 = vmatprep.subr.bf16.mxu0 0
  %548 = vmatpush1.bf16.msra.mxu0 %v432
  %549 = vmatprep.subr.bf16.mxu0 0
  %550 = vmatpush1.bf16.msra.mxu0 %v433
  %551 = vmatprep.subr.bf16.mxu0 0
  %552 = vmatpush1.bf16.msra.mxu0 %v434
  %553 = vmatprep.subr.bf16.mxu0 0
  %554 = vmatpush1.bf16.msra.mxu0 %v435
  %555 = vmatprep.subr.bf16.mxu0 0
  %556 = vmatpush1.bf16.msra.mxu0 %v436
  %557 = vmatprep.subr.bf16.mxu0 0
  %558 = vmatpush1.bf16.msra.mxu0 %v437
  %559 = vmatprep.subr.bf16.mxu0 0
  %560 = vmatpush1.bf16.msra.mxu0 %v438
  %561 = vmatprep.subr.bf16.mxu0 0
  %562 = vmatpush1.bf16.msra.mxu0 %v439
  %563 = vmatprep.subr.bf16.mxu0 0
  %564 = vmatpush1.bf16.msra.mxu0 %v440
  %565 = vmatprep.subr.bf16.mxu0 0
  %566 = vmatpush1.bf16.msra.mxu0 %v441
  %567 = vmatprep.subr.bf16.mxu0 0
  %568 = vmatpush1.bf16.msra.mxu0 %v442
  %569 = vmatprep.subr.bf16.mxu0 0
  %570 = vmatpush1.bf16.msra.mxu0 %v443
  %571 = vmatprep.subr.bf16.mxu0 0
  %572 = vmatpush1.bf16.msra.mxu0 %v444
  %573 = vmatprep.subr.bf16.mxu0 0
  %574 = vmatpush1.bf16.msra.mxu0 %v445
  %575 = vmatprep.mubr.bf16.mxu0 %v167
  %576 = vmatmul.mubr.bf16.gmra.mrb[0].mxu0 %v166
  %v577 = vpop.f32.mrb[0].mxu0
  %v578 = vadd.f32 %v529, %v577
  %v579 = vpop.f32.mrb[0].mxu0
  %v580 = vpop.f32.mrb[0].mxu0
  %v581 = vadd.f32 %v532, %v580
  %v582 = vpop.f32.mrb[0].mxu0
  %583 = vmatprep.mubr.bf16.mxu0 %v172
  %584 = vmatmul.mubr.bf16.gmra.mrb[0].mxu0 %v171
  %v585 = vpop.f32.mrb[0].mxu0
  %v586 = vadd.f32 %v537, %v585
  %v587 = vpop.f32.mrb[0].mxu0
  %v588 = vpop.f32.mrb[0].mxu0
  %v589 = vadd.f32 %v540, %v588
  %v590 = vpop.f32.mrb[0].mxu0
  %591 = vdwg.mxu0
  %592 = vmatprep.subr.bf16.mxu0 0
  %593 = vmatpush1.bf16.msra.mxu0 %v446
  %594 = vmatprep.subr.bf16.mxu0 0
  %595 = vmatpush1.bf16.msra.mxu0 %v447
  %596 = vmatprep.subr.bf16.mxu0 0
  %597 = vmatpush1.bf16.msra.mxu0 %v448
  %598 = vmatprep.subr.bf16.mxu0 0
  %599 = vmatpush1.bf16.msra.mxu0 %v449
  %600 = vmatprep.subr.bf16.mxu0 0
  %601 = vmatpush1.bf16.msra.mxu0 %v450
  %602 = vmatprep.subr.bf16.mxu0 0
  %603 = vmatpush1.bf16.msra.mxu0 %v451
  %604 = vmatprep.subr.bf16.mxu0 0
  %605 = vmatpush1.bf16.msra.mxu0 %v452
  %606 = vmatprep.subr.bf16.mxu0 0
  %607 = vmatpush1.bf16.msra.mxu0 %v453
  %608 = vmatprep.subr.bf16.mxu0 0
  %609 = vmatpush1.bf16.msra.mxu0 0
  %610 = vmatprep.subr.bf16.mxu0 0
  %611 = vmatpush1.bf16.msra.mxu0 0
  %612 = vmatprep.subr.bf16.mxu0 0
  %613 = vmatpush1.bf16.msra.mxu0 0
  %614 = vmatprep.subr.bf16.mxu0 0
  %615 = vmatpush1.bf16.msra.mxu0 0
  %616 = vmatprep.subr.bf16.mxu0 0
  %617 = vmatpush1.bf16.msra.mxu0 0
  %618 = vmatprep.subr.bf16.mxu0 0
  %619 = vmatpush1.bf16.msra.mxu0 0
  %620 = vmatprep.subr.bf16.mxu0 0
  %621 = vmatpush1.bf16.msra.mxu0 0
  %622 = vmatprep.subr.bf16.mxu0 0
  %623 = vmatpush1.bf16.msra.mxu0 0
  %624 = vmatprep.mubr.bf16.mxu0 0
  %625 = vmatmul.mubr.bf16.gmra.mrb[0].mxu0 %v168
  %v626 = vpop.f32.mrb[0].mxu0
  %v627 = vadd.f32 %v578, %v626
  %v628 = vpop.f32.mrb[0].mxu0
  %v629 = vpop.f32.mrb[0].mxu0
  %v630 = vadd.f32 %v581, %v629
  %v631 = vpop.f32.mrb[0].mxu0
  %632 = vmatprep.mubr.bf16.mxu0 0
  %633 = vmatmul.mubr.bf16.gmra.mrb[0].mxu0 %v173
  %v634 = vpop.f32.mrb[0].mxu0
  %v635 = vadd.f32 %v586, %v634
  %v636 = vpop.f32.mrb[0].mxu0
  %v637 = vpop.f32.mrb[0].mxu0
  %v638 = vadd.f32 %v589, %v637
  %v639 = vpop.f32.mrb[0].mxu0
  %640 = vdwg.mxu0
  %p641 = scmp.eq.s32.totalorder 0, 0
  // Predicated region
  $region18: #{_lambda_.29} parent=0 // pred_check
    %p642 = pneg %p641
  $region19: #{_lambda_.29} parent=0 // pred_check_branch
    %644 = sbr.rel (%p642) target = $region21
  $region20: #{_lambda_.29} parent=0 // pred_region
    %645 = vst [vmem:[#allocation2] sm:$0xff] %v627
    %646 = vst [vmem:[#allocation2 + $0x8] sm:$0xff] %v630
    %647 = vst [vmem:[#allocation2 + $0x10] sm:$0xff] %v635
    %648 = vst [vmem:[#allocation2 + $0x18] sm:$0xff] %v638
  $region21: #{_lambda_.29} parent=0 // pred_fallthru
    _
  %p649 = scmp.gt.s32.totalorder 0, 0
  // Predicated region
  $region22: #{_lambda_.29} parent=0 // pred_check
    %p650 = pneg %p649
  $region23: #{_lambda_.29} parent=0 // pred_check_branch
    %652 = sbr.rel (%p650) target = $region25
  $region24: #{_lambda_.29} parent=0 // pred_region
    %v653 = vld [vmem:[#allocation2] sm:$0xff]
    %v654 = vld [vmem:[#allocation2 + $0x8] sm:$0xff]
    %v655 = vld [vmem:[#allocation2 + $0x10] sm:$0xff]
    %v656 = vld [vmem:[#allocation2 + $0x18] sm:$0xff]
    %v657 = vadd.f32 %v653, %v627
    %v658 = vadd.f32 %v654, %v630
    %v659 = vadd.f32 %v655, %v635
    %v660 = vadd.f32 %v656, %v638
    %661 = vst [vmem:[#allocation2] sm:$0xff] %v657
    %662 = vst [vmem:[#allocation2 + $0x8] sm:$0xff] %v658
    %663 = vst [vmem:[#allocation2 + $0x10] sm:$0xff] %v659
    %664 = vst [vmem:[#allocation2 + $0x18] sm:$0xff] %v660
  $region25: #{_lambda_.29} parent=0 // pred_fallthru
    _
  // Predicated region
  $region26: #{_lambda_.29} parent=0 // pred_check
    %p665 = pneg %p641
  $region27: #{_lambda_.29} parent=0 // pred_check_branch
    %667 = sbr.rel (%p665) target = $region29
  $region28: #{_lambda_.29} parent=0 // pred_region
    %v668 = vld [vmem:[#allocation2] sm:$0xff]
    %v669 = vld [vmem:[#allocation2 + $0x8] sm:$0xff]
    %v670 = vld [vmem:[#allocation2 + $0x10] sm:$0xff]
    %v671 = vld [vmem:[#allocation2 + $0x18] sm:$0xff]
    %v672 = vpack.c.bf16 %v669, %v668
    %v673 = vpack.c.bf16 %v671, %v670
    %v676 = vunpack.c.l.b16 %v672
    %v677 = vunpack.c.h.b16 %v672
    %v678 = vunpack.c.l.b16 %v673
    %v679 = vunpack.c.h.b16 %v673
    %v680 = vpack.c.b16 %v676, %v676
    %v681 = vpack.c.b16 %v677, %v677
    %v682 = vpack.c.b16 %v678, %v678
    %v683 = vpack.c.b16 %v679, %v679
    %688 = vst [vmem:[%s4] sm:$0xf] %v680
    %689 = vst [vmem:[%s4 + $0x4] sm:$0xf] %v681
    %690 = vst [vmem:[%s4 + $0x8] sm:$0xf] %v682
    %691 = vst [vmem:[%s4 + $0xc] sm:$0xf] %v683
  $region29: #{_lambda_.29} parent=0 // pred_fallthru
    _
  // Predicated region
  $region30: #{_lambda_.29} parent=0 // pred_check
    _
  $region31: #{_lambda_.29} parent=0 // pred_check_branch
    %693 = sbr.rel (0) target = $region33
  $region32: #{_lambda_.29} parent=0 // pred_region
    _
  $region33: #{_lambda_.29} parent=0 // pred_fallthru
    _
  // Predicated region
  $region34: #{_lambda_.29} parent=0 // pred_check
    _
  $region35: #{_lambda_.29} parent=0 // pred_check_branch
    %695 = sbr.rel (0) target = $region37
  $region36: #{_lambda_.29} parent=0 // pred_region
    _
  $region37: #{_lambda_.29} parent=0 // pred_fallthru
    _

// kernel: _lambda_.31
$region0: #{_lambda_.31}
  #allocation0 [shape = 'u32[]', space=smem, size = 0x4, offset = 0x4, fixed_abs, tag = 'smem constant byte address 0x4 - core index']
  #allocation1 [shape = 'u32[144,128]{1,0:T(1,128)}', space=vmem, size = 0x12000, scoped, tag = 'internal scratch']
  #allocation2 [shape = 'f32[128,128]{1,0:T(8,128)}', space=vmem, size = 0x10000, scoped, tag = 'scratch operand']
  %s0 = inlined_call_operand.vmem [shape: bf16[128,384], index: 0, kind: input, shape index: {}]
  %s1 = inlined_call_operand.vmem [shape: bf16[384,128], index: 1, kind: input, shape index: {}]
  %s2 = inlined_call_operand.vmem [shape: f32[1,384], index: 2, kind: input, shape index: {}]
  %s3 = inlined_call_operand.vmem [shape: f32[1,384], index: 3, kind: input, shape index: {}]
  %s4 = inlined_call_operand.vmem [shape: bf16[128,128], index: 4, kind: output, shape index: {}]
  %s5 = sld [smem:[#allocation0]]
  $region38: #{_lambda_.31} parent=0
    _
  %s7 = ssub.s32 1, %s5
  %s8 = scalar_select 0, %s7, %s5
  // Predicated region
  $region2: #{_lambda_.31} parent=0 // pred_check
    _
  $region3: #{_lambda_.31} parent=0 // pred_check_branch
    %10 = sbr.rel (0) target = $region5
  $region4: #{_lambda_.31} parent=0 // pred_region
    _
  $region5: #{_lambda_.31} parent=0 // pred_fallthru
    _
  // Predicated region
  $region6: #{_lambda_.31} parent=0 // pred_check
    _
  $region7: #{_lambda_.31} parent=0 // pred_check_branch
    %12 = sbr.rel (0) target = $region9
  $region8: #{_lambda_.31} parent=0 // pred_region
    _
  $region9: #{_lambda_.31} parent=0 // pred_fallthru
    _
  // Predicated region
  $region10: #{_lambda_.31} parent=0 // pred_check
    _
  $region11: #{_lambda_.31} parent=0 // pred_check_branch
    %14 = sbr.rel (0) target = $region13
  $region12: #{_lambda_.31} parent=0 // pred_region
    _
  $region13: #{_lambda_.31} parent=0 // pred_fallthru
    _
  // Predicated region
  $region14: #{_lambda_.31} parent=0 // pred_check
    _
  $region15: #{_lambda_.31} parent=0 // pred_check_branch
    %16 = sbr.rel (0) target = $region17
  $region16: #{_lambda_.31} parent=0 // pred_region
    _
  $region17: #{_lambda_.31} parent=0 // pred_fallthru
    _
  %v18 = vld [vmem:[%s0] sm:$0xff]
  %v19 = vld [vmem:[%s0 + $0x8] sm:$0xf]
  %v20 = vld [vmem:[%s0 + $0xc] sm:$0xff]
  %v21 = vld [vmem:[%s0 + $0x14] sm:$0xf]
  %v22 = vld [vmem:[%s0 + $0x18] sm:$0xff]
  %v23 = vld [vmem:[%s0 + $0x20] sm:$0xf]
  %v24 = vld [vmem:[%s0 + $0x24] sm:$0xff]
  %v25 = vld [vmem:[%s0 + $0x2c] sm:$0xf]
  %v26 = vld [vmem:[%s0 + $0x30] sm:$0xff]
  %v27 = vld [vmem:[%s0 + $0x38] sm:$0xf]
  %v28 = vld [vmem:[%s0 + $0x3c] sm:$0xff]
  %v29 = vld [vmem:[%s0 + $0x44] sm:$0xf]
  %v30 = vld [vmem:[%s0 + $0x48] sm:$0xff]
  %v31 = vld [vmem:[%s0 + $0x50] sm:$0xf]
  %v32 = vld [vmem:[%s0 + $0x54] sm:$0xff]
  %v33 = vld [vmem:[%s0 + $0x5c] sm:$0xf]
  %v34 = vld [vmem:[%s0 + $0x60] sm:$0xff]
  %v35 = vld [vmem:[%s0 + $0x68] sm:$0xf]
  %v36 = vld [vmem:[%s0 + $0x6c] sm:$0xff]
  %v37 = vld [vmem:[%s0 + $0x74] sm:$0xf]
  %v38 = vld [vmem:[%s0 + $0x78] sm:$0xff]
  %v39 = vld [vmem:[%s0 + $0x80] sm:$0xf]
  %v40 = vld [vmem:[%s0 + $0x84] sm:$0xff]
  %v41 = vld [vmem:[%s0 + $0x8c] sm:$0xf]
  %v42 = vld [vmem:[%s0 + $0x90] sm:$0xff]
  %v43 = vld [vmem:[%s0 + $0x98] sm:$0xf]
  %v44 = vld [vmem:[%s0 + $0x9c] sm:$0xff]
  %v45 = vld [vmem:[%s0 + $0xa4] sm:$0xf]
  %v46 = vld [vmem:[%s0 + $0xa8] sm:$0xff]
  %v47 = vld [vmem:[%s0 + $0xb0] sm:$0xf]
  %v48 = vld [vmem:[%s0 + $0xb4] sm:$0xff]
  %v49 = vld [vmem:[%s0 + $0xbc] sm:$0xf]
  %v50 = vunpack.c.l.bf16 %v18
  %v51 = vunpack.c.h.bf16 %v18
  %v52 = vunpack.c.l.bf16 %v19
  %v53 = vunpack.c.l.bf16 %v20
  %v54 = vunpack.c.h.bf16 %v20
  %v55 = vunpack.c.l.bf16 %v21
  %v56 = vunpack.c.l.bf16 %v22
  %v57 = vunpack.c.h.bf16 %v22
  %v58 = vunpack.c.l.bf16 %v23
  %v59 = vunpack.c.l.bf16 %v24
  %v60 = vunpack.c.h.bf16 %v24
  %v61 = vunpack.c.l.bf16 %v25
  %v62 = vunpack.c.l.bf16 %v26
  %v63 = vunpack.c.h.bf16 %v26
  %v64 = vunpack.c.l.bf16 %v27
  %v65 = vunpack.c.l.bf16 %v28
  %v66 = vunpack.c.h.bf16 %v28
  %v67 = vunpack.c.l.bf16 %v29
  %v68 = vunpack.c.l.bf16 %v30
  %v69 = vunpack.c.h.bf16 %v30
  %v70 = vunpack.c.l.bf16 %v31
  %v71 = vunpack.c.l.bf16 %v32
  %v72 = vunpack.c.h.bf16 %v32
  %v73 = vunpack.c.l.bf16 %v33
  %v74 = vunpack.c.l.bf16 %v34
  %v75 = vunpack.c.h.bf16 %v34
  %v76 = vunpack.c.l.bf16 %v35
  %v77 = vunpack.c.l.bf16 %v36
  %v78 = vunpack.c.h.bf16 %v36
  %v79 = vunpack.c.l.bf16 %v37
  %v80 = vunpack.c.l.bf16 %v38
  %v81 = vunpack.c.h.bf16 %v38
  %v82 = vunpack.c.l.bf16 %v39
  %v83 = vunpack.c.l.bf16 %v40
  %v84 = vunpack.c.h.bf16 %v40
  %v85 = vunpack.c.l.bf16 %v41
  %v86 = vunpack.c.l.bf16 %v42
  %v87 = vunpack.c.h.bf16 %v42
  %v88 = vunpack.c.l.bf16 %v43
  %v89 = vunpack.c.l.bf16 %v44
  %v90 = vunpack.c.h.bf16 %v44
  %v91 = vunpack.c.l.bf16 %v45
  %v92 = vunpack.c.l.bf16 %v46
  %v93 = vunpack.c.h.bf16 %v46
  %v94 = vunpack.c.l.bf16 %v47
  %v95 = vunpack.c.l.bf16 %v48
  %v96 = vunpack.c.h.bf16 %v48
  %v97 = vunpack.c.l.bf16 %v49
  %v98 = vld [vmem:[%s2] sm:$0x7]
  %v100 = vlaneseq
  %v101 = vshrl.u32 %v100, 7
  %v102 = vsub.s32 0, %v101
  %v103 = vrot.slane %v98, %v102
  %v104 = vlaneseq
  %v105 = vshrl.u32 %v104, 7
  %v106 = vsub.s32 1, %v105
  %v107 = vrot.slane %v98, %v106
  %v108 = vlaneseq
  %v109 = vshrl.u32 %v108, 7
  %v110 = vsub.s32 2, %v109
  %v111 = vrot.slane %v98, %v110
  %v115 = vmul.f32 %v50, %v103
  %v116 = vmul.f32 %v51, %v107
  %v117 = vmul.f32 %v52, %v111
  %v118 = vmul.f32 %v53, %v103
  %v119 = vmul.f32 %v54, %v107
  %v120 = vmul.f32 %v55, %v111
  %v121 = vmul.f32 %v56, %v103
  %v122 = vmul.f32 %v57, %v107
  %v123 = vmul.f32 %v58, %v111
  %v124 = vmul.f32 %v59, %v103
  %v125 = vmul.f32 %v60, %v107
  %v126 = vmul.f32 %v61, %v111
  %v127 = vmul.f32 %v62, %v103
  %v128 = vmul.f32 %v63, %v107
  %v129 = vmul.f32 %v64, %v111
  %v130 = vmul.f32 %v65, %v103
  %v131 = vmul.f32 %v66, %v107
  %v132 = vmul.f32 %v67, %v111
  %v133 = vmul.f32 %v68, %v103
  %v134 = vmul.f32 %v69, %v107
  %v135 = vmul.f32 %v70, %v111
  %v136 = vmul.f32 %v71, %v103
  %v137 = vmul.f32 %v72, %v107
  %v138 = vmul.f32 %v73, %v111
  %v139 = vmul.f32 %v74, %v103
  %v140 = vmul.f32 %v75, %v107
  %v141 = vmul.f32 %v76, %v111
  %v142 = vmul.f32 %v77, %v103
  %v143 = vmul.f32 %v78, %v107
  %v144 = vmul.f32 %v79, %v111
  %v145 = vmul.f32 %v80, %v103
  %v146 = vmul.f32 %v81, %v107
  %v147 = vmul.f32 %v82, %v111
  %v148 = vmul.f32 %v83, %v103
  %v149 = vmul.f32 %v84, %v107
  %v150 = vmul.f32 %v85, %v111
  %v151 = vmul.f32 %v86, %v103
  %v152 = vmul.f32 %v87, %v107
  %v153 = vmul.f32 %v88, %v111
  %v154 = vmul.f32 %v89, %v103
  %v155 = vmul.f32 %v90, %v107
  %v156 = vmul.f32 %v91, %v111
  %v157 = vmul.f32 %v92, %v103
  %v158 = vmul.f32 %v93, %v107
  %v159 = vmul.f32 %v94, %v111
  %v160 = vmul.f32 %v95, %v103
  %v161 = vmul.f32 %v96, %v107
  %v162 = vmul.f32 %v97, %v111
  %v163 = vld [vmem:[%s3] sm:$0x7]
  %v165 = vlaneseq
  %v166 = vshrl.u32 %v165, 7
  %v167 = vsub.s32 0, %v166
  %v168 = vrot.slane %v163, %v167
  %v169 = vlaneseq
  %v170 = vshrl.u32 %v169, 7
  %v171 = vsub.s32 1, %v170
  %v172 = vrot.slane %v163, %v171
  %v173 = vlaneseq
  %v174 = vshrl.u32 %v173, 7
  %v175 = vsub.s32 2, %v174
  %v176 = vrot.slane %v163, %v175
  %v180 = vadd.f32 %v115, %v168
  %v181 = vadd.f32 %v116, %v172
  %v182 = vadd.f32 %v117, %v176
  %v183 = vadd.f32 %v118, %v168
  %v184 = vadd.f32 %v119, %v172
  %v185 = vadd.f32 %v120, %v176
  %v186 = vadd.f32 %v121, %v168
  %v187 = vadd.f32 %v122, %v172
  %v188 = vadd.f32 %v123, %v176
  %v189 = vadd.f32 %v124, %v168
  %v190 = vadd.f32 %v125, %v172
  %v191 = vadd.f32 %v126, %v176
  %v192 = vadd.f32 %v127, %v168
  %v193 = vadd.f32 %v128, %v172
  %v194 = vadd.f32 %v129, %v176
  %v195 = vadd.f32 %v130, %v168
  %v196 = vadd.f32 %v131, %v172
  %v197 = vadd.f32 %v132, %v176
  %v198 = vadd.f32 %v133, %v168
  %v199 = vadd.f32 %v134, %v172
  %v200 = vadd.f32 %v135, %v176
  %v201 = vadd.f32 %v136, %v168
  %v202 = vadd.f32 %v137, %v172
  %v203 = vadd.f32 %v138, %v176
  %v204 = vadd.f32 %v139, %v168
  %v205 = vadd.f32 %v140, %v172
  %v206 = vadd.f32 %v141, %v176
  %v207 = vadd.f32 %v142, %v168
  %v208 = vadd.f32 %v143, %v172
  %v209 = vadd.f32 %v144, %v176
  %v210 = vadd.f32 %v145, %v168
  %v211 = vadd.f32 %v146, %v172
  %v212 = vadd.f32 %v147, %v176
  %v213 = vadd.f32 %v148, %v168
  %v214 = vadd.f32 %v149, %v172
  %v215 = vadd.f32 %v150, %v176
  %v216 = vadd.f32 %v151, %v168
  %v217 = vadd.f32 %v152, %v172
  %v218 = vadd.f32 %v153, %v176
  %v219 = vadd.f32 %v154, %v168
  %v220 = vadd.f32 %v155, %v172
  %v221 = vadd.f32 %v156, %v176
  %v222 = vadd.f32 %v157, %v168
  %v223 = vadd.f32 %v158, %v172
  %v224 = vadd.f32 %v159, %v176
  %v225 = vadd.f32 %v160, %v168
  %v226 = vadd.f32 %v161, %v172
  %v227 = vadd.f32 %v162, %v176
  %v228 = vmax.f32 %v180, 0.0
  %v229 = vmax.f32 %v181, 0.0
  %v230 = vmax.f32 %v182, 0.0
  %v231 = vmax.f32 %v183, 0.0
  %v232 = vmax.f32 %v184, 0.0
  %v233 = vmax.f32 %v185, 0.0
  %v234 = vmax.f32 %v186, 0.0
  %v235 = vmax.f32 %v187, 0.0
  %v236 = vmax.f32 %v188, 0.0
  %v237 = vmax.f32 %v189, 0.0
  %v238 = vmax.f32 %v190, 0.0
  %v239 = vmax.f32 %v191, 0.0
  %v240 = vmax.f32 %v192, 0.0
  %v241 = vmax.f32 %v193, 0.0
  %v242 = vmax.f32 %v194, 0.0
  %v243 = vmax.f32 %v195, 0.0
  %v244 = vmax.f32 %v196, 0.0
  %v245 = vmax.f32 %v197, 0.0
  %v246 = vmax.f32 %v198, 0.0
  %v247 = vmax.f32 %v199, 0.0
  %v248 = vmax.f32 %v200, 0.0
  %v249 = vmax.f32 %v201, 0.0
  %v250 = vmax.f32 %v202, 0.0
  %v251 = vmax.f32 %v203, 0.0
  %v252 = vmax.f32 %v204, 0.0
  %v253 = vmax.f32 %v205, 0.0
  %v254 = vmax.f32 %v206, 0.0
  %v255 = vmax.f32 %v207, 0.0
  %v256 = vmax.f32 %v208, 0.0
  %v257 = vmax.f32 %v209, 0.0
  %v258 = vmax.f32 %v210, 0.0
  %v259 = vmax.f32 %v211, 0.0
  %v260 = vmax.f32 %v212, 0.0
  %v261 = vmax.f32 %v213, 0.0
  %v262 = vmax.f32 %v214, 0.0
  %v263 = vmax.f32 %v215, 0.0
  %v264 = vmax.f32 %v216, 0.0
  %v265 = vmax.f32 %v217, 0.0
  %v266 = vmax.f32 %v218, 0.0
  %v267 = vmax.f32 %v219, 0.0
  %v268 = vmax.f32 %v220, 0.0
  %v269 = vmax.f32 %v221, 0.0
  %v270 = vmax.f32 %v222, 0.0
  %v271 = vmax.f32 %v223, 0.0
  %v272 = vmax.f32 %v224, 0.0
  %v273 = vmax.f32 %v225, 0.0
  %v274 = vmax.f32 %v226, 0.0
  %v275 = vmax.f32 %v227, 0.0
  %v276 = vpack.c.bf16 %v231, %v228
  %v277 = vpack.c.bf16 %v232, %v229
  %v278 = vpack.c.bf16 %v233, %v230
  %v279 = vpack.c.bf16 %v237, %v234
  %v280 = vpack.c.bf16 %v238, %v235
  %v281 = vpack.c.bf16 %v239, %v236
  %v282 = vpack.c.bf16 %v243, %v240
  %v283 = vpack.c.bf16 %v244, %v241
  %v284 = vpack.c.bf16 %v245, %v242
  %v285 = vpack.c.bf16 %v249, %v246
  %v286 = vpack.c.bf16 %v250, %v247
  %v287 = vpack.c.bf16 %v251, %v248
  %v288 = vpack.c.bf16 %v255, %v252
  %v289 = vpack.c.bf16 %v256, %v253
  %v290 = vpack.c.bf16 %v257, %v254
  %v291 = vpack.c.bf16 %v261, %v258
  %v292 = vpack.c.bf16 %v262, %v259
  %v293 = vpack.c.bf16 %v263, %v260
  %v294 = vpack.c.bf16 %v267, %v264
  %v295 = vpack.c.bf16 %v268, %v265
  %v296 = vpack.c.bf16 %v269, %v266
  %v297 = vpack.c.bf16 %v273, %v270
  %v298 = vpack.c.bf16 %v274, %v271
  %v299 = vpack.c.bf16 %v275, %v272
  %v300 = vld [vmem:[%s1] sm:$0xf]
  %v301 = vld [vmem:[%s1 + $0x4] sm:$0xf]
  %v302 = vld [vmem:[%s1 + $0x8] sm:$0xf]
  %v303 = vld [vmem:[%s1 + $0xc] sm:$0xf]
  %v304 = vld [vmem:[%s1 + $0x10] sm:$0xf]
  %v305 = vld [vmem:[%s1 + $0x14] sm:$0xf]
  %v306 = vld [vmem:[%s1 + $0x18] sm:$0xf]
  %v307 = vld [vmem:[%s1 + $0x1c] sm:$0xf]
  %v308 = vld [vmem:[%s1 + $0x20] sm:$0xf]
  %v309 = vld [vmem:[%s1 + $0x24] sm:$0xf]
  %v310 = vld [vmem:[%s1 + $0x28] sm:$0xf]
  %v311 = vld [vmem:[%s1 + $0x2c] sm:$0xf]
  %v312 = vld [vmem:[%s1 + $0x30] sm:$0xf]
  %v313 = vld [vmem:[%s1 + $0x34] sm:$0xf]
  %v314 = vld [vmem:[%s1 + $0x38] sm:$0xf]
  %v315 = vld [vmem:[%s1 + $0x3c] sm:$0xf]
  %v316 = vld [vmem:[%s1 + $0x40] sm:$0xf]
  %v317 = vld [vmem:[%s1 + $0x44] sm:$0xf]
  %v318 = vld [vmem:[%s1 + $0x48] sm:$0xf]
  %v319 = vld [vmem:[%s1 + $0x4c] sm:$0xf]
  %v320 = vld [vmem:[%s1 + $0x50] sm:$0xf]
  %v321 = vld [vmem:[%s1 + $0x54] sm:$0xf]
  %v322 = vld [vmem:[%s1 + $0x58] sm:$0xf]
  %v323 = vld [vmem:[%s1 + $0x5c] sm:$0xf]
  %v324 = vld [vmem:[%s1 + $0x60] sm:$0xf]
  %v325 = vld [vmem:[%s1 + $0x64] sm:$0xf]
  %v326 = vld [vmem:[%s1 + $0x68] sm:$0xf]
  %v327 = vld [vmem:[%s1 + $0x6c] sm:$0xf]
  %v328 = vld [vmem:[%s1 + $0x70] sm:$0xf]
  %v329 = vld [vmem:[%s1 + $0x74] sm:$0xf]
  %v330 = vld [vmem:[%s1 + $0x78] sm:$0xf]
  %v331 = vld [vmem:[%s1 + $0x7c] sm:$0xf]
  %v332 = vld [vmem:[%s1 + $0x80] sm:$0xf]
  %v333 = vld [vmem:[%s1 + $0x84] sm:$0xf]
  %v334 = vld [vmem:[%s1 + $0x88] sm:$0xf]
  %v335 = vld [vmem:[%s1 + $0x8c] sm:$0xf]
  %v336 = vld [vmem:[%s1 + $0x90] sm:$0xf]
  %v337 = vld [vmem:[%s1 + $0x94] sm:$0xf]
  %v338 = vld [vmem:[%s1 + $0x98] sm:$0xf]
  %v339 = vld [vmem:[%s1 + $0x9c] sm:$0xf]
  %v340 = vld [vmem:[%s1 + $0xa0] sm:$0xf]
  %v341 = vld [vmem:[%s1 + $0xa4] sm:$0xf]
  %v342 = vld [vmem:[%s1 + $0xa8] sm:$0xf]
  %v343 = vld [vmem:[%s1 + $0xac] sm:$0xf]
  %v344 = vld [vmem:[%s1 + $0xb0] sm:$0xf]
  %v345 = vld [vmem:[%s1 + $0xb4] sm:$0xf]
  %v346 = vld [vmem:[%s1 + $0xb8] sm:$0xf]
  %v347 = vld [vmem:[%s1 + $0xbc] sm:$0xf]
  %v396 = vunpack.c.l.b16 %v300
  %v397 = vunpack.c.l.b16 %v301
  %v398 = vunpack.c.l.b16 %v302
  %v399 = vunpack.c.l.b16 %v303
  %v400 = vunpack.c.l.b16 %v304
  %v401 = vunpack.c.l.b16 %v305
  %v402 = vunpack.c.l.b16 %v306
  %v403 = vunpack.c.l.b16 %v307
  %v404 = vunpack.c.l.b16 %v308
  %v405 = vunpack.c.l.b16 %v309
  %v406 = vunpack.c.l.b16 %v310
  %v407 = vunpack.c.l.b16 %v311
  %v408 = vunpack.c.l.b16 %v312
  %v409 = vunpack.c.l.b16 %v313
  %v410 = vunpack.c.l.b16 %v314
  %v411 = vunpack.c.l.b16 %v315
  %v412 = vunpack.c.l.b16 %v316
  %v413 = vunpack.c.l.b16 %v317
  %v414 = vunpack.c.l.b16 %v318
  %v415 = vunpack.c.l.b16 %v319
  %v416 = vunpack.c.l.b16 %v320
  %v417 = vunpack.c.l.b16 %v321
  %v418 = vunpack.c.l.b16 %v322
  %v419 = vunpack.c.l.b16 %v323
  %v420 = vunpack.c.l.b16 %v324
  %v421 = vunpack.c.l.b16 %v325
  %v422 = vunpack.c.l.b16 %v326
  %v423 = vunpack.c.l.b16 %v327
  %v424 = vunpack.c.l.b16 %v328
  %v425 = vunpack.c.l.b16 %v329
  %v426 = vunpack.c.l.b16 %v330
  %v427 = vunpack.c.l.b16 %v331
  %v428 = vunpack.c.l.b16 %v332
  %v429 = vunpack.c.l.b16 %v333
  %v430 = vunpack.c.l.b16 %v334
  %v431 = vunpack.c.l.b16 %v335
  %v432 = vunpack.c.l.b16 %v336
  %v433 = vunpack.c.l.b16 %v337
  %v434 = vunpack.c.l.b16 %v338
  %v435 = vunpack.c.l.b16 %v339
  %v436 = vunpack.c.l.b16 %v340
  %v437 = vunpack.c.l.b16 %v341
  %v438 = vunpack.c.l.b16 %v342
  %v439 = vunpack.c.l.b16 %v343
  %v440 = vunpack.c.l.b16 %v344
  %v441 = vunpack.c.l.b16 %v345
  %v442 = vunpack.c.l.b16 %v346
  %v443 = vunpack.c.l.b16 %v347
  %v444 = vpack.c.b16 %v397, %v396
  %v445 = vpack.c.b16 %v399, %v398
  %v446 = vpack.c.b16 %v401, %v400
  %v447 = vpack.c.b16 %v403, %v402
  %v448 = vpack.c.b16 %v405, %v404
  %v449 = vpack.c.b16 %v407, %v406
  %v450 = vpack.c.b16 %v409, %v408
  %v451 = vpack.c.b16 %v411, %v410
  %v452 = vpack.c.b16 %v413, %v412
  %v453 = vpack.c.b16 %v415, %v414
  %v454 = vpack.c.b16 %v417, %v416
  %v455 = vpack.c.b16 %v419, %v418
  %v456 = vpack.c.b16 %v421, %v420
  %v457 = vpack.c.b16 %v423, %v422
  %v458 = vpack.c.b16 %v425, %v424
  %v459 = vpack.c.b16 %v427, %v426
  %v460 = vpack.c.b16 %v429, %v428
  %v461 = vpack.c.b16 %v431, %v430
  %v462 = vpack.c.b16 %v433, %v432
  %v463 = vpack.c.b16 %v435, %v434
  %v464 = vpack.c.b16 %v437, %v436
  %v465 = vpack.c.b16 %v439, %v438
  %v466 = vpack.c.b16 %v441, %v440
  %v467 = vpack.c.b16 %v443, %v442
  %492 = vmatprep.subr.bf16.mxu0 0
  %493 = vmatpush1.bf16.msra.mxu0 %v444
  %494 = vmatprep.subr.bf16.mxu0 0
  %495 = vmatpush1.bf16.msra.mxu0 %v445
  %496 = vmatprep.subr.bf16.mxu0 0
  %497 = vmatpush1.bf16.msra.mxu0 %v446
  %498 = vmatprep.subr.bf16.mxu0 0
  %499 = vmatpush1.bf16.msra.mxu0 %v447
  %500 = vmatprep.subr.bf16.mxu0 0
  %501 = vmatpush1.bf16.msra.mxu0 %v448
  %502 = vmatprep.subr.bf16.mxu0 0
  %503 = vmatpush1.bf16.msra.mxu0 %v449
  %504 = vmatprep.subr.bf16.mxu0 0
  %505 = vmatpush1.bf16.msra.mxu0 %v450
  %506 = vmatprep.subr.bf16.mxu0 0
  %507 = vmatpush1.bf16.msra.mxu0 %v451
  %508 = vmatprep.subr.bf16.mxu0 0
  %509 = vmatpush1.bf16.msra.mxu0 %v452
  %510 = vmatprep.subr.bf16.mxu0 0
  %511 = vmatpush1.bf16.msra.mxu0 %v453
  %512 = vmatprep.subr.bf16.mxu0 0
  %513 = vmatpush1.bf16.msra.mxu0 %v454
  %514 = vmatprep.subr.bf16.mxu0 0
  %515 = vmatpush1.bf16.msra.mxu0 %v455
  %516 = vmatprep.subr.bf16.mxu0 0
  %517 = vmatpush1.bf16.msra.mxu0 %v456
  %518 = vmatprep.subr.bf16.mxu0 0
  %519 = vmatpush1.bf16.msra.mxu0 %v457
  %520 = vmatprep.subr.bf16.mxu0 0
  %521 = vmatpush1.bf16.msra.mxu0 %v458
  %522 = vmatprep.subr.bf16.mxu0 0
  %523 = vmatpush1.bf16.msra.mxu0 %v459
  %524 = vmatprep.mubr.bf16.mxu0 %v277
  %525 = vmatmul.mubr.bf16.gmra.mrb[0].mxu0 %v276
  %v526 = vpop.f32.mrb[0].mxu0
  %v527 = vadd.f32 0.0, %v526
  %v528 = vpop.f32.mrb[0].mxu0
  %v529 = vpop.f32.mrb[0].mxu0
  %v530 = vadd.f32 0.0, %v529
  %v531 = vpop.f32.mrb[0].mxu0
  %532 = vmatprep.mubr.bf16.mxu0 %v280
  %533 = vmatmul.mubr.bf16.gmra.mrb[0].mxu0 %v279
  %v534 = vpop.f32.mrb[0].mxu0
  %v535 = vadd.f32 0.0, %v534
  %v536 = vpop.f32.mrb[0].mxu0
  %v537 = vpop.f32.mrb[0].mxu0
  %v538 = vadd.f32 0.0, %v537
  %v539 = vpop.f32.mrb[0].mxu0
  %540 = vmatprep.mubr.bf16.mxu0 %v283
  %541 = vmatmul.mubr.bf16.gmra.mrb[0].mxu0 %v282
  %v542 = vpop.f32.mrb[0].mxu0
  %v543 = vadd.f32 0.0, %v542
  %v544 = vpop.f32.mrb[0].mxu0
  %v545 = vpop.f32.mrb[0].mxu0
  %v546 = vadd.f32 0.0, %v545
  %v547 = vpop.f32.mrb[0].mxu0
  %548 = vmatprep.mubr.bf16.mxu0 %v286
  %549 = vmatmul.mubr.bf16.gmra.mrb[0].mxu0 %v285
  %v550 = vpop.f32.mrb[0].mxu0
  %v551 = vadd.f32 0.0, %v550
  %v552 = vpop.f32.mrb[0].mxu0
  %v553 = vpop.f32.mrb[0].mxu0
  %v554 = vadd.f32 0.0, %v553
  %v555 = vpop.f32.mrb[0].mxu0
  %556 = vmatprep.mubr.bf16.mxu0 %v289
  %557 = vmatmul.mubr.bf16.gmra.mrb[0].mxu0 %v288
  %v558 = vpop.f32.mrb[0].mxu0
  %v559 = vadd.f32 0.0, %v558
  %v560 = vpop.f32.mrb[0].mxu0
  %v561 = vpop.f32.mrb[0].mxu0
  %v562 = vadd.f32 0.0, %v561
  %v563 = vpop.f32.mrb[0].mxu0
  %564 = vmatprep.mubr.bf16.mxu0 %v292
  %565 = vmatmul.mubr.bf16.gmra.mrb[0].mxu0 %v291
  %v566 = vpop.f32.mrb[0].mxu0
  %v567 = vadd.f32 0.0, %v566
  %v568 = vpop.f32.mrb[0].mxu0
  %v569 = vpop.f32.mrb[0].mxu0
  %v570 = vadd.f32 0.0, %v569
  %v571 = vpop.f32.mrb[0].mxu0
  %572 = vmatprep.mubr.bf16.mxu0 %v295
  %573 = vmatmul.mubr.bf16.gmra.mrb[0].mxu0 %v294
  %v574 = vpop.f32.mrb[0].mxu0
  %v575 = vadd.f32 0.0, %v574
  %v576 = vpop.f32.mrb[0].mxu0
  %v577 = vpop.f32.mrb[0].mxu0
  %v578 = vadd.f32 0.0, %v577
  %v579 = vpop.f32.mrb[0].mxu0
  %580 = vmatprep.mubr.bf16.mxu0 %v298
  %581 = vmatmul.mubr.bf16.gmra.mrb[0].mxu0 %v297
  %v582 = vpop.f32.mrb[0].mxu0
  %v583 = vadd.f32 0.0, %v582
  %v584 = vpop.f32.mrb[0].mxu0
  %v585 = vpop.f32.mrb[0].mxu0
  %v586 = vadd.f32 0.0, %v585
  %v587 = vpop.f32.mrb[0].mxu0
  %588 = vdwg.mxu0
  %589 = vmatprep.subr.bf16.mxu0 0
  %590 = vmatpush1.bf16.msra.mxu0 %v460
  %591 = vmatprep.subr.bf16.mxu0 0
  %592 = vmatpush1.bf16.msra.mxu0 %v461
  %593 = vmatprep.subr.bf16.mxu0 0
  %594 = vmatpush1.bf16.msra.mxu0 %v462
  %595 = vmatprep.subr.bf16.mxu0 0
  %596 = vmatpush1.bf16.msra.mxu0 %v463
  %597 = vmatprep.subr.bf16.mxu0 0
  %598 = vmatpush1.bf16.msra.mxu0 %v464
  %599 = vmatprep.subr.bf16.mxu0 0
  %600 = vmatpush1.bf16.msra.mxu0 %v465
  %601 = vmatprep.subr.bf16.mxu0 0
  %602 = vmatpush1.bf16.msra.mxu0 %v466
  %603 = vmatprep.subr.bf16.mxu0 0
  %604 = vmatpush1.bf16.msra.mxu0 %v467
  %605 = vmatprep.subr.bf16.mxu0 0
  %606 = vmatpush1.bf16.msra.mxu0 0
  %607 = vmatprep.subr.bf16.mxu0 0
  %608 = vmatpush1.bf16.msra.mxu0 0
  %609 = vmatprep.subr.bf16.mxu0 0
  %610 = vmatpush1.bf16.msra.mxu0 0
  %611 = vmatprep.subr.bf16.mxu0 0
  %612 = vmatpush1.bf16.msra.mxu0 0
  %613 = vmatprep.subr.bf16.mxu0 0
  %614 = vmatpush1.bf16.msra.mxu0 0
  %615 = vmatprep.subr.bf16.mxu0 0
  %616 = vmatpush1.bf16.msra.mxu0 0
  %617 = vmatprep.subr.bf16.mxu0 0
  %618 = vmatpush1.bf16.msra.mxu0 0
  %619 = vmatprep.subr.bf16.mxu0 0
  %620 = vmatpush1.bf16.msra.mxu0 0
  %621 = vmatprep.mubr.bf16.mxu0 0
  %622 = vmatmul.mubr.bf16.gmra.mrb[0].mxu0 %v278
  %v623 = vpop.f32.mrb[0].mxu0
  %v624 = vadd.f32 %v527, %v623
  %v625 = vpop.f32.mrb[0].mxu0
  %v626 = vpop.f32.mrb[0].mxu0
  %v627 = vadd.f32 %v530, %v626
  %v628 = vpop.f32.mrb[0].mxu0
  %629 = vmatprep.mubr.bf16.mxu0 0
  %630 = vmatmul.mubr.bf16.gmra.mrb[0].mxu0 %v281
  %v631 = vpop.f32.mrb[0].mxu0
  %v632 = vadd.f32 %v535, %v631
  %v633 = vpop.f32.mrb[0].mxu0
  %v634 = vpop.f32.mrb[0].mxu0
  %v635 = vadd.f32 %v538, %v634
  %v636 = vpop.f32.mrb[0].mxu0
  %637 = vmatprep.mubr.bf16.mxu0 0
  %638 = vmatmul.mubr.bf16.gmra.mrb[0].mxu0 %v284
  %v639 = vpop.f32.mrb[0].mxu0
  %v640 = vadd.f32 %v543, %v639
  %v641 = vpop.f32.mrb[0].mxu0
  %v642 = vpop.f32.mrb[0].mxu0
  %v643 = vadd.f32 %v546, %v642
  %v644 = vpop.f32.mrb[0].mxu0
  %645 = vmatprep.mubr.bf16.mxu0 0
  %646 = vmatmul.mubr.bf16.gmra.mrb[0].mxu0 %v287
  %v647 = vpop.f32.mrb[0].mxu0
  %v648 = vadd.f32 %v551, %v647
  %v649 = vpop.f32.mrb[0].mxu0
  %v650 = vpop.f32.mrb[0].mxu0
  %v651 = vadd.f32 %v554, %v650
  %v652 = vpop.f32.mrb[0].mxu0
  %653 = vmatprep.mubr.bf16.mxu0 0
  %654 = vmatmul.mubr.bf16.gmra.mrb[0].mxu0 %v290
  %v655 = vpop.f32.mrb[0].mxu0
  %v656 = vadd.f32 %v559, %v655
  %v657 = vpop.f32.mrb[0].mxu0
  %v658 = vpop.f32.mrb[0].mxu0
  %v659 = vadd.f32 %v562, %v658
  %v660 = vpop.f32.mrb[0].mxu0
  %661 = vmatprep.mubr.bf16.mxu0 0
  %662 = vmatmul.mubr.bf16.gmra.mrb[0].mxu0 %v293
  %v663 = vpop.f32.mrb[0].mxu0
  %v664 = vadd.f32 %v567, %v663
  %v665 = vpop.f32.mrb[0].mxu0
  %v666 = vpop.f32.mrb[0].mxu0
  %v667 = vadd.f32 %v570, %v666
  %v668 = vpop.f32.mrb[0].mxu0
  %669 = vmatprep.mubr.bf16.mxu0 0
  %670 = vmatmul.mubr.bf16.gmra.mrb[0].mxu0 %v296
  %v671 = vpop.f32.mrb[0].mxu0
  %v672 = vadd.f32 %v575, %v671
  %v673 = vpop.f32.mrb[0].mxu0
  %v674 = vpop.f32.mrb[0].mxu0
  %v675 = vadd.f32 %v578, %v674
  %v676 = vpop.f32.mrb[0].mxu0
  %677 = vmatprep.mubr.bf16.mxu0 0
  %678 = vmatmul.mubr.bf16.gmra.mrb[0].mxu0 %v299
  %v679 = vpop.f32.mrb[0].mxu0
  %v680 = vadd.f32 %v583, %v679
  %v681 = vpop.f32.mrb[0].mxu0
  %v682 = vpop.f32.mrb[0].mxu0
  %v683 = vadd.f32 %v586, %v682
  %v684 = vpop.f32.mrb[0].mxu0
  %685 = vdwg.mxu0
  %p686 = scmp.eq.s32.totalorder 0, 0
  // Predicated region
  $region18: #{_lambda_.31} parent=0 // pred_check
    %p687 = pneg %p686
  $region19: #{_lambda_.31} parent=0 // pred_check_branch
    %689 = sbr.rel (%p687) target = $region21
  $region20: #{_lambda_.31} parent=0 // pred_region
    %690 = vst [vmem:[#allocation2] sm:$0xff] %v624
    %691 = vst [vmem:[#allocation2 + $0x8] sm:$0xff] %v627
    %692 = vst [vmem:[#allocation2 + $0x10] sm:$0xff] %v632
    %693 = vst [vmem:[#allocation2 + $0x18] sm:$0xff] %v635
    %694 = vst [vmem:[#allocation2 + $0x20] sm:$0xff] %v640
    %695 = vst [vmem:[#allocation2 + $0x28] sm:$0xff] %v643
    %696 = vst [vmem:[#allocation2 + $0x30] sm:$0xff] %v648
    %697 = vst [vmem:[#allocation2 + $0x38] sm:$0xff] %v651
    %698 = vst [vmem:[#allocation2 + $0x40] sm:$0xff] %v656
    %699 = vst [vmem:[#allocation2 + $0x48] sm:$0xff] %v659
    %700 = vst [vmem:[#allocation2 + $0x50] sm:$0xff] %v664
    %701 = vst [vmem:[#allocation2 + $0x58] sm:$0xff] %v667
    %702 = vst [vmem:[#allocation2 + $0x60] sm:$0xff] %v672
    %703 = vst [vmem:[#allocation2 + $0x68] sm:$0xff] %v675
    %704 = vst [vmem:[#allocation2 + $0x70] sm:$0xff] %v680
    %705 = vst [vmem:[#allocation2 + $0x78] sm:$0xff] %v683
  $region21: #{_lambda_.31} parent=0 // pred_fallthru
    _
  %p706 = scmp.gt.s32.totalorder 0, 0
  // Predicated region
  $region22: #{_lambda_.31} parent=0 // pred_check
    %p707 = pneg %p706
  $region23: #{_lambda_.31} parent=0 // pred_check_branch
    %709 = sbr.rel (%p707) target = $region25
  $region24: #{_lambda_.31} parent=0 // pred_region
    %v710 = vld [vmem:[#allocation2] sm:$0xff]
    %v711 = vld [vmem:[#allocation2 + $0x8] sm:$0xff]
    %v712 = vld [vmem:[#allocation2 + $0x10] sm:$0xff]
    %v713 = vld [vmem:[#allocation2 + $0x18] sm:$0xff]
    %v714 = vld [vmem:[#allocation2 + $0x20] sm:$0xff]
    %v715 = vld [vmem:[#allocation2 + $0x28] sm:$0xff]
    %v716 = vld [vmem:[#allocation2 + $0x30] sm:$0xff]
    %v717 = vld [vmem:[#allocation2 + $0x38] sm:$0xff]
    %v718 = vld [vmem:[#allocation2 + $0x40] sm:$0xff]
    %v719 = vld [vmem:[#allocation2 + $0x48] sm:$0xff]
    %v720 = vld [vmem:[#allocation2 + $0x50] sm:$0xff]
    %v721 = vld [vmem:[#allocation2 + $0x58] sm:$0xff]
    %v722 = vld [vmem:[#allocation2 + $0x60] sm:$0xff]
    %v723 = vld [vmem:[#allocation2 + $0x68] sm:$0xff]
    %v724 = vld [vmem:[#allocation2 + $0x70] sm:$0xff]
    %v725 = vld [vmem:[#allocation2 + $0x78] sm:$0xff]
    %v726 = vadd.f32 %v710, %v624
    %v727 = vadd.f32 %v711, %v627
    %v728 = vadd.f32 %v712, %v632
    %v729 = vadd.f32 %v713, %v635
    %v730 = vadd.f32 %v714, %v640
    %v731 = vadd.f32 %v715, %v643
    %v732 = vadd.f32 %v716, %v648
    %v733 = vadd.f32 %v717, %v651
    %v734 = vadd.f32 %v718, %v656
    %v735 = vadd.f32 %v719, %v659
    %v736 = vadd.f32 %v720, %v664
    %v737 = vadd.f32 %v721, %v667
    %v738 = vadd.f32 %v722, %v672
    %v739 = vadd.f32 %v723, %v675
    %v740 = vadd.f32 %v724, %v680
    %v741 = vadd.f32 %v725, %v683
    %742 = vst [vmem:[#allocation2] sm:$0xff] %v726
    %743 = vst [vmem:[#allocation2 + $0x8] sm:$0xff] %v727
    %744 = vst [vmem:[#allocation2 + $0x10] sm:$0xff] %v728
    %745 = vst [vmem:[#allocation2 + $0x18] sm:$0xff] %v729
    %746 = vst [vmem:[#allocation2 + $0x20] sm:$0xff] %v730
    %747 = vst [vmem:[#allocation2 + $0x28] sm:$0xff] %v731
    %748 = vst [vmem:[#allocation2 + $0x30] sm:$0xff] %v732
    %749 = vst [vmem:[#allocation2 + $0x38] sm:$0xff] %v733
    %750 = vst [vmem:[#allocation2 + $0x40] sm:$0xff] %v734
    %751 = vst [vmem:[#allocation2 + $0x48] sm:$0xff] %v735
    %752 = vst [vmem:[#allocation2 + $0x50] sm:$0xff] %v736
    %753 = vst [vmem:[#allocation2 + $0x58] sm:$0xff] %v737
    %754 = vst [vmem:[#allocation2 + $0x60] sm:$0xff] %v738
    %755 = vst [vmem:[#allocation2 + $0x68] sm:$0xff] %v739
    %756 = vst [vmem:[#allocation2 + $0x70] sm:$0xff] %v740
    %757 = vst [vmem:[#allocation2 + $0x78] sm:$0xff] %v741
  $region25: #{_lambda_.31} parent=0 // pred_fallthru
    _
  // Predicated region
  $region26: #{_lambda_.31} parent=0 // pred_check
    %p758 = pneg %p686
  $region27: #{_lambda_.31} parent=0 // pred_check_branch
    %760 = sbr.rel (%p758) target = $region29
  $region28: #{_lambda_.31} parent=0 // pred_region
    %v761 = vld [vmem:[#allocation2] sm:$0xff]
    %v762 = vld [vmem:[#allocation2 + $0x8] sm:$0xff]
    %v763 = vld [vmem:[#allocation2 + $0x10] sm:$0xff]
    %v764 = vld [vmem:[#allocation2 + $0x18] sm:$0xff]
    %v765 = vld [vmem:[#allocation2 + $0x20] sm:$0xff]
    %v766 = vld [vmem:[#allocation2 + $0x28] sm:$0xff]
    %v767 = vld [vmem:[#allocation2 + $0x30] sm:$0xff]
    %v768 = vld [vmem:[#allocation2 + $0x38] sm:$0xff]
    %v769 = vld [vmem:[#allocation2 + $0x40] sm:$0xff]
    %v770 = vld [vmem:[#allocation2 + $0x48] sm:$0xff]
    %v771 = vld [vmem:[#allocation2 + $0x50] sm:$0xff]
    %v772 = vld [vmem:[#allocation2 + $0x58] sm:$0xff]
    %v773 = vld [vmem:[#allocation2 + $0x60] sm:$0xff]
    %v774 = vld [vmem:[#allocation2 + $0x68] sm:$0xff]
    %v775 = vld [vmem:[#allocation2 + $0x70] sm:$0xff]
    %v776 = vld [vmem:[#allocation2 + $0x78] sm:$0xff]
    %v777 = vpack.c.bf16 %v762, %v761
    %v778 = vpack.c.bf16 %v764, %v763
    %v779 = vpack.c.bf16 %v766, %v765
    %v780 = vpack.c.bf16 %v768, %v767
    %v781 = vpack.c.bf16 %v770, %v769
    %v782 = vpack.c.bf16 %v772, %v771
    %v783 = vpack.c.bf16 %v774, %v773
    %v784 = vpack.c.bf16 %v776, %v775
    %v793 = vunpack.c.l.b16 %v777
    %v794 = vunpack.c.h.b16 %v777
    %v795 = vunpack.c.l.b16 %v778
    %v796 = vunpack.c.h.b16 %v778
    %v797 = vunpack.c.l.b16 %v779
    %v798 = vunpack.c.h.b16 %v779
    %v799 = vunpack.c.l.b16 %v780
    %v800 = vunpack.c.h.b16 %v780
    %v801 = vunpack.c.l.b16 %v781
    %v802 = vunpack.c.h.b16 %v781
    %v803 = vunpack.c.l.b16 %v782
    %v804 = vunpack.c.h.b16 %v782
    %v805 = vunpack.c.l.b16 %v783
    %v806 = vunpack.c.h.b16 %v783
    %v807 = vunpack.c.l.b16 %v784
    %v808 = vunpack.c.h.b16 %v784
    %v809 = vpack.c.b16 %v793, %v793
    %v810 = vpack.c.b16 %v794, %v794
    %v811 = vpack.c.b16 %v795, %v795
    %v812 = vpack.c.b16 %v796, %v796
    %v813 = vpack.c.b16 %v797, %v797
    %v814 = vpack.c.b16 %v798, %v798
    %v815 = vpack.c.b16 %v799, %v799
    %v816 = vpack.c.b16 %v800, %v800
    %v817 = vpack.c.b16 %v801, %v801
    %v818 = vpack.c.b16 %v802, %v802
    %v819 = vpack.c.b16 %v803, %v803
    %v820 = vpack.c.b16 %v804, %v804
    %v821 = vpack.c.b16 %v805, %v805
    %v822 = vpack.c.b16 %v806, %v806
    %v823 = vpack.c.b16 %v807, %v807
    %v824 = vpack.c.b16 %v808, %v808
    %841 = vst [vmem:[%s4] sm:$0xf] %v809
    %842 = vst [vmem:[%s4 + $0x4] sm:$0xf] %v810
    %843 = vst [vmem:[%s4 + $0x8] sm:$0xf] %v811
    %844 = vst [vmem:[%s4 + $0xc] sm:$0xf] %v812
    %845 = vst [vmem:[%s4 + $0x10] sm:$0xf] %v813
    %846 = vst [vmem:[%s4 + $0x14] sm:$0xf] %v814
    %847 = vst [vmem:[%s4 + $0x18] sm:$0xf] %v815
    %848 = vst [vmem:[%s4 + $0x1c] sm:$0xf] %v816
    %849 = vst [vmem:[%s4 + $0x20] sm:$0xf] %v817
    %850 = vst [vmem:[%s4 + $0x24] sm:$0xf] %v818
    %851 = vst [vmem:[%s4 + $0x28] sm:$0xf] %v819
    %852 = vst [vmem:[%s4 + $0x2c] sm:$0xf] %v820
    %853 = vst [vmem:[%s4 + $0x30] sm:$0xf] %v821
    %854 = vst [vmem:[%s4 + $0x34] sm:$0xf] %v822
    %855 = vst [vmem:[%s4 + $0x38] sm:$0xf] %v823
    %856 = vst [vmem:[%s4 + $0x3c] sm:$0xf] %v824
  $region29: #{_lambda_.31} parent=0 // pred_fallthru
    _
  // Predicated region
  $region30: #{_lambda_.31} parent=0 // pred_check
    _
  $region31: #{_lambda_.31} parent=0 // pred_check_branch
    %858 = sbr.rel (0) target = $region33
  $region32: #{_lambda_.31} parent=0 // pred_region
    _
  $region33: #{_lambda_.31} parent=0 // pred_fallthru
    _
  // Predicated region
  $region34: #{_lambda_.31} parent=0 // pred_check
    _
  $region35: #{_lambda_.31} parent=0 // pred_check_branch
    %860 = sbr.rel (0) target = $region37
  $region36: #{_lambda_.31} parent=0 // pred_region
    _
  $region37: #{_lambda_.31} parent=0 // pred_fallthru
    _

// kernel: _lambda_.32
$region0: #{_lambda_.32}
  #allocation0 [shape = 'u32[]', space=smem, size = 0x4, offset = 0x4, fixed_abs, tag = 'smem constant byte address 0x4 - core index']
  #allocation1 [shape = 'u32[144,128]{1,0:T(1,128)}', space=vmem, size = 0x12000, scoped, tag = 'internal scratch']
  %s0 = inlined_call_operand.vmem [shape: bf16[512,128], index: 0, kind: input, shape index: {}]
  %s1 = inlined_call_operand.vmem [shape: f32[2,128], index: 1, kind: output, shape index: {}]
  %s2 = sld [smem:[#allocation0]]
  $region18: #{_lambda_.32} parent=0
    _
  %s4 = ssub.s32 1, %s2
  %s5 = scalar_select 0, %s4, %s2
  // Predicated region
  $region2: #{_lambda_.32} parent=0 // pred_check
    _
  $region3: #{_lambda_.32} parent=0 // pred_check_branch
    %7 = sbr.rel (0) target = $region5
  $region4: #{_lambda_.32} parent=0 // pred_region
    _
  $region5: #{_lambda_.32} parent=0 // pred_fallthru
    _
  %p8 = scmp.eq.s32.totalorder 0, 0
  // Predicated region
  $region6: #{_lambda_.32} parent=0 // pred_check
    %p9 = pneg %p8
  $region7: #{_lambda_.32} parent=0 // pred_check_branch
    %11 = sbr.rel (%p9) target = $region9
  $region8: #{_lambda_.32} parent=0 // pred_region
    %12 = vst [vmem:[%s1] sm:$0x3] 0.0
  $region9: #{_lambda_.32} parent=0 // pred_fallthru
    _
  %v13 = vld [vmem:[%s0] sm:$0xf]
  %v14 = vld [vmem:[%s0 + $0x4] sm:$0xf]
  %v15 = vld [vmem:[%s0 + $0x8] sm:$0xf]
  %v16 = vld [vmem:[%s0 + $0xc] sm:$0xf]
  %v17 = vld [vmem:[%s0 + $0x10] sm:$0xf]
  %v18 = vld [vmem:[%s0 + $0x14] sm:$0xf]
  %v19 = vld [vmem:[%s0 + $0x18] sm:$0xf]
  %v20 = vld [vmem:[%s0 + $0x1c] sm:$0xf]
  %v21 = vld [vmem:[%s0 + $0x20] sm:$0xf]
  %v22 = vld [vmem:[%s0 + $0x24] sm:$0xf]
  %v23 = vld [vmem:[%s0 + $0x28] sm:$0xf]
  %v24 = vld [vmem:[%s0 + $0x2c] sm:$0xf]
  %v25 = vld [vmem:[%s0 + $0x30] sm:$0xf]
  %v26 = vld [vmem:[%s0 + $0x34] sm:$0xf]
  %v27 = vld [vmem:[%s0 + $0x38] sm:$0xf]
  %v28 = vld [vmem:[%s0 + $0x3c] sm:$0xf]
  %v29 = vld [vmem:[%s0 + $0x40] sm:$0xf]
  %v30 = vld [vmem:[%s0 + $0x44] sm:$0xf]
  %v31 = vld [vmem:[%s0 + $0x48] sm:$0xf]
  %v32 = vld [vmem:[%s0 + $0x4c] sm:$0xf]
  %v33 = vld [vmem:[%s0 + $0x50] sm:$0xf]
  %v34 = vld [vmem:[%s0 + $0x54] sm:$0xf]
  %v35 = vld [vmem:[%s0 + $0x58] sm:$0xf]
  %v36 = vld [vmem:[%s0 + $0x5c] sm:$0xf]
  %v37 = vld [vmem:[%s0 + $0x60] sm:$0xf]
  %v38 = vld [vmem:[%s0 + $0x64] sm:$0xf]
  %v39 = vld [vmem:[%s0 + $0x68] sm:$0xf]
  %v40 = vld [vmem:[%s0 + $0x6c] sm:$0xf]
  %v41 = vld [vmem:[%s0 + $0x70] sm:$0xf]
  %v42 = vld [vmem:[%s0 + $0x74] sm:$0xf]
  %v43 = vld [vmem:[%s0 + $0x78] sm:$0xf]
  %v44 = vld [vmem:[%s0 + $0x7c] sm:$0xf]
  %v45 = vld [vmem:[%s0 + $0x80] sm:$0xf]
  %v46 = vld [vmem:[%s0 + $0x84] sm:$0xf]
  %v47 = vld [vmem:[%s0 + $0x88] sm:$0xf]
  %v48 = vld [vmem:[%s0 + $0x8c] sm:$0xf]
  %v49 = vld [vmem:[%s0 + $0x90] sm:$0xf]
  %v50 = vld [vmem:[%s0 + $0x94] sm:$0xf]
  %v51 = vld [vmem:[%s0 + $0x98] sm:$0xf]
  %v52 = vld [vmem:[%s0 + $0x9c] sm:$0xf]
  %v53 = vld [vmem:[%s0 + $0xa0] sm:$0xf]
  %v54 = vld [vmem:[%s0 + $0xa4] sm:$0xf]
  %v55 = vld [vmem:[%s0 + $0xa8] sm:$0xf]
  %v56 = vld [vmem:[%s0 + $0xac] sm:$0xf]
  %v57 = vld [vmem:[%s0 + $0xb0] sm:$0xf]
  %v58 = vld [vmem:[%s0 + $0xb4] sm:$0xf]
  %v59 = vld [vmem:[%s0 + $0xb8] sm:$0xf]
  %v60 = vld [vmem:[%s0 + $0xbc] sm:$0xf]
  %v61 = vld [vmem:[%s0 + $0xc0] sm:$0xf]
  %v62 = vld [vmem:[%s0 + $0xc4] sm:$0xf]
  %v63 = vld [vmem:[%s0 + $0xc8] sm:$0xf]
  %v64 = vld [vmem:[%s0 + $0xcc] sm:$0xf]
  %v65 = vld [vmem:[%s0 + $0xd0] sm:$0xf]
  %v66 = vld [vmem:[%s0 + $0xd4] sm:$0xf]
  %v67 = vld [vmem:[%s0 + $0xd8] sm:$0xf]
  %v68 = vld [vmem:[%s0 + $0xdc] sm:$0xf]
  %v69 = vld [vmem:[%s0 + $0xe0] sm:$0xf]
  %v70 = vld [vmem:[%s0 + $0xe4] sm:$0xf]
  %v71 = vld [vmem:[%s0 + $0xe8] sm:$0xf]
  %v72 = vld [vmem:[%s0 + $0xec] sm:$0xf]
  %v73 = vld [vmem:[%s0 + $0xf0] sm:$0xf]
  %v74 = vld [vmem:[%s0 + $0xf4] sm:$0xf]
  %v75 = vld [vmem:[%s0 + $0xf8] sm:$0xf]
  %v76 = vld [vmem:[%s0 + $0xfc] sm:$0xf]
  %v77 = vunpack.c.l.bf16 %v13
  %v78 = vunpack.c.l.bf16 %v14
  %v79 = vunpack.c.l.bf16 %v15
  %v80 = vunpack.c.l.bf16 %v16
  %v81 = vunpack.c.l.bf16 %v17
  %v82 = vunpack.c.l.bf16 %v18
  %v83 = vunpack.c.l.bf16 %v19
  %v84 = vunpack.c.l.bf16 %v20
  %v85 = vunpack.c.l.bf16 %v21
  %v86 = vunpack.c.l.bf16 %v22
  %v87 = vunpack.c.l.bf16 %v23
  %v88 = vunpack.c.l.bf16 %v24
  %v89 = vunpack.c.l.bf16 %v25
  %v90 = vunpack.c.l.bf16 %v26
  %v91 = vunpack.c.l.bf16 %v27
  %v92 = vunpack.c.l.bf16 %v28
  %v93 = vunpack.c.l.bf16 %v29
  %v94 = vunpack.c.l.bf16 %v30
  %v95 = vunpack.c.l.bf16 %v31
  %v96 = vunpack.c.l.bf16 %v32
  %v97 = vunpack.c.l.bf16 %v33
  %v98 = vunpack.c.l.bf16 %v34
  %v99 = vunpack.c.l.bf16 %v35
  %v100 = vunpack.c.l.bf16 %v36
  %v101 = vunpack.c.l.bf16 %v37
  %v102 = vunpack.c.l.bf16 %v38
  %v103 = vunpack.c.l.bf16 %v39
  %v104 = vunpack.c.l.bf16 %v40
  %v105 = vunpack.c.l.bf16 %v41
  %v106 = vunpack.c.l.bf16 %v42
  %v107 = vunpack.c.l.bf16 %v43
  %v108 = vunpack.c.l.bf16 %v44
  %v109 = vunpack.c.l.bf16 %v45
  %v110 = vunpack.c.l.bf16 %v46
  %v111 = vunpack.c.l.bf16 %v47
  %v112 = vunpack.c.l.bf16 %v48
  %v113 = vunpack.c.l.bf16 %v49
  %v114 = vunpack.c.l.bf16 %v50
  %v115 = vunpack.c.l.bf16 %v51
  %v116 = vunpack.c.l.bf16 %v52
  %v117 = vunpack.c.l.bf16 %v53
  %v118 = vunpack.c.l.bf16 %v54
  %v119 = vunpack.c.l.bf16 %v55
  %v120 = vunpack.c.l.bf16 %v56
  %v121 = vunpack.c.l.bf16 %v57
  %v122 = vunpack.c.l.bf16 %v58
  %v123 = vunpack.c.l.bf16 %v59
  %v124 = vunpack.c.l.bf16 %v60
  %v125 = vunpack.c.l.bf16 %v61
  %v126 = vunpack.c.l.bf16 %v62
  %v127 = vunpack.c.l.bf16 %v63
  %v128 = vunpack.c.l.bf16 %v64
  %v129 = vunpack.c.l.bf16 %v65
  %v130 = vunpack.c.l.bf16 %v66
  %v131 = vunpack.c.l.bf16 %v67
  %v132 = vunpack.c.l.bf16 %v68
  %v133 = vunpack.c.l.bf16 %v69
  %v134 = vunpack.c.l.bf16 %v70
  %v135 = vunpack.c.l.bf16 %v71
  %v136 = vunpack.c.l.bf16 %v72
  %v137 = vunpack.c.l.bf16 %v73
  %v138 = vunpack.c.l.bf16 %v74
  %v139 = vunpack.c.l.bf16 %v75
  %v140 = vunpack.c.l.bf16 %v76
  %v141 = vadd.f32 %v77, %v78
  %v142 = vadd.f32 %v141, %v79
  %v143 = vadd.f32 %v142, %v80
  %v144 = vadd.f32 %v143, %v81
  %v145 = vadd.f32 %v144, %v82
  %v146 = vadd.f32 %v145, %v83
  %v147 = vadd.f32 %v146, %v84
  %v148 = vadd.f32 %v147, %v85
  %v149 = vadd.f32 %v148, %v86
  %v150 = vadd.f32 %v149, %v87
  %v151 = vadd.f32 %v150, %v88
  %v152 = vadd.f32 %v151, %v89
  %v153 = vadd.f32 %v152, %v90
  %v154 = vadd.f32 %v153, %v91
  %v155 = vadd.f32 %v154, %v92
  %v156 = vadd.f32 %v155, %v93
  %v157 = vadd.f32 %v156, %v94
  %v158 = vadd.f32 %v157, %v95
  %v159 = vadd.f32 %v158, %v96
  %v160 = vadd.f32 %v159, %v97
  %v161 = vadd.f32 %v160, %v98
  %v162 = vadd.f32 %v161, %v99
  %v163 = vadd.f32 %v162, %v100
  %v164 = vadd.f32 %v163, %v101
  %v165 = vadd.f32 %v164, %v102
  %v166 = vadd.f32 %v165, %v103
  %v167 = vadd.f32 %v166, %v104
  %v168 = vadd.f32 %v167, %v105
  %v169 = vadd.f32 %v168, %v106
  %v170 = vadd.f32 %v169, %v107
  %v171 = vadd.f32 %v170, %v108
  %v172 = vadd.f32 %v171, %v109
  %v173 = vadd.f32 %v172, %v110
  %v174 = vadd.f32 %v173, %v111
  %v175 = vadd.f32 %v174, %v112
  %v176 = vadd.f32 %v175, %v113
  %v177 = vadd.f32 %v176, %v114
  %v178 = vadd.f32 %v177, %v115
  %v179 = vadd.f32 %v178, %v116
  %v180 = vadd.f32 %v179, %v117
  %v181 = vadd.f32 %v180, %v118
  %v182 = vadd.f32 %v181, %v119
  %v183 = vadd.f32 %v182, %v120
  %v184 = vadd.f32 %v183, %v121
  %v185 = vadd.f32 %v184, %v122
  %v186 = vadd.f32 %v185, %v123
  %v187 = vadd.f32 %v186, %v124
  %v188 = vadd.f32 %v187, %v125
  %v189 = vadd.f32 %v188, %v126
  %v190 = vadd.f32 %v189, %v127
  %v191 = vadd.f32 %v190, %v128
  %v192 = vadd.f32 %v191, %v129
  %v193 = vadd.f32 %v192, %v130
  %v194 = vadd.f32 %v193, %v131
  %v195 = vadd.f32 %v194, %v132
  %v196 = vadd.f32 %v195, %v133
  %v197 = vadd.f32 %v196, %v134
  %v198 = vadd.f32 %v197, %v135
  %v199 = vadd.f32 %v198, %v136
  %v200 = vadd.f32 %v199, %v137
  %v201 = vadd.f32 %v200, %v138
  %v202 = vadd.f32 %v201, %v139
  %v203 = vadd.f32 %v202, %v140
  %v204 = vrot.slane %v203, 4
  %v205 = vadd.f32 %v203, %v204
  %v206 = vrot.slane %v205, 2
  %v207 = vadd.f32 %v205, %v206
  %v208 = vrot.slane %v207, 1
  %v209 = vadd.f32 %v207, %v208
  %v210 = vmul.f32 %v77, %v77
  %v211 = vmul.f32 %v78, %v78
  %v212 = vmul.f32 %v79, %v79
  %v213 = vmul.f32 %v80, %v80
  %v214 = vmul.f32 %v81, %v81
  %v215 = vmul.f32 %v82, %v82
  %v216 = vmul.f32 %v83, %v83
  %v217 = vmul.f32 %v84, %v84
  %v218 = vmul.f32 %v85, %v85
  %v219 = vmul.f32 %v86, %v86
  %v220 = vmul.f32 %v87, %v87
  %v221 = vmul.f32 %v88, %v88
  %v222 = vmul.f32 %v89, %v89
  %v223 = vmul.f32 %v90, %v90
  %v224 = vmul.f32 %v91, %v91
  %v225 = vmul.f32 %v92, %v92
  %v226 = vmul.f32 %v93, %v93
  %v227 = vmul.f32 %v94, %v94
  %v228 = vmul.f32 %v95, %v95
  %v229 = vmul.f32 %v96, %v96
  %v230 = vmul.f32 %v97, %v97
  %v231 = vmul.f32 %v98, %v98
  %v232 = vmul.f32 %v99, %v99
  %v233 = vmul.f32 %v100, %v100
  %v234 = vmul.f32 %v101, %v101
  %v235 = vmul.f32 %v102, %v102
  %v236 = vmul.f32 %v103, %v103
  %v237 = vmul.f32 %v104, %v104
  %v238 = vmul.f32 %v105, %v105
  %v239 = vmul.f32 %v106, %v106
  %v240 = vmul.f32 %v107, %v107
  %v241 = vmul.f32 %v108, %v108
  %v242 = vmul.f32 %v109, %v109
  %v243 = vmul.f32 %v110, %v110
  %v244 = vmul.f32 %v111, %v111
  %v245 = vmul.f32 %v112, %v112
  %v246 = vmul.f32 %v113, %v113
  %v247 = vmul.f32 %v114, %v114
  %v248 = vmul.f32 %v115, %v115
  %v249 = vmul.f32 %v116, %v116
  %v250 = vmul.f32 %v117, %v117
  %v251 = vmul.f32 %v118, %v118
  %v252 = vmul.f32 %v119, %v119
  %v253 = vmul.f32 %v120, %v120
  %v254 = vmul.f32 %v121, %v121
  %v255 = vmul.f32 %v122, %v122
  %v256 = vmul.f32 %v123, %v123
  %v257 = vmul.f32 %v124, %v124
  %v258 = vmul.f32 %v125, %v125
  %v259 = vmul.f32 %v126, %v126
  %v260 = vmul.f32 %v127, %v127
  %v261 = vmul.f32 %v128, %v128
  %v262 = vmul.f32 %v129, %v129
  %v263 = vmul.f32 %v130, %v130
  %v264 = vmul.f32 %v131, %v131
  %v265 = vmul.f32 %v132, %v132
  %v266 = vmul.f32 %v133, %v133
  %v267 = vmul.f32 %v134, %v134
  %v268 = vmul.f32 %v135, %v135
  %v269 = vmul.f32 %v136, %v136
  %v270 = vmul.f32 %v137, %v137
  %v271 = vmul.f32 %v138, %v138
  %v272 = vmul.f32 %v139, %v139
  %v273 = vmul.f32 %v140, %v140
  %v274 = vadd.f32 %v210, %v211
  %v275 = vadd.f32 %v274, %v212
  %v276 = vadd.f32 %v275, %v213
  %v277 = vadd.f32 %v276, %v214
  %v278 = vadd.f32 %v277, %v215
  %v279 = vadd.f32 %v278, %v216
  %v280 = vadd.f32 %v279, %v217
  %v281 = vadd.f32 %v280, %v218
  %v282 = vadd.f32 %v281, %v219
  %v283 = vadd.f32 %v282, %v220
  %v284 = vadd.f32 %v283, %v221
  %v285 = vadd.f32 %v284, %v222
  %v286 = vadd.f32 %v285, %v223
  %v287 = vadd.f32 %v286, %v224
  %v288 = vadd.f32 %v287, %v225
  %v289 = vadd.f32 %v288, %v226
  %v290 = vadd.f32 %v289, %v227
  %v291 = vadd.f32 %v290, %v228
  %v292 = vadd.f32 %v291, %v229
  %v293 = vadd.f32 %v292, %v230
  %v294 = vadd.f32 %v293, %v231
  %v295 = vadd.f32 %v294, %v232
  %v296 = vadd.f32 %v295, %v233
  %v297 = vadd.f32 %v296, %v234
  %v298 = vadd.f32 %v297, %v235
  %v299 = vadd.f32 %v298, %v236
  %v300 = vadd.f32 %v299, %v237
  %v301 = vadd.f32 %v300, %v238
  %v302 = vadd.f32 %v301, %v239
  %v303 = vadd.f32 %v302, %v240
  %v304 = vadd.f32 %v303, %v241
  %v305 = vadd.f32 %v304, %v242
  %v306 = vadd.f32 %v305, %v243
  %v307 = vadd.f32 %v306, %v244
  %v308 = vadd.f32 %v307, %v245
  %v309 = vadd.f32 %v308, %v246
  %v310 = vadd.f32 %v309, %v247
  %v311 = vadd.f32 %v310, %v248
  %v312 = vadd.f32 %v311, %v249
  %v313 = vadd.f32 %v312, %v250
  %v314 = vadd.f32 %v313, %v251
  %v315 = vadd.f32 %v314, %v252
  %v316 = vadd.f32 %v315, %v253
  %v317 = vadd.f32 %v316, %v254
  %v318 = vadd.f32 %v317, %v255
  %v319 = vadd.f32 %v318, %v256
  %v320 = vadd.f32 %v319, %v257
  %v321 = vadd.f32 %v320, %v258
  %v322 = vadd.f32 %v321, %v259
  %v323 = vadd.f32 %v322, %v260
  %v324 = vadd.f32 %v323, %v261
  %v325 = vadd.f32 %v324, %v262
  %v326 = vadd.f32 %v325, %v263
  %v327 = vadd.f32 %v326, %v264
  %v328 = vadd.f32 %v327, %v265
  %v329 = vadd.f32 %v328, %v266
  %v330 = vadd.f32 %v329, %v267
  %v331 = vadd.f32 %v330, %v268
  %v332 = vadd.f32 %v331, %v269
  %v333 = vadd.f32 %v332, %v270
  %v334 = vadd.f32 %v333, %v271
  %v335 = vadd.f32 %v334, %v272
  %v336 = vadd.f32 %v335, %v273
  %v337 = vrot.slane %v336, 4
  %v338 = vadd.f32 %v336, %v337
  %v339 = vrot.slane %v338, 2
  %v340 = vadd.f32 %v338, %v339
  %v341 = vrot.slane %v340, 1
  %v342 = vadd.f32 %v340, %v341
  %v343 = vld [vmem:[%s1] sm:$0x3]
  %vm344 = vcmask 1040384
  %v345 = vsel %vm344, %v209, %v342
  %v346 = vadd.f32 %v343, %v345
  %347 = vst [vmem:[%s1] sm:$0x3] %v346
  // Predicated region
  $region10: #{_lambda_.32} parent=0 // pred_check
    _
  $region11: #{_lambda_.32} parent=0 // pred_check_branch
    %349 = sbr.rel (0) target = $region13
  $region12: #{_lambda_.32} parent=0 // pred_region
    _
  $region13: #{_lambda_.32} parent=0 // pred_fallthru
    _
  // Predicated region
  $region14: #{_lambda_.32} parent=0 // pred_check
    _
  $region15: #{_lambda_.32} parent=0 // pred_check_branch
    %351 = sbr.rel (0) target = $region17
  $region16: #{_lambda_.32} parent=0 // pred_region
    _
  $region17: #{_lambda_.32} parent=0 // pred_fallthru
    _

// kernel: tile.133
$region0: #{tile.133}
  #allocation0 [shape = 's32[1]{0}', space=sflag, size = 0x4, scoped, tag = 'scoped memory for tile.133']
  %s0 = inlined_call_operand.vmem [shape: f32[16], index: 0, kind: input, shape index: {}]
  %s1 = inlined_call_operand.vmem [shape: f32[9,16], index: 1, kind: output, shape index: {}]
  // Predicated region
  $region2: #{tile.133} parent=0 // pred_check
    _
  $region3: #{tile.133} parent=0 // pred_check_branch
    %3 = sbr.rel (0) target = $region5
  $region4: #{tile.133} parent=0 // pred_region
    _
  $region5: #{tile.133} parent=0 // pred_fallthru
    _
  %v4 = vld [vmem:[%s0] ss:$0 sm:$0xff]
  %5 = vst [vmem:[%s1] sm:$0xff] %v4
  %s6 = scalar_lea.vmem %s1, 8
  %7 = vst [vmem:[%s6] sm:$0xff] %v4

// kernel: tile.138
$region0: #{tile.138}
  %s0 = inlined_call_operand.vmem [shape: f32[9,16], index: 0, kind: input, shape index: {}]
  %s1 = inlined_call_operand.vmem [shape: f32[1,144], index: 1, kind: output, shape index: {}]
  $region1: #{tile.138} parent=0
    #allocation0 [shape = 'u8[8192]{0}', space=vmem, size = 0x2000, scoped, tag = 'scoped mem for output reshape']
    %s2 = smov 3
    %v3 = vld [vmem:[%s0] ss:$8 sm:%s2]
    %vm4 = vcmask 130048
    %5 = vst.msk [vmem:[#allocation0] ss:$8 sm:$0x3] %vm4, %v3
    %s6 = scalar_lea.vmem %s0, 7
    %v7 = vld [vmem:[%s6] sm:$0x1]
    %8 = vrot.lane.b32.xlu0 %v7, 112
    %v9 = vpop.permute.xlu0 %8
    %vm10 = vcmask 1048448
    %11 = vst.msk [vmem:[#allocation0] sm:$0x1] %vm10, %v9
    %s12 = scalar_lea.vmem %s0, 6
    %v13 = vld [vmem:[%s12] sm:$0x1]
    %14 = vrot.lane.b32.xlu0 %v13, 96
    %v15 = vpop.permute.xlu0 %14
    %vm16 = vcmask 917248
    %17 = vst.msk [vmem:[#allocation0] sm:$0x1] %vm16, %v15
    %s18 = scalar_lea.vmem %s0, 5
    %v19 = vld [vmem:[%s18] sm:$0x1]
    %20 = vrot.lane.b32.xlu0 %v19, 80
    %v21 = vpop.permute.xlu0 %20
    %vm22 = vcmask 786048
    %23 = vst.msk [vmem:[#allocation0] sm:$0x1] %vm22, %v21
    %s24 = scalar_lea.vmem %s0, 4
    %v25 = vld [vmem:[%s24] sm:$0x1]
    %26 = vrot.lane.b32.xlu0 %v25, 64
    %v27 = vpop.permute.xlu0 %26
    %vm28 = vcmask 654848
    %29 = vst.msk [vmem:[#allocation0] sm:$0x1] %vm28, %v27
    %s30 = scalar_lea.vmem %s0, 3
    %v31 = vld [vmem:[%s30] sm:$0x1]
    %32 = vrot.lane.b32.xlu0 %v31, 48
    %v33 = vpop.permute.xlu0 %32
    %vm34 = vcmask 523648
    %35 = vst.msk [vmem:[#allocation0] sm:$0x1] %vm34, %v33
    %s36 = scalar_lea.vmem %s0, 2
    %v37 = vld [vmem:[%s36] sm:$0x1]
    %38 = vrot.lane.b32.xlu0 %v37, 32
    %v39 = vpop.permute.xlu0 %38
    %vm40 = vcmask 392448
    %41 = vst.msk [vmem:[#allocation0] sm:$0x1] %vm40, %v39
    %s42 = scalar_lea.vmem %s0, 1
    %v43 = vld [vmem:[%s42] sm:$0x1]
    %44 = vrot.lane.b32.xlu0 %v43, 16
    %v45 = vpop.permute.xlu0 %44
    %vm46 = vcmask 261248
    %47 = vst.msk [vmem:[#allocation0] sm:$0x1] %vm46, %v45
    %s49 = sshllo.u32 0, 1
    %v51 = vld [vmem:[#allocation0] sm:%s49]
    %s52 = sshllo.u32 0, 1
    %53 = vst [vmem:[%s1] sm:%s52] %v51
    %s54 = scalar_lea.vmem [#allocation0], 8
    %v55 = vld [vmem:[%s54] sm:%s49]
    %s56 = sshllo.u32 0, 1
    %s57 = scalar_lea.vmem %s1, 1
    %58 = vst [vmem:[%s57] sm:%s56] %v55

// kernel: _lambda_.33
$region0: #{_lambda_.33}
  #allocation0 [shape = 'u32[]', space=smem, size = 0x4, offset = 0x4, fixed_abs, tag = 'smem constant byte address 0x4 - core index']
  #allocation1 [shape = 'u32[144,128]{1,0:T(1,128)}', space=vmem, size = 0x12000, scoped, tag = 'internal scratch']
  #allocation2 [shape = 'f32[512,128]{1,0:T(8,128)}', space=vmem, size = 0x40000, scoped, tag = 'scratch operand']
  %s0 = inlined_call_operand.vmem [shape: bf16[512,256], index: 0, kind: input, shape index: {}]
  %s1 = inlined_call_operand.vmem [shape: bf16[256,128], index: 1, kind: input, shape index: {}]
  %s2 = inlined_call_operand.vmem [shape: f32[1,256], index: 2, kind: input, shape index: {}]
  %s3 = inlined_call_operand.vmem [shape: f32[1,256], index: 3, kind: input, shape index: {}]
  %s4 = inlined_call_operand.vmem [shape: f32[1,128], index: 4, kind: input, shape index: {}]
  %s5 = inlined_call_operand.vmem [shape: f32[512,128], index: 5, kind: output, shape index: {}]
  %s6 = sld [smem:[#allocation0]]
  $region42: #{_lambda_.33} parent=0
    _
  %s8 = ssub.s32 1, %s6
  %s9 = scalar_select 0, %s8, %s6
  // Predicated region
  $region2: #{_lambda_.33} parent=0 // pred_check
    _
  $region3: #{_lambda_.33} parent=0 // pred_check_branch
    %11 = sbr.rel (0) target = $region5
  $region4: #{_lambda_.33} parent=0 // pred_region
    _
  $region5: #{_lambda_.33} parent=0 // pred_fallthru
    _
  // Predicated region
  $region6: #{_lambda_.33} parent=0 // pred_check
    _
  $region7: #{_lambda_.33} parent=0 // pred_check_branch
    %13 = sbr.rel (0) target = $region9
  $region8: #{_lambda_.33} parent=0 // pred_region
    _
  $region9: #{_lambda_.33} parent=0 // pred_fallthru
    _
  // Predicated region
  $region10: #{_lambda_.33} parent=0 // pred_check
    _
  $region11: #{_lambda_.33} parent=0 // pred_check_branch
    %15 = sbr.rel (0) target = $region13
  $region12: #{_lambda_.33} parent=0 // pred_region
    _
  $region13: #{_lambda_.33} parent=0 // pred_fallthru
    _
  // Predicated region
  $region14: #{_lambda_.33} parent=0 // pred_check
    _
  $region15: #{_lambda_.33} parent=0 // pred_check_branch
    %17 = sbr.rel (0) target = $region17
  $region16: #{_lambda_.33} parent=0 // pred_region
    _
  $region17: #{_lambda_.33} parent=0 // pred_fallthru
    _
  // Predicated region
  $region18: #{_lambda_.33} parent=0 // pred_check
    _
  $region19: #{_lambda_.33} parent=0 // pred_check_branch
    %19 = sbr.rel (0) target = $region21
  $region20: #{_lambda_.33} parent=0 // pred_region
    _
  $region21: #{_lambda_.33} parent=0 // pred_fallthru
    _
  %v21 = vld [vmem:[%s0] sm:$0xff]
  %v22 = vld [vmem:[%s0 + $0x8] sm:$0xff]
  %v23 = vld [vmem:[%s0 + $0x10] sm:$0xff]
  %v24 = vld [vmem:[%s0 + $0x18] sm:$0xff]
  %v25 = vld [vmem:[%s0 + $0x20] sm:$0xff]
  %v26 = vld [vmem:[%s0 + $0x28] sm:$0xff]
  %v27 = vld [vmem:[%s0 + $0x30] sm:$0xff]
  %v28 = vld [vmem:[%s0 + $0x38] sm:$0xff]
  %v29 = vld [vmem:[%s0 + $0x40] sm:$0xff]
  %v30 = vld [vmem:[%s0 + $0x48] sm:$0xff]
  %v31 = vld [vmem:[%s0 + $0x50] sm:$0xff]
  %v32 = vld [vmem:[%s0 + $0x58] sm:$0xff]
  %v33 = vld [vmem:[%s0 + $0x60] sm:$0xff]
  %v34 = vld [vmem:[%s0 + $0x68] sm:$0xff]
  %v35 = vld [vmem:[%s0 + $0x70] sm:$0xff]
  %v36 = vld [vmem:[%s0 + $0x78] sm:$0xff]
  %v37 = vld [vmem:[%s0 + $0x80] sm:$0xff]
  %v38 = vld [vmem:[%s0 + $0x88] sm:$0xff]
  %v39 = vld [vmem:[%s0 + $0x90] sm:$0xff]
  %v40 = vld [vmem:[%s0 + $0x98] sm:$0xff]
  %v41 = vld [vmem:[%s0 + $0xa0] sm:$0xff]
  %v42 = vld [vmem:[%s0 + $0xa8] sm:$0xff]
  %v43 = vld [vmem:[%s0 + $0xb0] sm:$0xff]
  %v44 = vld [vmem:[%s0 + $0xb8] sm:$0xff]
  %v45 = vld [vmem:[%s0 + $0xc0] sm:$0xff]
  %v46 = vld [vmem:[%s0 + $0xc8] sm:$0xff]
  %v47 = vld [vmem:[%s0 + $0xd0] sm:$0xff]
  %v48 = vld [vmem:[%s0 + $0xd8] sm:$0xff]
  %v49 = vld [vmem:[%s0 + $0xe0] sm:$0xff]
  %v50 = vld [vmem:[%s0 + $0xe8] sm:$0xff]
  %v51 = vld [vmem:[%s0 + $0xf0] sm:$0xff]
  %v52 = vld [vmem:[%s0 + $0xf8] sm:$0xff]
  %v53 = vld [vmem:[%s0 + $0x100] sm:$0xff]
  %v54 = vld [vmem:[%s0 + $0x108] sm:$0xff]
  %v55 = vld [vmem:[%s0 + $0x110] sm:$0xff]
  %v56 = vld [vmem:[%s0 + $0x118] sm:$0xff]
  %v57 = vld [vmem:[%s0 + $0x120] sm:$0xff]
  %v58 = vld [vmem:[%s0 + $0x128] sm:$0xff]
  %v59 = vld [vmem:[%s0 + $0x130] sm:$0xff]
  %v60 = vld [vmem:[%s0 + $0x138] sm:$0xff]
  %v61 = vld [vmem:[%s0 + $0x140] sm:$0xff]
  %v62 = vld [vmem:[%s0 + $0x148] sm:$0xff]
  %v63 = vld [vmem:[%s0 + $0x150] sm:$0xff]
  %v64 = vld [vmem:[%s0 + $0x158] sm:$0xff]
  %v65 = vld [vmem:[%s0 + $0x160] sm:$0xff]
  %v66 = vld [vmem:[%s0 + $0x168] sm:$0xff]
  %v67 = vld [vmem:[%s0 + $0x170] sm:$0xff]
  %v68 = vld [vmem:[%s0 + $0x178] sm:$0xff]
  %v69 = vld [vmem:[%s0 + $0x180] sm:$0xff]
  %v70 = vld [vmem:[%s0 + $0x188] sm:$0xff]
  %v71 = vld [vmem:[%s0 + $0x190] sm:$0xff]
  %v72 = vld [vmem:[%s0 + $0x198] sm:$0xff]
  %v73 = vld [vmem:[%s0 + $0x1a0] sm:$0xff]
  %v74 = vld [vmem:[%s0 + $0x1a8] sm:$0xff]
  %v75 = vld [vmem:[%s0 + $0x1b0] sm:$0xff]
  %v76 = vld [vmem:[%s0 + $0x1b8] sm:$0xff]
  %v77 = vld [vmem:[%s0 + $0x1c0] sm:$0xff]
  %v78 = vld [vmem:[%s0 + $0x1c8] sm:$0xff]
  %v79 = vld [vmem:[%s0 + $0x1d0] sm:$0xff]
  %v80 = vld [vmem:[%s0 + $0x1d8] sm:$0xff]
  %v81 = vld [vmem:[%s0 + $0x1e0] sm:$0xff]
  %v82 = vld [vmem:[%s0 + $0x1e8] sm:$0xff]
  %v83 = vld [vmem:[%s0 + $0x1f0] sm:$0xff]
  %v84 = vld [vmem:[%s0 + $0x1f8] sm:$0xff]
  %v85 = vunpack.c.l.bf16 %v21
  %v86 = vunpack.c.h.bf16 %v21
  %v87 = vunpack.c.l.bf16 %v22
  %v88 = vunpack.c.h.bf16 %v22
  %v89 = vunpack.c.l.bf16 %v23
  %v90 = vunpack.c.h.bf16 %v23
  %v91 = vunpack.c.l.bf16 %v24
  %v92 = vunpack.c.h.bf16 %v24
  %v93 = vunpack.c.l.bf16 %v25
  %v94 = vunpack.c.h.bf16 %v25
  %v95 = vunpack.c.l.bf16 %v26
  %v96 = vunpack.c.h.bf16 %v26
  %v97 = vunpack.c.l.bf16 %v27
  %v98 = vunpack.c.h.bf16 %v27
  %v99 = vunpack.c.l.bf16 %v28
  %v100 = vunpack.c.h.bf16 %v28
  %v101 = vunpack.c.l.bf16 %v29
  %v102 = vunpack.c.h.bf16 %v29
  %v103 = vunpack.c.l.bf16 %v30
  %v104 = vunpack.c.h.bf16 %v30
  %v105 = vunpack.c.l.bf16 %v31
  %v106 = vunpack.c.h.bf16 %v31
  %v107 = vunpack.c.l.bf16 %v32
  %v108 = vunpack.c.h.bf16 %v32
  %v109 = vunpack.c.l.bf16 %v33
  %v110 = vunpack.c.h.bf16 %v33
  %v111 = vunpack.c.l.bf16 %v34
  %v112 = vunpack.c.h.bf16 %v34
  %v113 = vunpack.c.l.bf16 %v35
  %v114 = vunpack.c.h.bf16 %v35
  %v115 = vunpack.c.l.bf16 %v36
  %v116 = vunpack.c.h.bf16 %v36
  %v117 = vunpack.c.l.bf16 %v37
  %v118 = vunpack.c.h.bf16 %v37
  %v119 = vunpack.c.l.bf16 %v38
  %v120 = vunpack.c.h.bf16 %v38
  %v121 = vunpack.c.l.bf16 %v39
  %v122 = vunpack.c.h.bf16 %v39
  %v123 = vunpack.c.l.bf16 %v40
  %v124 = vunpack.c.h.bf16 %v40
  %v125 = vunpack.c.l.bf16 %v41
  %v126 = vunpack.c.h.bf16 %v41
  %v127 = vunpack.c.l.bf16 %v42
  %v128 = vunpack.c.h.bf16 %v42
  %v129 = vunpack.c.l.bf16 %v43
  %v130 = vunpack.c.h.bf16 %v43
  %v131 = vunpack.c.l.bf16 %v44
  %v132 = vunpack.c.h.bf16 %v44
  %v133 = vunpack.c.l.bf16 %v45
  %v134 = vunpack.c.h.bf16 %v45
  %v135 = vunpack.c.l.bf16 %v46
  %v136 = vunpack.c.h.bf16 %v46
  %v137 = vunpack.c.l.bf16 %v47
  %v138 = vunpack.c.h.bf16 %v47
  %v139 = vunpack.c.l.bf16 %v48
  %v140 = vunpack.c.h.bf16 %v48
  %v141 = vunpack.c.l.bf16 %v49
  %v142 = vunpack.c.h.bf16 %v49
  %v143 = vunpack.c.l.bf16 %v50
  %v144 = vunpack.c.h.bf16 %v50
  %v145 = vunpack.c.l.bf16 %v51
  %v146 = vunpack.c.h.bf16 %v51
  %v147 = vunpack.c.l.bf16 %v52
  %v148 = vunpack.c.h.bf16 %v52
  %v149 = vunpack.c.l.bf16 %v53
  %v150 = vunpack.c.h.bf16 %v53
  %v151 = vunpack.c.l.bf16 %v54
  %v152 = vunpack.c.h.bf16 %v54
  %v153 = vunpack.c.l.bf16 %v55
  %v154 = vunpack.c.h.bf16 %v55
  %v155 = vunpack.c.l.bf16 %v56
  %v156 = vunpack.c.h.bf16 %v56
  %v157 = vunpack.c.l.bf16 %v57
  %v158 = vunpack.c.h.bf16 %v57
  %v159 = vunpack.c.l.bf16 %v58
  %v160 = vunpack.c.h.bf16 %v58
  %v161 = vunpack.c.l.bf16 %v59
  %v162 = vunpack.c.h.bf16 %v59
  %v163 = vunpack.c.l.bf16 %v60
  %v164 = vunpack.c.h.bf16 %v60
  %v165 = vunpack.c.l.bf16 %v61
  %v166 = vunpack.c.h.bf16 %v61
  %v167 = vunpack.c.l.bf16 %v62
  %v168 = vunpack.c.h.bf16 %v62
  %v169 = vunpack.c.l.bf16 %v63
  %v170 = vunpack.c.h.bf16 %v63
  %v171 = vunpack.c.l.bf16 %v64
  %v172 = vunpack.c.h.bf16 %v64
  %v173 = vunpack.c.l.bf16 %v65
  %v174 = vunpack.c.h.bf16 %v65
  %v175 = vunpack.c.l.bf16 %v66
  %v176 = vunpack.c.h.bf16 %v66
  %v177 = vunpack.c.l.bf16 %v67
  %v178 = vunpack.c.h.bf16 %v67
  %v179 = vunpack.c.l.bf16 %v68
  %v180 = vunpack.c.h.bf16 %v68
  %v181 = vunpack.c.l.bf16 %v69
  %v182 = vunpack.c.h.bf16 %v69
  %v183 = vunpack.c.l.bf16 %v70
  %v184 = vunpack.c.h.bf16 %v70
  %v185 = vunpack.c.l.bf16 %v71
  %v186 = vunpack.c.h.bf16 %v71
  %v187 = vunpack.c.l.bf16 %v72
  %v188 = vunpack.c.h.bf16 %v72
  %v189 = vunpack.c.l.bf16 %v73
  %v190 = vunpack.c.h.bf16 %v73
  %v191 = vunpack.c.l.bf16 %v74
  %v192 = vunpack.c.h.bf16 %v74
  %v193 = vunpack.c.l.bf16 %v75
  %v194 = vunpack.c.h.bf16 %v75
  %v195 = vunpack.c.l.bf16 %v76
  %v196 = vunpack.c.h.bf16 %v76
  %v197 = vunpack.c.l.bf16 %v77
  %v198 = vunpack.c.h.bf16 %v77
  %v199 = vunpack.c.l.bf16 %v78
  %v200 = vunpack.c.h.bf16 %v78
  %v201 = vunpack.c.l.bf16 %v79
  %v202 = vunpack.c.h.bf16 %v79
  %v203 = vunpack.c.l.bf16 %v80
  %v204 = vunpack.c.h.bf16 %v80
  %v205 = vunpack.c.l.bf16 %v81
  %v206 = vunpack.c.h.bf16 %v81
  %v207 = vunpack.c.l.bf16 %v82
  %v208 = vunpack.c.h.bf16 %v82
  %v209 = vunpack.c.l.bf16 %v83
  %v210 = vunpack.c.h.bf16 %v83
  %v211 = vunpack.c.l.bf16 %v84
  %v212 = vunpack.c.h.bf16 %v84
  %v213 = vld [vmem:[%s2] sm:$0x3]
  %v215 = vlaneseq
  %v216 = vshrl.u32 %v215, 7
  %v217 = vsub.s32 0, %v216
  %v218 = vrot.slane %v213, %v217
  %v219 = vlaneseq
  %v220 = vshrl.u32 %v219, 7
  %v221 = vsub.s32 1, %v220
  %v222 = vrot.slane %v213, %v221
  %v225 = vmul.f32 %v85, %v218
  %v226 = vmul.f32 %v86, %v222
  %v227 = vmul.f32 %v87, %v218
  %v228 = vmul.f32 %v88, %v222
  %v229 = vmul.f32 %v89, %v218
  %v230 = vmul.f32 %v90, %v222
  %v231 = vmul.f32 %v91, %v218
  %v232 = vmul.f32 %v92, %v222
  %v233 = vmul.f32 %v93, %v218
  %v234 = vmul.f32 %v94, %v222
  %v235 = vmul.f32 %v95, %v218
  %v236 = vmul.f32 %v96, %v222
  %v237 = vmul.f32 %v97, %v218
  %v238 = vmul.f32 %v98, %v222
  %v239 = vmul.f32 %v99, %v218
  %v240 = vmul.f32 %v100, %v222
  %v241 = vmul.f32 %v101, %v218
  %v242 = vmul.f32 %v102, %v222
  %v243 = vmul.f32 %v103, %v218
  %v244 = vmul.f32 %v104, %v222
  %v245 = vmul.f32 %v105, %v218
  %v246 = vmul.f32 %v106, %v222
  %v247 = vmul.f32 %v107, %v218
  %v248 = vmul.f32 %v108, %v222
  %v249 = vmul.f32 %v109, %v218
  %v250 = vmul.f32 %v110, %v222
  %v251 = vmul.f32 %v111, %v218
  %v252 = vmul.f32 %v112, %v222
  %v253 = vmul.f32 %v113, %v218
  %v254 = vmul.f32 %v114, %v222
  %v255 = vmul.f32 %v115, %v218
  %v256 = vmul.f32 %v116, %v222
  %v257 = vmul.f32 %v117, %v218
  %v258 = vmul.f32 %v118, %v222
  %v259 = vmul.f32 %v119, %v218
  %v260 = vmul.f32 %v120, %v222
  %v261 = vmul.f32 %v121, %v218
  %v262 = vmul.f32 %v122, %v222
  %v263 = vmul.f32 %v123, %v218
  %v264 = vmul.f32 %v124, %v222
  %v265 = vmul.f32 %v125, %v218
  %v266 = vmul.f32 %v126, %v222
  %v267 = vmul.f32 %v127, %v218
  %v268 = vmul.f32 %v128, %v222
  %v269 = vmul.f32 %v129, %v218
  %v270 = vmul.f32 %v130, %v222
  %v271 = vmul.f32 %v131, %v218
  %v272 = vmul.f32 %v132, %v222
  %v273 = vmul.f32 %v133, %v218
  %v274 = vmul.f32 %v134, %v222
  %v275 = vmul.f32 %v135, %v218
  %v276 = vmul.f32 %v136, %v222
  %v277 = vmul.f32 %v137, %v218
  %v278 = vmul.f32 %v138, %v222
  %v279 = vmul.f32 %v139, %v218
  %v280 = vmul.f32 %v140, %v222
  %v281 = vmul.f32 %v141, %v218
  %v282 = vmul.f32 %v142, %v222
  %v283 = vmul.f32 %v143, %v218
  %v284 = vmul.f32 %v144, %v222
  %v285 = vmul.f32 %v145, %v218
  %v286 = vmul.f32 %v146, %v222
  %v287 = vmul.f32 %v147, %v218
  %v288 = vmul.f32 %v148, %v222
  %v289 = vmul.f32 %v149, %v218
  %v290 = vmul.f32 %v150, %v222
  %v291 = vmul.f32 %v151, %v218
  %v292 = vmul.f32 %v152, %v222
  %v293 = vmul.f32 %v153, %v218
  %v294 = vmul.f32 %v154, %v222
  %v295 = vmul.f32 %v155, %v218
  %v296 = vmul.f32 %v156, %v222
  %v297 = vmul.f32 %v157, %v218
  %v298 = vmul.f32 %v158, %v222
  %v299 = vmul.f32 %v159, %v218
  %v300 = vmul.f32 %v160, %v222
  %v301 = vmul.f32 %v161, %v218
  %v302 = vmul.f32 %v162, %v222
  %v303 = vmul.f32 %v163, %v218
  %v304 = vmul.f32 %v164, %v222
  %v305 = vmul.f32 %v165, %v218
  %v306 = vmul.f32 %v166, %v222
  %v307 = vmul.f32 %v167, %v218
  %v308 = vmul.f32 %v168, %v222
  %v309 = vmul.f32 %v169, %v218
  %v310 = vmul.f32 %v170, %v222
  %v311 = vmul.f32 %v171, %v218
  %v312 = vmul.f32 %v172, %v222
  %v313 = vmul.f32 %v173, %v218
  %v314 = vmul.f32 %v174, %v222
  %v315 = vmul.f32 %v175, %v218
  %v316 = vmul.f32 %v176, %v222
  %v317 = vmul.f32 %v177, %v218
  %v318 = vmul.f32 %v178, %v222
  %v319 = vmul.f32 %v179, %v218
  %v320 = vmul.f32 %v180, %v222
  %v321 = vmul.f32 %v181, %v218
  %v322 = vmul.f32 %v182, %v222
  %v323 = vmul.f32 %v183, %v218
  %v324 = vmul.f32 %v184, %v222
  %v325 = vmul.f32 %v185, %v218
  %v326 = vmul.f32 %v186, %v222
  %v327 = vmul.f32 %v187, %v218
  %v328 = vmul.f32 %v188, %v222
  %v329 = vmul.f32 %v189, %v218
  %v330 = vmul.f32 %v190, %v222
  %v331 = vmul.f32 %v191, %v218
  %v332 = vmul.f32 %v192, %v222
  %v333 = vmul.f32 %v193, %v218
  %v334 = vmul.f32 %v194, %v222
  %v335 = vmul.f32 %v195, %v218
  %v336 = vmul.f32 %v196, %v222
  %v337 = vmul.f32 %v197, %v218
  %v338 = vmul.f32 %v198, %v222
  %v339 = vmul.f32 %v199, %v218
  %v340 = vmul.f32 %v200, %v222
  %v341 = vmul.f32 %v201, %v218
  %v342 = vmul.f32 %v202, %v222
  %v343 = vmul.f32 %v203, %v218
  %v344 = vmul.f32 %v204, %v222
  %v345 = vmul.f32 %v205, %v218
  %v346 = vmul.f32 %v206, %v222
  %v347 = vmul.f32 %v207, %v218
  %v348 = vmul.f32 %v208, %v222
  %v349 = vmul.f32 %v209, %v218
  %v350 = vmul.f32 %v210, %v222
  %v351 = vmul.f32 %v211, %v218
  %v352 = vmul.f32 %v212, %v222
  %v353 = vld [vmem:[%s3] sm:$0x3]
  %v355 = vlaneseq
  %v356 = vshrl.u32 %v355, 7
  %v357 = vsub.s32 0, %v356
  %v358 = vrot.slane %v353, %v357
  %v359 = vlaneseq
  %v360 = vshrl.u32 %v359, 7
  %v361 = vsub.s32 1, %v360
  %v362 = vrot.slane %v353, %v361
  %v365 = vadd.f32 %v225, %v358
  %v366 = vadd.f32 %v226, %v362
  %v367 = vadd.f32 %v227, %v358
  %v368 = vadd.f32 %v228, %v362
  %v369 = vadd.f32 %v229, %v358
  %v370 = vadd.f32 %v230, %v362
  %v371 = vadd.f32 %v231, %v358
  %v372 = vadd.f32 %v232, %v362
  %v373 = vadd.f32 %v233, %v358
  %v374 = vadd.f32 %v234, %v362
  %v375 = vadd.f32 %v235, %v358
  %v376 = vadd.f32 %v236, %v362
  %v377 = vadd.f32 %v237, %v358
  %v378 = vadd.f32 %v238, %v362
  %v379 = vadd.f32 %v239, %v358
  %v380 = vadd.f32 %v240, %v362
  %v381 = vadd.f32 %v241, %v358
  %v382 = vadd.f32 %v242, %v362
  %v383 = vadd.f32 %v243, %v358
  %v384 = vadd.f32 %v244, %v362
  %v385 = vadd.f32 %v245, %v358
  %v386 = vadd.f32 %v246, %v362
  %v387 = vadd.f32 %v247, %v358
  %v388 = vadd.f32 %v248, %v362
  %v389 = vadd.f32 %v249, %v358
  %v390 = vadd.f32 %v250, %v362
  %v391 = vadd.f32 %v251, %v358
  %v392 = vadd.f32 %v252, %v362
  %v393 = vadd.f32 %v253, %v358
  %v394 = vadd.f32 %v254, %v362
  %v395 = vadd.f32 %v255, %v358
  %v396 = vadd.f32 %v256, %v362
  %v397 = vadd.f32 %v257, %v358
  %v398 = vadd.f32 %v258, %v362
  %v399 = vadd.f32 %v259, %v358
  %v400 = vadd.f32 %v260, %v362
  %v401 = vadd.f32 %v261, %v358
  %v402 = vadd.f32 %v262, %v362
  %v403 = vadd.f32 %v263, %v358
  %v404 = vadd.f32 %v264, %v362
  %v405 = vadd.f32 %v265, %v358
  %v406 = vadd.f32 %v266, %v362
  %v407 = vadd.f32 %v267, %v358
  %v408 = vadd.f32 %v268, %v362
  %v409 = vadd.f32 %v269, %v358
  %v410 = vadd.f32 %v270, %v362
  %v411 = vadd.f32 %v271, %v358
  %v412 = vadd.f32 %v272, %v362
  %v413 = vadd.f32 %v273, %v358
  %v414 = vadd.f32 %v274, %v362
  %v415 = vadd.f32 %v275, %v358
  %v416 = vadd.f32 %v276, %v362
  %v417 = vadd.f32 %v277, %v358
  %v418 = vadd.f32 %v278, %v362
  %v419 = vadd.f32 %v279, %v358
  %v420 = vadd.f32 %v280, %v362
  %v421 = vadd.f32 %v281, %v358
  %v422 = vadd.f32 %v282, %v362
  %v423 = vadd.f32 %v283, %v358
  %v424 = vadd.f32 %v284, %v362
  %v425 = vadd.f32 %v285, %v358
  %v426 = vadd.f32 %v286, %v362
  %v427 = vadd.f32 %v287, %v358
  %v428 = vadd.f32 %v288, %v362
  %v429 = vadd.f32 %v289, %v358
  %v430 = vadd.f32 %v290, %v362
  %v431 = vadd.f32 %v291, %v358
  %v432 = vadd.f32 %v292, %v362
  %v433 = vadd.f32 %v293, %v358
  %v434 = vadd.f32 %v294, %v362
  %v435 = vadd.f32 %v295, %v358
  %v436 = vadd.f32 %v296, %v362
  %v437 = vadd.f32 %v297, %v358
  %v438 = vadd.f32 %v298, %v362
  %v439 = vadd.f32 %v299, %v358
  %v440 = vadd.f32 %v300, %v362
  %v441 = vadd.f32 %v301, %v358
  %v442 = vadd.f32 %v302, %v362
  %v443 = vadd.f32 %v303, %v358
  %v444 = vadd.f32 %v304, %v362
  %v445 = vadd.f32 %v305, %v358
  %v446 = vadd.f32 %v306, %v362
  %v447 = vadd.f32 %v307, %v358
  %v448 = vadd.f32 %v308, %v362
  %v449 = vadd.f32 %v309, %v358
  %v450 = vadd.f32 %v310, %v362
  %v451 = vadd.f32 %v311, %v358
  %v452 = vadd.f32 %v312, %v362
  %v453 = vadd.f32 %v313, %v358
  %v454 = vadd.f32 %v314, %v362
  %v455 = vadd.f32 %v315, %v358
  %v456 = vadd.f32 %v316, %v362
  %v457 = vadd.f32 %v317, %v358
  %v458 = vadd.f32 %v318, %v362
  %v459 = vadd.f32 %v319, %v358
  %v460 = vadd.f32 %v320, %v362
  %v461 = vadd.f32 %v321, %v358
  %v462 = vadd.f32 %v322, %v362
  %v463 = vadd.f32 %v323, %v358
  %v464 = vadd.f32 %v324, %v362
  %v465 = vadd.f32 %v325, %v358
  %v466 = vadd.f32 %v326, %v362
  %v467 = vadd.f32 %v327, %v358
  %v468 = vadd.f32 %v328, %v362
  %v469 = vadd.f32 %v329, %v358
  %v470 = vadd.f32 %v330, %v362
  %v471 = vadd.f32 %v331, %v358
  %v472 = vadd.f32 %v332, %v362
  %v473 = vadd.f32 %v333, %v358
  %v474 = vadd.f32 %v334, %v362
  %v475 = vadd.f32 %v335, %v358
  %v476 = vadd.f32 %v336, %v362
  %v477 = vadd.f32 %v337, %v358
  %v478 = vadd.f32 %v338, %v362
  %v479 = vadd.f32 %v339, %v358
  %v480 = vadd.f32 %v340, %v362
  %v481 = vadd.f32 %v341, %v358
  %v482 = vadd.f32 %v342, %v362
  %v483 = vadd.f32 %v343, %v358
  %v484 = vadd.f32 %v344, %v362
  %v485 = vadd.f32 %v345, %v358
  %v486 = vadd.f32 %v346, %v362
  %v487 = vadd.f32 %v347, %v358
  %v488 = vadd.f32 %v348, %v362
  %v489 = vadd.f32 %v349, %v358
  %v490 = vadd.f32 %v350, %v362
  %v491 = vadd.f32 %v351, %v358
  %v492 = vadd.f32 %v352, %v362
  %v493 = vmax.f32 %v365, 0.0
  %v494 = vmax.f32 %v366, 0.0
  %v495 = vmax.f32 %v367, 0.0
  %v496 = vmax.f32 %v368, 0.0
  %v497 = vmax.f32 %v369, 0.0
  %v498 = vmax.f32 %v370, 0.0
  %v499 = vmax.f32 %v371, 0.0
  %v500 = vmax.f32 %v372, 0.0
  %v501 = vmax.f32 %v373, 0.0
  %v502 = vmax.f32 %v374, 0.0
  %v503 = vmax.f32 %v375, 0.0
  %v504 = vmax.f32 %v376, 0.0
  %v505 = vmax.f32 %v377, 0.0
  %v506 = vmax.f32 %v378, 0.0
  %v507 = vmax.f32 %v379, 0.0
  %v508 = vmax.f32 %v380, 0.0
  %v509 = vmax.f32 %v381, 0.0
  %v510 = vmax.f32 %v382, 0.0
  %v511 = vmax.f32 %v383, 0.0
  %v512 = vmax.f32 %v384, 0.0
  %v513 = vmax.f32 %v385, 0.0
  %v514 = vmax.f32 %v386, 0.0
  %v515 = vmax.f32 %v387, 0.0
  %v516 = vmax.f32 %v388, 0.0
  %v517 = vmax.f32 %v389, 0.0
  %v518 = vmax.f32 %v390, 0.0
  %v519 = vmax.f32 %v391, 0.0
  %v520 = vmax.f32 %v392, 0.0
  %v521 = vmax.f32 %v393, 0.0
  %v522 = vmax.f32 %v394, 0.0
  %v523 = vmax.f32 %v395, 0.0
  %v524 = vmax.f32 %v396, 0.0
  %v525 = vmax.f32 %v397, 0.0
  %v526 = vmax.f32 %v398, 0.0
  %v527 = vmax.f32 %v399, 0.0
  %v528 = vmax.f32 %v400, 0.0
  %v529 = vmax.f32 %v401, 0.0
  %v530 = vmax.f32 %v402, 0.0
  %v531 = vmax.f32 %v403, 0.0
  %v532 = vmax.f32 %v404, 0.0
  %v533 = vmax.f32 %v405, 0.0
  %v534 = vmax.f32 %v406, 0.0
  %v535 = vmax.f32 %v407, 0.0
  %v536 = vmax.f32 %v408, 0.0
  %v537 = vmax.f32 %v409, 0.0
  %v538 = vmax.f32 %v410, 0.0
  %v539 = vmax.f32 %v411, 0.0
  %v540 = vmax.f32 %v412, 0.0
  %v541 = vmax.f32 %v413, 0.0
  %v542 = vmax.f32 %v414, 0.0
  %v543 = vmax.f32 %v415, 0.0
  %v544 = vmax.f32 %v416, 0.0
  %v545 = vmax.f32 %v417, 0.0
  %v546 = vmax.f32 %v418, 0.0
  %v547 = vmax.f32 %v419, 0.0
  %v548 = vmax.f32 %v420, 0.0
  %v549 = vmax.f32 %v421, 0.0
  %v550 = vmax.f32 %v422, 0.0
  %v551 = vmax.f32 %v423, 0.0
  %v552 = vmax.f32 %v424, 0.0
  %v553 = vmax.f32 %v425, 0.0
  %v554 = vmax.f32 %v426, 0.0
  %v555 = vmax.f32 %v427, 0.0
  %v556 = vmax.f32 %v428, 0.0
  %v557 = vmax.f32 %v429, 0.0
  %v558 = vmax.f32 %v430, 0.0
  %v559 = vmax.f32 %v431, 0.0
  %v560 = vmax.f32 %v432, 0.0
  %v561 = vmax.f32 %v433, 0.0
  %v562 = vmax.f32 %v434, 0.0
  %v563 = vmax.f32 %v435, 0.0
  %v564 = vmax.f32 %v436, 0.0
  %v565 = vmax.f32 %v437, 0.0
  %v566 = vmax.f32 %v438, 0.0
  %v567 = vmax.f32 %v439, 0.0
  %v568 = vmax.f32 %v440, 0.0
  %v569 = vmax.f32 %v441, 0.0
  %v570 = vmax.f32 %v442, 0.0
  %v571 = vmax.f32 %v443, 0.0
  %v572 = vmax.f32 %v444, 0.0
  %v573 = vmax.f32 %v445, 0.0
  %v574 = vmax.f32 %v446, 0.0
  %v575 = vmax.f32 %v447, 0.0
  %v576 = vmax.f32 %v448, 0.0
  %v577 = vmax.f32 %v449, 0.0
  %v578 = vmax.f32 %v450, 0.0
  %v579 = vmax.f32 %v451, 0.0
  %v580 = vmax.f32 %v452, 0.0
  %v581 = vmax.f32 %v453, 0.0
  %v582 = vmax.f32 %v454, 0.0
  %v583 = vmax.f32 %v455, 0.0
  %v584 = vmax.f32 %v456, 0.0
  %v585 = vmax.f32 %v457, 0.0
  %v586 = vmax.f32 %v458, 0.0
  %v587 = vmax.f32 %v459, 0.0
  %v588 = vmax.f32 %v460, 0.0
  %v589 = vmax.f32 %v461, 0.0
  %v590 = vmax.f32 %v462, 0.0
  %v591 = vmax.f32 %v463, 0.0
  %v592 = vmax.f32 %v464, 0.0
  %v593 = vmax.f32 %v465, 0.0
  %v594 = vmax.f32 %v466, 0.0
  %v595 = vmax.f32 %v467, 0.0
  %v596 = vmax.f32 %v468, 0.0
  %v597 = vmax.f32 %v469, 0.0
  %v598 = vmax.f32 %v470, 0.0
  %v599 = vmax.f32 %v471, 0.0
  %v600 = vmax.f32 %v472, 0.0
  %v601 = vmax.f32 %v473, 0.0
  %v602 = vmax.f32 %v474, 0.0
  %v603 = vmax.f32 %v475, 0.0
  %v604 = vmax.f32 %v476, 0.0
  %v605 = vmax.f32 %v477, 0.0
  %v606 = vmax.f32 %v478, 0.0
  %v607 = vmax.f32 %v479, 0.0
  %v608 = vmax.f32 %v480, 0.0
  %v609 = vmax.f32 %v481, 0.0
  %v610 = vmax.f32 %v482, 0.0
  %v611 = vmax.f32 %v483, 0.0
  %v612 = vmax.f32 %v484, 0.0
  %v613 = vmax.f32 %v485, 0.0
  %v614 = vmax.f32 %v486, 0.0
  %v615 = vmax.f32 %v487, 0.0
  %v616 = vmax.f32 %v488, 0.0
  %v617 = vmax.f32 %v489, 0.0
  %v618 = vmax.f32 %v490, 0.0
  %v619 = vmax.f32 %v491, 0.0
  %v620 = vmax.f32 %v492, 0.0
  %v621 = vpack.c.bf16 %v495, %v493
  %v622 = vpack.c.bf16 %v496, %v494
  %v623 = vpack.c.bf16 %v499, %v497
  %v624 = vpack.c.bf16 %v500, %v498
  %v625 = vpack.c.bf16 %v503, %v501
  %v626 = vpack.c.bf16 %v504, %v502
  %v627 = vpack.c.bf16 %v507, %v505
  %v628 = vpack.c.bf16 %v508, %v506
  %v629 = vpack.c.bf16 %v511, %v509
  %v630 = vpack.c.bf16 %v512, %v510
  %v631 = vpack.c.bf16 %v515, %v513
  %v632 = vpack.c.bf16 %v516, %v514
  %v633 = vpack.c.bf16 %v519, %v517
  %v634 = vpack.c.bf16 %v520, %v518
  %v635 = vpack.c.bf16 %v523, %v521
  %v636 = vpack.c.bf16 %v524, %v522
  %v637 = vpack.c.bf16 %v527, %v525
  %v638 = vpack.c.bf16 %v528, %v526
  %v639 = vpack.c.bf16 %v531, %v529
  %v640 = vpack.c.bf16 %v532, %v530
  %v641 = vpack.c.bf16 %v535, %v533
  %v642 = vpack.c.bf16 %v536, %v534
  %v643 = vpack.c.bf16 %v539, %v537
  %v644 = vpack.c.bf16 %v540, %v538
  %v645 = vpack.c.bf16 %v543, %v541
  %v646 = vpack.c.bf16 %v544, %v542
  %v647 = vpack.c.bf16 %v547, %v545
  %v648 = vpack.c.bf16 %v548, %v546
  %v649 = vpack.c.bf16 %v551, %v549
  %v650 = vpack.c.bf16 %v552, %v550
  %v651 = vpack.c.bf16 %v555, %v553
  %v652 = vpack.c.bf16 %v556, %v554
  %v653 = vpack.c.bf16 %v559, %v557
  %v654 = vpack.c.bf16 %v560, %v558
  %v655 = vpack.c.bf16 %v563, %v561
  %v656 = vpack.c.bf16 %v564, %v562
  %v657 = vpack.c.bf16 %v567, %v565
  %v658 = vpack.c.bf16 %v568, %v566
  %v659 = vpack.c.bf16 %v571, %v569
  %v660 = vpack.c.bf16 %v572, %v570
  %v661 = vpack.c.bf16 %v575, %v573
  %v662 = vpack.c.bf16 %v576, %v574
  %v663 = vpack.c.bf16 %v579, %v577
  %v664 = vpack.c.bf16 %v580, %v578
  %v665 = vpack.c.bf16 %v583, %v581
  %v666 = vpack.c.bf16 %v584, %v582
  %v667 = vpack.c.bf16 %v587, %v585
  %v668 = vpack.c.bf16 %v588, %v586
  %v669 = vpack.c.bf16 %v591, %v589
  %v670 = vpack.c.bf16 %v592, %v590
  %v671 = vpack.c.bf16 %v595, %v593
  %v672 = vpack.c.bf16 %v596, %v594
  %v673 = vpack.c.bf16 %v599, %v597
  %v674 = vpack.c.bf16 %v600, %v598
  %v675 = vpack.c.bf16 %v603, %v601
  %v676 = vpack.c.bf16 %v604, %v602
  %v677 = vpack.c.bf16 %v607, %v605
  %v678 = vpack.c.bf16 %v608, %v606
  %v679 = vpack.c.bf16 %v611, %v609
  %v680 = vpack.c.bf16 %v612, %v610
  %v681 = vpack.c.bf16 %v615, %v613
  %v682 = vpack.c.bf16 %v616, %v614
  %v683 = vpack.c.bf16 %v619, %v617
  %v684 = vpack.c.bf16 %v620, %v618
  %v685 = vld [vmem:[%s1] sm:$0xf]
  %v686 = vld [vmem:[%s1 + $0x4] sm:$0xf]
  %v687 = vld [vmem:[%s1 + $0x8] sm:$0xf]
  %v688 = vld [vmem:[%s1 + $0xc] sm:$0xf]
  %v689 = vld [vmem:[%s1 + $0x10] sm:$0xf]
  %v690 = vld [vmem:[%s1 + $0x14] sm:$0xf]
  %v691 = vld [vmem:[%s1 + $0x18] sm:$0xf]
  %v692 = vld [vmem:[%s1 + $0x1c] sm:$0xf]
  %v693 = vld [vmem:[%s1 + $0x20] sm:$0xf]
  %v694 = vld [vmem:[%s1 + $0x24] sm:$0xf]
  %v695 = vld [vmem:[%s1 + $0x28] sm:$0xf]
  %v696 = vld [vmem:[%s1 + $0x2c] sm:$0xf]
  %v697 = vld [vmem:[%s1 + $0x30] sm:$0xf]
  %v698 = vld [vmem:[%s1 + $0x34] sm:$0xf]
  %v699 = vld [vmem:[%s1 + $0x38] sm:$0xf]
  %v700 = vld [vmem:[%s1 + $0x3c] sm:$0xf]
  %v701 = vld [vmem:[%s1 + $0x40] sm:$0xf]
  %v702 = vld [vmem:[%s1 + $0x44] sm:$0xf]
  %v703 = vld [vmem:[%s1 + $0x48] sm:$0xf]
  %v704 = vld [vmem:[%s1 + $0x4c] sm:$0xf]
  %v705 = vld [vmem:[%s1 + $0x50] sm:$0xf]
  %v706 = vld [vmem:[%s1 + $0x54] sm:$0xf]
  %v707 = vld [vmem:[%s1 + $0x58] sm:$0xf]
  %v708 = vld [vmem:[%s1 + $0x5c] sm:$0xf]
  %v709 = vld [vmem:[%s1 + $0x60] sm:$0xf]
  %v710 = vld [vmem:[%s1 + $0x64] sm:$0xf]
  %v711 = vld [vmem:[%s1 + $0x68] sm:$0xf]
  %v712 = vld [vmem:[%s1 + $0x6c] sm:$0xf]
  %v713 = vld [vmem:[%s1 + $0x70] sm:$0xf]
  %v714 = vld [vmem:[%s1 + $0x74] sm:$0xf]
  %v715 = vld [vmem:[%s1 + $0x78] sm:$0xf]
  %v716 = vld [vmem:[%s1 + $0x7c] sm:$0xf]
  %v749 = vunpack.c.l.b16 %v685
  %v750 = vunpack.c.l.b16 %v686
  %v751 = vunpack.c.l.b16 %v687
  %v752 = vunpack.c.l.b16 %v688
  %v753 = vunpack.c.l.b16 %v689
  %v754 = vunpack.c.l.b16 %v690
  %v755 = vunpack.c.l.b16 %v691
  %v756 = vunpack.c.l.b16 %v692
  %v757 = vunpack.c.l.b16 %v693
  %v758 = vunpack.c.l.b16 %v694
  %v759 = vunpack.c.l.b16 %v695
  %v760 = vunpack.c.l.b16 %v696
  %v761 = vunpack.c.l.b16 %v697
  %v762 = vunpack.c.l.b16 %v698
  %v763 = vunpack.c.l.b16 %v699
  %v764 = vunpack.c.l.b16 %v700
  %v765 = vunpack.c.l.b16 %v701
  %v766 = vunpack.c.l.b16 %v702
  %v767 = vunpack.c.l.b16 %v703
  %v768 = vunpack.c.l.b16 %v704
  %v769 = vunpack.c.l.b16 %v705
  %v770 = vunpack.c.l.b16 %v706
  %v771 = vunpack.c.l.b16 %v707
  %v772 = vunpack.c.l.b16 %v708
  %v773 = vunpack.c.l.b16 %v709
  %v774 = vunpack.c.l.b16 %v710
  %v775 = vunpack.c.l.b16 %v711
  %v776 = vunpack.c.l.b16 %v712
  %v777 = vunpack.c.l.b16 %v713
  %v778 = vunpack.c.l.b16 %v714
  %v779 = vunpack.c.l.b16 %v715
  %v780 = vunpack.c.l.b16 %v716
  %v781 = vpack.c.b16 %v750, %v749
  %v782 = vpack.c.b16 %v752, %v751
  %v783 = vpack.c.b16 %v754, %v753
  %v784 = vpack.c.b16 %v756, %v755
  %v785 = vpack.c.b16 %v758, %v757
  %v786 = vpack.c.b16 %v760, %v759
  %v787 = vpack.c.b16 %v762, %v761
  %v788 = vpack.c.b16 %v764, %v763
  %v789 = vpack.c.b16 %v766, %v765
  %v790 = vpack.c.b16 %v768, %v767
  %v791 = vpack.c.b16 %v770, %v769
  %v792 = vpack.c.b16 %v772, %v771
  %v793 = vpack.c.b16 %v774, %v773
  %v794 = vpack.c.b16 %v776, %v775
  %v795 = vpack.c.b16 %v778, %v777
  %v796 = vpack.c.b16 %v780, %v779
  %813 = vmatprep.subr.bf16.mxu0 0
  %814 = vmatpush1.bf16.msra.mxu0 %v781
  %815 = vmatprep.subr.bf16.mxu0 0
  %816 = vmatpush1.bf16.msra.mxu0 %v782
  %817 = vmatprep.subr.bf16.mxu0 0
  %818 = vmatpush1.bf16.msra.mxu0 %v783
  %819 = vmatprep.subr.bf16.mxu0 0
  %820 = vmatpush1.bf16.msra.mxu0 %v784
  %821 = vmatprep.subr.bf16.mxu0 0
  %822 = vmatpush1.bf16.msra.mxu0 %v785
  %823 = vmatprep.subr.bf16.mxu0 0
  %824 = vmatpush1.bf16.msra.mxu0 %v786
  %825 = vmatprep.subr.bf16.mxu0 0
  %826 = vmatpush1.bf16.msra.mxu0 %v787
  %827 = vmatprep.subr.bf16.mxu0 0
  %828 = vmatpush1.bf16.msra.mxu0 %v788
  %829 = vmatprep.subr.bf16.mxu0 0
  %830 = vmatpush1.bf16.msra.mxu0 %v789
  %831 = vmatprep.subr.bf16.mxu0 0
  %832 = vmatpush1.bf16.msra.mxu0 %v790
  %833 = vmatprep.subr.bf16.mxu0 0
  %834 = vmatpush1.bf16.msra.mxu0 %v791
  %835 = vmatprep.subr.bf16.mxu0 0
  %836 = vmatpush1.bf16.msra.mxu0 %v792
  %837 = vmatprep.subr.bf16.mxu0 0
  %838 = vmatpush1.bf16.msra.mxu0 %v793
  %839 = vmatprep.subr.bf16.mxu0 0
  %840 = vmatpush1.bf16.msra.mxu0 %v794
  %841 = vmatprep.subr.bf16.mxu0 0
  %842 = vmatpush1.bf16.msra.mxu0 %v795
  %843 = vmatprep.subr.bf16.mxu0 0
  %844 = vmatpush1.bf16.msra.mxu0 %v796
  %845 = vmatprep.mubr.bf16.mxu0 %v622
  %846 = vmatmul.mubr.bf16.gmra.mrb[0].mxu0 %v621
  %v847 = vpop.f32.mrb[0].mxu0
  %v848 = vadd.f32 0.0, %v847
  %v849 = vpop.f32.mrb[0].mxu0
  %v850 = vpop.f32.mrb[0].mxu0
  %v851 = vadd.f32 0.0, %v850
  %v852 = vpop.f32.mrb[0].mxu0
  %853 = vmatprep.mubr.bf16.mxu0 %v624
  %854 = vmatmul.mubr.bf16.gmra.mrb[0].mxu0 %v623
  %v855 = vpop.f32.mrb[0].mxu0
  %v856 = vadd.f32 0.0, %v855
  %v857 = vpop.f32.mrb[0].mxu0
  %v858 = vpop.f32.mrb[0].mxu0
  %v859 = vadd.f32 0.0, %v858
  %v860 = vpop.f32.mrb[0].mxu0
  %861 = vmatprep.mubr.bf16.mxu0 %v626
  %862 = vmatmul.mubr.bf16.gmra.mrb[0].mxu0 %v625
  %v863 = vpop.f32.mrb[0].mxu0
  %v864 = vadd.f32 0.0, %v863
  %v865 = vpop.f32.mrb[0].mxu0
  %v866 = vpop.f32.mrb[0].mxu0
  %v867 = vadd.f32 0.0, %v866
  %v868 = vpop.f32.mrb[0].mxu0
  %869 = vmatprep.mubr.bf16.mxu0 %v628
  %870 = vmatmul.mubr.bf16.gmra.mrb[0].mxu0 %v627
  %v871 = vpop.f32.mrb[0].mxu0
  %v872 = vadd.f32 0.0, %v871
  %v873 = vpop.f32.mrb[0].mxu0
  %v874 = vpop.f32.mrb[0].mxu0
  %v875 = vadd.f32 0.0, %v874
  %v876 = vpop.f32.mrb[0].mxu0
  %877 = vmatprep.mubr.bf16.mxu0 %v630
  %878 = vmatmul.mubr.bf16.gmra.mrb[0].mxu0 %v629
  %v879 = vpop.f32.mrb[0].mxu0
  %v880 = vadd.f32 0.0, %v879
  %v881 = vpop.f32.mrb[0].mxu0
  %v882 = vpop.f32.mrb[0].mxu0
  %v883 = vadd.f32 0.0, %v882
  %v884 = vpop.f32.mrb[0].mxu0
  %885 = vmatprep.mubr.bf16.mxu0 %v632
  %886 = vmatmul.mubr.bf16.gmra.mrb[0].mxu0 %v631
  %v887 = vpop.f32.mrb[0].mxu0
  %v888 = vadd.f32 0.0, %v887
  %v889 = vpop.f32.mrb[0].mxu0
  %v890 = vpop.f32.mrb[0].mxu0
  %v891 = vadd.f32 0.0, %v890
  %v892 = vpop.f32.mrb[0].mxu0
  %893 = vmatprep.mubr.bf16.mxu0 %v634
  %894 = vmatmul.mubr.bf16.gmra.mrb[0].mxu0 %v633
  %v895 = vpop.f32.mrb[0].mxu0
  %v896 = vadd.f32 0.0, %v895
  %v897 = vpop.f32.mrb[0].mxu0
  %v898 = vpop.f32.mrb[0].mxu0
  %v899 = vadd.f32 0.0, %v898
  %v900 = vpop.f32.mrb[0].mxu0
  %901 = vmatprep.mubr.bf16.mxu0 %v636
  %902 = vmatmul.mubr.bf16.gmra.mrb[0].mxu0 %v635
  %v903 = vpop.f32.mrb[0].mxu0
  %v904 = vadd.f32 0.0, %v903
  %v905 = vpop.f32.mrb[0].mxu0
  %v906 = vpop.f32.mrb[0].mxu0
  %v907 = vadd.f32 0.0, %v906
  %v908 = vpop.f32.mrb[0].mxu0
  %909 = vmatprep.mubr.bf16.mxu0 %v638
  %910 = vmatmul.mubr.bf16.gmra.mrb[0].mxu0 %v637
  %v911 = vpop.f32.mrb[0].mxu0
  %v912 = vadd.f32 0.0, %v911
  %v913 = vpop.f32.mrb[0].mxu0
  %v914 = vpop.f32.mrb[0].mxu0
  %v915 = vadd.f32 0.0, %v914
  %v916 = vpop.f32.mrb[0].mxu0
  %917 = vmatprep.mubr.bf16.mxu0 %v640
  %918 = vmatmul.mubr.bf16.gmra.mrb[0].mxu0 %v639
  %v919 = vpop.f32.mrb[0].mxu0
  %v920 = vadd.f32 0.0, %v919
  %v921 = vpop.f32.mrb[0].mxu0
  %v922 = vpop.f32.mrb[0].mxu0
  %v923 = vadd.f32 0.0, %v922
  %v924 = vpop.f32.mrb[0].mxu0
  %925 = vmatprep.mubr.bf16.mxu0 %v642
  %926 = vmatmul.mubr.bf16.gmra.mrb[0].mxu0 %v641
  %v927 = vpop.f32.mrb[0].mxu0
  %v928 = vadd.f32 0.0, %v927
  %v929 = vpop.f32.mrb[0].mxu0
  %v930 = vpop.f32.mrb[0].mxu0
  %v931 = vadd.f32 0.0, %v930
  %v932 = vpop.f32.mrb[0].mxu0
  %933 = vmatprep.mubr.bf16.mxu0 %v644
  %934 = vmatmul.mubr.bf16.gmra.mrb[0].mxu0 %v643
  %v935 = vpop.f32.mrb[0].mxu0
  %v936 = vadd.f32 0.0, %v935
  %v937 = vpop.f32.mrb[0].mxu0
  %v938 = vpop.f32.mrb[0].mxu0
  %v939 = vadd.f32 0.0, %v938
  %v940 = vpop.f32.mrb[0].mxu0
  %941 = vmatprep.mubr.bf16.mxu0 %v646
  %942 = vmatmul.mubr.bf16.gmra.mrb[0].mxu0 %v645
  %v943 = vpop.f32.mrb[0].mxu0
  %v944 = vadd.f32 0.0, %v943
  %v945 = vpop.f32.mrb[0].mxu0
  %v946 = vpop.f32.mrb[0].mxu0
  %v947 = vadd.f32 0.0, %v946
  %v948 = vpop.f32.mrb[0].mxu0
  %949 = vmatprep.mubr.bf16.mxu0 %v648
  %950 = vmatmul.mubr.bf16.gmra.mrb[0].mxu0 %v647
  %v951 = vpop.f32.mrb[0].mxu0
  %v952 = vadd.f32 0.0, %v951
  %v953 = vpop.f32.mrb[0].mxu0
  %v954 = vpop.f32.mrb[0].mxu0
  %v955 = vadd.f32 0.0, %v954
  %v956 = vpop.f32.mrb[0].mxu0
  %957 = vmatprep.mubr.bf16.mxu0 %v650
  %958 = vmatmul.mubr.bf16.gmra.mrb[0].mxu0 %v649
  %v959 = vpop.f32.mrb[0].mxu0
  %v960 = vadd.f32 0.0, %v959
  %v961 = vpop.f32.mrb[0].mxu0
  %v962 = vpop.f32.mrb[0].mxu0
  %v963 = vadd.f32 0.0, %v962
  %v964 = vpop.f32.mrb[0].mxu0
  %965 = vmatprep.mubr.bf16.mxu0 %v652
  %966 = vmatmul.mubr.bf16.gmra.mrb[0].mxu0 %v651
  %v967 = vpop.f32.mrb[0].mxu0
  %v968 = vadd.f32 0.0, %v967
  %v969 = vpop.f32.mrb[0].mxu0
  %v970 = vpop.f32.mrb[0].mxu0
  %v971 = vadd.f32 0.0, %v970
  %v972 = vpop.f32.mrb[0].mxu0
  %973 = vmatprep.mubr.bf16.mxu0 %v654
  %974 = vmatmul.mubr.bf16.gmra.mrb[0].mxu0 %v653
  %v975 = vpop.f32.mrb[0].mxu0
  %v976 = vadd.f32 0.0, %v975
  %v977 = vpop.f32.mrb[0].mxu0
  %v978 = vpop.f32.mrb[0].mxu0
  %v979 = vadd.f32 0.0, %v978
  %v980 = vpop.f32.mrb[0].mxu0
  %981 = vmatprep.mubr.bf16.mxu0 %v656
  %982 = vmatmul.mubr.bf16.gmra.mrb[0].mxu0 %v655
  %v983 = vpop.f32.mrb[0].mxu0
  %v984 = vadd.f32 0.0, %v983
  %v985 = vpop.f32.mrb[0].mxu0
  %v986 = vpop.f32.mrb[0].mxu0
  %v987 = vadd.f32 0.0, %v986
  %v988 = vpop.f32.mrb[0].mxu0
  %989 = vmatprep.mubr.bf16.mxu0 %v658
  %990 = vmatmul.mubr.bf16.gmra.mrb[0].mxu0 %v657
  %v991 = vpop.f32.mrb[0].mxu0
  %v992 = vadd.f32 0.0, %v991
  %v993 = vpop.f32.mrb[0].mxu0
  %v994 = vpop.f32.mrb[0].mxu0
  %v995 = vadd.f32 0.0, %v994
  %v996 = vpop.f32.mrb[0].mxu0
  %997 = vmatprep.mubr.bf16.mxu0 %v660
  %998 = vmatmul.mubr.bf16.gmra.mrb[0].mxu0 %v659
  %v999 = vpop.f32.mrb[0].mxu0
  %v1000 = vadd.f32 0.0, %v999
  %v1001 = vpop.f32.mrb[0].mxu0
  %v1002 = vpop.f32.mrb[0].mxu0
  %v1003 = vadd.f32 0.0, %v1002
  %v1004 = vpop.f32.mrb[0].mxu0
  %1005 = vmatprep.mubr.bf16.mxu0 %v662
  %1006 = vmatmul.mubr.bf16.gmra.mrb[0].mxu0 %v661
  %v1007 = vpop.f32.mrb[0].mxu0
  %v1008 = vadd.f32 0.0, %v1007
  %v1009 = vpop.f32.mrb[0].mxu0
  %v1010 = vpop.f32.mrb[0].mxu0
  %v1011 = vadd.f32 0.0, %v1010
  %v1012 = vpop.f32.mrb[0].mxu0
  %1013 = vmatprep.mubr.bf16.mxu0 %v664
  %1014 = vmatmul.mubr.bf16.gmra.mrb[0].mxu0 %v663
  %v1015 = vpop.f32.mrb[0].mxu0
  %v1016 = vadd.f32 0.0, %v1015
  %v1017 = vpop.f32.mrb[0].mxu0
  %v1018 = vpop.f32.mrb[0].mxu0
  %v1019 = vadd.f32 0.0, %v1018
  %v1020 = vpop.f32.mrb[0].mxu0
  %1021 = vmatprep.mubr.bf16.mxu0 %v666
  %1022 = vmatmul.mubr.bf16.gmra.mrb[0].mxu0 %v665
  %v1023 = vpop.f32.mrb[0].mxu0
  %v1024 = vadd.f32 0.0, %v1023
  %v1025 = vpop.f32.mrb[0].mxu0
  %v1026 = vpop.f32.mrb[0].mxu0
  %v1027 = vadd.f32 0.0, %v1026
  %v1028 = vpop.f32.mrb[0].mxu0
  %1029 = vmatprep.mubr.bf16.mxu0 %v668
  %1030 = vmatmul.mubr.bf16.gmra.mrb[0].mxu0 %v667
  %v1031 = vpop.f32.mrb[0].mxu0
  %v1032 = vadd.f32 0.0, %v1031
  %v1033 = vpop.f32.mrb[0].mxu0
  %v1034 = vpop.f32.mrb[0].mxu0
  %v1035 = vadd.f32 0.0, %v1034
  %v1036 = vpop.f32.mrb[0].mxu0
  %1037 = vmatprep.mubr.bf16.mxu0 %v670
  %1038 = vmatmul.mubr.bf16.gmra.mrb[0].mxu0 %v669
  %v1039 = vpop.f32.mrb[0].mxu0
  %v1040 = vadd.f32 0.0, %v1039
  %v1041 = vpop.f32.mrb[0].mxu0
  %v1042 = vpop.f32.mrb[0].mxu0
  %v1043 = vadd.f32 0.0, %v1042
  %v1044 = vpop.f32.mrb[0].mxu0
  %1045 = vmatprep.mubr.bf16.mxu0 %v672
  %1046 = vmatmul.mubr.bf16.gmra.mrb[0].mxu0 %v671
  %v1047 = vpop.f32.mrb[0].mxu0
  %v1048 = vadd.f32 0.0, %v1047
  %v1049 = vpop.f32.mrb[0].mxu0
  %v1050 = vpop.f32.mrb[0].mxu0
  %v1051 = vadd.f32 0.0, %v1050
  %v1052 = vpop.f32.mrb[0].mxu0
  %1053 = vmatprep.mubr.bf16.mxu0 %v674
  %1054 = vmatmul.mubr.bf16.gmra.mrb[0].mxu0 %v673
  %v1055 = vpop.f32.mrb[0].mxu0
  %v1056 = vadd.f32 0.0, %v1055
  %v1057 = vpop.f32.mrb[0].mxu0
  %v1058 = vpop.f32.mrb[0].mxu0
  %v1059 = vadd.f32 0.0, %v1058
  %v1060 = vpop.f32.mrb[0].mxu0
  %1061 = vmatprep.mubr.bf16.mxu0 %v676
  %1062 = vmatmul.mubr.bf16.gmra.mrb[0].mxu0 %v675
  %v1063 = vpop.f32.mrb[0].mxu0
  %v1064 = vadd.f32 0.0, %v1063
  %v1065 = vpop.f32.mrb[0].mxu0
  %v1066 = vpop.f32.mrb[0].mxu0
  %v1067 = vadd.f32 0.0, %v1066
  %v1068 = vpop.f32.mrb[0].mxu0
  %1069 = vmatprep.mubr.bf16.mxu0 %v678
  %1070 = vmatmul.mubr.bf16.gmra.mrb[0].mxu0 %v677
  %v1071 = vpop.f32.mrb[0].mxu0
  %v1072 = vadd.f32 0.0, %v1071
  %v1073 = vpop.f32.mrb[0].mxu0
  %v1074 = vpop.f32.mrb[0].mxu0
  %v1075 = vadd.f32 0.0, %v1074
  %v1076 = vpop.f32.mrb[0].mxu0
  %1077 = vmatprep.mubr.bf16.mxu0 %v680
  %1078 = vmatmul.mubr.bf16.gmra.mrb[0].mxu0 %v679
  %v1079 = vpop.f32.mrb[0].mxu0
  %v1080 = vadd.f32 0.0, %v1079
  %v1081 = vpop.f32.mrb[0].mxu0
  %v1082 = vpop.f32.mrb[0].mxu0
  %v1083 = vadd.f32 0.0, %v1082
  %v1084 = vpop.f32.mrb[0].mxu0
  %1085 = vmatprep.mubr.bf16.mxu0 %v682
  %1086 = vmatmul.mubr.bf16.gmra.mrb[0].mxu0 %v681
  %v1087 = vpop.f32.mrb[0].mxu0
  %v1088 = vadd.f32 0.0, %v1087
  %v1089 = vpop.f32.mrb[0].mxu0
  %v1090 = vpop.f32.mrb[0].mxu0
  %v1091 = vadd.f32 0.0, %v1090
  %v1092 = vpop.f32.mrb[0].mxu0
  %1093 = vmatprep.mubr.bf16.mxu0 %v684
  %1094 = vmatmul.mubr.bf16.gmra.mrb[0].mxu0 %v683
  %v1095 = vpop.f32.mrb[0].mxu0
  %v1096 = vadd.f32 0.0, %v1095
  %v1097 = vpop.f32.mrb[0].mxu0
  %v1098 = vpop.f32.mrb[0].mxu0
  %v1099 = vadd.f32 0.0, %v1098
  %v1100 = vpop.f32.mrb[0].mxu0
  %1101 = vdwg.mxu0
  %p1102 = scmp.eq.s32.totalorder 0, 0
  // Predicated region
  $region22: #{_lambda_.33} parent=0 // pred_check
    %p1103 = pneg %p1102
  $region23: #{_lambda_.33} parent=0 // pred_check_branch
    %1105 = sbr.rel (%p1103) target = $region25
  $region24: #{_lambda_.33} parent=0 // pred_region
    %1106 = vst [vmem:[#allocation2] sm:$0xff] %v848
    %1107 = vst [vmem:[#allocation2 + $0x8] sm:$0xff] %v851
    %1108 = vst [vmem:[#allocation2 + $0x10] sm:$0xff] %v856
    %1109 = vst [vmem:[#allocation2 + $0x18] sm:$0xff] %v859
    %1110 = vst [vmem:[#allocation2 + $0x20] sm:$0xff] %v864
    %1111 = vst [vmem:[#allocation2 + $0x28] sm:$0xff] %v867
    %1112 = vst [vmem:[#allocation2 + $0x30] sm:$0xff] %v872
    %1113 = vst [vmem:[#allocation2 + $0x38] sm:$0xff] %v875
    %1114 = vst [vmem:[#allocation2 + $0x40] sm:$0xff] %v880
    %1115 = vst [vmem:[#allocation2 + $0x48] sm:$0xff] %v883
    %1116 = vst [vmem:[#allocation2 + $0x50] sm:$0xff] %v888
    %1117 = vst [vmem:[#allocation2 + $0x58] sm:$0xff] %v891
    %1118 = vst [vmem:[#allocation2 + $0x60] sm:$0xff] %v896
    %1119 = vst [vmem:[#allocation2 + $0x68] sm:$0xff] %v899
    %1120 = vst [vmem:[#allocation2 + $0x70] sm:$0xff] %v904
    %1121 = vst [vmem:[#allocation2 + $0x78] sm:$0xff] %v907
    %1122 = vst [vmem:[#allocation2 + $0x80] sm:$0xff] %v912
    %1123 = vst [vmem:[#allocation2 + $0x88] sm:$0xff] %v915
    %1124 = vst [vmem:[#allocation2 + $0x90] sm:$0xff] %v920
    %1125 = vst [vmem:[#allocation2 + $0x98] sm:$0xff] %v923
    %1126 = vst [vmem:[#allocation2 + $0xa0] sm:$0xff] %v928
    %1127 = vst [vmem:[#allocation2 + $0xa8] sm:$0xff] %v931
    %1128 = vst [vmem:[#allocation2 + $0xb0] sm:$0xff] %v936
    %1129 = vst [vmem:[#allocation2 + $0xb8] sm:$0xff] %v939
    %1130 = vst [vmem:[#allocation2 + $0xc0] sm:$0xff] %v944
    %1131 = vst [vmem:[#allocation2 + $0xc8] sm:$0xff] %v947
    %1132 = vst [vmem:[#allocation2 + $0xd0] sm:$0xff] %v952
    %1133 = vst [vmem:[#allocation2 + $0xd8] sm:$0xff] %v955
    %1134 = vst [vmem:[#allocation2 + $0xe0] sm:$0xff] %v960
    %1135 = vst [vmem:[#allocation2 + $0xe8] sm:$0xff] %v963
    %1136 = vst [vmem:[#allocation2 + $0xf0] sm:$0xff] %v968
    %1137 = vst [vmem:[#allocation2 + $0xf8] sm:$0xff] %v971
    %1138 = vst [vmem:[#allocation2 + $0x100] sm:$0xff] %v976
    %1139 = vst [vmem:[#allocation2 + $0x108] sm:$0xff] %v979
    %1140 = vst [vmem:[#allocation2 + $0x110] sm:$0xff] %v984
    %1141 = vst [vmem:[#allocation2 + $0x118] sm:$0xff] %v987
    %1142 = vst [vmem:[#allocation2 + $0x120] sm:$0xff] %v992
    %1143 = vst [vmem:[#allocation2 + $0x128] sm:$0xff] %v995
    %1144 = vst [vmem:[#allocation2 + $0x130] sm:$0xff] %v1000
    %1145 = vst [vmem:[#allocation2 + $0x138] sm:$0xff] %v1003
    %1146 = vst [vmem:[#allocation2 + $0x140] sm:$0xff] %v1008
    %1147 = vst [vmem:[#allocation2 + $0x148] sm:$0xff] %v1011
    %1148 = vst [vmem:[#allocation2 + $0x150] sm:$0xff] %v1016
    %1149 = vst [vmem:[#allocation2 + $0x158] sm:$0xff] %v1019
    %1150 = vst [vmem:[#allocation2 + $0x160] sm:$0xff] %v1024
    %1151 = vst [vmem:[#allocation2 + $0x168] sm:$0xff] %v1027
    %1152 = vst [vmem:[#allocation2 + $0x170] sm:$0xff] %v1032
    %1153 = vst [vmem:[#allocation2 + $0x178] sm:$0xff] %v1035
    %1154 = vst [vmem:[#allocation2 + $0x180] sm:$0xff] %v1040
    %1155 = vst [vmem:[#allocation2 + $0x188] sm:$0xff] %v1043
    %1156 = vst [vmem:[#allocation2 + $0x190] sm:$0xff] %v1048
    %1157 = vst [vmem:[#allocation2 + $0x198] sm:$0xff] %v1051
    %1158 = vst [vmem:[#allocation2 + $0x1a0] sm:$0xff] %v1056
    %1159 = vst [vmem:[#allocation2 + $0x1a8] sm:$0xff] %v1059
    %1160 = vst [vmem:[#allocation2 + $0x1b0] sm:$0xff] %v1064
    %1161 = vst [vmem:[#allocation2 + $0x1b8] sm:$0xff] %v1067
    %1162 = vst [vmem:[#allocation2 + $0x1c0] sm:$0xff] %v1072
    %1163 = vst [vmem:[#allocation2 + $0x1c8] sm:$0xff] %v1075
    %1164 = vst [vmem:[#allocation2 + $0x1d0] sm:$0xff] %v1080
    %1165 = vst [vmem:[#allocation2 + $0x1d8] sm:$0xff] %v1083
    %1166 = vst [vmem:[#allocation2 + $0x1e0] sm:$0xff] %v1088
    %1167 = vst [vmem:[#allocation2 + $0x1e8] sm:$0xff] %v1091
    %1168 = vst [vmem:[#allocation2 + $0x1f0] sm:$0xff] %v1096
    %1169 = vst [vmem:[#allocation2 + $0x1f8] sm:$0xff] %v1099
  $region25: #{_lambda_.33} parent=0 // pred_fallthru
    _
  %p1170 = scmp.gt.s32.totalorder 0, 0
  // Predicated region
  $region26: #{_lambda_.33} parent=0 // pred_check
    %p1171 = pneg %p1170
  $region27: #{_lambda_.33} parent=0 // pred_check_branch
    %1173 = sbr.rel (%p1171) target = $region29
  $region28: #{_lambda_.33} parent=0 // pred_region
    %v1174 = vld [vmem:[#allocation2] sm:$0xff]
    %v1175 = vld [vmem:[#allocation2 + $0x8] sm:$0xff]
    %v1176 = vld [vmem:[#allocation2 + $0x10] sm:$0xff]
    %v1177 = vld [vmem:[#allocation2 + $0x18] sm:$0xff]
    %v1178 = vld [vmem:[#allocation2 + $0x20] sm:$0xff]
    %v1179 = vld [vmem:[#allocation2 + $0x28] sm:$0xff]
    %v1180 = vld [vmem:[#allocation2 + $0x30] sm:$0xff]
    %v1181 = vld [vmem:[#allocation2 + $0x38] sm:$0xff]
    %v1182 = vld [vmem:[#allocation2 + $0x40] sm:$0xff]
    %v1183 = vld [vmem:[#allocation2 + $0x48] sm:$0xff]
    %v1184 = vld [vmem:[#allocation2 + $0x50] sm:$0xff]
    %v1185 = vld [vmem:[#allocation2 + $0x58] sm:$0xff]
    %v1186 = vld [vmem:[#allocation2 + $0x60] sm:$0xff]
    %v1187 = vld [vmem:[#allocation2 + $0x68] sm:$0xff]
    %v1188 = vld [vmem:[#allocation2 + $0x70] sm:$0xff]
    %v1189 = vld [vmem:[#allocation2 + $0x78] sm:$0xff]
    %v1190 = vld [vmem:[#allocation2 + $0x80] sm:$0xff]
    %v1191 = vld [vmem:[#allocation2 + $0x88] sm:$0xff]
    %v1192 = vld [vmem:[#allocation2 + $0x90] sm:$0xff]
    %v1193 = vld [vmem:[#allocation2 + $0x98] sm:$0xff]
    %v1194 = vld [vmem:[#allocation2 + $0xa0] sm:$0xff]
    %v1195 = vld [vmem:[#allocation2 + $0xa8] sm:$0xff]
    %v1196 = vld [vmem:[#allocation2 + $0xb0] sm:$0xff]
    %v1197 = vld [vmem:[#allocation2 + $0xb8] sm:$0xff]
    %v1198 = vld [vmem:[#allocation2 + $0xc0] sm:$0xff]
    %v1199 = vld [vmem:[#allocation2 + $0xc8] sm:$0xff]
    %v1200 = vld [vmem:[#allocation2 + $0xd0] sm:$0xff]
    %v1201 = vld [vmem:[#allocation2 + $0xd8] sm:$0xff]
    %v1202 = vld [vmem:[#allocation2 + $0xe0] sm:$0xff]
    %v1203 = vld [vmem:[#allocation2 + $0xe8] sm:$0xff]
    %v1204 = vld [vmem:[#allocation2 + $0xf0] sm:$0xff]
    %v1205 = vld [vmem:[#allocation2 + $0xf8] sm:$0xff]
    %v1206 = vld [vmem:[#allocation2 + $0x100] sm:$0xff]
    %v1207 = vld [vmem:[#allocation2 + $0x108] sm:$0xff]
    %v1208 = vld [vmem:[#allocation2 + $0x110] sm:$0xff]
    %v1209 = vld [vmem:[#allocation2 + $0x118] sm:$0xff]
    %v1210 = vld [vmem:[#allocation2 + $0x120] sm:$0xff]
    %v1211 = vld [vmem:[#allocation2 + $0x128] sm:$0xff]
    %v1212 = vld [vmem:[#allocation2 + $0x130] sm:$0xff]
    %v1213 = vld [vmem:[#allocation2 + $0x138] sm:$0xff]
    %v1214 = vld [vmem:[#allocation2 + $0x140] sm:$0xff]
    %v1215 = vld [vmem:[#allocation2 + $0x148] sm:$0xff]
    %v1216 = vld [vmem:[#allocation2 + $0x150] sm:$0xff]
    %v1217 = vld [vmem:[#allocation2 + $0x158] sm:$0xff]
    %v1218 = vld [vmem:[#allocation2 + $0x160] sm:$0xff]
    %v1219 = vld [vmem:[#allocation2 + $0x168] sm:$0xff]
    %v1220 = vld [vmem:[#allocation2 + $0x170] sm:$0xff]
    %v1221 = vld [vmem:[#allocation2 + $0x178] sm:$0xff]
    %v1222 = vld [vmem:[#allocation2 + $0x180] sm:$0xff]
    %v1223 = vld [vmem:[#allocation2 + $0x188] sm:$0xff]
    %v1224 = vld [vmem:[#allocation2 + $0x190] sm:$0xff]
    %v1225 = vld [vmem:[#allocation2 + $0x198] sm:$0xff]
    %v1226 = vld [vmem:[#allocation2 + $0x1a0] sm:$0xff]
    %v1227 = vld [vmem:[#allocation2 + $0x1a8] sm:$0xff]
    %v1228 = vld [vmem:[#allocation2 + $0x1b0] sm:$0xff]
    %v1229 = vld [vmem:[#allocation2 + $0x1b8] sm:$0xff]
    %v1230 = vld [vmem:[#allocation2 + $0x1c0] sm:$0xff]
    %v1231 = vld [vmem:[#allocation2 + $0x1c8] sm:$0xff]
    %v1232 = vld [vmem:[#allocation2 + $0x1d0] sm:$0xff]
    %v1233 = vld [vmem:[#allocation2 + $0x1d8] sm:$0xff]
    %v1234 = vld [vmem:[#allocation2 + $0x1e0] sm:$0xff]
    %v1235 = vld [vmem:[#allocation2 + $0x1e8] sm:$0xff]
    %v1236 = vld [vmem:[#allocation2 + $0x1f0] sm:$0xff]
    %v1237 = vld [vmem:[#allocation2 + $0x1f8] sm:$0xff]
    %v1238 = vadd.f32 %v1174, %v848
    %v1239 = vadd.f32 %v1175, %v851
    %v1240 = vadd.f32 %v1176, %v856
    %v1241 = vadd.f32 %v1177, %v859
    %v1242 = vadd.f32 %v1178, %v864
    %v1243 = vadd.f32 %v1179, %v867
    %v1244 = vadd.f32 %v1180, %v872
    %v1245 = vadd.f32 %v1181, %v875
    %v1246 = vadd.f32 %v1182, %v880
    %v1247 = vadd.f32 %v1183, %v883
    %v1248 = vadd.f32 %v1184, %v888
    %v1249 = vadd.f32 %v1185, %v891
    %v1250 = vadd.f32 %v1186, %v896
    %v1251 = vadd.f32 %v1187, %v899
    %v1252 = vadd.f32 %v1188, %v904
    %v1253 = vadd.f32 %v1189, %v907
    %v1254 = vadd.f32 %v1190, %v912
    %v1255 = vadd.f32 %v1191, %v915
    %v1256 = vadd.f32 %v1192, %v920
    %v1257 = vadd.f32 %v1193, %v923
    %v1258 = vadd.f32 %v1194, %v928
    %v1259 = vadd.f32 %v1195, %v931
    %v1260 = vadd.f32 %v1196, %v936
    %v1261 = vadd.f32 %v1197, %v939
    %v1262 = vadd.f32 %v1198, %v944
    %v1263 = vadd.f32 %v1199, %v947
    %v1264 = vadd.f32 %v1200, %v952
    %v1265 = vadd.f32 %v1201, %v955
    %v1266 = vadd.f32 %v1202, %v960
    %v1267 = vadd.f32 %v1203, %v963
    %v1268 = vadd.f32 %v1204, %v968
    %v1269 = vadd.f32 %v1205, %v971
    %v1270 = vadd.f32 %v1206, %v976
    %v1271 = vadd.f32 %v1207, %v979
    %v1272 = vadd.f32 %v1208, %v984
    %v1273 = vadd.f32 %v1209, %v987
    %v1274 = vadd.f32 %v1210, %v992
    %v1275 = vadd.f32 %v1211, %v995
    %v1276 = vadd.f32 %v1212, %v1000
    %v1277 = vadd.f32 %v1213, %v1003
    %v1278 = vadd.f32 %v1214, %v1008
    %v1279 = vadd.f32 %v1215, %v1011
    %v1280 = vadd.f32 %v1216, %v1016
    %v1281 = vadd.f32 %v1217, %v1019
    %v1282 = vadd.f32 %v1218, %v1024
    %v1283 = vadd.f32 %v1219, %v1027
    %v1284 = vadd.f32 %v1220, %v1032
    %v1285 = vadd.f32 %v1221, %v1035
    %v1286 = vadd.f32 %v1222, %v1040
    %v1287 = vadd.f32 %v1223, %v1043
    %v1288 = vadd.f32 %v1224, %v1048
    %v1289 = vadd.f32 %v1225, %v1051
    %v1290 = vadd.f32 %v1226, %v1056
    %v1291 = vadd.f32 %v1227, %v1059
    %v1292 = vadd.f32 %v1228, %v1064
    %v1293 = vadd.f32 %v1229, %v1067
    %v1294 = vadd.f32 %v1230, %v1072
    %v1295 = vadd.f32 %v1231, %v1075
    %v1296 = vadd.f32 %v1232, %v1080
    %v1297 = vadd.f32 %v1233, %v1083
    %v1298 = vadd.f32 %v1234, %v1088
    %v1299 = vadd.f32 %v1235, %v1091
    %v1300 = vadd.f32 %v1236, %v1096
    %v1301 = vadd.f32 %v1237, %v1099
    %1302 = vst [vmem:[#allocation2] sm:$0xff] %v1238
    %1303 = vst [vmem:[#allocation2 + $0x8] sm:$0xff] %v1239
    %1304 = vst [vmem:[#allocation2 + $0x10] sm:$0xff] %v1240
    %1305 = vst [vmem:[#allocation2 + $0x18] sm:$0xff] %v1241
    %1306 = vst [vmem:[#allocation2 + $0x20] sm:$0xff] %v1242
    %1307 = vst [vmem:[#allocation2 + $0x28] sm:$0xff] %v1243
    %1308 = vst [vmem:[#allocation2 + $0x30] sm:$0xff] %v1244
    %1309 = vst [vmem:[#allocation2 + $0x38] sm:$0xff] %v1245
    %1310 = vst [vmem:[#allocation2 + $0x40] sm:$0xff] %v1246
    %1311 = vst [vmem:[#allocation2 + $0x48] sm:$0xff] %v1247
    %1312 = vst [vmem:[#allocation2 + $0x50] sm:$0xff] %v1248
    %1313 = vst [vmem:[#allocation2 + $0x58] sm:$0xff] %v1249
    %1314 = vst [vmem:[#allocation2 + $0x60] sm:$0xff] %v1250
    %1315 = vst [vmem:[#allocation2 + $0x68] sm:$0xff] %v1251
    %1316 = vst [vmem:[#allocation2 + $0x70] sm:$0xff] %v1252
    %1317 = vst [vmem:[#allocation2 + $0x78] sm:$0xff] %v1253
    %1318 = vst [vmem:[#allocation2 + $0x80] sm:$0xff] %v1254
    %1319 = vst [vmem:[#allocation2 + $0x88] sm:$0xff] %v1255
    %1320 = vst [vmem:[#allocation2 + $0x90] sm:$0xff] %v1256
    %1321 = vst [vmem:[#allocation2 + $0x98] sm:$0xff] %v1257
    %1322 = vst [vmem:[#allocation2 + $0xa0] sm:$0xff] %v1258
    %1323 = vst [vmem:[#allocation2 + $0xa8] sm:$0xff] %v1259
    %1324 = vst [vmem:[#allocation2 + $0xb0] sm:$0xff] %v1260
    %1325 = vst [vmem:[#allocation2 + $0xb8] sm:$0xff] %v1261
    %1326 = vst [vmem:[#allocation2 + $0xc0] sm:$0xff] %v1262
    %1327 = vst [vmem:[#allocation2 + $0xc8] sm:$0xff] %v1263
    %1328 = vst [vmem:[#allocation2 + $0xd0] sm:$0xff] %v1264
    %1329 = vst [vmem:[#allocation2 + $0xd8] sm:$0xff] %v1265
    %1330 = vst [vmem:[#allocation2 + $0xe0] sm:$0xff] %v1266
    %1331 = vst [vmem:[#allocation2 + $0xe8] sm:$0xff] %v1267
    %1332 = vst [vmem:[#allocation2 + $0xf0] sm:$0xff] %v1268
    %1333 = vst [vmem:[#allocation2 + $0xf8] sm:$0xff] %v1269
    %1334 = vst [vmem:[#allocation2 + $0x100] sm:$0xff] %v1270
    %1335 = vst [vmem:[#allocation2 + $0x108] sm:$0xff] %v1271
    %1336 = vst [vmem:[#allocation2 + $0x110] sm:$0xff] %v1272
    %1337 = vst [vmem:[#allocation2 + $0x118] sm:$0xff] %v1273
    %1338 = vst [vmem:[#allocation2 + $0x120] sm:$0xff] %v1274
    %1339 = vst [vmem:[#allocation2 + $0x128] sm:$0xff] %v1275
    %1340 = vst [vmem:[#allocation2 + $0x130] sm:$0xff] %v1276
    %1341 = vst [vmem:[#allocation2 + $0x138] sm:$0xff] %v1277
    %1342 = vst [vmem:[#allocation2 + $0x140] sm:$0xff] %v1278
    %1343 = vst [vmem:[#allocation2 + $0x148] sm:$0xff] %v1279
    %1344 = vst [vmem:[#allocation2 + $0x150] sm:$0xff] %v1280
    %1345 = vst [vmem:[#allocation2 + $0x158] sm:$0xff] %v1281
    %1346 = vst [vmem:[#allocation2 + $0x160] sm:$0xff] %v1282
    %1347 = vst [vmem:[#allocation2 + $0x168] sm:$0xff] %v1283
    %1348 = vst [vmem:[#allocation2 + $0x170] sm:$0xff] %v1284
    %1349 = vst [vmem:[#allocation2 + $0x178] sm:$0xff] %v1285
    %1350 = vst [vmem:[#allocation2 + $0x180] sm:$0xff] %v1286
    %1351 = vst [vmem:[#allocation2 + $0x188] sm:$0xff] %v1287
    %1352 = vst [vmem:[#allocation2 + $0x190] sm:$0xff] %v1288
    %1353 = vst [vmem:[#allocation2 + $0x198] sm:$0xff] %v1289
    %1354 = vst [vmem:[#allocation2 + $0x1a0] sm:$0xff] %v1290
    %1355 = vst [vmem:[#allocation2 + $0x1a8] sm:$0xff] %v1291
    %1356 = vst [vmem:[#allocation2 + $0x1b0] sm:$0xff] %v1292
    %1357 = vst [vmem:[#allocation2 + $0x1b8] sm:$0xff] %v1293
    %1358 = vst [vmem:[#allocation2 + $0x1c0] sm:$0xff] %v1294
    %1359 = vst [vmem:[#allocation2 + $0x1c8] sm:$0xff] %v1295
    %1360 = vst [vmem:[#allocation2 + $0x1d0] sm:$0xff] %v1296
    %1361 = vst [vmem:[#allocation2 + $0x1d8] sm:$0xff] %v1297
    %1362 = vst [vmem:[#allocation2 + $0x1e0] sm:$0xff] %v1298
    %1363 = vst [vmem:[#allocation2 + $0x1e8] sm:$0xff] %v1299
    %1364 = vst [vmem:[#allocation2 + $0x1f0] sm:$0xff] %v1300
    %1365 = vst [vmem:[#allocation2 + $0x1f8] sm:$0xff] %v1301
  $region29: #{_lambda_.33} parent=0 // pred_fallthru
    _
  // Predicated region
  $region30: #{_lambda_.33} parent=0 // pred_check
    %p1366 = pneg %p1102
  $region31: #{_lambda_.33} parent=0 // pred_check_branch
    %1368 = sbr.rel (%p1366) target = $region33
  $region32: #{_lambda_.33} parent=0 // pred_region
    %v1369 = vld [vmem:[#allocation2] sm:$0xff]
    %v1370 = vld [vmem:[#allocation2 + $0x8] sm:$0xff]
    %v1371 = vld [vmem:[#allocation2 + $0x10] sm:$0xff]
    %v1372 = vld [vmem:[#allocation2 + $0x18] sm:$0xff]
    %v1373 = vld [vmem:[#allocation2 + $0x20] sm:$0xff]
    %v1374 = vld [vmem:[#allocation2 + $0x28] sm:$0xff]
    %v1375 = vld [vmem:[#allocation2 + $0x30] sm:$0xff]
    %v1376 = vld [vmem:[#allocation2 + $0x38] sm:$0xff]
    %v1377 = vld [vmem:[#allocation2 + $0x40] sm:$0xff]
    %v1378 = vld [vmem:[#allocation2 + $0x48] sm:$0xff]
    %v1379 = vld [vmem:[#allocation2 + $0x50] sm:$0xff]
    %v1380 = vld [vmem:[#allocation2 + $0x58] sm:$0xff]
    %v1381 = vld [vmem:[#allocation2 + $0x60] sm:$0xff]
    %v1382 = vld [vmem:[#allocation2 + $0x68] sm:$0xff]
    %v1383 = vld [vmem:[#allocation2 + $0x70] sm:$0xff]
    %v1384 = vld [vmem:[#allocation2 + $0x78] sm:$0xff]
    %v1385 = vld [vmem:[#allocation2 + $0x80] sm:$0xff]
    %v1386 = vld [vmem:[#allocation2 + $0x88] sm:$0xff]
    %v1387 = vld [vmem:[#allocation2 + $0x90] sm:$0xff]
    %v1388 = vld [vmem:[#allocation2 + $0x98] sm:$0xff]
    %v1389 = vld [vmem:[#allocation2 + $0xa0] sm:$0xff]
    %v1390 = vld [vmem:[#allocation2 + $0xa8] sm:$0xff]
    %v1391 = vld [vmem:[#allocation2 + $0xb0] sm:$0xff]
    %v1392 = vld [vmem:[#allocation2 + $0xb8] sm:$0xff]
    %v1393 = vld [vmem:[#allocation2 + $0xc0] sm:$0xff]
    %v1394 = vld [vmem:[#allocation2 + $0xc8] sm:$0xff]
    %v1395 = vld [vmem:[#allocation2 + $0xd0] sm:$0xff]
    %v1396 = vld [vmem:[#allocation2 + $0xd8] sm:$0xff]
    %v1397 = vld [vmem:[#allocation2 + $0xe0] sm:$0xff]
    %v1398 = vld [vmem:[#allocation2 + $0xe8] sm:$0xff]
    %v1399 = vld [vmem:[#allocation2 + $0xf0] sm:$0xff]
    %v1400 = vld [vmem:[#allocation2 + $0xf8] sm:$0xff]
    %v1401 = vld [vmem:[#allocation2 + $0x100] sm:$0xff]
    %v1402 = vld [vmem:[#allocation2 + $0x108] sm:$0xff]
    %v1403 = vld [vmem:[#allocation2 + $0x110] sm:$0xff]
    %v1404 = vld [vmem:[#allocation2 + $0x118] sm:$0xff]
    %v1405 = vld [vmem:[#allocation2 + $0x120] sm:$0xff]
    %v1406 = vld [vmem:[#allocation2 + $0x128] sm:$0xff]
    %v1407 = vld [vmem:[#allocation2 + $0x130] sm:$0xff]
    %v1408 = vld [vmem:[#allocation2 + $0x138] sm:$0xff]
    %v1409 = vld [vmem:[#allocation2 + $0x140] sm:$0xff]
    %v1410 = vld [vmem:[#allocation2 + $0x148] sm:$0xff]
    %v1411 = vld [vmem:[#allocation2 + $0x150] sm:$0xff]
    %v1412 = vld [vmem:[#allocation2 + $0x158] sm:$0xff]
    %v1413 = vld [vmem:[#allocation2 + $0x160] sm:$0xff]
    %v1414 = vld [vmem:[#allocation2 + $0x168] sm:$0xff]
    %v1415 = vld [vmem:[#allocation2 + $0x170] sm:$0xff]
    %v1416 = vld [vmem:[#allocation2 + $0x178] sm:$0xff]
    %v1417 = vld [vmem:[#allocation2 + $0x180] sm:$0xff]
    %v1418 = vld [vmem:[#allocation2 + $0x188] sm:$0xff]
    %v1419 = vld [vmem:[#allocation2 + $0x190] sm:$0xff]
    %v1420 = vld [vmem:[#allocation2 + $0x198] sm:$0xff]
    %v1421 = vld [vmem:[#allocation2 + $0x1a0] sm:$0xff]
    %v1422 = vld [vmem:[#allocation2 + $0x1a8] sm:$0xff]
    %v1423 = vld [vmem:[#allocation2 + $0x1b0] sm:$0xff]
    %v1424 = vld [vmem:[#allocation2 + $0x1b8] sm:$0xff]
    %v1425 = vld [vmem:[#allocation2 + $0x1c0] sm:$0xff]
    %v1426 = vld [vmem:[#allocation2 + $0x1c8] sm:$0xff]
    %v1427 = vld [vmem:[#allocation2 + $0x1d0] sm:$0xff]
    %v1428 = vld [vmem:[#allocation2 + $0x1d8] sm:$0xff]
    %v1429 = vld [vmem:[#allocation2 + $0x1e0] sm:$0xff]
    %v1430 = vld [vmem:[#allocation2 + $0x1e8] sm:$0xff]
    %v1431 = vld [vmem:[#allocation2 + $0x1f0] sm:$0xff]
    %v1432 = vld [vmem:[#allocation2 + $0x1f8] sm:$0xff]
    %v1433 = vld [vmem:[%s4] sm:$0x1]
    %v1435 = vlaneseq
    %v1436 = vshrl.u32 %v1435, 7
    %v1437 = vsub.s32 0, %v1436
    %v1438 = vrot.slane %v1433, %v1437
    %v1440 = vadd.f32 %v1369, %v1438
    %v1441 = vadd.f32 %v1370, %v1438
    %v1442 = vadd.f32 %v1371, %v1438
    %v1443 = vadd.f32 %v1372, %v1438
    %v1444 = vadd.f32 %v1373, %v1438
    %v1445 = vadd.f32 %v1374, %v1438
    %v1446 = vadd.f32 %v1375, %v1438
    %v1447 = vadd.f32 %v1376, %v1438
    %v1448 = vadd.f32 %v1377, %v1438
    %v1449 = vadd.f32 %v1378, %v1438
    %v1450 = vadd.f32 %v1379, %v1438
    %v1451 = vadd.f32 %v1380, %v1438
    %v1452 = vadd.f32 %v1381, %v1438
    %v1453 = vadd.f32 %v1382, %v1438
    %v1454 = vadd.f32 %v1383, %v1438
    %v1455 = vadd.f32 %v1384, %v1438
    %v1456 = vadd.f32 %v1385, %v1438
    %v1457 = vadd.f32 %v1386, %v1438
    %v1458 = vadd.f32 %v1387, %v1438
    %v1459 = vadd.f32 %v1388, %v1438
    %v1460 = vadd.f32 %v1389, %v1438
    %v1461 = vadd.f32 %v1390, %v1438
    %v1462 = vadd.f32 %v1391, %v1438
    %v1463 = vadd.f32 %v1392, %v1438
    %v1464 = vadd.f32 %v1393, %v1438
    %v1465 = vadd.f32 %v1394, %v1438
    %v1466 = vadd.f32 %v1395, %v1438
    %v1467 = vadd.f32 %v1396, %v1438
    %v1468 = vadd.f32 %v1397, %v1438
    %v1469 = vadd.f32 %v1398, %v1438
    %v1470 = vadd.f32 %v1399, %v1438
    %v1471 = vadd.f32 %v1400, %v1438
    %v1472 = vadd.f32 %v1401, %v1438
    %v1473 = vadd.f32 %v1402, %v1438
    %v1474 = vadd.f32 %v1403, %v1438
    %v1475 = vadd.f32 %v1404, %v1438
    %v1476 = vadd.f32 %v1405, %v1438
    %v1477 = vadd.f32 %v1406, %v1438
    %v1478 = vadd.f32 %v1407, %v1438
    %v1479 = vadd.f32 %v1408, %v1438
    %v1480 = vadd.f32 %v1409, %v1438
    %v1481 = vadd.f32 %v1410, %v1438
    %v1482 = vadd.f32 %v1411, %v1438
    %v1483 = vadd.f32 %v1412, %v1438
    %v1484 = vadd.f32 %v1413, %v1438
    %v1485 = vadd.f32 %v1414, %v1438
    %v1486 = vadd.f32 %v1415, %v1438
    %v1487 = vadd.f32 %v1416, %v1438
    %v1488 = vadd.f32 %v1417, %v1438
    %v1489 = vadd.f32 %v1418, %v1438
    %v1490 = vadd.f32 %v1419, %v1438
    %v1491 = vadd.f32 %v1420, %v1438
    %v1492 = vadd.f32 %v1421, %v1438
    %v1493 = vadd.f32 %v1422, %v1438
    %v1494 = vadd.f32 %v1423, %v1438
    %v1495 = vadd.f32 %v1424, %v1438
    %v1496 = vadd.f32 %v1425, %v1438
    %v1497 = vadd.f32 %v1426, %v1438
    %v1498 = vadd.f32 %v1427, %v1438
    %v1499 = vadd.f32 %v1428, %v1438
    %v1500 = vadd.f32 %v1429, %v1438
    %v1501 = vadd.f32 %v1430, %v1438
    %v1502 = vadd.f32 %v1431, %v1438
    %v1503 = vadd.f32 %v1432, %v1438
    %v1504 = vtanh.pop %v1440
    %v1505 = vtanh.pop %v1441
    %v1506 = vtanh.pop %v1442
    %v1507 = vtanh.pop %v1443
    %v1508 = vtanh.pop %v1444
    %v1509 = vtanh.pop %v1445
    %v1510 = vtanh.pop %v1446
    %v1511 = vtanh.pop %v1447
    %v1512 = vtanh.pop %v1448
    %v1513 = vtanh.pop %v1449
    %v1514 = vtanh.pop %v1450
    %v1515 = vtanh.pop %v1451
    %v1516 = vtanh.pop %v1452
    %v1517 = vtanh.pop %v1453
    %v1518 = vtanh.pop %v1454
    %v1519 = vtanh.pop %v1455
    %v1520 = vtanh.pop %v1456
    %v1521 = vtanh.pop %v1457
    %v1522 = vtanh.pop %v1458
    %v1523 = vtanh.pop %v1459
    %v1524 = vtanh.pop %v1460
    %v1525 = vtanh.pop %v1461
    %v1526 = vtanh.pop %v1462
    %v1527 = vtanh.pop %v1463
    %v1528 = vtanh.pop %v1464
    %v1529 = vtanh.pop %v1465
    %v1530 = vtanh.pop %v1466
    %v1531 = vtanh.pop %v1467
    %v1532 = vtanh.pop %v1468
    %v1533 = vtanh.pop %v1469
    %v1534 = vtanh.pop %v1470
    %v1535 = vtanh.pop %v1471
    %v1536 = vtanh.pop %v1472
    %v1537 = vtanh.pop %v1473
    %v1538 = vtanh.pop %v1474
    %v1539 = vtanh.pop %v1475
    %v1540 = vtanh.pop %v1476
    %v1541 = vtanh.pop %v1477
    %v1542 = vtanh.pop %v1478
    %v1543 = vtanh.pop %v1479
    %v1544 = vtanh.pop %v1480
    %v1545 = vtanh.pop %v1481
    %v1546 = vtanh.pop %v1482
    %v1547 = vtanh.pop %v1483
    %v1548 = vtanh.pop %v1484
    %v1549 = vtanh.pop %v1485
    %v1550 = vtanh.pop %v1486
    %v1551 = vtanh.pop %v1487
    %v1552 = vtanh.pop %v1488
    %v1553 = vtanh.pop %v1489
    %v1554 = vtanh.pop %v1490
    %v1555 = vtanh.pop %v1491
    %v1556 = vtanh.pop %v1492
    %v1557 = vtanh.pop %v1493
    %v1558 = vtanh.pop %v1494
    %v1559 = vtanh.pop %v1495
    %v1560 = vtanh.pop %v1496
    %v1561 = vtanh.pop %v1497
    %v1562 = vtanh.pop %v1498
    %v1563 = vtanh.pop %v1499
    %v1564 = vtanh.pop %v1500
    %v1565 = vtanh.pop %v1501
    %v1566 = vtanh.pop %v1502
    %v1567 = vtanh.pop %v1503
    %1568 = vst [vmem:[%s5] sm:$0xff] %v1504
    %1569 = vst [vmem:[%s5 + $0x8] sm:$0xff] %v1505
    %1570 = vst [vmem:[%s5 + $0x10] sm:$0xff] %v1506
    %1571 = vst [vmem:[%s5 + $0x18] sm:$0xff] %v1507
    %1572 = vst [vmem:[%s5 + $0x20] sm:$0xff] %v1508
    %1573 = vst [vmem:[%s5 + $0x28] sm:$0xff] %v1509
    %1574 = vst [vmem:[%s5 + $0x30] sm:$0xff] %v1510
    %1575 = vst [vmem:[%s5 + $0x38] sm:$0xff] %v1511
    %1576 = vst [vmem:[%s5 + $0x40] sm:$0xff] %v1512
    %1577 = vst [vmem:[%s5 + $0x48] sm:$0xff] %v1513
    %1578 = vst [vmem:[%s5 + $0x50] sm:$0xff] %v1514
    %1579 = vst [vmem:[%s5 + $0x58] sm:$0xff] %v1515
    %1580 = vst [vmem:[%s5 + $0x60] sm:$0xff] %v1516
    %1581 = vst [vmem:[%s5 + $0x68] sm:$0xff] %v1517
    %1582 = vst [vmem:[%s5 + $0x70] sm:$0xff] %v1518
    %1583 = vst [vmem:[%s5 + $0x78] sm:$0xff] %v1519
    %1584 = vst [vmem:[%s5 + $0x80] sm:$0xff] %v1520
    %1585 = vst [vmem:[%s5 + $0x88] sm:$0xff] %v1521
    %1586 = vst [vmem:[%s5 + $0x90] sm:$0xff] %v1522
    %1587 = vst [vmem:[%s5 + $0x98] sm:$0xff] %v1523
    %1588 = vst [vmem:[%s5 + $0xa0] sm:$0xff] %v1524
    %1589 = vst [vmem:[%s5 + $0xa8] sm:$0xff] %v1525
    %1590 = vst [vmem:[%s5 + $0xb0] sm:$0xff] %v1526
    %1591 = vst [vmem:[%s5 + $0xb8] sm:$0xff] %v1527
    %1592 = vst [vmem:[%s5 + $0xc0] sm:$0xff] %v1528
    %1593 = vst [vmem:[%s5 + $0xc8] sm:$0xff] %v1529
    %1594 = vst [vmem:[%s5 + $0xd0] sm:$0xff] %v1530
    %1595 = vst [vmem:[%s5 + $0xd8] sm:$0xff] %v1531
    %1596 = vst [vmem:[%s5 + $0xe0] sm:$0xff] %v1532
    %1597 = vst [vmem:[%s5 + $0xe8] sm:$0xff] %v1533
    %1598 = vst [vmem:[%s5 + $0xf0] sm:$0xff] %v1534
    %1599 = vst [vmem:[%s5 + $0xf8] sm:$0xff] %v1535
    %1600 = vst [vmem:[%s5 + $0x100] sm:$0xff] %v1536
    %1601 = vst [vmem:[%s5 + $0x108] sm:$0xff] %v1537
    %1602 = vst [vmem:[%s5 + $0x110] sm:$0xff] %v1538
    %1603 = vst [vmem:[%s5 + $0x118] sm:$0xff] %v1539
    %1604 = vst [vmem:[%s5 + $0x120] sm:$0xff] %v1540
    %1605 = vst [vmem:[%s5 + $0x128] sm:$0xff] %v1541
    %1606 = vst [vmem:[%s5 + $0x130] sm:$0xff] %v1542
    %1607 = vst [vmem:[%s5 + $0x138] sm:$0xff] %v1543
    %1608 = vst [vmem:[%s5 + $0x140] sm:$0xff] %v1544
    %1609 = vst [vmem:[%s5 + $0x148] sm:$0xff] %v1545
    %1610 = vst [vmem:[%s5 + $0x150] sm:$0xff] %v1546
    %1611 = vst [vmem:[%s5 + $0x158] sm:$0xff] %v1547
    %1612 = vst [vmem:[%s5 + $0x160] sm:$0xff] %v1548
    %1613 = vst [vmem:[%s5 + $0x168] sm:$0xff] %v1549
    %1614 = vst [vmem:[%s5 + $0x170] sm:$0xff] %v1550
    %1615 = vst [vmem:[%s5 + $0x178] sm:$0xff] %v1551
    %1616 = vst [vmem:[%s5 + $0x180] sm:$0xff] %v1552
    %1617 = vst [vmem:[%s5 + $0x188] sm:$0xff] %v1553
    %1618 = vst [vmem:[%s5 + $0x190] sm:$0xff] %v1554
    %1619 = vst [vmem:[%s5 + $0x198] sm:$0xff] %v1555
    %1620 = vst [vmem:[%s5 + $0x1a0] sm:$0xff] %v1556
    %1621 = vst [vmem:[%s5 + $0x1a8] sm:$0xff] %v1557
    %1622 = vst [vmem:[%s5 + $0x1b0] sm:$0xff] %v1558
    %1623 = vst [vmem:[%s5 + $0x1b8] sm:$0xff] %v1559
    %1624 = vst [vmem:[%s5 + $0x1c0] sm:$0xff] %v1560
    %1625 = vst [vmem:[%s5 + $0x1c8] sm:$0xff] %v1561
    %1626 = vst [vmem:[%s5 + $0x1d0] sm:$0xff] %v1562
    %1627 = vst [vmem:[%s5 + $0x1d8] sm:$0xff] %v1563
    %1628 = vst [vmem:[%s5 + $0x1e0] sm:$0xff] %v1564
    %1629 = vst [vmem:[%s5 + $0x1e8] sm:$0xff] %v1565
    %1630 = vst [vmem:[%s5 + $0x1f0] sm:$0xff] %v1566
    %1631 = vst [vmem:[%s5 + $0x1f8] sm:$0xff] %v1567
  $region33: #{_lambda_.33} parent=0 // pred_fallthru
    _
  // Predicated region
  $region34: #{_lambda_.33} parent=0 // pred_check
    _
  $region35: #{_lambda_.33} parent=0 // pred_check_branch
    %1633 = sbr.rel (0) target = $region37
  $region36: #{_lambda_.33} parent=0 // pred_region
    _
  $region37: #{_lambda_.33} parent=0 // pred_fallthru
    _
  // Predicated region
  $region38: #{_lambda_.33} parent=0 // pred_check
    _
  $region39: #{_lambda_.33} parent=0 // pred_check_branch
    %1635 = sbr.rel (0) target = $region41
  $region40: #{_lambda_.33} parent=0 // pred_region
    _
  $region41: #{_lambda_.33} parent=0 // pred_fallthru
    _

</llo_original>
